<compile_context>
chip_gen: v7x
topology: tpu7x:2x2x1
jax: 0.10.0
libtpu: 0.0.40
codegen_flags: <defaults>
</compile_context>

<pallas_src>
import functools

import jax
import jax.numpy as jnp
from jax.experimental import pallas as pl
from jax.experimental.pallas import tpu as pltpu


def calculate_feature_output_size(img_size, kernel_size, padding, stride):
    return int((img_size - kernel_size + 2 * padding) / stride) + 1


def _round_up(x, m):
    return ((x + m - 1) // m) * m


def _pick_tk(K):
    """K-tile: full K when small, else a 128-aligned divisor (<= 1152)."""
    if K <= 1152:
        return K
    for tk in (1152, 1024, 768, 640, 512, 384, 256, 128):  # all multiples of 128
        if K % tk == 0:
            return tk
    return K


def _dot_f32(x, w):
    """(M, K) @ (K, N) -> (M, N) f32 accumulation.
    Tiny K -> unrolled VPU multiply-add (avoids a nearly-empty MXU pass)."""
    K = x.shape[1]
    if K <= 16:
        acc = x[:, 0:1].astype(jnp.float32) * w[0:1, :].astype(jnp.float32)
        for k in range(1, K):
            acc = acc + (x[:, k:k + 1].astype(jnp.float32)
                         * w[k:k + 1, :].astype(jnp.float32))
        return acc
    return jnp.dot(x, w, preferred_element_type=jnp.float32)


# ---------------------------------------------------------------------------
# Fused  out = leaky_relu(x @ w + b, slope)  with (M, K)-tiled grid
# ---------------------------------------------------------------------------
def _matmul_bias_lrelu_kernel(x_ref, w_ref, b_ref, o_ref, acc_ref, *, slope):
    @pl.when(pl.program_id(1) == 0)
    def _():
        acc_ref[...] = jnp.zeros_like(acc_ref)

    acc_ref[...] += _dot_f32(x_ref[...], w_ref[...])

    @pl.when(pl.program_id(1) == pl.num_programs(1) - 1)
    def _():
        y = acc_ref[...] + b_ref[...]              # f32 epilogue
        y = jnp.where(y >= 0.0, y, slope * y)      # LeakyReLU
        o_ref[...] = y.astype(o_ref.dtype)


def fused_matmul_bias_lrelu(x, w, b, slope, out_dtype):
    """x: (M, K) bf16, w: (K, N) bf16, b: (1, N) f32 -> (M, N) out_dtype."""
    M, K = x.shape
    Kw, N = w.shape
    assert K == Kw and b.shape == (1, N)

    TM = M if M <= 512 else 256           # small layers: one full-M block
    TK = _pick_tk(K)
    Mp = _round_up(M, TM)
    if Mp != M:                           # only conv1 (1458 -> 1536, ~5%)
        x = jnp.pad(x, ((0, Mp - M), (0, 0)))

    out = pl.pallas_call(
        functools.partial(_matmul_bias_lrelu_kernel, slope=slope),
        out_shape=jax.ShapeDtypeStruct((Mp, N), out_dtype),
        grid=(Mp // TM, K // TK),
        in_specs=[
            pl.BlockSpec((TM, TK), lambda i, k: (i, k)),
            pl.BlockSpec((TK, N), lambda i, k: (k, 0)),
            pl.BlockSpec((1, N), lambda i, k: (0, 0)),
        ],
        out_specs=pl.BlockSpec((TM, N), lambda i, k: (i, 0)),
        scratch_shapes=[pltpu.VMEM((TM, N), jnp.float32)],
        compiler_params=pltpu.CompilerParams(
            dimension_semantics=("parallel", "arbitrary")),
    )(x, w, b)
    return out if Mp == M else out[:M]


# ---------------------------------------------------------------------------
# Conv2d (valid padding) in NHWC: shifted-window gather + fused Pallas matmul
# ---------------------------------------------------------------------------
def conv2d_lrelu_nhwc(x, w2d, b, stride, slope):
    """x: (B, H, W, Cin) bf16; w2d: (9*Cin, Cout) bf16, rows ordered
    (kh, kw, cin); b: (1, Cout) f32 -> (B, OH, OW, Cout) bf16."""
    B, H, W, Cin = x.shape
    k = 3
    OH = (H - k) // stride + 1
    OW = (W - k) // stride + 1
    # Strided slices + channel concat only: channels stay on the lane axis,
    # no cross-lane transposes.
    cols = [x[:, i:i + stride * OH:stride, j:j + stride * OW:stride, :]
            for i in range(k) for j in range(k)]
    cols = jnp.concatenate(cols, axis=-1).reshape(B * OH * OW, k * k * Cin)
    out = fused_matmul_bias_lrelu(cols, w2d, b, slope=slope,
                                  out_dtype=jnp.bfloat16)
    return out.reshape(B, OH, OW, w2d.shape[1])


# ---------------------------------------------------------------------------
# Fused FC head:  leaky_relu(x @ W1 + b1, 0.2) @ W2 + b2   in ONE pallas_call
# ---------------------------------------------------------------------------
def _fc_head_kernel(x_ref, w1_ref, b1_ref, w2_ref, b2_ref, o_ref):
    x = x_ref[...].astype(jnp.float32)
    h = _dot_f32(x, w1_ref[...]) + b1_ref[...]
    h = jnp.where(h >= 0.0, h, 0.2 * h)            # LeakyReLU(0.2)
    # Linear(64 -> 1): VPU multiply + lane reduction (no N=1 MXU matmul).
    o_ref[...] = jnp.sum(h * w2_ref[...], axis=-1, keepdims=True) + b2_ref[...]


def fc_head(x, w1, b1, w2, b2):
    B, F = x.shape
    H = w1.shape[1]
    return pl.pallas_call(
        _fc_head_kernel,
        out_shape=jax.ShapeDtypeStruct((B, 1), jnp.float32),
        in_specs=[
            pl.BlockSpec((B, F), lambda: (0, 0)),
            pl.BlockSpec((F, H), lambda: (0, 0)),
            pl.BlockSpec((1, H), lambda: (0, 0)),
            pl.BlockSpec((1, H), lambda: (0, 0)),
            pl.BlockSpec((1, 1), lambda: (0, 0)),
        ],
        out_specs=pl.BlockSpec((B, 1), lambda: (0, 0)),
    )(x, w1, b1, w2, b2)


# ---------------------------------------------------------------------------
# Parameters + forward
# ---------------------------------------------------------------------------
_CONV_CFG = [
    # (in_ch, out_ch, stride)
    (1, 64, 1),
    (64, 128, 2),
    (128, 128, 1),
    (128, 128, 2),
    (128, 256, 1),
    (256, 4, 2),
]


def init_params(key, img_size):
    """Random params in PyTorch layout: conv w (Cout, Cin, 3, 3); fc weights
    already transposed to (in, out) relative to torch's (out, in)."""
    N = img_size
    for _, _, s in _CONV_CFG:
        N = calculate_feature_output_size(N, 3, 0, s)
    feature_size = N
    flat = 4 * feature_size * feature_size

    params = {"convs": [], "feature_size": feature_size}
    keys = jax.random.split(key, len(_CONV_CFG) + 2)
    for idx, (cin, cout, _) in enumerate(_CONV_CFG):
        fan_in = cin * 9
        w = jax.random.normal(keys[idx], (cout, cin, 3, 3), jnp.float32) / jnp.sqrt(fan_in)
        b = jnp.zeros((cout,), jnp.float32)
        params["convs"].append((w, b))

    w1 = jax.random.normal(keys[-2], (flat, 64), jnp.float32) / jnp.sqrt(flat)
    b1 = jnp.zeros((64,), jnp.float32)
    w2 = jax.random.normal(keys[-1], (64, 1), jnp.float32) / jnp.sqrt(64.0)
    b2 = jnp.zeros((1,), jnp.float32)
    params["fc"] = [(w1, b1), (w2, b2)]
    return params


def pack_params(params):
    """Kernel-ready layout: conv weights (9*Cin, Cout) bf16 with row order
    (kh, kw, cin) matching the NHWC patch gather; biases (1, Cout) f32;
    fc2 weight stored as a (1, 64) row for the lane reduction."""
    packed = {"convs": []}
    for w, b in params["convs"]:
        cout, cin, kh, kw = w.shape
        w2d = (w.transpose(2, 3, 1, 0)           # (kh, kw, cin, cout)
                .reshape(kh * kw * cin, cout)
                .astype(jnp.bfloat16))
        packed["convs"].append((w2d, b.reshape(1, cout).astype(jnp.float32)))
    (w1, b1), (w2, b2) = params["fc"]
    packed["fc"] = (w1.astype(jnp.float32),
                    b1.reshape(1, -1).astype(jnp.float32),
                    w2.reshape(1, -1).astype(jnp.float32),
                    b2.reshape(1, 1).astype(jnp.float32))
    return packed


def discriminator_forward(packed, x):
    """x: (B, 1, H, W) f32 (PyTorch NCHW at the boundary) -> (B, 1) f32."""
    x = jnp.transpose(x, (0, 2, 3, 1)).astype(jnp.bfloat16)   # NHWC, bf16
    for (w2d, b), (_, _, stride) in zip(packed["convs"], _CONV_CFG):
        x = conv2d_lrelu_nhwc(x, w2d, b, stride=stride, slope=0.01)
    # Flatten exactly like torch .view(B, -1) on NCHW (tiny tensor here).
    B = x.shape[0]
    x = jnp.transpose(x, (0, 3, 1, 2)).reshape(B, -1)
    w1, b1, w2, b2 = packed["fc"]
    return fc_head(x, w1, b1, w2, b2)


if __name__ == "__main__":
    # Smallest img_size for which the conv stack yields feature_size >= 1 is 29.
    img_size = 29
    batch = 2

    key = jax.random.PRNGKey(0)
    pkey, xkey = jax.random.split(key)
    params = init_params(pkey, img_size)
    packed = pack_params(params)
    x = jax.random.normal(xkey, (batch, 1, img_size, img_size), jnp.float32)

    out = jax.jit(discriminator_forward)(packed, x)
    out = jax.block_until_ready(out)
    assert out.shape == (batch, 1), out.shape
    assert out.dtype == jnp.float32
    print("KERNEL_OK")
</pallas_src>

<mosaic_0001>
module attributes {stable_mosaic.version = 11 : i64} {
  func.func @_matmul_bias_lrelu_kernel(%arg0: i32, %arg1: i32, %arg2: memref<256x9xbf16, #tpu.memory_space<vmem>>, %arg3: memref<9x64xbf16, #tpu.memory_space<vmem>>, %arg4: memref<1x64xf32, #tpu.memory_space<vmem>>, %arg5: memref<256x64xbf16, #tpu.memory_space<vmem>>, %arg6: memref<256x64xf32, #tpu.memory_space<vmem>>) attributes {dimension_semantics = [#tpu.dimension_semantics<parallel>, #tpu.dimension_semantics<arbitrary>], iteration_bounds = array<i64: 6, 1>, scalar_prefetch = 0 : i64, scratch_operands = 1 : i64, tpu.core_type = #tpu.core_type<tc>, window_params = [{transform_indices = @transform_0, window_bounds = array<i64: 256, 9>}, {transform_indices = @transform_1, window_bounds = array<i64: 9, 64>}, {pipeline_mode = #tpu.pipeline_mode<synchronous>, transform_indices = @transform_2, window_bounds = array<i64: 1, 64>}, {transform_indices = @transform_3, window_bounds = array<i64: 256, 64>}]} {
    %c0_i32 = arith.constant 0 : i32
    %0 = arith.cmpi eq, %arg1, %c0_i32 : i32
    %1 = arith.extui %0 : i1 to i32
    %c0_i32_0 = arith.constant 0 : i32
    %2 = arith.cmpi ne, %1, %c0_i32_0 : i32
    scf.if %2 {
      %cst = arith.constant 0.000000e+00 : f32
      %82 = vector.broadcast %cst : f32 to vector<256x64xf32>
      %c0_10 = arith.constant 0 : index
      %c0_11 = arith.constant 0 : index
      %83 = vector.load %arg6[%c0_10, %c0_11] : memref<256x64xf32, #tpu.memory_space<vmem>>, vector<256x64xf32>
      tpu.vector_store %arg6[%c0_10, %c0_11], %82 {strides = array<i32>} : memref<256x64xf32, #tpu.memory_space<vmem>>, vector<256x64xf32>,
    } else {
    }
    %c0 = arith.constant 0 : index
    %c0_1 = arith.constant 0 : index
    %3 = vector.load %arg6[%c0, %c0_1] : memref<256x64xf32, #tpu.memory_space<vmem>>, vector<256x64xf32>
    %c0_2 = arith.constant 0 : index
    %c0_3 = arith.constant 0 : index
    %4 = vector.load %arg2[%c0_2, %c0_3] : memref<256x9xbf16, #tpu.memory_space<vmem>>, vector<256x9xbf16>
    %c0_4 = arith.constant 0 : index
    %c0_5 = arith.constant 0 : index
    %5 = vector.load %arg3[%c0_4, %c0_5] : memref<9x64xbf16, #tpu.memory_space<vmem>>, vector<9x64xbf16>
    %6 = vector.extract_strided_slice %4 {offsets = [0, 0], sizes = [256, 1], strides = [1, 1]} : vector<256x9xbf16> to vector<256x1xbf16>
    %7 = arith.extf %6 : vector<256x1xbf16> to vector<256x1xf32>
    %8 = vector.extract_strided_slice %5 {offsets = [0, 0], sizes = [1, 64], strides = [1, 1]} : vector<9x64xbf16> to vector<1x64xbf16>
    %9 = arith.extf %8 : vector<1x64xbf16> to vector<1x64xf32>
    %10 = vector.broadcast %7 : vector<256x1xf32> to vector<256x64xf32>
    %11 = vector.broadcast %9 : vector<1x64xf32> to vector<256x64xf32>
    %12 = arith.mulf %10, %11 : vector<256x64xf32>
    %13 = vector.extract_strided_slice %4 {offsets = [0, 1], sizes = [256, 1], strides = [1, 1]} : vector<256x9xbf16> to vector<256x1xbf16>
    %14 = arith.extf %13 : vector<256x1xbf16> to vector<256x1xf32>
    %15 = vector.extract_strided_slice %5 {offsets = [1, 0], sizes = [1, 64], strides = [1, 1]} : vector<9x64xbf16> to vector<1x64xbf16>
    %16 = arith.extf %15 : vector<1x64xbf16> to vector<1x64xf32>
    %17 = vector.broadcast %14 : vector<256x1xf32> to vector<256x64xf32>
    %18 = vector.broadcast %16 : vector<1x64xf32> to vector<256x64xf32>
    %19 = arith.mulf %17, %18 : vector<256x64xf32>
    %20 = arith.addf %12, %19 : vector<256x64xf32>
    %21 = vector.extract_strided_slice %4 {offsets = [0, 2], sizes = [256, 1], strides = [1, 1]} : vector<256x9xbf16> to vector<256x1xbf16>
    %22 = arith.extf %21 : vector<256x1xbf16> to vector<256x1xf32>
    %23 = vector.extract_strided_slice %5 {offsets = [2, 0], sizes = [1, 64], strides = [1, 1]} : vector<9x64xbf16> to vector<1x64xbf16>
    %24 = arith.extf %23 : vector<1x64xbf16> to vector<1x64xf32>
    %25 = vector.broadcast %22 : vector<256x1xf32> to vector<256x64xf32>
    %26 = vector.broadcast %24 : vector<1x64xf32> to vector<256x64xf32>
    %27 = arith.mulf %25, %26 : vector<256x64xf32>
    %28 = arith.addf %20, %27 : vector<256x64xf32>
    %29 = vector.extract_strided_slice %4 {offsets = [0, 3], sizes = [256, 1], strides = [1, 1]} : vector<256x9xbf16> to vector<256x1xbf16>
    %30 = arith.extf %29 : vector<256x1xbf16> to vector<256x1xf32>
    %31 = vector.extract_strided_slice %5 {offsets = [3, 0], sizes = [1, 64], strides = [1, 1]} : vector<9x64xbf16> to vector<1x64xbf16>
    %32 = arith.extf %31 : vector<1x64xbf16> to vector<1x64xf32>
    %33 = vector.broadcast %30 : vector<256x1xf32> to vector<256x64xf32>
    %34 = vector.broadcast %32 : vector<1x64xf32> to vector<256x64xf32>
    %35 = arith.mulf %33, %34 : vector<256x64xf32>
    %36 = arith.addf %28, %35 : vector<256x64xf32>
    %37 = vector.extract_strided_slice %4 {offsets = [0, 4], sizes = [256, 1], strides = [1, 1]} : vector<256x9xbf16> to vector<256x1xbf16>
    %38 = arith.extf %37 : vector<256x1xbf16> to vector<256x1xf32>
    %39 = vector.extract_strided_slice %5 {offsets = [4, 0], sizes = [1, 64], strides = [1, 1]} : vector<9x64xbf16> to vector<1x64xbf16>
    %40 = arith.extf %39 : vector<1x64xbf16> to vector<1x64xf32>
    %41 = vector.broadcast %38 : vector<256x1xf32> to vector<256x64xf32>
    %42 = vector.broadcast %40 : vector<1x64xf32> to vector<256x64xf32>
    %43 = arith.mulf %41, %42 : vector<256x64xf32>
    %44 = arith.addf %36, %43 : vector<256x64xf32>
    %45 = vector.extract_strided_slice %4 {offsets = [0, 5], sizes = [256, 1], strides = [1, 1]} : vector<256x9xbf16> to vector<256x1xbf16>
    %46 = arith.extf %45 : vector<256x1xbf16> to vector<256x1xf32>
    %47 = vector.extract_strided_slice %5 {offsets = [5, 0], sizes = [1, 64], strides = [1, 1]} : vector<9x64xbf16> to vector<1x64xbf16>
    %48 = arith.extf %47 : vector<1x64xbf16> to vector<1x64xf32>
    %49 = vector.broadcast %46 : vector<256x1xf32> to vector<256x64xf32>
    %50 = vector.broadcast %48 : vector<1x64xf32> to vector<256x64xf32>
    %51 = arith.mulf %49, %50 : vector<256x64xf32>
    %52 = arith.addf %44, %51 : vector<256x64xf32>
    %53 = vector.extract_strided_slice %4 {offsets = [0, 6], sizes = [256, 1], strides = [1, 1]} : vector<256x9xbf16> to vector<256x1xbf16>
    %54 = arith.extf %53 : vector<256x1xbf16> to vector<256x1xf32>
    %55 = vector.extract_strided_slice %5 {offsets = [6, 0], sizes = [1, 64], strides = [1, 1]} : vector<9x64xbf16> to vector<1x64xbf16>
    %56 = arith.extf %55 : vector<1x64xbf16> to vector<1x64xf32>
    %57 = vector.broadcast %54 : vector<256x1xf32> to vector<256x64xf32>
    %58 = vector.broadcast %56 : vector<1x64xf32> to vector<256x64xf32>
    %59 = arith.mulf %57, %58 : vector<256x64xf32>
    %60 = arith.addf %52, %59 : vector<256x64xf32>
    %61 = vector.extract_strided_slice %4 {offsets = [0, 7], sizes = [256, 1], strides = [1, 1]} : vector<256x9xbf16> to vector<256x1xbf16>
    %62 = arith.extf %61 : vector<256x1xbf16> to vector<256x1xf32>
    %63 = vector.extract_strided_slice %5 {offsets = [7, 0], sizes = [1, 64], strides = [1, 1]} : vector<9x64xbf16> to vector<1x64xbf16>
    %64 = arith.extf %63 : vector<1x64xbf16> to vector<1x64xf32>
    %65 = vector.broadcast %62 : vector<256x1xf32> to vector<256x64xf32>
    %66 = vector.broadcast %64 : vector<1x64xf32> to vector<256x64xf32>
    %67 = arith.mulf %65, %66 : vector<256x64xf32>
    %68 = arith.addf %60, %67 : vector<256x64xf32>
    %69 = vector.extract_strided_slice %4 {offsets = [0, 8], sizes = [256, 1], strides = [1, 1]} : vector<256x9xbf16> to vector<256x1xbf16>
    %70 = arith.extf %69 : vector<256x1xbf16> to vector<256x1xf32>
    %71 = vector.extract_strided_slice %5 {offsets = [8, 0], sizes = [1, 64], strides = [1, 1]} : vector<9x64xbf16> to vector<1x64xbf16>
    %72 = arith.extf %71 : vector<1x64xbf16> to vector<1x64xf32>
    %73 = vector.broadcast %70 : vector<256x1xf32> to vector<256x64xf32>
    %74 = vector.broadcast %72 : vector<1x64xf32> to vector<256x64xf32>
    %75 = arith.mulf %73, %74 : vector<256x64xf32>
    %76 = arith.addf %68, %75 : vector<256x64xf32>
    %77 = arith.addf %3, %76 : vector<256x64xf32>
    %c0_6 = arith.constant 0 : index
    %c0_7 = arith.constant 0 : index
    %78 = vector.load %arg6[%c0_6, %c0_7] : memref<256x64xf32, #tpu.memory_space<vmem>>, vector<256x64xf32>
    tpu.vector_store %arg6[%c0_6, %c0_7], %77 {strides = array<i32>} : memref<256x64xf32, #tpu.memory_space<vmem>>, vector<256x64xf32>,
    %c0_i32_8 = arith.constant 0 : i32
    %79 = arith.cmpi eq, %arg1, %c0_i32_8 : i32
    %80 = arith.extui %79 : i1 to i32
    %c0_i32_9 = arith.constant 0 : i32
    %81 = arith.cmpi ne, %80, %c0_i32_9 : i32
    scf.if %81 {
      %c0_10 = arith.constant 0 : index
      %c0_11 = arith.constant 0 : index
      %82 = vector.load %arg6[%c0_10, %c0_11] : memref<256x64xf32, #tpu.memory_space<vmem>>, vector<256x64xf32>
      %c0_12 = arith.constant 0 : index
      %c0_13 = arith.constant 0 : index
      %83 = vector.load %arg4[%c0_12, %c0_13] : memref<1x64xf32, #tpu.memory_space<vmem>>, vector<1x64xf32>
      %84 = vector.broadcast %83 : vector<1x64xf32> to vector<256x64xf32>
      %85 = arith.addf %82, %84 : vector<256x64xf32>
      %cst = arith.constant 0.000000e+00 : f32
      %86 = vector.broadcast %cst : f32 to vector<256x64xf32>
      %87 = arith.cmpf oge, %85, %86 : vector<256x64xf32>
      %cst_14 = arith.constant 0.00999999977 : f32
      %88 = vector.broadcast %cst_14 : f32 to vector<256x64xf32>
      %89 = arith.mulf %88, %85 : vector<256x64xf32>
      %90 = arith.select %87, %85, %89 : vector<256x64xi1>, vector<256x64xf32>
      %91 = arith.truncf %90 : vector<256x64xf32> to vector<256x64xbf16>
      %c0_15 = arith.constant 0 : index
      %c0_16 = arith.constant 0 : index
      %92 = vector.load %arg5[%c0_15, %c0_16] : memref<256x64xbf16, #tpu.memory_space<vmem>>, vector<256x64xbf16>
      tpu.vector_store %arg5[%c0_15, %c0_16], %91 {strides = array<i32>} : memref<256x64xbf16, #tpu.memory_space<vmem>>, vector<256x64xbf16>,
    } else {
    }
    return
  }
  func.func @transform_0(%arg0: i32, %arg1: i32) -> (i32, i32) {
    %c0_i32 = arith.constant 0 : i32
    return %arg0, %arg1 : i32, i32
  }
  func.func @transform_1(%arg0: i32, %arg1: i32) -> (i32, i32) {
    %c0_i32 = arith.constant 0 : i32
    %c0_i32_0 = arith.constant 0 : i32
    return %arg1, %c0_i32 : i32, i32
  }
  func.func @transform_2(%arg0: i32, %arg1: i32) -> (i32, i32) {
    %c0_i32 = arith.constant 0 : i32
    %c0_i32_0 = arith.constant 0 : i32
    %c0_i32_1 = arith.constant 0 : i32
    return %c0_i32, %c0_i32_0 : i32, i32
  }
  func.func @transform_3(%arg0: i32, %arg1: i32) -> (i32, i32) {
    %c0_i32 = arith.constant 0 : i32
    %c0_i32_0 = arith.constant 0 : i32
    return %arg0, %c0_i32 : i32, i32
  }
}

module attributes {stable_mosaic.version = 11 : i64} {
  func.func @_matmul_bias_lrelu_kernel(%arg0: i32, %arg1: i32, %arg2: memref<338x576xbf16, #tpu.memory_space<vmem>>, %arg3: memref<576x128xbf16, #tpu.memory_space<vmem>>, %arg4: memref<1x128xf32, #tpu.memory_space<vmem>>, %arg5: memref<338x128xbf16, #tpu.memory_space<vmem>>, %arg6: memref<338x128xf32, #tpu.memory_space<vmem>>) attributes {dimension_semantics = [#tpu.dimension_semantics<parallel>, #tpu.dimension_semantics<arbitrary>], iteration_bounds = array<i64: 1, 1>, scalar_prefetch = 0 : i64, scratch_operands = 1 : i64, tpu.core_type = #tpu.core_type<tc>, window_params = [{transform_indices = @transform_0, window_bounds = array<i64: 338, 576>}, {transform_indices = @transform_1, window_bounds = array<i64: 576, 128>}, {pipeline_mode = #tpu.pipeline_mode<synchronous>, transform_indices = @transform_2, window_bounds = array<i64: 1, 128>}, {transform_indices = @transform_3, window_bounds = array<i64: 338, 128>}]} {
    %c0_i32 = arith.constant 0 : i32
    %0 = arith.cmpi eq, %arg1, %c0_i32 : i32
    %1 = arith.extui %0 : i1 to i32
    %c0_i32_0 = arith.constant 0 : i32
    %2 = arith.cmpi ne, %1, %c0_i32_0 : i32
    scf.if %2 {
      %cst_10 = arith.constant 0.000000e+00 : f32
      %12 = vector.broadcast %cst_10 : f32 to vector<338x128xf32>
      %c0_11 = arith.constant 0 : index
      %c0_12 = arith.constant 0 : index
      %13 = vector.load %arg6[%c0_11, %c0_12] : memref<338x128xf32, #tpu.memory_space<vmem>>, vector<338x128xf32>
      tpu.vector_store %arg6[%c0_11, %c0_12], %12 {strides = array<i32>} : memref<338x128xf32, #tpu.memory_space<vmem>>, vector<338x128xf32>,
    } else {
    }
    %c0 = arith.constant 0 : index
    %c0_1 = arith.constant 0 : index
    %3 = vector.load %arg6[%c0, %c0_1] : memref<338x128xf32, #tpu.memory_space<vmem>>, vector<338x128xf32>
    %c0_2 = arith.constant 0 : index
    %c0_3 = arith.constant 0 : index
    %4 = vector.load %arg2[%c0_2, %c0_3] : memref<338x576xbf16, #tpu.memory_space<vmem>>, vector<338x576xbf16>
    %c0_4 = arith.constant 0 : index
    %c0_5 = arith.constant 0 : index
    %5 = vector.load %arg3[%c0_4, %c0_5] : memref<576x128xbf16, #tpu.memory_space<vmem>>, vector<576x128xbf16>
    %cst = arith.constant dense<0.000000e+00> : vector<338x128xf32>
    %6 = tpu.matmul %4, %5, %cst {dimension_numbers = #tpu.dot_dimension_numbers<[1], [0], [0], [1], [0, 0, 1, 1], [], []>} : vector<338x576xbf16>, vector<576x128xbf16>, vector<338x128xf32> -> vector<338x128xf32>
    %7 = arith.addf %3, %6 : vector<338x128xf32>
    %c0_6 = arith.constant 0 : index
    %c0_7 = arith.constant 0 : index
    %8 = vector.load %arg6[%c0_6, %c0_7] : memref<338x128xf32, #tpu.memory_space<vmem>>, vector<338x128xf32>
    tpu.vector_store %arg6[%c0_6, %c0_7], %7 {strides = array<i32>} : memref<338x128xf32, #tpu.memory_space<vmem>>, vector<338x128xf32>,
    %c0_i32_8 = arith.constant 0 : i32
    %9 = arith.cmpi eq, %arg1, %c0_i32_8 : i32
    %10 = arith.extui %9 : i1 to i32
    %c0_i32_9 = arith.constant 0 : i32
    %11 = arith.cmpi ne, %10, %c0_i32_9 : i32
    scf.if %11 {
      %c0_10 = arith.constant 0 : index
      %c0_11 = arith.constant 0 : index
      %12 = vector.load %arg6[%c0_10, %c0_11] : memref<338x128xf32, #tpu.memory_space<vmem>>, vector<338x128xf32>
      %c0_12 = arith.constant 0 : index
      %c0_13 = arith.constant 0 : index
      %13 = vector.load %arg4[%c0_12, %c0_13] : memref<1x128xf32, #tpu.memory_space<vmem>>, vector<1x128xf32>
      %14 = vector.broadcast %13 : vector<1x128xf32> to vector<338x128xf32>
      %15 = arith.addf %12, %14 : vector<338x128xf32>
      %cst_14 = arith.constant 0.000000e+00 : f32
      %16 = vector.broadcast %cst_14 : f32 to vector<338x128xf32>
      %17 = arith.cmpf oge, %15, %16 : vector<338x128xf32>
      %cst_15 = arith.constant 0.00999999977 : f32
      %18 = vector.broadcast %cst_15 : f32 to vector<338x128xf32>
      %19 = arith.mulf %18, %15 : vector<338x128xf32>
      %20 = arith.select %17, %15, %19 : vector<338x128xi1>, vector<338x128xf32>
      %21 = arith.truncf %20 : vector<338x128xf32> to vector<338x128xbf16>
      %c0_16 = arith.constant 0 : index
      %c0_17 = arith.constant 0 : index
      %22 = vector.load %arg5[%c0_16, %c0_17] : memref<338x128xbf16, #tpu.memory_space<vmem>>, vector<338x128xbf16>
      tpu.vector_store %arg5[%c0_16, %c0_17], %21 {strides = array<i32>} : memref<338x128xbf16, #tpu.memory_space<vmem>>, vector<338x128xbf16>,
    } else {
    }
    return
  }
  func.func @transform_0(%arg0: i32, %arg1: i32) -> (i32, i32) {
    %c0_i32 = arith.constant 0 : i32
    return %arg0, %arg1 : i32, i32
  }
  func.func @transform_1(%arg0: i32, %arg1: i32) -> (i32, i32) {
    %c0_i32 = arith.constant 0 : i32
    %c0_i32_0 = arith.constant 0 : i32
    return %arg1, %c0_i32 : i32, i32
  }
  func.func @transform_2(%arg0: i32, %arg1: i32) -> (i32, i32) {
    %c0_i32 = arith.constant 0 : i32
    %c0_i32_0 = arith.constant 0 : i32
    %c0_i32_1 = arith.constant 0 : i32
    return %c0_i32, %c0_i32_0 : i32, i32
  }
  func.func @transform_3(%arg0: i32, %arg1: i32) -> (i32, i32) {
    %c0_i32 = arith.constant 0 : i32
    %c0_i32_0 = arith.constant 0 : i32
    return %arg0, %c0_i32 : i32, i32
  }
}

module attributes {stable_mosaic.version = 11 : i64} {
  func.func @_matmul_bias_lrelu_kernel(%arg0: i32, %arg1: i32, %arg2: memref<242x1152xbf16, #tpu.memory_space<vmem>>, %arg3: memref<1152x128xbf16, #tpu.memory_space<vmem>>, %arg4: memref<1x128xf32, #tpu.memory_space<vmem>>, %arg5: memref<242x128xbf16, #tpu.memory_space<vmem>>, %arg6: memref<242x128xf32, #tpu.memory_space<vmem>>) attributes {dimension_semantics = [#tpu.dimension_semantics<parallel>, #tpu.dimension_semantics<arbitrary>], iteration_bounds = array<i64: 1, 1>, scalar_prefetch = 0 : i64, scratch_operands = 1 : i64, tpu.core_type = #tpu.core_type<tc>, window_params = [{transform_indices = @transform_0, window_bounds = array<i64: 242, 1152>}, {transform_indices = @transform_1, window_bounds = array<i64: 1152, 128>}, {pipeline_mode = #tpu.pipeline_mode<synchronous>, transform_indices = @transform_2, window_bounds = array<i64: 1, 128>}, {transform_indices = @transform_3, window_bounds = array<i64: 242, 128>}]} {
    %c0_i32 = arith.constant 0 : i32
    %0 = arith.cmpi eq, %arg1, %c0_i32 : i32
    %1 = arith.extui %0 : i1 to i32
    %c0_i32_0 = arith.constant 0 : i32
    %2 = arith.cmpi ne, %1, %c0_i32_0 : i32
    scf.if %2 {
      %cst_10 = arith.constant 0.000000e+00 : f32
      %12 = vector.broadcast %cst_10 : f32 to vector<242x128xf32>
      %c0_11 = arith.constant 0 : index
      %c0_12 = arith.constant 0 : index
      %13 = vector.load %arg6[%c0_11, %c0_12] : memref<242x128xf32, #tpu.memory_space<vmem>>, vector<242x128xf32>
      tpu.vector_store %arg6[%c0_11, %c0_12], %12 {strides = array<i32>} : memref<242x128xf32, #tpu.memory_space<vmem>>, vector<242x128xf32>,
    } else {
    }
    %c0 = arith.constant 0 : index
    %c0_1 = arith.constant 0 : index
    %3 = vector.load %arg6[%c0, %c0_1] : memref<242x128xf32, #tpu.memory_space<vmem>>, vector<242x128xf32>
    %c0_2 = arith.constant 0 : index
    %c0_3 = arith.constant 0 : index
    %4 = vector.load %arg2[%c0_2, %c0_3] : memref<242x1152xbf16, #tpu.memory_space<vmem>>, vector<242x1152xbf16>
    %c0_4 = arith.constant 0 : index
    %c0_5 = arith.constant 0 : index
    %5 = vector.load %arg3[%c0_4, %c0_5] : memref<1152x128xbf16, #tpu.memory_space<vmem>>, vector<1152x128xbf16>
    %cst = arith.constant dense<0.000000e+00> : vector<242x128xf32>
    %6 = tpu.matmul %4, %5, %cst {dimension_numbers = #tpu.dot_dimension_numbers<[1], [0], [0], [1], [0, 0, 1, 1], [], []>} : vector<242x1152xbf16>, vector<1152x128xbf16>, vector<242x128xf32> -> vector<242x128xf32>
    %7 = arith.addf %3, %6 : vector<242x128xf32>
    %c0_6 = arith.constant 0 : index
    %c0_7 = arith.constant 0 : index
    %8 = vector.load %arg6[%c0_6, %c0_7] : memref<242x128xf32, #tpu.memory_space<vmem>>, vector<242x128xf32>
    tpu.vector_store %arg6[%c0_6, %c0_7], %7 {strides = array<i32>} : memref<242x128xf32, #tpu.memory_space<vmem>>, vector<242x128xf32>,
    %c0_i32_8 = arith.constant 0 : i32
    %9 = arith.cmpi eq, %arg1, %c0_i32_8 : i32
    %10 = arith.extui %9 : i1 to i32
    %c0_i32_9 = arith.constant 0 : i32
    %11 = arith.cmpi ne, %10, %c0_i32_9 : i32
    scf.if %11 {
      %c0_10 = arith.constant 0 : index
      %c0_11 = arith.constant 0 : index
      %12 = vector.load %arg6[%c0_10, %c0_11] : memref<242x128xf32, #tpu.memory_space<vmem>>, vector<242x128xf32>
      %c0_12 = arith.constant 0 : index
      %c0_13 = arith.constant 0 : index
      %13 = vector.load %arg4[%c0_12, %c0_13] : memref<1x128xf32, #tpu.memory_space<vmem>>, vector<1x128xf32>
      %14 = vector.broadcast %13 : vector<1x128xf32> to vector<242x128xf32>
      %15 = arith.addf %12, %14 : vector<242x128xf32>
      %cst_14 = arith.constant 0.000000e+00 : f32
      %16 = vector.broadcast %cst_14 : f32 to vector<242x128xf32>
      %17 = arith.cmpf oge, %15, %16 : vector<242x128xf32>
      %cst_15 = arith.constant 0.00999999977 : f32
      %18 = vector.broadcast %cst_15 : f32 to vector<242x128xf32>
      %19 = arith.mulf %18, %15 : vector<242x128xf32>
      %20 = arith.select %17, %15, %19 : vector<242x128xi1>, vector<242x128xf32>
      %21 = arith.truncf %20 : vector<242x128xf32> to vector<242x128xbf16>
      %c0_16 = arith.constant 0 : index
      %c0_17 = arith.constant 0 : index
      %22 = vector.load %arg5[%c0_16, %c0_17] : memref<242x128xbf16, #tpu.memory_space<vmem>>, vector<242x128xbf16>
      tpu.vector_store %arg5[%c0_16, %c0_17], %21 {strides = array<i32>} : memref<242x128xbf16, #tpu.memory_space<vmem>>, vector<242x128xbf16>,
    } else {
    }
    return
  }
  func.func @transform_0(%arg0: i32, %arg1: i32) -> (i32, i32) {
    %c0_i32 = arith.constant 0 : i32
    return %arg0, %arg1 : i32, i32
  }
  func.func @transform_1(%arg0: i32, %arg1: i32) -> (i32, i32) {
    %c0_i32 = arith.constant 0 : i32
    %c0_i32_0 = arith.constant 0 : i32
    return %arg1, %c0_i32 : i32, i32
  }
  func.func @transform_2(%arg0: i32, %arg1: i32) -> (i32, i32) {
    %c0_i32 = arith.constant 0 : i32
    %c0_i32_0 = arith.constant 0 : i32
    %c0_i32_1 = arith.constant 0 : i32
    return %c0_i32, %c0_i32_0 : i32, i32
  }
  func.func @transform_3(%arg0: i32, %arg1: i32) -> (i32, i32) {
    %c0_i32 = arith.constant 0 : i32
    %c0_i32_0 = arith.constant 0 : i32
    return %arg0, %c0_i32 : i32, i32
  }
}

module attributes {stable_mosaic.version = 11 : i64} {
  func.func @_matmul_bias_lrelu_kernel(%arg0: i32, %arg1: i32, %arg2: memref<50x1152xbf16, #tpu.memory_space<vmem>>, %arg3: memref<1152x128xbf16, #tpu.memory_space<vmem>>, %arg4: memref<1x128xf32, #tpu.memory_space<vmem>>, %arg5: memref<50x128xbf16, #tpu.memory_space<vmem>>, %arg6: memref<50x128xf32, #tpu.memory_space<vmem>>) attributes {dimension_semantics = [#tpu.dimension_semantics<parallel>, #tpu.dimension_semantics<arbitrary>], iteration_bounds = array<i64: 1, 1>, scalar_prefetch = 0 : i64, scratch_operands = 1 : i64, tpu.core_type = #tpu.core_type<tc>, window_params = [{transform_indices = @transform_0, window_bounds = array<i64: 50, 1152>}, {transform_indices = @transform_1, window_bounds = array<i64: 1152, 128>}, {pipeline_mode = #tpu.pipeline_mode<synchronous>, transform_indices = @transform_2, window_bounds = array<i64: 1, 128>}, {transform_indices = @transform_3, window_bounds = array<i64: 50, 128>}]} {
    %c0_i32 = arith.constant 0 : i32
    %0 = arith.cmpi eq, %arg1, %c0_i32 : i32
    %1 = arith.extui %0 : i1 to i32
    %c0_i32_0 = arith.constant 0 : i32
    %2 = arith.cmpi ne, %1, %c0_i32_0 : i32
    scf.if %2 {
      %cst_10 = arith.constant 0.000000e+00 : f32
      %12 = vector.broadcast %cst_10 : f32 to vector<50x128xf32>
      %c0_11 = arith.constant 0 : index
      %c0_12 = arith.constant 0 : index
      %13 = vector.load %arg6[%c0_11, %c0_12] : memref<50x128xf32, #tpu.memory_space<vmem>>, vector<50x128xf32>
      tpu.vector_store %arg6[%c0_11, %c0_12], %12 {strides = array<i32>} : memref<50x128xf32, #tpu.memory_space<vmem>>, vector<50x128xf32>,
    } else {
    }
    %c0 = arith.constant 0 : index
    %c0_1 = arith.constant 0 : index
    %3 = vector.load %arg6[%c0, %c0_1] : memref<50x128xf32, #tpu.memory_space<vmem>>, vector<50x128xf32>
    %c0_2 = arith.constant 0 : index
    %c0_3 = arith.constant 0 : index
    %4 = vector.load %arg2[%c0_2, %c0_3] : memref<50x1152xbf16, #tpu.memory_space<vmem>>, vector<50x1152xbf16>
    %c0_4 = arith.constant 0 : index
    %c0_5 = arith.constant 0 : index
    %5 = vector.load %arg3[%c0_4, %c0_5] : memref<1152x128xbf16, #tpu.memory_space<vmem>>, vector<1152x128xbf16>
    %cst = arith.constant dense<0.000000e+00> : vector<50x128xf32>
    %6 = tpu.matmul %4, %5, %cst {dimension_numbers = #tpu.dot_dimension_numbers<[1], [0], [0], [1], [0, 0, 1, 1], [], []>} : vector<50x1152xbf16>, vector<1152x128xbf16>, vector<50x128xf32> -> vector<50x128xf32>
    %7 = arith.addf %3, %6 : vector<50x128xf32>
    %c0_6 = arith.constant 0 : index
    %c0_7 = arith.constant 0 : index
    %8 = vector.load %arg6[%c0_6, %c0_7] : memref<50x128xf32, #tpu.memory_space<vmem>>, vector<50x128xf32>
    tpu.vector_store %arg6[%c0_6, %c0_7], %7 {strides = array<i32>} : memref<50x128xf32, #tpu.memory_space<vmem>>, vector<50x128xf32>,
    %c0_i32_8 = arith.constant 0 : i32
    %9 = arith.cmpi eq, %arg1, %c0_i32_8 : i32
    %10 = arith.extui %9 : i1 to i32
    %c0_i32_9 = arith.constant 0 : i32
    %11 = arith.cmpi ne, %10, %c0_i32_9 : i32
    scf.if %11 {
      %c0_10 = arith.constant 0 : index
      %c0_11 = arith.constant 0 : index
      %12 = vector.load %arg6[%c0_10, %c0_11] : memref<50x128xf32, #tpu.memory_space<vmem>>, vector<50x128xf32>
      %c0_12 = arith.constant 0 : index
      %c0_13 = arith.constant 0 : index
      %13 = vector.load %arg4[%c0_12, %c0_13] : memref<1x128xf32, #tpu.memory_space<vmem>>, vector<1x128xf32>
      %14 = vector.broadcast %13 : vector<1x128xf32> to vector<50x128xf32>
      %15 = arith.addf %12, %14 : vector<50x128xf32>
      %cst_14 = arith.constant 0.000000e+00 : f32
      %16 = vector.broadcast %cst_14 : f32 to vector<50x128xf32>
      %17 = arith.cmpf oge, %15, %16 : vector<50x128xf32>
      %cst_15 = arith.constant 0.00999999977 : f32
      %18 = vector.broadcast %cst_15 : f32 to vector<50x128xf32>
      %19 = arith.mulf %18, %15 : vector<50x128xf32>
      %20 = arith.select %17, %15, %19 : vector<50x128xi1>, vector<50x128xf32>
      %21 = arith.truncf %20 : vector<50x128xf32> to vector<50x128xbf16>
      %c0_16 = arith.constant 0 : index
      %c0_17 = arith.constant 0 : index
      %22 = vector.load %arg5[%c0_16, %c0_17] : memref<50x128xbf16, #tpu.memory_space<vmem>>, vector<50x128xbf16>
      tpu.vector_store %arg5[%c0_16, %c0_17], %21 {strides = array<i32>} : memref<50x128xbf16, #tpu.memory_space<vmem>>, vector<50x128xbf16>,
    } else {
    }
    return
  }
  func.func @transform_0(%arg0: i32, %arg1: i32) -> (i32, i32) {
    %c0_i32 = arith.constant 0 : i32
    return %arg0, %arg1 : i32, i32
  }
  func.func @transform_1(%arg0: i32, %arg1: i32) -> (i32, i32) {
    %c0_i32 = arith.constant 0 : i32
    %c0_i32_0 = arith.constant 0 : i32
    return %arg1, %c0_i32 : i32, i32
  }
  func.func @transform_2(%arg0: i32, %arg1: i32) -> (i32, i32) {
    %c0_i32 = arith.constant 0 : i32
    %c0_i32_0 = arith.constant 0 : i32
    %c0_i32_1 = arith.constant 0 : i32
    return %c0_i32, %c0_i32_0 : i32, i32
  }
  func.func @transform_3(%arg0: i32, %arg1: i32) -> (i32, i32) {
    %c0_i32 = arith.constant 0 : i32
    %c0_i32_0 = arith.constant 0 : i32
    return %arg0, %c0_i32 : i32, i32
  }
}

module attributes {stable_mosaic.version = 11 : i64} {
  func.func @_matmul_bias_lrelu_kernel(%arg0: i32, %arg1: i32, %arg2: memref<18x1152xbf16, #tpu.memory_space<vmem>>, %arg3: memref<1152x256xbf16, #tpu.memory_space<vmem>>, %arg4: memref<1x256xf32, #tpu.memory_space<vmem>>, %arg5: memref<18x256xbf16, #tpu.memory_space<vmem>>, %arg6: memref<18x256xf32, #tpu.memory_space<vmem>>) attributes {dimension_semantics = [#tpu.dimension_semantics<parallel>, #tpu.dimension_semantics<arbitrary>], iteration_bounds = array<i64: 1, 1>, scalar_prefetch = 0 : i64, scratch_operands = 1 : i64, tpu.core_type = #tpu.core_type<tc>, window_params = [{transform_indices = @transform_0, window_bounds = array<i64: 18, 1152>}, {transform_indices = @transform_1, window_bounds = array<i64: 1152, 256>}, {pipeline_mode = #tpu.pipeline_mode<synchronous>, transform_indices = @transform_2, window_bounds = array<i64: 1, 256>}, {transform_indices = @transform_3, window_bounds = array<i64: 18, 256>}]} {
    %c0_i32 = arith.constant 0 : i32
    %0 = arith.cmpi eq, %arg1, %c0_i32 : i32
    %1 = arith.extui %0 : i1 to i32
    %c0_i32_0 = arith.constant 0 : i32
    %2 = arith.cmpi ne, %1, %c0_i32_0 : i32
    scf.if %2 {
      %cst_10 = arith.constant 0.000000e+00 : f32
      %12 = vector.broadcast %cst_10 : f32 to vector<18x256xf32>
      %c0_11 = arith.constant 0 : index
      %c0_12 = arith.constant 0 : index
      %13 = vector.load %arg6[%c0_11, %c0_12] : memref<18x256xf32, #tpu.memory_space<vmem>>, vector<18x256xf32>
      tpu.vector_store %arg6[%c0_11, %c0_12], %12 {strides = array<i32>} : memref<18x256xf32, #tpu.memory_space<vmem>>, vector<18x256xf32>,
    } else {
    }
    %c0 = arith.constant 0 : index
    %c0_1 = arith.constant 0 : index
    %3 = vector.load %arg6[%c0, %c0_1] : memref<18x256xf32, #tpu.memory_space<vmem>>, vector<18x256xf32>
    %c0_2 = arith.constant 0 : index
    %c0_3 = arith.constant 0 : index
    %4 = vector.load %arg2[%c0_2, %c0_3] : memref<18x1152xbf16, #tpu.memory_space<vmem>>, vector<18x1152xbf16>
    %c0_4 = arith.constant 0 : index
    %c0_5 = arith.constant 0 : index
    %5 = vector.load %arg3[%c0_4, %c0_5] : memref<1152x256xbf16, #tpu.memory_space<vmem>>, vector<1152x256xbf16>
    %cst = arith.constant dense<0.000000e+00> : vector<18x256xf32>
    %6 = tpu.matmul %4, %5, %cst {dimension_numbers = #tpu.dot_dimension_numbers<[1], [0], [0], [1], [0, 0, 1, 1], [], []>} : vector<18x1152xbf16>, vector<1152x256xbf16>, vector<18x256xf32> -> vector<18x256xf32>
    %7 = arith.addf %3, %6 : vector<18x256xf32>
    %c0_6 = arith.constant 0 : index
    %c0_7 = arith.constant 0 : index
    %8 = vector.load %arg6[%c0_6, %c0_7] : memref<18x256xf32, #tpu.memory_space<vmem>>, vector<18x256xf32>
    tpu.vector_store %arg6[%c0_6, %c0_7], %7 {strides = array<i32>} : memref<18x256xf32, #tpu.memory_space<vmem>>, vector<18x256xf32>,
    %c0_i32_8 = arith.constant 0 : i32
    %9 = arith.cmpi eq, %arg1, %c0_i32_8 : i32
    %10 = arith.extui %9 : i1 to i32
    %c0_i32_9 = arith.constant 0 : i32
    %11 = arith.cmpi ne, %10, %c0_i32_9 : i32
    scf.if %11 {
      %c0_10 = arith.constant 0 : index
      %c0_11 = arith.constant 0 : index
      %12 = vector.load %arg6[%c0_10, %c0_11] : memref<18x256xf32, #tpu.memory_space<vmem>>, vector<18x256xf32>
      %c0_12 = arith.constant 0 : index
      %c0_13 = arith.constant 0 : index
      %13 = vector.load %arg4[%c0_12, %c0_13] : memref<1x256xf32, #tpu.memory_space<vmem>>, vector<1x256xf32>
      %14 = vector.broadcast %13 : vector<1x256xf32> to vector<18x256xf32>
      %15 = arith.addf %12, %14 : vector<18x256xf32>
      %cst_14 = arith.constant 0.000000e+00 : f32
      %16 = vector.broadcast %cst_14 : f32 to vector<18x256xf32>
      %17 = arith.cmpf oge, %15, %16 : vector<18x256xf32>
      %cst_15 = arith.constant 0.00999999977 : f32
      %18 = vector.broadcast %cst_15 : f32 to vector<18x256xf32>
      %19 = arith.mulf %18, %15 : vector<18x256xf32>
      %20 = arith.select %17, %15, %19 : vector<18x256xi1>, vector<18x256xf32>
      %21 = arith.truncf %20 : vector<18x256xf32> to vector<18x256xbf16>
      %c0_16 = arith.constant 0 : index
      %c0_17 = arith.constant 0 : index
      %22 = vector.load %arg5[%c0_16, %c0_17] : memref<18x256xbf16, #tpu.memory_space<vmem>>, vector<18x256xbf16>
      tpu.vector_store %arg5[%c0_16, %c0_17], %21 {strides = array<i32>} : memref<18x256xbf16, #tpu.memory_space<vmem>>, vector<18x256xbf16>,
    } else {
    }
    return
  }
  func.func @transform_0(%arg0: i32, %arg1: i32) -> (i32, i32) {
    %c0_i32 = arith.constant 0 : i32
    return %arg0, %arg1 : i32, i32
  }
  func.func @transform_1(%arg0: i32, %arg1: i32) -> (i32, i32) {
    %c0_i32 = arith.constant 0 : i32
    %c0_i32_0 = arith.constant 0 : i32
    return %arg1, %c0_i32 : i32, i32
  }
  func.func @transform_2(%arg0: i32, %arg1: i32) -> (i32, i32) {
    %c0_i32 = arith.constant 0 : i32
    %c0_i32_0 = arith.constant 0 : i32
    %c0_i32_1 = arith.constant 0 : i32
    return %c0_i32, %c0_i32_0 : i32, i32
  }
  func.func @transform_3(%arg0: i32, %arg1: i32) -> (i32, i32) {
    %c0_i32 = arith.constant 0 : i32
    %c0_i32_0 = arith.constant 0 : i32
    return %arg0, %c0_i32 : i32, i32
  }
}

module attributes {stable_mosaic.version = 11 : i64} {
  func.func @_matmul_bias_lrelu_kernel(%arg0: i32, %arg1: i32, %arg2: memref<2x1152xbf16, #tpu.memory_space<vmem>>, %arg3: memref<1152x4xbf16, #tpu.memory_space<vmem>>, %arg4: memref<1x4xf32, #tpu.memory_space<vmem>>, %arg5: memref<2x4xbf16, #tpu.memory_space<vmem>>, %arg6: memref<2x4xf32, #tpu.memory_space<vmem>>) attributes {dimension_semantics = [#tpu.dimension_semantics<parallel>, #tpu.dimension_semantics<arbitrary>], iteration_bounds = array<i64: 1, 2>, scalar_prefetch = 0 : i64, scratch_operands = 1 : i64, tpu.core_type = #tpu.core_type<tc>, window_params = [{transform_indices = @transform_0, window_bounds = array<i64: 2, 1152>}, {transform_indices = @transform_1, window_bounds = array<i64: 1152, 4>}, {pipeline_mode = #tpu.pipeline_mode<synchronous>, transform_indices = @transform_2, window_bounds = array<i64: 1, 4>}, {transform_indices = @transform_3, window_bounds = array<i64: 2, 4>}]} {
    %c0_i32 = arith.constant 0 : i32
    %0 = arith.cmpi eq, %arg1, %c0_i32 : i32
    %1 = arith.extui %0 : i1 to i32
    %c0_i32_0 = arith.constant 0 : i32
    %2 = arith.cmpi ne, %1, %c0_i32_0 : i32
    scf.if %2 {
      %cst_9 = arith.constant 0.000000e+00 : f32
      %12 = vector.broadcast %cst_9 : f32 to vector<2x4xf32>
      %c0_10 = arith.constant 0 : index
      %c0_11 = arith.constant 0 : index
      %13 = vector.load %arg6[%c0_10, %c0_11] : memref<2x4xf32, #tpu.memory_space<vmem>>, vector<2x4xf32>
      tpu.vector_store %arg6[%c0_10, %c0_11], %12 {strides = array<i32>} : memref<2x4xf32, #tpu.memory_space<vmem>>, vector<2x4xf32>,
    } else {
    }
    %c0 = arith.constant 0 : index
    %c0_1 = arith.constant 0 : index
    %3 = vector.load %arg6[%c0, %c0_1] : memref<2x4xf32, #tpu.memory_space<vmem>>, vector<2x4xf32>
    %c0_2 = arith.constant 0 : index
    %c0_3 = arith.constant 0 : index
    %4 = vector.load %arg2[%c0_2, %c0_3] : memref<2x1152xbf16, #tpu.memory_space<vmem>>, vector<2x1152xbf16>
    %c0_4 = arith.constant 0 : index
    %c0_5 = arith.constant 0 : index
    %5 = vector.load %arg3[%c0_4, %c0_5] : memref<1152x4xbf16, #tpu.memory_space<vmem>>, vector<1152x4xbf16>
    %cst = arith.constant dense<0.000000e+00> : vector<2x4xf32>
    %6 = tpu.matmul %4, %5, %cst {dimension_numbers = #tpu.dot_dimension_numbers<[1], [0], [0], [1], [0, 0, 1, 1], [], []>} : vector<2x1152xbf16>, vector<1152x4xbf16>, vector<2x4xf32> -> vector<2x4xf32>
    %7 = arith.addf %3, %6 : vector<2x4xf32>
    %c0_6 = arith.constant 0 : index
    %c0_7 = arith.constant 0 : index
    %8 = vector.load %arg6[%c0_6, %c0_7] : memref<2x4xf32, #tpu.memory_space<vmem>>, vector<2x4xf32>
    tpu.vector_store %arg6[%c0_6, %c0_7], %7 {strides = array<i32>} : memref<2x4xf32, #tpu.memory_space<vmem>>, vector<2x4xf32>,
    %c1_i32 = arith.constant 1 : i32
    %9 = arith.cmpi eq, %arg1, %c1_i32 : i32
    %10 = arith.extui %9 : i1 to i32
    %c0_i32_8 = arith.constant 0 : i32
    %11 = arith.cmpi ne, %10, %c0_i32_8 : i32
    scf.if %11 {
      %c0_9 = arith.constant 0 : index
      %c0_10 = arith.constant 0 : index
      %12 = vector.load %arg6[%c0_9, %c0_10] : memref<2x4xf32, #tpu.memory_space<vmem>>, vector<2x4xf32>
      %c0_11 = arith.constant 0 : index
      %c0_12 = arith.constant 0 : index
      %13 = vector.load %arg4[%c0_11, %c0_12] : memref<1x4xf32, #tpu.memory_space<vmem>>, vector<1x4xf32>
      %14 = vector.broadcast %13 : vector<1x4xf32> to vector<2x4xf32>
      %15 = arith.addf %12, %14 : vector<2x4xf32>
      %cst_13 = arith.constant 0.000000e+00 : f32
      %16 = vector.broadcast %cst_13 : f32 to vector<2x4xf32>
      %17 = arith.cmpf oge, %15, %16 : vector<2x4xf32>
      %cst_14 = arith.constant 0.00999999977 : f32
      %18 = vector.broadcast %cst_14 : f32 to vector<2x4xf32>
      %19 = arith.mulf %18, %15 : vector<2x4xf32>
      %20 = arith.select %17, %15, %19 : vector<2x4xi1>, vector<2x4xf32>
      %21 = arith.truncf %20 : vector<2x4xf32> to vector<2x4xbf16>
      %c0_15 = arith.constant 0 : index
      %c0_16 = arith.constant 0 : index
      %22 = vector.load %arg5[%c0_15, %c0_16] : memref<2x4xbf16, #tpu.memory_space<vmem>>, vector<2x4xbf16>
      tpu.vector_store %arg5[%c0_15, %c0_16], %21 {strides = array<i32>} : memref<2x4xbf16, #tpu.memory_space<vmem>>, vector<2x4xbf16>,
    } else {
    }
    return
  }
  func.func @transform_0(%arg0: i32, %arg1: i32) -> (i32, i32) {
    %c0_i32 = arith.constant 0 : i32
    return %arg0, %arg1 : i32, i32
  }
  func.func @transform_1(%arg0: i32, %arg1: i32) -> (i32, i32) {
    %c0_i32 = arith.constant 0 : i32
    %c0_i32_0 = arith.constant 0 : i32
    return %arg1, %c0_i32 : i32, i32
  }
  func.func @transform_2(%arg0: i32, %arg1: i32) -> (i32, i32) {
    %c0_i32 = arith.constant 0 : i32
    %c0_i32_0 = arith.constant 0 : i32
    %c0_i32_1 = arith.constant 0 : i32
    return %c0_i32, %c0_i32_0 : i32, i32
  }
  func.func @transform_3(%arg0: i32, %arg1: i32) -> (i32, i32) {
    %c0_i32 = arith.constant 0 : i32
    %c0_i32_0 = arith.constant 0 : i32
    return %arg0, %c0_i32 : i32, i32
  }
}

module attributes {stable_mosaic.version = 11 : i64} {
  func.func @_fc_head_kernel(%arg0: memref<2x4xbf16, #tpu.memory_space<vmem>>, %arg1: memref<4x64xf32, #tpu.memory_space<vmem>>, %arg2: memref<1x64xf32, #tpu.memory_space<vmem>>, %arg3: memref<1x64xf32, #tpu.memory_space<vmem>>, %arg4: memref<1x1xf32, #tpu.memory_space<vmem>>, %arg5: memref<2x1xf32, #tpu.memory_space<vmem>>) attributes {dimension_semantics = [], scalar_prefetch = 0 : i64, scratch_operands = 0 : i64, tpu.core_type = #tpu.core_type<tc>} {
    %c0 = arith.constant 0 : index
    %c0_0 = arith.constant 0 : index
    %0 = vector.load %arg0[%c0, %c0_0] : memref<2x4xbf16, #tpu.memory_space<vmem>>, vector<2x4xbf16>
    %1 = arith.extf %0 : vector<2x4xbf16> to vector<2x4xf32>
    %c0_1 = arith.constant 0 : index
    %c0_2 = arith.constant 0 : index
    %2 = vector.load %arg1[%c0_1, %c0_2] : memref<4x64xf32, #tpu.memory_space<vmem>>, vector<4x64xf32>
    %3 = vector.extract_strided_slice %1 {offsets = [0, 0], sizes = [2, 1], strides = [1, 1]} : vector<2x4xf32> to vector<2x1xf32>
    %4 = vector.extract_strided_slice %2 {offsets = [0, 0], sizes = [1, 64], strides = [1, 1]} : vector<4x64xf32> to vector<1x64xf32>
    %5 = vector.broadcast %3 : vector<2x1xf32> to vector<2x64xf32>
    %6 = vector.broadcast %4 : vector<1x64xf32> to vector<2x64xf32>
    %7 = arith.mulf %5, %6 : vector<2x64xf32>
    %8 = vector.extract_strided_slice %1 {offsets = [0, 1], sizes = [2, 1], strides = [1, 1]} : vector<2x4xf32> to vector<2x1xf32>
    %9 = vector.extract_strided_slice %2 {offsets = [1, 0], sizes = [1, 64], strides = [1, 1]} : vector<4x64xf32> to vector<1x64xf32>
    %10 = vector.broadcast %8 : vector<2x1xf32> to vector<2x64xf32>
    %11 = vector.broadcast %9 : vector<1x64xf32> to vector<2x64xf32>
    %12 = arith.mulf %10, %11 : vector<2x64xf32>
    %13 = arith.addf %7, %12 : vector<2x64xf32>
    %14 = vector.extract_strided_slice %1 {offsets = [0, 2], sizes = [2, 1], strides = [1, 1]} : vector<2x4xf32> to vector<2x1xf32>
    %15 = vector.extract_strided_slice %2 {offsets = [2, 0], sizes = [1, 64], strides = [1, 1]} : vector<4x64xf32> to vector<1x64xf32>
    %16 = vector.broadcast %14 : vector<2x1xf32> to vector<2x64xf32>
    %17 = vector.broadcast %15 : vector<1x64xf32> to vector<2x64xf32>
    %18 = arith.mulf %16, %17 : vector<2x64xf32>
    %19 = arith.addf %13, %18 : vector<2x64xf32>
    %20 = vector.extract_strided_slice %1 {offsets = [0, 3], sizes = [2, 1], strides = [1, 1]} : vector<2x4xf32> to vector<2x1xf32>
    %21 = vector.extract_strided_slice %2 {offsets = [3, 0], sizes = [1, 64], strides = [1, 1]} : vector<4x64xf32> to vector<1x64xf32>
    %22 = vector.broadcast %20 : vector<2x1xf32> to vector<2x64xf32>
    %23 = vector.broadcast %21 : vector<1x64xf32> to vector<2x64xf32>
    %24 = arith.mulf %22, %23 : vector<2x64xf32>
    %25 = arith.addf %19, %24 : vector<2x64xf32>
    %c0_3 = arith.constant 0 : index
    %c0_4 = arith.constant 0 : index
    %26 = vector.load %arg2[%c0_3, %c0_4] : memref<1x64xf32, #tpu.memory_space<vmem>>, vector<1x64xf32>
    %27 = vector.broadcast %26 : vector<1x64xf32> to vector<2x64xf32>
    %28 = arith.addf %25, %27 : vector<2x64xf32>
    %cst = arith.constant 0.000000e+00 : f32
    %29 = vector.broadcast %cst : f32 to vector<2x64xf32>
    %30 = arith.cmpf oge, %28, %29 : vector<2x64xf32>
    %cst_5 = arith.constant 2.000000e-01 : f32
    %31 = vector.broadcast %cst_5 : f32 to vector<2x64xf32>
    %32 = arith.mulf %31, %28 : vector<2x64xf32>
    %33 = arith.select %30, %28, %32 : vector<2x64xi1>, vector<2x64xf32>
    %c0_6 = arith.constant 0 : index
    %c0_7 = arith.constant 0 : index
    %34 = vector.load %arg3[%c0_6, %c0_7] : memref<1x64xf32, #tpu.memory_space<vmem>>, vector<1x64xf32>
    %35 = vector.broadcast %34 : vector<1x64xf32> to vector<2x64xf32>
    %36 = arith.mulf %33, %35 : vector<2x64xf32>
    %cst_8 = arith.constant dense<0.000000e+00> : vector<2xf32>
    %37 = vector.multi_reduction <add>, %36, %cst_8 [1] : vector<2x64xf32> to vector<2xf32>
    %38 = vector.shape_cast %37 : vector<2xf32> to vector<2x1xf32>
    %c0_9 = arith.constant 0 : index
    %c0_10 = arith.constant 0 : index
    %39 = vector.load %arg4[%c0_9, %c0_10] : memref<1x1xf32, #tpu.memory_space<vmem>>, vector<1x1xf32>
    %40 = vector.broadcast %39 : vector<1x1xf32> to vector<2x1xf32>
    %41 = arith.addf %38, %40 : vector<2x1xf32>
    %c0_11 = arith.constant 0 : index
    %c0_12 = arith.constant 0 : index
    %42 = vector.load %arg5[%c0_11, %c0_12] : memref<2x1xf32, #tpu.memory_space<vmem>>, vector<2x1xf32>
    tpu.vector_store %arg5[%c0_11, %c0_12], %41 {strides = array<i32>} : memref<2x1xf32, #tpu.memory_space<vmem>>, vector<2x1xf32>,
    return
  }
}

</mosaic_0001>

<llo_original>
// kernel: discriminator_forward.7
$region0: #{discriminator_forward.7}
  #allocation0 [shape = 'u32[]', space=smem, size = 0x4, offset = 0x4, fixed_abs, tag = 'smem constant byte address 0x4 - core index']
  #allocation1 [shape = 'u32[144,128]{1,0:T(1,128)}', space=vmem, size = 0x12000, scoped, tag = 'internal scratch']
  #allocation2 [shape = 'f32[256,64]{1,0:T(8,128)}', space=vmem, size = 0x20000, scoped, tag = 'scratch operand']
  %s0 = inlined_call_operand.vmem [shape: bf16[1536,9], index: 0, kind: input, shape index: {}]
  %s1 = inlined_call_operand.vmem [shape: bf16[9,64], index: 1, kind: input, shape index: {}]
  %s2 = inlined_call_operand.vmem [shape: f32[1,64], index: 2, kind: input, shape index: {}]
  %s3 = inlined_call_operand.vmem [shape: bf16[1536,64], index: 3, kind: output, shape index: {}]
  %s4 = sld [smem:[#allocation0]]
  $region53: #{discriminator_forward.7} parent=0
    _
  %s6 = ssub.s32 1, %s4
  %s7 = scalar_select 0, %s6, %s4
  loop: start=0, step=1, limit=8
  $region2: #{discriminator_forward.7} parent=0 // loop_pre_header
    _
  $region3: #{discriminator_forward.7} parent=0 // loop_header
    %s9 = sphi 0, %s13
    %p10 = scmp.ge.s32.totalorder %s9, 8
    %s16 = sphi 0, %s28
    %s17 = sphi 0, %s24
    %s18 = sphi 0, %s16
    %s19 = sphi 0, %s17
    %s20 = sphi 0, %s18
    %s21 = sphi 0, %s19
    %s33 = sphi 0, %s35
    %s36 = sphi 0, %s33
    %s37 = sphi 0, %s36
    %s53 = sphi 0, %s37
    %s59 = sphi 0, %s61
    %s62 = sphi 0, %s59
    %s63 = sphi 0, %s62
    %s79 = sphi 0, %s63
    %s83 = sphi 0, %s83
    %s85 = sphi 0, %s83
    %s86 = sphi 0, %s85
    %s100 = sphi 0, %s86
    %s106 = sphi 0, %s108
    %s109 = sphi 0, %s106
    %s110 = sphi 0, %s109
    %s126 = sphi 0, %s110
  $region4: #{discriminator_forward.7} parent=0 // loop_header_branch
    %12 = sbr.rel (%p10) target = $region8
  $region5: #{discriminator_forward.7} parent=0 // loop_body
    %s14 = ssub.s32 %s9, 1
    %s15 = ssub.s32 %s9, 2
    %s22 = sadd.s32 1, %s17
    %p23 = scmp.ge.s32.totalorder %s22, 1
    %s24 = scalar_select %p23, 0, %s22
    %s25 = sadd.s32 1, %s16
    %s26 = scalar_select %p23, %s25, %s16
    %p27 = scmp.ge.s32.totalorder %s26, 6
    %s28 = scalar_select %p27, 0, %s26
    %s29 = ssub.s32 %s16, %s28
    %s30 = ssub.s32 %s17, %s24
    %s31 = sor.u32 %s29, %s30
    %p32 = scmp.eq.s32.totalorder %s31, 0
    %s34 = sadd.s32 %s33, 1
    %s35 = scalar_select %p32, %s33, %s34
    %p38 = pneg %p32
    %p39 = scmp.eq.s32.totalorder %s9, 5
    %p40 = por %p38, %p39
    %p41 = scmp.ne.s32.totalorder %s33, %s36
    %p42 = scmp.eq.s32.totalorder %s9, 0
    %p43 = por %p41, %p42
    %p44 = scmp.ne.s32.totalorder %s33, %s36
    %p45 = scmp.eq.s32.totalorder %s14, 5
    %p46 = por %p44, %p45
    %p47 = scmp.ne.s32.totalorder %s36, %s37
    %p48 = scmp.eq.s32.totalorder %s14, 0
    %p49 = por %p47, %p48
    %p50 = scmp.ne.s32.totalorder %s36, %s37
    %p51 = scmp.eq.s32.totalorder %s15, 5
    %p52 = por %p50, %p51
    %p54 = scmp.ne.s32.totalorder %s37, %s53
    %p55 = scmp.eq.s32.totalorder %s15, 0
    %p56 = por %p54, %p55
    %s57 = ssub.s32 %s17, %s24
    %p58 = scmp.eq.s32.totalorder %s57, 0
    %s60 = sadd.s32 %s59, 1
    %s61 = scalar_select %p58, %s59, %s60
    %p64 = pneg %p58
    %p65 = scmp.eq.s32.totalorder %s9, 5
    %p66 = por %p64, %p65
    %p67 = scmp.ne.s32.totalorder %s59, %s62
    %p68 = scmp.eq.s32.totalorder %s9, 0
    %p69 = por %p67, %p68
    %p70 = scmp.ne.s32.totalorder %s59, %s62
    %p71 = scmp.eq.s32.totalorder %s14, 5
    %p72 = por %p70, %p71
    %p73 = scmp.ne.s32.totalorder %s62, %s63
    %p74 = scmp.eq.s32.totalorder %s14, 0
    %p75 = por %p73, %p74
    %p76 = scmp.ne.s32.totalorder %s62, %s63
    %p77 = scmp.eq.s32.totalorder %s15, 5
    %p78 = por %p76, %p77
    %p80 = scmp.ne.s32.totalorder %s63, %s79
    %p81 = scmp.eq.s32.totalorder %s15, 0
    %p82 = por %p80, %p81
    %s84 = sadd.s32 %s83, 1
    %p87 = scmp.eq.s32.totalorder %s9, 5
    %p88 = scmp.ne.s32.totalorder %s83, %s85
    %p89 = scmp.eq.s32.totalorder %s9, 0
    %p90 = por %p88, %p89
    %p91 = scmp.ne.s32.totalorder %s83, %s85
    %p92 = scmp.eq.s32.totalorder %s14, 5
    %p93 = por %p91, %p92
    %p94 = scmp.ne.s32.totalorder %s85, %s86
    %p95 = scmp.eq.s32.totalorder %s14, 0
    %p96 = por %p94, %p95
    %p97 = scmp.ne.s32.totalorder %s85, %s86
    %p98 = scmp.eq.s32.totalorder %s15, 5
    %p99 = por %p97, %p98
    %p101 = scmp.ne.s32.totalorder %s86, %s100
    %p102 = scmp.eq.s32.totalorder %s15, 0
    %p103 = por %p101, %p102
    %s104 = ssub.s32 %s16, %s28
    %p105 = scmp.eq.s32.totalorder %s104, 0
    %s107 = sadd.s32 %s106, 1
    %s108 = scalar_select %p105, %s106, %s107
    %p111 = pneg %p105
    %p112 = scmp.eq.s32.totalorder %s9, 5
    %p113 = por %p111, %p112
    %p114 = scmp.ne.s32.totalorder %s106, %s109
    %p115 = scmp.eq.s32.totalorder %s9, 0
    %p116 = por %p114, %p115
    %p117 = scmp.ne.s32.totalorder %s106, %s109
    %p118 = scmp.eq.s32.totalorder %s14, 5
    %p119 = por %p117, %p118
    %p120 = scmp.ne.s32.totalorder %s109, %s110
    %p121 = scmp.eq.s32.totalorder %s14, 0
    %p122 = por %p120, %p121
    %p123 = scmp.ne.s32.totalorder %s109, %s110
    %p124 = scmp.eq.s32.totalorder %s15, 5
    %p125 = por %p123, %p124
    %p127 = scmp.ne.s32.totalorder %s110, %s126
    %p128 = scmp.eq.s32.totalorder %s15, 0
    %p129 = por %p127, %p128
    %p130 = scmp.le.s32.totalorder 1, %s9
    %p131 = scmp.lt.s32.totalorder %s9, 7
    %p132 = pnand %p130, %p131
    %p133 = pneg %p132
    // Predicated region
    $region9: #{discriminator_forward.7} parent=5 // pred_check
      _
    $region10: #{discriminator_forward.7} parent=5 // pred_check_branch
      %135 = sbr.rel (%p132) target = $region12
    $region11: #{discriminator_forward.7} parent=5 // pred_region
      %s136 = ssub.s32 %s9, 1
      // Predicated region
      $region13: #{discriminator_forward.7} parent=11 // pred_check
        %p137 = pneg %p75
      $region14: #{discriminator_forward.7} parent=11 // pred_check_branch
        %139 = sbr.rel (%p137) target = $region16
      $region15: #{discriminator_forward.7} parent=11 // pred_region
        %s140 = smul.u32 2, %s19
        %p141 = scmp.lt.s32.totalorder %s140, 1
        %s142 = scalar_select %p141, %s140, 1
        %s143 = smul.addr %s142, 4
        %s144 = scalar_lea.vmem %s1, %s143
        %s145 = smul.u32 2, %s19
      $region16: #{discriminator_forward.7} parent=11 // pred_fallthru
        _
      // Predicated region
      $region17: #{discriminator_forward.7} parent=11 // pred_check
        %p146 = pneg %p96
      $region18: #{discriminator_forward.7} parent=11 // pred_check_branch
        %148 = sbr.rel (%p146) target = $region20
      $region19: #{discriminator_forward.7} parent=11 // pred_region
        _
      $region20: #{discriminator_forward.7} parent=11 // pred_fallthru
        _
    $region12: #{discriminator_forward.7} parent=5 // pred_fallthru
      _
    %p149 = scmp.lt.s32.totalorder %s9, 6
    // Predicated region
    $region21: #{discriminator_forward.7} parent=5 // pred_check
      %p150 = pneg %p149
    $region22: #{discriminator_forward.7} parent=5 // pred_check_branch
      %152 = sbr.rel (%p150) target = $region24
    $region23: #{discriminator_forward.7} parent=5 // pred_region
      // Predicated region
      $region25: #{discriminator_forward.7} parent=23 // pred_check
        %p153 = pneg %p43
      $region26: #{discriminator_forward.7} parent=23 // pred_check_branch
        %155 = sbr.rel (%p153) target = $region28
      $region27: #{discriminator_forward.7} parent=23 // pred_region
        %s156 = smul.u32 32, %s16
        %p157 = scmp.lt.s32.totalorder %s156, 191
        %s158 = scalar_select %p157, %s156, 191
        %p159 = scmp.lt.s32.totalorder %s17, 0
        %s160 = scalar_select %p159, %s17, 0
        %s161 = sadd.s32 %s160, %s158
        %s162 = smul.addr %s161, 4
        %s163 = scalar_lea.vmem %s0, %s162
        %s164 = smul.u32 32, %s16
      $region28: #{discriminator_forward.7} parent=23 // pred_fallthru
        _
    $region24: #{discriminator_forward.7} parent=5 // pred_fallthru
      _
    %p165 = scmp.le.s32.totalorder 1, %s9
    %p166 = scmp.lt.s32.totalorder %s9, 7
    %p167 = pnand %p165, %p166
    %p168 = pneg %p167
    // Predicated region
    $region29: #{discriminator_forward.7} parent=5 // pred_check
      _
    $region30: #{discriminator_forward.7} parent=5 // pred_check_branch
      %170 = sbr.rel (%p167) target = $region32
    $region31: #{discriminator_forward.7} parent=5 // pred_region
      %s171 = ssub.s32 %s9, 1
      %s172 = smul.u32 32, %s18
      %p173 = scmp.lt.s32.totalorder %s172, 191
      %s174 = scalar_select %p173, %s172, 191
      %p175 = scmp.lt.s32.totalorder %s19, 0
      %s176 = scalar_select %p175, %s19, 0
      %s177 = sadd.s32 %s176, %s174
      %s178 = smul.addr %s177, 4
      %s179 = scalar_lea.vmem %s0, %s178
      %p180 = pneg %p49
      %p181 = pneg %p46
      %s182 = smul.u32 2, %s19
      %p183 = scmp.lt.s32.totalorder %s182, 1
      %s184 = scalar_select %p183, %s182, 1
      %s185 = smul.addr %s184, 4
      %s186 = scalar_lea.vmem %s1, %s185
      %p187 = pneg %p75
      %p188 = pneg %p72
      %p189 = pneg %p96
      %p190 = pneg %p93
      %p191 = pneg %p122
      %p192 = pneg %p119
      %s193 = smul.u32 32, %s18
      %p194 = scmp.lt.s32.totalorder %s193, 191
      %s195 = scalar_select %p194, %s193, 191
      %s196 = smul.addr %s195, 4
      %s197 = scalar_lea.vmem %s3, %s196
      %s198 = smul.u32 32, %s18
      %p199 = scmp.lt.s32.totalorder %s198, 191
      %s200 = scalar_select %p199, %s198, 191
      %p201 = scmp.lt.s32.totalorder %s19, 0
      %s202 = scalar_select %p201, %s19, 0
      %s203 = sadd.s32 %s202, %s200
      %s204 = smul.addr %s203, 4
      %s205 = scalar_lea.vmem %s0, %s204
      %s206 = smul.u32 32, %s18
      %s207 = smul.u32 2, %s19
      %p208 = scmp.lt.s32.totalorder %s207, 1
      %s209 = scalar_select %p208, %s207, 1
      %s210 = smul.addr %s209, 4
      %s211 = scalar_lea.vmem %s1, %s210
      %s212 = smul.u32 2, %s19
      %s213 = smul.u32 32, %s18
      %p214 = scmp.lt.s32.totalorder %s213, 191
      %s215 = scalar_select %p214, %s213, 191
      %s216 = smul.addr %s215, 4
      %s217 = scalar_lea.vmem %s3, %s216
      %s218 = smul.u32 32, %s18
      %p219 = scmp.eq.s32.totalorder %s19, 0
      // Predicated region
      $region33: #{discriminator_forward.7} parent=31 // pred_check
        %p220 = pneg %p219
      $region34: #{discriminator_forward.7} parent=31 // pred_check_branch
        %222 = sbr.rel (%p220) target = $region36
      $region35: #{discriminator_forward.7} parent=31 // pred_region
        %vm223 = vcmask 523264
        %224 = vst.msk [vmem:[#allocation2] sm:$0xff] %vm223, 0.0
        %225 = vst.msk [vmem:[#allocation2 + $0x8] sm:$0xff] %vm223, 0.0
        %226 = vst.msk [vmem:[#allocation2 + $0x10] sm:$0xff] %vm223, 0.0
        %227 = vst.msk [vmem:[#allocation2 + $0x18] sm:$0xff] %vm223, 0.0
        %228 = vst.msk [vmem:[#allocation2 + $0x20] sm:$0xff] %vm223, 0.0
        %229 = vst.msk [vmem:[#allocation2 + $0x28] sm:$0xff] %vm223, 0.0
        %230 = vst.msk [vmem:[#allocation2 + $0x30] sm:$0xff] %vm223, 0.0
        %231 = vst.msk [vmem:[#allocation2 + $0x38] sm:$0xff] %vm223, 0.0
        %232 = vst.msk [vmem:[#allocation2 + $0x40] sm:$0xff] %vm223, 0.0
        %233 = vst.msk [vmem:[#allocation2 + $0x48] sm:$0xff] %vm223, 0.0
        %234 = vst.msk [vmem:[#allocation2 + $0x50] sm:$0xff] %vm223, 0.0
        %235 = vst.msk [vmem:[#allocation2 + $0x58] sm:$0xff] %vm223, 0.0
        %236 = vst.msk [vmem:[#allocation2 + $0x60] sm:$0xff] %vm223, 0.0
        %237 = vst.msk [vmem:[#allocation2 + $0x68] sm:$0xff] %vm223, 0.0
        %238 = vst.msk [vmem:[#allocation2 + $0x70] sm:$0xff] %vm223, 0.0
        %239 = vst.msk [vmem:[#allocation2 + $0x78] sm:$0xff] %vm223, 0.0
        %240 = vst.msk [vmem:[#allocation2 + $0x80] sm:$0xff] %vm223, 0.0
        %241 = vst.msk [vmem:[#allocation2 + $0x88] sm:$0xff] %vm223, 0.0
        %242 = vst.msk [vmem:[#allocation2 + $0x90] sm:$0xff] %vm223, 0.0
        %243 = vst.msk [vmem:[#allocation2 + $0x98] sm:$0xff] %vm223, 0.0
        %244 = vst.msk [vmem:[#allocation2 + $0xa0] sm:$0xff] %vm223, 0.0
        %245 = vst.msk [vmem:[#allocation2 + $0xa8] sm:$0xff] %vm223, 0.0
        %246 = vst.msk [vmem:[#allocation2 + $0xb0] sm:$0xff] %vm223, 0.0
        %247 = vst.msk [vmem:[#allocation2 + $0xb8] sm:$0xff] %vm223, 0.0
        %248 = vst.msk [vmem:[#allocation2 + $0xc0] sm:$0xff] %vm223, 0.0
        %249 = vst.msk [vmem:[#allocation2 + $0xc8] sm:$0xff] %vm223, 0.0
        %250 = vst.msk [vmem:[#allocation2 + $0xd0] sm:$0xff] %vm223, 0.0
        %251 = vst.msk [vmem:[#allocation2 + $0xd8] sm:$0xff] %vm223, 0.0
        %252 = vst.msk [vmem:[#allocation2 + $0xe0] sm:$0xff] %vm223, 0.0
        %253 = vst.msk [vmem:[#allocation2 + $0xe8] sm:$0xff] %vm223, 0.0
        %254 = vst.msk [vmem:[#allocation2 + $0xf0] sm:$0xff] %vm223, 0.0
        %255 = vst.msk [vmem:[#allocation2 + $0xf8] sm:$0xff] %vm223, 0.0
      $region36: #{discriminator_forward.7} parent=31 // pred_fallthru
        _
      %v256 = vld [vmem:[#allocation2] sm:$0xff]
      %v257 = vld [vmem:[#allocation2 + $0x8] sm:$0xff]
      %v258 = vld [vmem:[#allocation2 + $0x10] sm:$0xff]
      %v259 = vld [vmem:[#allocation2 + $0x18] sm:$0xff]
      %v260 = vld [vmem:[#allocation2 + $0x20] sm:$0xff]
      %v261 = vld [vmem:[#allocation2 + $0x28] sm:$0xff]
      %v262 = vld [vmem:[#allocation2 + $0x30] sm:$0xff]
      %v263 = vld [vmem:[#allocation2 + $0x38] sm:$0xff]
      %v264 = vld [vmem:[#allocation2 + $0x40] sm:$0xff]
      %v265 = vld [vmem:[#allocation2 + $0x48] sm:$0xff]
      %v266 = vld [vmem:[#allocation2 + $0x50] sm:$0xff]
      %v267 = vld [vmem:[#allocation2 + $0x58] sm:$0xff]
      %v268 = vld [vmem:[#allocation2 + $0x60] sm:$0xff]
      %v269 = vld [vmem:[#allocation2 + $0x68] sm:$0xff]
      %v270 = vld [vmem:[#allocation2 + $0x70] sm:$0xff]
      %v271 = vld [vmem:[#allocation2 + $0x78] sm:$0xff]
      %v272 = vld [vmem:[#allocation2 + $0x80] sm:$0xff]
      %v273 = vld [vmem:[#allocation2 + $0x88] sm:$0xff]
      %v274 = vld [vmem:[#allocation2 + $0x90] sm:$0xff]
      %v275 = vld [vmem:[#allocation2 + $0x98] sm:$0xff]
      %v276 = vld [vmem:[#allocation2 + $0xa0] sm:$0xff]
      %v277 = vld [vmem:[#allocation2 + $0xa8] sm:$0xff]
      %v278 = vld [vmem:[#allocation2 + $0xb0] sm:$0xff]
      %v279 = vld [vmem:[#allocation2 + $0xb8] sm:$0xff]
      %v280 = vld [vmem:[#allocation2 + $0xc0] sm:$0xff]
      %v281 = vld [vmem:[#allocation2 + $0xc8] sm:$0xff]
      %v282 = vld [vmem:[#allocation2 + $0xd0] sm:$0xff]
      %v283 = vld [vmem:[#allocation2 + $0xd8] sm:$0xff]
      %v284 = vld [vmem:[#allocation2 + $0xe0] sm:$0xff]
      %v285 = vld [vmem:[#allocation2 + $0xe8] sm:$0xff]
      %v286 = vld [vmem:[#allocation2 + $0xf0] sm:$0xff]
      %v287 = vld [vmem:[#allocation2 + $0xf8] sm:$0xff]
      %v288 = vld [vmem:[%s205] sm:$0xf]
      %v289 = vld [vmem:[%s205 + $0x4] sm:$0xf]
      %v290 = vld [vmem:[%s205 + $0x8] sm:$0xf]
      %v291 = vld [vmem:[%s205 + $0xc] sm:$0xf]
      %v292 = vld [vmem:[%s205 + $0x10] sm:$0xf]
      %v293 = vld [vmem:[%s205 + $0x14] sm:$0xf]
      %v294 = vld [vmem:[%s205 + $0x18] sm:$0xf]
      %v295 = vld [vmem:[%s205 + $0x1c] sm:$0xf]
      %v296 = vld [vmem:[%s205 + $0x20] sm:$0xf]
      %v297 = vld [vmem:[%s205 + $0x24] sm:$0xf]
      %v298 = vld [vmem:[%s205 + $0x28] sm:$0xf]
      %v299 = vld [vmem:[%s205 + $0x2c] sm:$0xf]
      %v300 = vld [vmem:[%s205 + $0x30] sm:$0xf]
      %v301 = vld [vmem:[%s205 + $0x34] sm:$0xf]
      %v302 = vld [vmem:[%s205 + $0x38] sm:$0xf]
      %v303 = vld [vmem:[%s205 + $0x3c] sm:$0xf]
      %v304 = vld [vmem:[%s205 + $0x40] sm:$0xf]
      %v305 = vld [vmem:[%s205 + $0x44] sm:$0xf]
      %v306 = vld [vmem:[%s205 + $0x48] sm:$0xf]
      %v307 = vld [vmem:[%s205 + $0x4c] sm:$0xf]
      %v308 = vld [vmem:[%s205 + $0x50] sm:$0xf]
      %v309 = vld [vmem:[%s205 + $0x54] sm:$0xf]
      %v310 = vld [vmem:[%s205 + $0x58] sm:$0xf]
      %v311 = vld [vmem:[%s205 + $0x5c] sm:$0xf]
      %v312 = vld [vmem:[%s205 + $0x60] sm:$0xf]
      %v313 = vld [vmem:[%s205 + $0x64] sm:$0xf]
      %v314 = vld [vmem:[%s205 + $0x68] sm:$0xf]
      %v315 = vld [vmem:[%s205 + $0x6c] sm:$0xf]
      %v316 = vld [vmem:[%s205 + $0x70] sm:$0xf]
      %v317 = vld [vmem:[%s205 + $0x74] sm:$0xf]
      %v318 = vld [vmem:[%s205 + $0x78] sm:$0xf]
      %v319 = vld [vmem:[%s205 + $0x7c] sm:$0xf]
      %v320 = vld [vmem:[%s211] sm:$0xf]
      %v321 = vld [vmem:[%s211 + $0x4] sm:$0x1]
      %v322 = vunpack.c.l.bf16 %v288
      %v323 = vunpack.c.l.bf16 %v289
      %v324 = vunpack.c.l.bf16 %v290
      %v325 = vunpack.c.l.bf16 %v291
      %v326 = vunpack.c.l.bf16 %v292
      %v327 = vunpack.c.l.bf16 %v293
      %v328 = vunpack.c.l.bf16 %v294
      %v329 = vunpack.c.l.bf16 %v295
      %v330 = vunpack.c.l.bf16 %v296
      %v331 = vunpack.c.l.bf16 %v297
      %v332 = vunpack.c.l.bf16 %v298
      %v333 = vunpack.c.l.bf16 %v299
      %v334 = vunpack.c.l.bf16 %v300
      %v335 = vunpack.c.l.bf16 %v301
      %v336 = vunpack.c.l.bf16 %v302
      %v337 = vunpack.c.l.bf16 %v303
      %v338 = vunpack.c.l.bf16 %v304
      %v339 = vunpack.c.l.bf16 %v305
      %v340 = vunpack.c.l.bf16 %v306
      %v341 = vunpack.c.l.bf16 %v307
      %v342 = vunpack.c.l.bf16 %v308
      %v343 = vunpack.c.l.bf16 %v309
      %v344 = vunpack.c.l.bf16 %v310
      %v345 = vunpack.c.l.bf16 %v311
      %v346 = vunpack.c.l.bf16 %v312
      %v347 = vunpack.c.l.bf16 %v313
      %v348 = vunpack.c.l.bf16 %v314
      %v349 = vunpack.c.l.bf16 %v315
      %v350 = vunpack.c.l.bf16 %v316
      %v351 = vunpack.c.l.bf16 %v317
      %v352 = vunpack.c.l.bf16 %v318
      %v353 = vunpack.c.l.bf16 %v319
      %v354 = vunpack.c.l.bf16 %v320
      %356 = vset.pattern.permute.xlu0 0
      %357 = vperm.xlu0 %356, %v322
      %v358 = vpop.permute.xlu0 %357
      %361 = vset.pattern.permute.xlu0 0
      %362 = vperm.xlu0 %361, %v323
      %v363 = vpop.permute.xlu0 %362
      %366 = vset.pattern.permute.xlu0 0
      %367 = vperm.xlu0 %366, %v324
      %v368 = vpop.permute.xlu0 %367
      %371 = vset.pattern.permute.xlu0 0
      %372 = vperm.xlu0 %371, %v325
      %v373 = vpop.permute.xlu0 %372
      %376 = vset.pattern.permute.xlu0 0
      %377 = vperm.xlu0 %376, %v326
      %v378 = vpop.permute.xlu0 %377
      %381 = vset.pattern.permute.xlu0 0
      %382 = vperm.xlu0 %381, %v327
      %v383 = vpop.permute.xlu0 %382
      %386 = vset.pattern.permute.xlu0 0
      %387 = vperm.xlu0 %386, %v328
      %v388 = vpop.permute.xlu0 %387
      %391 = vset.pattern.permute.xlu0 0
      %392 = vperm.xlu0 %391, %v329
      %v393 = vpop.permute.xlu0 %392
      %396 = vset.pattern.permute.xlu0 0
      %397 = vperm.xlu0 %396, %v330
      %v398 = vpop.permute.xlu0 %397
      %401 = vset.pattern.permute.xlu0 0
      %402 = vperm.xlu0 %401, %v331
      %v403 = vpop.permute.xlu0 %402
      %406 = vset.pattern.permute.xlu0 0
      %407 = vperm.xlu0 %406, %v332
      %v408 = vpop.permute.xlu0 %407
      %411 = vset.pattern.permute.xlu0 0
      %412 = vperm.xlu0 %411, %v333
      %v413 = vpop.permute.xlu0 %412
      %416 = vset.pattern.permute.xlu0 0
      %417 = vperm.xlu0 %416, %v334
      %v418 = vpop.permute.xlu0 %417
      %421 = vset.pattern.permute.xlu0 0
      %422 = vperm.xlu0 %421, %v335
      %v423 = vpop.permute.xlu0 %422
      %426 = vset.pattern.permute.xlu0 0
      %427 = vperm.xlu0 %426, %v336
      %v428 = vpop.permute.xlu0 %427
      %431 = vset.pattern.permute.xlu0 0
      %432 = vperm.xlu0 %431, %v337
      %v433 = vpop.permute.xlu0 %432
      %436 = vset.pattern.permute.xlu0 0
      %437 = vperm.xlu0 %436, %v338
      %v438 = vpop.permute.xlu0 %437
      %441 = vset.pattern.permute.xlu0 0
      %442 = vperm.xlu0 %441, %v339
      %v443 = vpop.permute.xlu0 %442
      %446 = vset.pattern.permute.xlu0 0
      %447 = vperm.xlu0 %446, %v340
      %v448 = vpop.permute.xlu0 %447
      %451 = vset.pattern.permute.xlu0 0
      %452 = vperm.xlu0 %451, %v341
      %v453 = vpop.permute.xlu0 %452
      %456 = vset.pattern.permute.xlu0 0
      %457 = vperm.xlu0 %456, %v342
      %v458 = vpop.permute.xlu0 %457
      %461 = vset.pattern.permute.xlu0 0
      %462 = vperm.xlu0 %461, %v343
      %v463 = vpop.permute.xlu0 %462
      %466 = vset.pattern.permute.xlu0 0
      %467 = vperm.xlu0 %466, %v344
      %v468 = vpop.permute.xlu0 %467
      %471 = vset.pattern.permute.xlu0 0
      %472 = vperm.xlu0 %471, %v345
      %v473 = vpop.permute.xlu0 %472
      %476 = vset.pattern.permute.xlu0 0
      %477 = vperm.xlu0 %476, %v346
      %v478 = vpop.permute.xlu0 %477
      %481 = vset.pattern.permute.xlu0 0
      %482 = vperm.xlu0 %481, %v347
      %v483 = vpop.permute.xlu0 %482
      %486 = vset.pattern.permute.xlu0 0
      %487 = vperm.xlu0 %486, %v348
      %v488 = vpop.permute.xlu0 %487
      %491 = vset.pattern.permute.xlu0 0
      %492 = vperm.xlu0 %491, %v349
      %v493 = vpop.permute.xlu0 %492
      %496 = vset.pattern.permute.xlu0 0
      %497 = vperm.xlu0 %496, %v350
      %v498 = vpop.permute.xlu0 %497
      %501 = vset.pattern.permute.xlu0 0
      %502 = vperm.xlu0 %501, %v351
      %v503 = vpop.permute.xlu0 %502
      %506 = vset.pattern.permute.xlu0 0
      %507 = vperm.xlu0 %506, %v352
      %v508 = vpop.permute.xlu0 %507
      %511 = vset.pattern.permute.xlu0 0
      %512 = vperm.xlu0 %511, %v353
      %v513 = vpop.permute.xlu0 %512
      %v515 = vlaneseq
      %v516 = vshrl.u32 %v515, 7
      %v517 = vsub.s32 0, %v516
      %v518 = vrot.slane %v354, %v517
      %v519 = vmul.f32 %v358, %v518
      %v520 = vmul.f32 %v363, %v518
      %v521 = vmul.f32 %v368, %v518
      %v522 = vmul.f32 %v373, %v518
      %v523 = vmul.f32 %v378, %v518
      %v524 = vmul.f32 %v383, %v518
      %v525 = vmul.f32 %v388, %v518
      %v526 = vmul.f32 %v393, %v518
      %v527 = vmul.f32 %v398, %v518
      %v528 = vmul.f32 %v403, %v518
      %v529 = vmul.f32 %v408, %v518
      %v530 = vmul.f32 %v413, %v518
      %v531 = vmul.f32 %v418, %v518
      %v532 = vmul.f32 %v423, %v518
      %v533 = vmul.f32 %v428, %v518
      %v534 = vmul.f32 %v433, %v518
      %v535 = vmul.f32 %v438, %v518
      %v536 = vmul.f32 %v443, %v518
      %v537 = vmul.f32 %v448, %v518
      %v538 = vmul.f32 %v453, %v518
      %v539 = vmul.f32 %v458, %v518
      %v540 = vmul.f32 %v463, %v518
      %v541 = vmul.f32 %v468, %v518
      %v542 = vmul.f32 %v473, %v518
      %v543 = vmul.f32 %v478, %v518
      %v544 = vmul.f32 %v483, %v518
      %v545 = vmul.f32 %v488, %v518
      %v546 = vmul.f32 %v493, %v518
      %v547 = vmul.f32 %v498, %v518
      %v548 = vmul.f32 %v503, %v518
      %v549 = vmul.f32 %v508, %v518
      %v550 = vmul.f32 %v513, %v518
      %551 = vset.pattern.permute.xlu0 1
      %552 = vperm.xlu0 %551, %v322
      %v553 = vpop.permute.xlu0 %552
      %555 = vset.pattern.permute.xlu0 1
      %556 = vperm.xlu0 %555, %v323
      %v557 = vpop.permute.xlu0 %556
      %559 = vset.pattern.permute.xlu0 1
      %560 = vperm.xlu0 %559, %v324
      %v561 = vpop.permute.xlu0 %560
      %563 = vset.pattern.permute.xlu0 1
      %564 = vperm.xlu0 %563, %v325
      %v565 = vpop.permute.xlu0 %564
      %567 = vset.pattern.permute.xlu0 1
      %568 = vperm.xlu0 %567, %v326
      %v569 = vpop.permute.xlu0 %568
      %571 = vset.pattern.permute.xlu0 1
      %572 = vperm.xlu0 %571, %v327
      %v573 = vpop.permute.xlu0 %572
      %575 = vset.pattern.permute.xlu0 1
      %576 = vperm.xlu0 %575, %v328
      %v577 = vpop.permute.xlu0 %576
      %579 = vset.pattern.permute.xlu0 1
      %580 = vperm.xlu0 %579, %v329
      %v581 = vpop.permute.xlu0 %580
      %583 = vset.pattern.permute.xlu0 1
      %584 = vperm.xlu0 %583, %v330
      %v585 = vpop.permute.xlu0 %584
      %587 = vset.pattern.permute.xlu0 1
      %588 = vperm.xlu0 %587, %v331
      %v589 = vpop.permute.xlu0 %588
      %591 = vset.pattern.permute.xlu0 1
      %592 = vperm.xlu0 %591, %v332
      %v593 = vpop.permute.xlu0 %592
      %595 = vset.pattern.permute.xlu0 1
      %596 = vperm.xlu0 %595, %v333
      %v597 = vpop.permute.xlu0 %596
      %599 = vset.pattern.permute.xlu0 1
      %600 = vperm.xlu0 %599, %v334
      %v601 = vpop.permute.xlu0 %600
      %603 = vset.pattern.permute.xlu0 1
      %604 = vperm.xlu0 %603, %v335
      %v605 = vpop.permute.xlu0 %604
      %607 = vset.pattern.permute.xlu0 1
      %608 = vperm.xlu0 %607, %v336
      %v609 = vpop.permute.xlu0 %608
      %611 = vset.pattern.permute.xlu0 1
      %612 = vperm.xlu0 %611, %v337
      %v613 = vpop.permute.xlu0 %612
      %615 = vset.pattern.permute.xlu0 1
      %616 = vperm.xlu0 %615, %v338
      %v617 = vpop.permute.xlu0 %616
      %619 = vset.pattern.permute.xlu0 1
      %620 = vperm.xlu0 %619, %v339
      %v621 = vpop.permute.xlu0 %620
      %623 = vset.pattern.permute.xlu0 1
      %624 = vperm.xlu0 %623, %v340
      %v625 = vpop.permute.xlu0 %624
      %627 = vset.pattern.permute.xlu0 1
      %628 = vperm.xlu0 %627, %v341
      %v629 = vpop.permute.xlu0 %628
      %631 = vset.pattern.permute.xlu0 1
      %632 = vperm.xlu0 %631, %v342
      %v633 = vpop.permute.xlu0 %632
      %635 = vset.pattern.permute.xlu0 1
      %636 = vperm.xlu0 %635, %v343
      %v637 = vpop.permute.xlu0 %636
      %639 = vset.pattern.permute.xlu0 1
      %640 = vperm.xlu0 %639, %v344
      %v641 = vpop.permute.xlu0 %640
      %643 = vset.pattern.permute.xlu0 1
      %644 = vperm.xlu0 %643, %v345
      %v645 = vpop.permute.xlu0 %644
      %647 = vset.pattern.permute.xlu0 1
      %648 = vperm.xlu0 %647, %v346
      %v649 = vpop.permute.xlu0 %648
      %651 = vset.pattern.permute.xlu0 1
      %652 = vperm.xlu0 %651, %v347
      %v653 = vpop.permute.xlu0 %652
      %655 = vset.pattern.permute.xlu0 1
      %656 = vperm.xlu0 %655, %v348
      %v657 = vpop.permute.xlu0 %656
      %659 = vset.pattern.permute.xlu0 1
      %660 = vperm.xlu0 %659, %v349
      %v661 = vpop.permute.xlu0 %660
      %663 = vset.pattern.permute.xlu0 1
      %664 = vperm.xlu0 %663, %v350
      %v665 = vpop.permute.xlu0 %664
      %667 = vset.pattern.permute.xlu0 1
      %668 = vperm.xlu0 %667, %v351
      %v669 = vpop.permute.xlu0 %668
      %671 = vset.pattern.permute.xlu0 1
      %672 = vperm.xlu0 %671, %v352
      %v673 = vpop.permute.xlu0 %672
      %675 = vset.pattern.permute.xlu0 1
      %676 = vperm.xlu0 %675, %v353
      %v677 = vpop.permute.xlu0 %676
      %v679 = vlaneseq
      %v680 = vshrl.u32 %v679, 7
      %v681 = vsub.s32 1, %v680
      %v682 = vrot.slane %v354, %v681
      %v683 = vmul.f32 %v553, %v682
      %v684 = vmul.f32 %v557, %v682
      %v685 = vmul.f32 %v561, %v682
      %v686 = vmul.f32 %v565, %v682
      %v687 = vmul.f32 %v569, %v682
      %v688 = vmul.f32 %v573, %v682
      %v689 = vmul.f32 %v577, %v682
      %v690 = vmul.f32 %v581, %v682
      %v691 = vmul.f32 %v585, %v682
      %v692 = vmul.f32 %v589, %v682
      %v693 = vmul.f32 %v593, %v682
      %v694 = vmul.f32 %v597, %v682
      %v695 = vmul.f32 %v601, %v682
      %v696 = vmul.f32 %v605, %v682
      %v697 = vmul.f32 %v609, %v682
      %v698 = vmul.f32 %v613, %v682
      %v699 = vmul.f32 %v617, %v682
      %v700 = vmul.f32 %v621, %v682
      %v701 = vmul.f32 %v625, %v682
      %v702 = vmul.f32 %v629, %v682
      %v703 = vmul.f32 %v633, %v682
      %v704 = vmul.f32 %v637, %v682
      %v705 = vmul.f32 %v641, %v682
      %v706 = vmul.f32 %v645, %v682
      %v707 = vmul.f32 %v649, %v682
      %v708 = vmul.f32 %v653, %v682
      %v709 = vmul.f32 %v657, %v682
      %v710 = vmul.f32 %v661, %v682
      %v711 = vmul.f32 %v665, %v682
      %v712 = vmul.f32 %v669, %v682
      %v713 = vmul.f32 %v673, %v682
      %v714 = vmul.f32 %v677, %v682
      %v715 = vadd.f32 %v519, %v683
      %v716 = vadd.f32 %v520, %v684
      %v717 = vadd.f32 %v521, %v685
      %v718 = vadd.f32 %v522, %v686
      %v719 = vadd.f32 %v523, %v687
      %v720 = vadd.f32 %v524, %v688
      %v721 = vadd.f32 %v525, %v689
      %v722 = vadd.f32 %v526, %v690
      %v723 = vadd.f32 %v527, %v691
      %v724 = vadd.f32 %v528, %v692
      %v725 = vadd.f32 %v529, %v693
      %v726 = vadd.f32 %v530, %v694
      %v727 = vadd.f32 %v531, %v695
      %v728 = vadd.f32 %v532, %v696
      %v729 = vadd.f32 %v533, %v697
      %v730 = vadd.f32 %v534, %v698
      %v731 = vadd.f32 %v535, %v699
      %v732 = vadd.f32 %v536, %v700
      %v733 = vadd.f32 %v537, %v701
      %v734 = vadd.f32 %v538, %v702
      %v735 = vadd.f32 %v539, %v703
      %v736 = vadd.f32 %v540, %v704
      %v737 = vadd.f32 %v541, %v705
      %v738 = vadd.f32 %v542, %v706
      %v739 = vadd.f32 %v543, %v707
      %v740 = vadd.f32 %v544, %v708
      %v741 = vadd.f32 %v545, %v709
      %v742 = vadd.f32 %v546, %v710
      %v743 = vadd.f32 %v547, %v711
      %v744 = vadd.f32 %v548, %v712
      %v745 = vadd.f32 %v549, %v713
      %v746 = vadd.f32 %v550, %v714
      %747 = vset.pattern.permute.xlu0 2
      %748 = vperm.xlu0 %747, %v322
      %v749 = vpop.permute.xlu0 %748
      %751 = vset.pattern.permute.xlu0 2
      %752 = vperm.xlu0 %751, %v323
      %v753 = vpop.permute.xlu0 %752
      %755 = vset.pattern.permute.xlu0 2
      %756 = vperm.xlu0 %755, %v324
      %v757 = vpop.permute.xlu0 %756
      %759 = vset.pattern.permute.xlu0 2
      %760 = vperm.xlu0 %759, %v325
      %v761 = vpop.permute.xlu0 %760
      %763 = vset.pattern.permute.xlu0 2
      %764 = vperm.xlu0 %763, %v326
      %v765 = vpop.permute.xlu0 %764
      %767 = vset.pattern.permute.xlu0 2
      %768 = vperm.xlu0 %767, %v327
      %v769 = vpop.permute.xlu0 %768
      %771 = vset.pattern.permute.xlu0 2
      %772 = vperm.xlu0 %771, %v328
      %v773 = vpop.permute.xlu0 %772
      %775 = vset.pattern.permute.xlu0 2
      %776 = vperm.xlu0 %775, %v329
      %v777 = vpop.permute.xlu0 %776
      %779 = vset.pattern.permute.xlu0 2
      %780 = vperm.xlu0 %779, %v330
      %v781 = vpop.permute.xlu0 %780
      %783 = vset.pattern.permute.xlu0 2
      %784 = vperm.xlu0 %783, %v331
      %v785 = vpop.permute.xlu0 %784
      %787 = vset.pattern.permute.xlu0 2
      %788 = vperm.xlu0 %787, %v332
      %v789 = vpop.permute.xlu0 %788
      %791 = vset.pattern.permute.xlu0 2
      %792 = vperm.xlu0 %791, %v333
      %v793 = vpop.permute.xlu0 %792
      %795 = vset.pattern.permute.xlu0 2
      %796 = vperm.xlu0 %795, %v334
      %v797 = vpop.permute.xlu0 %796
      %799 = vset.pattern.permute.xlu0 2
      %800 = vperm.xlu0 %799, %v335
      %v801 = vpop.permute.xlu0 %800
      %803 = vset.pattern.permute.xlu0 2
      %804 = vperm.xlu0 %803, %v336
      %v805 = vpop.permute.xlu0 %804
      %807 = vset.pattern.permute.xlu0 2
      %808 = vperm.xlu0 %807, %v337
      %v809 = vpop.permute.xlu0 %808
      %811 = vset.pattern.permute.xlu0 2
      %812 = vperm.xlu0 %811, %v338
      %v813 = vpop.permute.xlu0 %812
      %815 = vset.pattern.permute.xlu0 2
      %816 = vperm.xlu0 %815, %v339
      %v817 = vpop.permute.xlu0 %816
      %819 = vset.pattern.permute.xlu0 2
      %820 = vperm.xlu0 %819, %v340
      %v821 = vpop.permute.xlu0 %820
      %823 = vset.pattern.permute.xlu0 2
      %824 = vperm.xlu0 %823, %v341
      %v825 = vpop.permute.xlu0 %824
      %827 = vset.pattern.permute.xlu0 2
      %828 = vperm.xlu0 %827, %v342
      %v829 = vpop.permute.xlu0 %828
      %831 = vset.pattern.permute.xlu0 2
      %832 = vperm.xlu0 %831, %v343
      %v833 = vpop.permute.xlu0 %832
      %835 = vset.pattern.permute.xlu0 2
      %836 = vperm.xlu0 %835, %v344
      %v837 = vpop.permute.xlu0 %836
      %839 = vset.pattern.permute.xlu0 2
      %840 = vperm.xlu0 %839, %v345
      %v841 = vpop.permute.xlu0 %840
      %843 = vset.pattern.permute.xlu0 2
      %844 = vperm.xlu0 %843, %v346
      %v845 = vpop.permute.xlu0 %844
      %847 = vset.pattern.permute.xlu0 2
      %848 = vperm.xlu0 %847, %v347
      %v849 = vpop.permute.xlu0 %848
      %851 = vset.pattern.permute.xlu0 2
      %852 = vperm.xlu0 %851, %v348
      %v853 = vpop.permute.xlu0 %852
      %855 = vset.pattern.permute.xlu0 2
      %856 = vperm.xlu0 %855, %v349
      %v857 = vpop.permute.xlu0 %856
      %859 = vset.pattern.permute.xlu0 2
      %860 = vperm.xlu0 %859, %v350
      %v861 = vpop.permute.xlu0 %860
      %863 = vset.pattern.permute.xlu0 2
      %864 = vperm.xlu0 %863, %v351
      %v865 = vpop.permute.xlu0 %864
      %867 = vset.pattern.permute.xlu0 2
      %868 = vperm.xlu0 %867, %v352
      %v869 = vpop.permute.xlu0 %868
      %871 = vset.pattern.permute.xlu0 2
      %872 = vperm.xlu0 %871, %v353
      %v873 = vpop.permute.xlu0 %872
      %v875 = vlaneseq
      %v876 = vshrl.u32 %v875, 7
      %v877 = vsub.s32 2, %v876
      %v878 = vrot.slane %v354, %v877
      %v879 = vmul.f32 %v749, %v878
      %v880 = vmul.f32 %v753, %v878
      %v881 = vmul.f32 %v757, %v878
      %v882 = vmul.f32 %v761, %v878
      %v883 = vmul.f32 %v765, %v878
      %v884 = vmul.f32 %v769, %v878
      %v885 = vmul.f32 %v773, %v878
      %v886 = vmul.f32 %v777, %v878
      %v887 = vmul.f32 %v781, %v878
      %v888 = vmul.f32 %v785, %v878
      %v889 = vmul.f32 %v789, %v878
      %v890 = vmul.f32 %v793, %v878
      %v891 = vmul.f32 %v797, %v878
      %v892 = vmul.f32 %v801, %v878
      %v893 = vmul.f32 %v805, %v878
      %v894 = vmul.f32 %v809, %v878
      %v895 = vmul.f32 %v813, %v878
      %v896 = vmul.f32 %v817, %v878
      %v897 = vmul.f32 %v821, %v878
      %v898 = vmul.f32 %v825, %v878
      %v899 = vmul.f32 %v829, %v878
      %v900 = vmul.f32 %v833, %v878
      %v901 = vmul.f32 %v837, %v878
      %v902 = vmul.f32 %v841, %v878
      %v903 = vmul.f32 %v845, %v878
      %v904 = vmul.f32 %v849, %v878
      %v905 = vmul.f32 %v853, %v878
      %v906 = vmul.f32 %v857, %v878
      %v907 = vmul.f32 %v861, %v878
      %v908 = vmul.f32 %v865, %v878
      %v909 = vmul.f32 %v869, %v878
      %v910 = vmul.f32 %v873, %v878
      %v911 = vadd.f32 %v715, %v879
      %v912 = vadd.f32 %v716, %v880
      %v913 = vadd.f32 %v717, %v881
      %v914 = vadd.f32 %v718, %v882
      %v915 = vadd.f32 %v719, %v883
      %v916 = vadd.f32 %v720, %v884
      %v917 = vadd.f32 %v721, %v885
      %v918 = vadd.f32 %v722, %v886
      %v919 = vadd.f32 %v723, %v887
      %v920 = vadd.f32 %v724, %v888
      %v921 = vadd.f32 %v725, %v889
      %v922 = vadd.f32 %v726, %v890
      %v923 = vadd.f32 %v727, %v891
      %v924 = vadd.f32 %v728, %v892
      %v925 = vadd.f32 %v729, %v893
      %v926 = vadd.f32 %v730, %v894
      %v927 = vadd.f32 %v731, %v895
      %v928 = vadd.f32 %v732, %v896
      %v929 = vadd.f32 %v733, %v897
      %v930 = vadd.f32 %v734, %v898
      %v931 = vadd.f32 %v735, %v899
      %v932 = vadd.f32 %v736, %v900
      %v933 = vadd.f32 %v737, %v901
      %v934 = vadd.f32 %v738, %v902
      %v935 = vadd.f32 %v739, %v903
      %v936 = vadd.f32 %v740, %v904
      %v937 = vadd.f32 %v741, %v905
      %v938 = vadd.f32 %v742, %v906
      %v939 = vadd.f32 %v743, %v907
      %v940 = vadd.f32 %v744, %v908
      %v941 = vadd.f32 %v745, %v909
      %v942 = vadd.f32 %v746, %v910
      %943 = vset.pattern.permute.xlu0 3
      %944 = vperm.xlu0 %943, %v322
      %v945 = vpop.permute.xlu0 %944
      %947 = vset.pattern.permute.xlu0 3
      %948 = vperm.xlu0 %947, %v323
      %v949 = vpop.permute.xlu0 %948
      %951 = vset.pattern.permute.xlu0 3
      %952 = vperm.xlu0 %951, %v324
      %v953 = vpop.permute.xlu0 %952
      %955 = vset.pattern.permute.xlu0 3
      %956 = vperm.xlu0 %955, %v325
      %v957 = vpop.permute.xlu0 %956
      %959 = vset.pattern.permute.xlu0 3
      %960 = vperm.xlu0 %959, %v326
      %v961 = vpop.permute.xlu0 %960
      %963 = vset.pattern.permute.xlu0 3
      %964 = vperm.xlu0 %963, %v327
      %v965 = vpop.permute.xlu0 %964
      %967 = vset.pattern.permute.xlu0 3
      %968 = vperm.xlu0 %967, %v328
      %v969 = vpop.permute.xlu0 %968
      %971 = vset.pattern.permute.xlu0 3
      %972 = vperm.xlu0 %971, %v329
      %v973 = vpop.permute.xlu0 %972
      %975 = vset.pattern.permute.xlu0 3
      %976 = vperm.xlu0 %975, %v330
      %v977 = vpop.permute.xlu0 %976
      %979 = vset.pattern.permute.xlu0 3
      %980 = vperm.xlu0 %979, %v331
      %v981 = vpop.permute.xlu0 %980
      %983 = vset.pattern.permute.xlu0 3
      %984 = vperm.xlu0 %983, %v332
      %v985 = vpop.permute.xlu0 %984
      %987 = vset.pattern.permute.xlu0 3
      %988 = vperm.xlu0 %987, %v333
      %v989 = vpop.permute.xlu0 %988
      %991 = vset.pattern.permute.xlu0 3
      %992 = vperm.xlu0 %991, %v334
      %v993 = vpop.permute.xlu0 %992
      %995 = vset.pattern.permute.xlu0 3
      %996 = vperm.xlu0 %995, %v335
      %v997 = vpop.permute.xlu0 %996
      %999 = vset.pattern.permute.xlu0 3
      %1000 = vperm.xlu0 %999, %v336
      %v1001 = vpop.permute.xlu0 %1000
      %1003 = vset.pattern.permute.xlu0 3
      %1004 = vperm.xlu0 %1003, %v337
      %v1005 = vpop.permute.xlu0 %1004
      %1007 = vset.pattern.permute.xlu0 3
      %1008 = vperm.xlu0 %1007, %v338
      %v1009 = vpop.permute.xlu0 %1008
      %1011 = vset.pattern.permute.xlu0 3
      %1012 = vperm.xlu0 %1011, %v339
      %v1013 = vpop.permute.xlu0 %1012
      %1015 = vset.pattern.permute.xlu0 3
      %1016 = vperm.xlu0 %1015, %v340
      %v1017 = vpop.permute.xlu0 %1016
      %1019 = vset.pattern.permute.xlu0 3
      %1020 = vperm.xlu0 %1019, %v341
      %v1021 = vpop.permute.xlu0 %1020
      %1023 = vset.pattern.permute.xlu0 3
      %1024 = vperm.xlu0 %1023, %v342
      %v1025 = vpop.permute.xlu0 %1024
      %1027 = vset.pattern.permute.xlu0 3
      %1028 = vperm.xlu0 %1027, %v343
      %v1029 = vpop.permute.xlu0 %1028
      %1031 = vset.pattern.permute.xlu0 3
      %1032 = vperm.xlu0 %1031, %v344
      %v1033 = vpop.permute.xlu0 %1032
      %1035 = vset.pattern.permute.xlu0 3
      %1036 = vperm.xlu0 %1035, %v345
      %v1037 = vpop.permute.xlu0 %1036
      %1039 = vset.pattern.permute.xlu0 3
      %1040 = vperm.xlu0 %1039, %v346
      %v1041 = vpop.permute.xlu0 %1040
      %1043 = vset.pattern.permute.xlu0 3
      %1044 = vperm.xlu0 %1043, %v347
      %v1045 = vpop.permute.xlu0 %1044
      %1047 = vset.pattern.permute.xlu0 3
      %1048 = vperm.xlu0 %1047, %v348
      %v1049 = vpop.permute.xlu0 %1048
      %1051 = vset.pattern.permute.xlu0 3
      %1052 = vperm.xlu0 %1051, %v349
      %v1053 = vpop.permute.xlu0 %1052
      %1055 = vset.pattern.permute.xlu0 3
      %1056 = vperm.xlu0 %1055, %v350
      %v1057 = vpop.permute.xlu0 %1056
      %1059 = vset.pattern.permute.xlu0 3
      %1060 = vperm.xlu0 %1059, %v351
      %v1061 = vpop.permute.xlu0 %1060
      %1063 = vset.pattern.permute.xlu0 3
      %1064 = vperm.xlu0 %1063, %v352
      %v1065 = vpop.permute.xlu0 %1064
      %1067 = vset.pattern.permute.xlu0 3
      %1068 = vperm.xlu0 %1067, %v353
      %v1069 = vpop.permute.xlu0 %1068
      %v1071 = vlaneseq
      %v1072 = vshrl.u32 %v1071, 7
      %v1073 = vsub.s32 3, %v1072
      %v1074 = vrot.slane %v354, %v1073
      %v1075 = vmul.f32 %v945, %v1074
      %v1076 = vmul.f32 %v949, %v1074
      %v1077 = vmul.f32 %v953, %v1074
      %v1078 = vmul.f32 %v957, %v1074
      %v1079 = vmul.f32 %v961, %v1074
      %v1080 = vmul.f32 %v965, %v1074
      %v1081 = vmul.f32 %v969, %v1074
      %v1082 = vmul.f32 %v973, %v1074
      %v1083 = vmul.f32 %v977, %v1074
      %v1084 = vmul.f32 %v981, %v1074
      %v1085 = vmul.f32 %v985, %v1074
      %v1086 = vmul.f32 %v989, %v1074
      %v1087 = vmul.f32 %v993, %v1074
      %v1088 = vmul.f32 %v997, %v1074
      %v1089 = vmul.f32 %v1001, %v1074
      %v1090 = vmul.f32 %v1005, %v1074
      %v1091 = vmul.f32 %v1009, %v1074
      %v1092 = vmul.f32 %v1013, %v1074
      %v1093 = vmul.f32 %v1017, %v1074
      %v1094 = vmul.f32 %v1021, %v1074
      %v1095 = vmul.f32 %v1025, %v1074
      %v1096 = vmul.f32 %v1029, %v1074
      %v1097 = vmul.f32 %v1033, %v1074
      %v1098 = vmul.f32 %v1037, %v1074
      %v1099 = vmul.f32 %v1041, %v1074
      %v1100 = vmul.f32 %v1045, %v1074
      %v1101 = vmul.f32 %v1049, %v1074
      %v1102 = vmul.f32 %v1053, %v1074
      %v1103 = vmul.f32 %v1057, %v1074
      %v1104 = vmul.f32 %v1061, %v1074
      %v1105 = vmul.f32 %v1065, %v1074
      %v1106 = vmul.f32 %v1069, %v1074
      %v1107 = vadd.f32 %v911, %v1075
      %v1108 = vadd.f32 %v912, %v1076
      %v1109 = vadd.f32 %v913, %v1077
      %v1110 = vadd.f32 %v914, %v1078
      %v1111 = vadd.f32 %v915, %v1079
      %v1112 = vadd.f32 %v916, %v1080
      %v1113 = vadd.f32 %v917, %v1081
      %v1114 = vadd.f32 %v918, %v1082
      %v1115 = vadd.f32 %v919, %v1083
      %v1116 = vadd.f32 %v920, %v1084
      %v1117 = vadd.f32 %v921, %v1085
      %v1118 = vadd.f32 %v922, %v1086
      %v1119 = vadd.f32 %v923, %v1087
      %v1120 = vadd.f32 %v924, %v1088
      %v1121 = vadd.f32 %v925, %v1089
      %v1122 = vadd.f32 %v926, %v1090
      %v1123 = vadd.f32 %v927, %v1091
      %v1124 = vadd.f32 %v928, %v1092
      %v1125 = vadd.f32 %v929, %v1093
      %v1126 = vadd.f32 %v930, %v1094
      %v1127 = vadd.f32 %v931, %v1095
      %v1128 = vadd.f32 %v932, %v1096
      %v1129 = vadd.f32 %v933, %v1097
      %v1130 = vadd.f32 %v934, %v1098
      %v1131 = vadd.f32 %v935, %v1099
      %v1132 = vadd.f32 %v936, %v1100
      %v1133 = vadd.f32 %v937, %v1101
      %v1134 = vadd.f32 %v938, %v1102
      %v1135 = vadd.f32 %v939, %v1103
      %v1136 = vadd.f32 %v940, %v1104
      %v1137 = vadd.f32 %v941, %v1105
      %v1138 = vadd.f32 %v942, %v1106
      %1139 = vset.pattern.permute.xlu0 4
      %1140 = vperm.xlu0 %1139, %v322
      %v1141 = vpop.permute.xlu0 %1140
      %1143 = vset.pattern.permute.xlu0 4
      %1144 = vperm.xlu0 %1143, %v323
      %v1145 = vpop.permute.xlu0 %1144
      %1147 = vset.pattern.permute.xlu0 4
      %1148 = vperm.xlu0 %1147, %v324
      %v1149 = vpop.permute.xlu0 %1148
      %1151 = vset.pattern.permute.xlu0 4
      %1152 = vperm.xlu0 %1151, %v325
      %v1153 = vpop.permute.xlu0 %1152
      %1155 = vset.pattern.permute.xlu0 4
      %1156 = vperm.xlu0 %1155, %v326
      %v1157 = vpop.permute.xlu0 %1156
      %1159 = vset.pattern.permute.xlu0 4
      %1160 = vperm.xlu0 %1159, %v327
      %v1161 = vpop.permute.xlu0 %1160
      %1163 = vset.pattern.permute.xlu0 4
      %1164 = vperm.xlu0 %1163, %v328
      %v1165 = vpop.permute.xlu0 %1164
      %1167 = vset.pattern.permute.xlu0 4
      %1168 = vperm.xlu0 %1167, %v329
      %v1169 = vpop.permute.xlu0 %1168
      %1171 = vset.pattern.permute.xlu0 4
      %1172 = vperm.xlu0 %1171, %v330
      %v1173 = vpop.permute.xlu0 %1172
      %1175 = vset.pattern.permute.xlu0 4
      %1176 = vperm.xlu0 %1175, %v331
      %v1177 = vpop.permute.xlu0 %1176
      %1179 = vset.pattern.permute.xlu0 4
      %1180 = vperm.xlu0 %1179, %v332
      %v1181 = vpop.permute.xlu0 %1180
      %1183 = vset.pattern.permute.xlu0 4
      %1184 = vperm.xlu0 %1183, %v333
      %v1185 = vpop.permute.xlu0 %1184
      %1187 = vset.pattern.permute.xlu0 4
      %1188 = vperm.xlu0 %1187, %v334
      %v1189 = vpop.permute.xlu0 %1188
      %1191 = vset.pattern.permute.xlu0 4
      %1192 = vperm.xlu0 %1191, %v335
      %v1193 = vpop.permute.xlu0 %1192
      %1195 = vset.pattern.permute.xlu0 4
      %1196 = vperm.xlu0 %1195, %v336
      %v1197 = vpop.permute.xlu0 %1196
      %1199 = vset.pattern.permute.xlu0 4
      %1200 = vperm.xlu0 %1199, %v337
      %v1201 = vpop.permute.xlu0 %1200
      %1203 = vset.pattern.permute.xlu0 4
      %1204 = vperm.xlu0 %1203, %v338
      %v1205 = vpop.permute.xlu0 %1204
      %1207 = vset.pattern.permute.xlu0 4
      %1208 = vperm.xlu0 %1207, %v339
      %v1209 = vpop.permute.xlu0 %1208
      %1211 = vset.pattern.permute.xlu0 4
      %1212 = vperm.xlu0 %1211, %v340
      %v1213 = vpop.permute.xlu0 %1212
      %1215 = vset.pattern.permute.xlu0 4
      %1216 = vperm.xlu0 %1215, %v341
      %v1217 = vpop.permute.xlu0 %1216
      %1219 = vset.pattern.permute.xlu0 4
      %1220 = vperm.xlu0 %1219, %v342
      %v1221 = vpop.permute.xlu0 %1220
      %1223 = vset.pattern.permute.xlu0 4
      %1224 = vperm.xlu0 %1223, %v343
      %v1225 = vpop.permute.xlu0 %1224
      %1227 = vset.pattern.permute.xlu0 4
      %1228 = vperm.xlu0 %1227, %v344
      %v1229 = vpop.permute.xlu0 %1228
      %1231 = vset.pattern.permute.xlu0 4
      %1232 = vperm.xlu0 %1231, %v345
      %v1233 = vpop.permute.xlu0 %1232
      %1235 = vset.pattern.permute.xlu0 4
      %1236 = vperm.xlu0 %1235, %v346
      %v1237 = vpop.permute.xlu0 %1236
      %1239 = vset.pattern.permute.xlu0 4
      %1240 = vperm.xlu0 %1239, %v347
      %v1241 = vpop.permute.xlu0 %1240
      %1243 = vset.pattern.permute.xlu0 4
      %1244 = vperm.xlu0 %1243, %v348
      %v1245 = vpop.permute.xlu0 %1244
      %1247 = vset.pattern.permute.xlu0 4
      %1248 = vperm.xlu0 %1247, %v349
      %v1249 = vpop.permute.xlu0 %1248
      %1251 = vset.pattern.permute.xlu0 4
      %1252 = vperm.xlu0 %1251, %v350
      %v1253 = vpop.permute.xlu0 %1252
      %1255 = vset.pattern.permute.xlu0 4
      %1256 = vperm.xlu0 %1255, %v351
      %v1257 = vpop.permute.xlu0 %1256
      %1259 = vset.pattern.permute.xlu0 4
      %1260 = vperm.xlu0 %1259, %v352
      %v1261 = vpop.permute.xlu0 %1260
      %1263 = vset.pattern.permute.xlu0 4
      %1264 = vperm.xlu0 %1263, %v353
      %v1265 = vpop.permute.xlu0 %1264
      %v1267 = vlaneseq
      %v1268 = vshrl.u32 %v1267, 7
      %v1269 = vsub.s32 4, %v1268
      %v1270 = vrot.slane %v354, %v1269
      %v1271 = vmul.f32 %v1141, %v1270
      %v1272 = vmul.f32 %v1145, %v1270
      %v1273 = vmul.f32 %v1149, %v1270
      %v1274 = vmul.f32 %v1153, %v1270
      %v1275 = vmul.f32 %v1157, %v1270
      %v1276 = vmul.f32 %v1161, %v1270
      %v1277 = vmul.f32 %v1165, %v1270
      %v1278 = vmul.f32 %v1169, %v1270
      %v1279 = vmul.f32 %v1173, %v1270
      %v1280 = vmul.f32 %v1177, %v1270
      %v1281 = vmul.f32 %v1181, %v1270
      %v1282 = vmul.f32 %v1185, %v1270
      %v1283 = vmul.f32 %v1189, %v1270
      %v1284 = vmul.f32 %v1193, %v1270
      %v1285 = vmul.f32 %v1197, %v1270
      %v1286 = vmul.f32 %v1201, %v1270
      %v1287 = vmul.f32 %v1205, %v1270
      %v1288 = vmul.f32 %v1209, %v1270
      %v1289 = vmul.f32 %v1213, %v1270
      %v1290 = vmul.f32 %v1217, %v1270
      %v1291 = vmul.f32 %v1221, %v1270
      %v1292 = vmul.f32 %v1225, %v1270
      %v1293 = vmul.f32 %v1229, %v1270
      %v1294 = vmul.f32 %v1233, %v1270
      %v1295 = vmul.f32 %v1237, %v1270
      %v1296 = vmul.f32 %v1241, %v1270
      %v1297 = vmul.f32 %v1245, %v1270
      %v1298 = vmul.f32 %v1249, %v1270
      %v1299 = vmul.f32 %v1253, %v1270
      %v1300 = vmul.f32 %v1257, %v1270
      %v1301 = vmul.f32 %v1261, %v1270
      %v1302 = vmul.f32 %v1265, %v1270
      %v1303 = vadd.f32 %v1107, %v1271
      %v1304 = vadd.f32 %v1108, %v1272
      %v1305 = vadd.f32 %v1109, %v1273
      %v1306 = vadd.f32 %v1110, %v1274
      %v1307 = vadd.f32 %v1111, %v1275
      %v1308 = vadd.f32 %v1112, %v1276
      %v1309 = vadd.f32 %v1113, %v1277
      %v1310 = vadd.f32 %v1114, %v1278
      %v1311 = vadd.f32 %v1115, %v1279
      %v1312 = vadd.f32 %v1116, %v1280
      %v1313 = vadd.f32 %v1117, %v1281
      %v1314 = vadd.f32 %v1118, %v1282
      %v1315 = vadd.f32 %v1119, %v1283
      %v1316 = vadd.f32 %v1120, %v1284
      %v1317 = vadd.f32 %v1121, %v1285
      %v1318 = vadd.f32 %v1122, %v1286
      %v1319 = vadd.f32 %v1123, %v1287
      %v1320 = vadd.f32 %v1124, %v1288
      %v1321 = vadd.f32 %v1125, %v1289
      %v1322 = vadd.f32 %v1126, %v1290
      %v1323 = vadd.f32 %v1127, %v1291
      %v1324 = vadd.f32 %v1128, %v1292
      %v1325 = vadd.f32 %v1129, %v1293
      %v1326 = vadd.f32 %v1130, %v1294
      %v1327 = vadd.f32 %v1131, %v1295
      %v1328 = vadd.f32 %v1132, %v1296
      %v1329 = vadd.f32 %v1133, %v1297
      %v1330 = vadd.f32 %v1134, %v1298
      %v1331 = vadd.f32 %v1135, %v1299
      %v1332 = vadd.f32 %v1136, %v1300
      %v1333 = vadd.f32 %v1137, %v1301
      %v1334 = vadd.f32 %v1138, %v1302
      %1335 = vset.pattern.permute.xlu0 5
      %1336 = vperm.xlu0 %1335, %v322
      %v1337 = vpop.permute.xlu0 %1336
      %1339 = vset.pattern.permute.xlu0 5
      %1340 = vperm.xlu0 %1339, %v323
      %v1341 = vpop.permute.xlu0 %1340
      %1343 = vset.pattern.permute.xlu0 5
      %1344 = vperm.xlu0 %1343, %v324
      %v1345 = vpop.permute.xlu0 %1344
      %1347 = vset.pattern.permute.xlu0 5
      %1348 = vperm.xlu0 %1347, %v325
      %v1349 = vpop.permute.xlu0 %1348
      %1351 = vset.pattern.permute.xlu0 5
      %1352 = vperm.xlu0 %1351, %v326
      %v1353 = vpop.permute.xlu0 %1352
      %1355 = vset.pattern.permute.xlu0 5
      %1356 = vperm.xlu0 %1355, %v327
      %v1357 = vpop.permute.xlu0 %1356
      %1359 = vset.pattern.permute.xlu0 5
      %1360 = vperm.xlu0 %1359, %v328
      %v1361 = vpop.permute.xlu0 %1360
      %1363 = vset.pattern.permute.xlu0 5
      %1364 = vperm.xlu0 %1363, %v329
      %v1365 = vpop.permute.xlu0 %1364
      %1367 = vset.pattern.permute.xlu0 5
      %1368 = vperm.xlu0 %1367, %v330
      %v1369 = vpop.permute.xlu0 %1368
      %1371 = vset.pattern.permute.xlu0 5
      %1372 = vperm.xlu0 %1371, %v331
      %v1373 = vpop.permute.xlu0 %1372
      %1375 = vset.pattern.permute.xlu0 5
      %1376 = vperm.xlu0 %1375, %v332
      %v1377 = vpop.permute.xlu0 %1376
      %1379 = vset.pattern.permute.xlu0 5
      %1380 = vperm.xlu0 %1379, %v333
      %v1381 = vpop.permute.xlu0 %1380
      %1383 = vset.pattern.permute.xlu0 5
      %1384 = vperm.xlu0 %1383, %v334
      %v1385 = vpop.permute.xlu0 %1384
      %1387 = vset.pattern.permute.xlu0 5
      %1388 = vperm.xlu0 %1387, %v335
      %v1389 = vpop.permute.xlu0 %1388
      %1391 = vset.pattern.permute.xlu0 5
      %1392 = vperm.xlu0 %1391, %v336
      %v1393 = vpop.permute.xlu0 %1392
      %1395 = vset.pattern.permute.xlu0 5
      %1396 = vperm.xlu0 %1395, %v337
      %v1397 = vpop.permute.xlu0 %1396
      %1399 = vset.pattern.permute.xlu0 5
      %1400 = vperm.xlu0 %1399, %v338
      %v1401 = vpop.permute.xlu0 %1400
      %1403 = vset.pattern.permute.xlu0 5
      %1404 = vperm.xlu0 %1403, %v339
      %v1405 = vpop.permute.xlu0 %1404
      %1407 = vset.pattern.permute.xlu0 5
      %1408 = vperm.xlu0 %1407, %v340
      %v1409 = vpop.permute.xlu0 %1408
      %1411 = vset.pattern.permute.xlu0 5
      %1412 = vperm.xlu0 %1411, %v341
      %v1413 = vpop.permute.xlu0 %1412
      %1415 = vset.pattern.permute.xlu0 5
      %1416 = vperm.xlu0 %1415, %v342
      %v1417 = vpop.permute.xlu0 %1416
      %1419 = vset.pattern.permute.xlu0 5
      %1420 = vperm.xlu0 %1419, %v343
      %v1421 = vpop.permute.xlu0 %1420
      %1423 = vset.pattern.permute.xlu0 5
      %1424 = vperm.xlu0 %1423, %v344
      %v1425 = vpop.permute.xlu0 %1424
      %1427 = vset.pattern.permute.xlu0 5
      %1428 = vperm.xlu0 %1427, %v345
      %v1429 = vpop.permute.xlu0 %1428
      %1431 = vset.pattern.permute.xlu0 5
      %1432 = vperm.xlu0 %1431, %v346
      %v1433 = vpop.permute.xlu0 %1432
      %1435 = vset.pattern.permute.xlu0 5
      %1436 = vperm.xlu0 %1435, %v347
      %v1437 = vpop.permute.xlu0 %1436
      %1439 = vset.pattern.permute.xlu0 5
      %1440 = vperm.xlu0 %1439, %v348
      %v1441 = vpop.permute.xlu0 %1440
      %1443 = vset.pattern.permute.xlu0 5
      %1444 = vperm.xlu0 %1443, %v349
      %v1445 = vpop.permute.xlu0 %1444
      %1447 = vset.pattern.permute.xlu0 5
      %1448 = vperm.xlu0 %1447, %v350
      %v1449 = vpop.permute.xlu0 %1448
      %1451 = vset.pattern.permute.xlu0 5
      %1452 = vperm.xlu0 %1451, %v351
      %v1453 = vpop.permute.xlu0 %1452
      %1455 = vset.pattern.permute.xlu0 5
      %1456 = vperm.xlu0 %1455, %v352
      %v1457 = vpop.permute.xlu0 %1456
      %1459 = vset.pattern.permute.xlu0 5
      %1460 = vperm.xlu0 %1459, %v353
      %v1461 = vpop.permute.xlu0 %1460
      %v1463 = vlaneseq
      %v1464 = vshrl.u32 %v1463, 7
      %v1465 = vsub.s32 5, %v1464
      %v1466 = vrot.slane %v354, %v1465
      %v1467 = vmul.f32 %v1337, %v1466
      %v1468 = vmul.f32 %v1341, %v1466
      %v1469 = vmul.f32 %v1345, %v1466
      %v1470 = vmul.f32 %v1349, %v1466
      %v1471 = vmul.f32 %v1353, %v1466
      %v1472 = vmul.f32 %v1357, %v1466
      %v1473 = vmul.f32 %v1361, %v1466
      %v1474 = vmul.f32 %v1365, %v1466
      %v1475 = vmul.f32 %v1369, %v1466
      %v1476 = vmul.f32 %v1373, %v1466
      %v1477 = vmul.f32 %v1377, %v1466
      %v1478 = vmul.f32 %v1381, %v1466
      %v1479 = vmul.f32 %v1385, %v1466
      %v1480 = vmul.f32 %v1389, %v1466
      %v1481 = vmul.f32 %v1393, %v1466
      %v1482 = vmul.f32 %v1397, %v1466
      %v1483 = vmul.f32 %v1401, %v1466
      %v1484 = vmul.f32 %v1405, %v1466
      %v1485 = vmul.f32 %v1409, %v1466
      %v1486 = vmul.f32 %v1413, %v1466
      %v1487 = vmul.f32 %v1417, %v1466
      %v1488 = vmul.f32 %v1421, %v1466
      %v1489 = vmul.f32 %v1425, %v1466
      %v1490 = vmul.f32 %v1429, %v1466
      %v1491 = vmul.f32 %v1433, %v1466
      %v1492 = vmul.f32 %v1437, %v1466
      %v1493 = vmul.f32 %v1441, %v1466
      %v1494 = vmul.f32 %v1445, %v1466
      %v1495 = vmul.f32 %v1449, %v1466
      %v1496 = vmul.f32 %v1453, %v1466
      %v1497 = vmul.f32 %v1457, %v1466
      %v1498 = vmul.f32 %v1461, %v1466
      %v1499 = vadd.f32 %v1303, %v1467
      %v1500 = vadd.f32 %v1304, %v1468
      %v1501 = vadd.f32 %v1305, %v1469
      %v1502 = vadd.f32 %v1306, %v1470
      %v1503 = vadd.f32 %v1307, %v1471
      %v1504 = vadd.f32 %v1308, %v1472
      %v1505 = vadd.f32 %v1309, %v1473
      %v1506 = vadd.f32 %v1310, %v1474
      %v1507 = vadd.f32 %v1311, %v1475
      %v1508 = vadd.f32 %v1312, %v1476
      %v1509 = vadd.f32 %v1313, %v1477
      %v1510 = vadd.f32 %v1314, %v1478
      %v1511 = vadd.f32 %v1315, %v1479
      %v1512 = vadd.f32 %v1316, %v1480
      %v1513 = vadd.f32 %v1317, %v1481
      %v1514 = vadd.f32 %v1318, %v1482
      %v1515 = vadd.f32 %v1319, %v1483
      %v1516 = vadd.f32 %v1320, %v1484
      %v1517 = vadd.f32 %v1321, %v1485
      %v1518 = vadd.f32 %v1322, %v1486
      %v1519 = vadd.f32 %v1323, %v1487
      %v1520 = vadd.f32 %v1324, %v1488
      %v1521 = vadd.f32 %v1325, %v1489
      %v1522 = vadd.f32 %v1326, %v1490
      %v1523 = vadd.f32 %v1327, %v1491
      %v1524 = vadd.f32 %v1328, %v1492
      %v1525 = vadd.f32 %v1329, %v1493
      %v1526 = vadd.f32 %v1330, %v1494
      %v1527 = vadd.f32 %v1331, %v1495
      %v1528 = vadd.f32 %v1332, %v1496
      %v1529 = vadd.f32 %v1333, %v1497
      %v1530 = vadd.f32 %v1334, %v1498
      %1531 = vset.pattern.permute.xlu0 6
      %1532 = vperm.xlu0 %1531, %v322
      %v1533 = vpop.permute.xlu0 %1532
      %1535 = vset.pattern.permute.xlu0 6
      %1536 = vperm.xlu0 %1535, %v323
      %v1537 = vpop.permute.xlu0 %1536
      %1539 = vset.pattern.permute.xlu0 6
      %1540 = vperm.xlu0 %1539, %v324
      %v1541 = vpop.permute.xlu0 %1540
      %1543 = vset.pattern.permute.xlu0 6
      %1544 = vperm.xlu0 %1543, %v325
      %v1545 = vpop.permute.xlu0 %1544
      %1547 = vset.pattern.permute.xlu0 6
      %1548 = vperm.xlu0 %1547, %v326
      %v1549 = vpop.permute.xlu0 %1548
      %1551 = vset.pattern.permute.xlu0 6
      %1552 = vperm.xlu0 %1551, %v327
      %v1553 = vpop.permute.xlu0 %1552
      %1555 = vset.pattern.permute.xlu0 6
      %1556 = vperm.xlu0 %1555, %v328
      %v1557 = vpop.permute.xlu0 %1556
      %1559 = vset.pattern.permute.xlu0 6
      %1560 = vperm.xlu0 %1559, %v329
      %v1561 = vpop.permute.xlu0 %1560
      %1563 = vset.pattern.permute.xlu0 6
      %1564 = vperm.xlu0 %1563, %v330
      %v1565 = vpop.permute.xlu0 %1564
      %1567 = vset.pattern.permute.xlu0 6
      %1568 = vperm.xlu0 %1567, %v331
      %v1569 = vpop.permute.xlu0 %1568
      %1571 = vset.pattern.permute.xlu0 6
      %1572 = vperm.xlu0 %1571, %v332
      %v1573 = vpop.permute.xlu0 %1572
      %1575 = vset.pattern.permute.xlu0 6
      %1576 = vperm.xlu0 %1575, %v333
      %v1577 = vpop.permute.xlu0 %1576
      %1579 = vset.pattern.permute.xlu0 6
      %1580 = vperm.xlu0 %1579, %v334
      %v1581 = vpop.permute.xlu0 %1580
      %1583 = vset.pattern.permute.xlu0 6
      %1584 = vperm.xlu0 %1583, %v335
      %v1585 = vpop.permute.xlu0 %1584
      %1587 = vset.pattern.permute.xlu0 6
      %1588 = vperm.xlu0 %1587, %v336
      %v1589 = vpop.permute.xlu0 %1588
      %1591 = vset.pattern.permute.xlu0 6
      %1592 = vperm.xlu0 %1591, %v337
      %v1593 = vpop.permute.xlu0 %1592
      %1595 = vset.pattern.permute.xlu0 6
      %1596 = vperm.xlu0 %1595, %v338
      %v1597 = vpop.permute.xlu0 %1596
      %1599 = vset.pattern.permute.xlu0 6
      %1600 = vperm.xlu0 %1599, %v339
      %v1601 = vpop.permute.xlu0 %1600
      %1603 = vset.pattern.permute.xlu0 6
      %1604 = vperm.xlu0 %1603, %v340
      %v1605 = vpop.permute.xlu0 %1604
      %1607 = vset.pattern.permute.xlu0 6
      %1608 = vperm.xlu0 %1607, %v341
      %v1609 = vpop.permute.xlu0 %1608
      %1611 = vset.pattern.permute.xlu0 6
      %1612 = vperm.xlu0 %1611, %v342
      %v1613 = vpop.permute.xlu0 %1612
      %1615 = vset.pattern.permute.xlu0 6
      %1616 = vperm.xlu0 %1615, %v343
      %v1617 = vpop.permute.xlu0 %1616
      %1619 = vset.pattern.permute.xlu0 6
      %1620 = vperm.xlu0 %1619, %v344
      %v1621 = vpop.permute.xlu0 %1620
      %1623 = vset.pattern.permute.xlu0 6
      %1624 = vperm.xlu0 %1623, %v345
      %v1625 = vpop.permute.xlu0 %1624
      %1627 = vset.pattern.permute.xlu0 6
      %1628 = vperm.xlu0 %1627, %v346
      %v1629 = vpop.permute.xlu0 %1628
      %1631 = vset.pattern.permute.xlu0 6
      %1632 = vperm.xlu0 %1631, %v347
      %v1633 = vpop.permute.xlu0 %1632
      %1635 = vset.pattern.permute.xlu0 6
      %1636 = vperm.xlu0 %1635, %v348
      %v1637 = vpop.permute.xlu0 %1636
      %1639 = vset.pattern.permute.xlu0 6
      %1640 = vperm.xlu0 %1639, %v349
      %v1641 = vpop.permute.xlu0 %1640
      %1643 = vset.pattern.permute.xlu0 6
      %1644 = vperm.xlu0 %1643, %v350
      %v1645 = vpop.permute.xlu0 %1644
      %1647 = vset.pattern.permute.xlu0 6
      %1648 = vperm.xlu0 %1647, %v351
      %v1649 = vpop.permute.xlu0 %1648
      %1651 = vset.pattern.permute.xlu0 6
      %1652 = vperm.xlu0 %1651, %v352
      %v1653 = vpop.permute.xlu0 %1652
      %1655 = vset.pattern.permute.xlu0 6
      %1656 = vperm.xlu0 %1655, %v353
      %v1657 = vpop.permute.xlu0 %1656
      %v1659 = vlaneseq
      %v1660 = vshrl.u32 %v1659, 7
      %v1661 = vsub.s32 6, %v1660
      %v1662 = vrot.slane %v354, %v1661
      %v1663 = vmul.f32 %v1533, %v1662
      %v1664 = vmul.f32 %v1537, %v1662
      %v1665 = vmul.f32 %v1541, %v1662
      %v1666 = vmul.f32 %v1545, %v1662
      %v1667 = vmul.f32 %v1549, %v1662
      %v1668 = vmul.f32 %v1553, %v1662
      %v1669 = vmul.f32 %v1557, %v1662
      %v1670 = vmul.f32 %v1561, %v1662
      %v1671 = vmul.f32 %v1565, %v1662
      %v1672 = vmul.f32 %v1569, %v1662
      %v1673 = vmul.f32 %v1573, %v1662
      %v1674 = vmul.f32 %v1577, %v1662
      %v1675 = vmul.f32 %v1581, %v1662
      %v1676 = vmul.f32 %v1585, %v1662
      %v1677 = vmul.f32 %v1589, %v1662
      %v1678 = vmul.f32 %v1593, %v1662
      %v1679 = vmul.f32 %v1597, %v1662
      %v1680 = vmul.f32 %v1601, %v1662
      %v1681 = vmul.f32 %v1605, %v1662
      %v1682 = vmul.f32 %v1609, %v1662
      %v1683 = vmul.f32 %v1613, %v1662
      %v1684 = vmul.f32 %v1617, %v1662
      %v1685 = vmul.f32 %v1621, %v1662
      %v1686 = vmul.f32 %v1625, %v1662
      %v1687 = vmul.f32 %v1629, %v1662
      %v1688 = vmul.f32 %v1633, %v1662
      %v1689 = vmul.f32 %v1637, %v1662
      %v1690 = vmul.f32 %v1641, %v1662
      %v1691 = vmul.f32 %v1645, %v1662
      %v1692 = vmul.f32 %v1649, %v1662
      %v1693 = vmul.f32 %v1653, %v1662
      %v1694 = vmul.f32 %v1657, %v1662
      %v1695 = vadd.f32 %v1499, %v1663
      %v1696 = vadd.f32 %v1500, %v1664
      %v1697 = vadd.f32 %v1501, %v1665
      %v1698 = vadd.f32 %v1502, %v1666
      %v1699 = vadd.f32 %v1503, %v1667
      %v1700 = vadd.f32 %v1504, %v1668
      %v1701 = vadd.f32 %v1505, %v1669
      %v1702 = vadd.f32 %v1506, %v1670
      %v1703 = vadd.f32 %v1507, %v1671
      %v1704 = vadd.f32 %v1508, %v1672
      %v1705 = vadd.f32 %v1509, %v1673
      %v1706 = vadd.f32 %v1510, %v1674
      %v1707 = vadd.f32 %v1511, %v1675
      %v1708 = vadd.f32 %v1512, %v1676
      %v1709 = vadd.f32 %v1513, %v1677
      %v1710 = vadd.f32 %v1514, %v1678
      %v1711 = vadd.f32 %v1515, %v1679
      %v1712 = vadd.f32 %v1516, %v1680
      %v1713 = vadd.f32 %v1517, %v1681
      %v1714 = vadd.f32 %v1518, %v1682
      %v1715 = vadd.f32 %v1519, %v1683
      %v1716 = vadd.f32 %v1520, %v1684
      %v1717 = vadd.f32 %v1521, %v1685
      %v1718 = vadd.f32 %v1522, %v1686
      %v1719 = vadd.f32 %v1523, %v1687
      %v1720 = vadd.f32 %v1524, %v1688
      %v1721 = vadd.f32 %v1525, %v1689
      %v1722 = vadd.f32 %v1526, %v1690
      %v1723 = vadd.f32 %v1527, %v1691
      %v1724 = vadd.f32 %v1528, %v1692
      %v1725 = vadd.f32 %v1529, %v1693
      %v1726 = vadd.f32 %v1530, %v1694
      %1727 = vset.pattern.permute.xlu0 7
      %1728 = vperm.xlu0 %1727, %v322
      %v1729 = vpop.permute.xlu0 %1728
      %1731 = vset.pattern.permute.xlu0 7
      %1732 = vperm.xlu0 %1731, %v323
      %v1733 = vpop.permute.xlu0 %1732
      %1735 = vset.pattern.permute.xlu0 7
      %1736 = vperm.xlu0 %1735, %v324
      %v1737 = vpop.permute.xlu0 %1736
      %1739 = vset.pattern.permute.xlu0 7
      %1740 = vperm.xlu0 %1739, %v325
      %v1741 = vpop.permute.xlu0 %1740
      %1743 = vset.pattern.permute.xlu0 7
      %1744 = vperm.xlu0 %1743, %v326
      %v1745 = vpop.permute.xlu0 %1744
      %1747 = vset.pattern.permute.xlu0 7
      %1748 = vperm.xlu0 %1747, %v327
      %v1749 = vpop.permute.xlu0 %1748
      %1751 = vset.pattern.permute.xlu0 7
      %1752 = vperm.xlu0 %1751, %v328
      %v1753 = vpop.permute.xlu0 %1752
      %1755 = vset.pattern.permute.xlu0 7
      %1756 = vperm.xlu0 %1755, %v329
      %v1757 = vpop.permute.xlu0 %1756
      %1759 = vset.pattern.permute.xlu0 7
      %1760 = vperm.xlu0 %1759, %v330
      %v1761 = vpop.permute.xlu0 %1760
      %1763 = vset.pattern.permute.xlu0 7
      %1764 = vperm.xlu0 %1763, %v331
      %v1765 = vpop.permute.xlu0 %1764
      %1767 = vset.pattern.permute.xlu0 7
      %1768 = vperm.xlu0 %1767, %v332
      %v1769 = vpop.permute.xlu0 %1768
      %1771 = vset.pattern.permute.xlu0 7
      %1772 = vperm.xlu0 %1771, %v333
      %v1773 = vpop.permute.xlu0 %1772
      %1775 = vset.pattern.permute.xlu0 7
      %1776 = vperm.xlu0 %1775, %v334
      %v1777 = vpop.permute.xlu0 %1776
      %1779 = vset.pattern.permute.xlu0 7
      %1780 = vperm.xlu0 %1779, %v335
      %v1781 = vpop.permute.xlu0 %1780
      %1783 = vset.pattern.permute.xlu0 7
      %1784 = vperm.xlu0 %1783, %v336
      %v1785 = vpop.permute.xlu0 %1784
      %1787 = vset.pattern.permute.xlu0 7
      %1788 = vperm.xlu0 %1787, %v337
      %v1789 = vpop.permute.xlu0 %1788
      %1791 = vset.pattern.permute.xlu0 7
      %1792 = vperm.xlu0 %1791, %v338
      %v1793 = vpop.permute.xlu0 %1792
      %1795 = vset.pattern.permute.xlu0 7
      %1796 = vperm.xlu0 %1795, %v339
      %v1797 = vpop.permute.xlu0 %1796
      %1799 = vset.pattern.permute.xlu0 7
      %1800 = vperm.xlu0 %1799, %v340
      %v1801 = vpop.permute.xlu0 %1800
      %1803 = vset.pattern.permute.xlu0 7
      %1804 = vperm.xlu0 %1803, %v341
      %v1805 = vpop.permute.xlu0 %1804
      %1807 = vset.pattern.permute.xlu0 7
      %1808 = vperm.xlu0 %1807, %v342
      %v1809 = vpop.permute.xlu0 %1808
      %1811 = vset.pattern.permute.xlu0 7
      %1812 = vperm.xlu0 %1811, %v343
      %v1813 = vpop.permute.xlu0 %1812
      %1815 = vset.pattern.permute.xlu0 7
      %1816 = vperm.xlu0 %1815, %v344
      %v1817 = vpop.permute.xlu0 %1816
      %1819 = vset.pattern.permute.xlu0 7
      %1820 = vperm.xlu0 %1819, %v345
      %v1821 = vpop.permute.xlu0 %1820
      %1823 = vset.pattern.permute.xlu0 7
      %1824 = vperm.xlu0 %1823, %v346
      %v1825 = vpop.permute.xlu0 %1824
      %1827 = vset.pattern.permute.xlu0 7
      %1828 = vperm.xlu0 %1827, %v347
      %v1829 = vpop.permute.xlu0 %1828
      %1831 = vset.pattern.permute.xlu0 7
      %1832 = vperm.xlu0 %1831, %v348
      %v1833 = vpop.permute.xlu0 %1832
      %1835 = vset.pattern.permute.xlu0 7
      %1836 = vperm.xlu0 %1835, %v349
      %v1837 = vpop.permute.xlu0 %1836
      %1839 = vset.pattern.permute.xlu0 7
      %1840 = vperm.xlu0 %1839, %v350
      %v1841 = vpop.permute.xlu0 %1840
      %1843 = vset.pattern.permute.xlu0 7
      %1844 = vperm.xlu0 %1843, %v351
      %v1845 = vpop.permute.xlu0 %1844
      %1847 = vset.pattern.permute.xlu0 7
      %1848 = vperm.xlu0 %1847, %v352
      %v1849 = vpop.permute.xlu0 %1848
      %1851 = vset.pattern.permute.xlu0 7
      %1852 = vperm.xlu0 %1851, %v353
      %v1853 = vpop.permute.xlu0 %1852
      %v1855 = vlaneseq
      %v1856 = vshrl.u32 %v1855, 7
      %v1857 = vsub.s32 7, %v1856
      %v1858 = vrot.slane %v354, %v1857
      %v1859 = vmul.f32 %v1729, %v1858
      %v1860 = vmul.f32 %v1733, %v1858
      %v1861 = vmul.f32 %v1737, %v1858
      %v1862 = vmul.f32 %v1741, %v1858
      %v1863 = vmul.f32 %v1745, %v1858
      %v1864 = vmul.f32 %v1749, %v1858
      %v1865 = vmul.f32 %v1753, %v1858
      %v1866 = vmul.f32 %v1757, %v1858
      %v1867 = vmul.f32 %v1761, %v1858
      %v1868 = vmul.f32 %v1765, %v1858
      %v1869 = vmul.f32 %v1769, %v1858
      %v1870 = vmul.f32 %v1773, %v1858
      %v1871 = vmul.f32 %v1777, %v1858
      %v1872 = vmul.f32 %v1781, %v1858
      %v1873 = vmul.f32 %v1785, %v1858
      %v1874 = vmul.f32 %v1789, %v1858
      %v1875 = vmul.f32 %v1793, %v1858
      %v1876 = vmul.f32 %v1797, %v1858
      %v1877 = vmul.f32 %v1801, %v1858
      %v1878 = vmul.f32 %v1805, %v1858
      %v1879 = vmul.f32 %v1809, %v1858
      %v1880 = vmul.f32 %v1813, %v1858
      %v1881 = vmul.f32 %v1817, %v1858
      %v1882 = vmul.f32 %v1821, %v1858
      %v1883 = vmul.f32 %v1825, %v1858
      %v1884 = vmul.f32 %v1829, %v1858
      %v1885 = vmul.f32 %v1833, %v1858
      %v1886 = vmul.f32 %v1837, %v1858
      %v1887 = vmul.f32 %v1841, %v1858
      %v1888 = vmul.f32 %v1845, %v1858
      %v1889 = vmul.f32 %v1849, %v1858
      %v1890 = vmul.f32 %v1853, %v1858
      %v1891 = vadd.f32 %v1695, %v1859
      %v1892 = vadd.f32 %v1696, %v1860
      %v1893 = vadd.f32 %v1697, %v1861
      %v1894 = vadd.f32 %v1698, %v1862
      %v1895 = vadd.f32 %v1699, %v1863
      %v1896 = vadd.f32 %v1700, %v1864
      %v1897 = vadd.f32 %v1701, %v1865
      %v1898 = vadd.f32 %v1702, %v1866
      %v1899 = vadd.f32 %v1703, %v1867
      %v1900 = vadd.f32 %v1704, %v1868
      %v1901 = vadd.f32 %v1705, %v1869
      %v1902 = vadd.f32 %v1706, %v1870
      %v1903 = vadd.f32 %v1707, %v1871
      %v1904 = vadd.f32 %v1708, %v1872
      %v1905 = vadd.f32 %v1709, %v1873
      %v1906 = vadd.f32 %v1710, %v1874
      %v1907 = vadd.f32 %v1711, %v1875
      %v1908 = vadd.f32 %v1712, %v1876
      %v1909 = vadd.f32 %v1713, %v1877
      %v1910 = vadd.f32 %v1714, %v1878
      %v1911 = vadd.f32 %v1715, %v1879
      %v1912 = vadd.f32 %v1716, %v1880
      %v1913 = vadd.f32 %v1717, %v1881
      %v1914 = vadd.f32 %v1718, %v1882
      %v1915 = vadd.f32 %v1719, %v1883
      %v1916 = vadd.f32 %v1720, %v1884
      %v1917 = vadd.f32 %v1721, %v1885
      %v1918 = vadd.f32 %v1722, %v1886
      %v1919 = vadd.f32 %v1723, %v1887
      %v1920 = vadd.f32 %v1724, %v1888
      %v1921 = vadd.f32 %v1725, %v1889
      %v1922 = vadd.f32 %v1726, %v1890
      %v1923 = vunpack.c.l.bf16 %v321
      %1924 = vset.pattern.permute.xlu0 8
      %1925 = vperm.xlu0 %1924, %v322
      %v1926 = vpop.permute.xlu0 %1925
      %1928 = vset.pattern.permute.xlu0 8
      %1929 = vperm.xlu0 %1928, %v323
      %v1930 = vpop.permute.xlu0 %1929
      %1932 = vset.pattern.permute.xlu0 8
      %1933 = vperm.xlu0 %1932, %v324
      %v1934 = vpop.permute.xlu0 %1933
      %1936 = vset.pattern.permute.xlu0 8
      %1937 = vperm.xlu0 %1936, %v325
      %v1938 = vpop.permute.xlu0 %1937
      %1940 = vset.pattern.permute.xlu0 8
      %1941 = vperm.xlu0 %1940, %v326
      %v1942 = vpop.permute.xlu0 %1941
      %1944 = vset.pattern.permute.xlu0 8
      %1945 = vperm.xlu0 %1944, %v327
      %v1946 = vpop.permute.xlu0 %1945
      %1948 = vset.pattern.permute.xlu0 8
      %1949 = vperm.xlu0 %1948, %v328
      %v1950 = vpop.permute.xlu0 %1949
      %1952 = vset.pattern.permute.xlu0 8
      %1953 = vperm.xlu0 %1952, %v329
      %v1954 = vpop.permute.xlu0 %1953
      %1956 = vset.pattern.permute.xlu0 8
      %1957 = vperm.xlu0 %1956, %v330
      %v1958 = vpop.permute.xlu0 %1957
      %1960 = vset.pattern.permute.xlu0 8
      %1961 = vperm.xlu0 %1960, %v331
      %v1962 = vpop.permute.xlu0 %1961
      %1964 = vset.pattern.permute.xlu0 8
      %1965 = vperm.xlu0 %1964, %v332
      %v1966 = vpop.permute.xlu0 %1965
      %1968 = vset.pattern.permute.xlu0 8
      %1969 = vperm.xlu0 %1968, %v333
      %v1970 = vpop.permute.xlu0 %1969
      %1972 = vset.pattern.permute.xlu0 8
      %1973 = vperm.xlu0 %1972, %v334
      %v1974 = vpop.permute.xlu0 %1973
      %1976 = vset.pattern.permute.xlu0 8
      %1977 = vperm.xlu0 %1976, %v335
      %v1978 = vpop.permute.xlu0 %1977
      %1980 = vset.pattern.permute.xlu0 8
      %1981 = vperm.xlu0 %1980, %v336
      %v1982 = vpop.permute.xlu0 %1981
      %1984 = vset.pattern.permute.xlu0 8
      %1985 = vperm.xlu0 %1984, %v337
      %v1986 = vpop.permute.xlu0 %1985
      %1988 = vset.pattern.permute.xlu0 8
      %1989 = vperm.xlu0 %1988, %v338
      %v1990 = vpop.permute.xlu0 %1989
      %1992 = vset.pattern.permute.xlu0 8
      %1993 = vperm.xlu0 %1992, %v339
      %v1994 = vpop.permute.xlu0 %1993
      %1996 = vset.pattern.permute.xlu0 8
      %1997 = vperm.xlu0 %1996, %v340
      %v1998 = vpop.permute.xlu0 %1997
      %2000 = vset.pattern.permute.xlu0 8
      %2001 = vperm.xlu0 %2000, %v341
      %v2002 = vpop.permute.xlu0 %2001
      %2004 = vset.pattern.permute.xlu0 8
      %2005 = vperm.xlu0 %2004, %v342
      %v2006 = vpop.permute.xlu0 %2005
      %2008 = vset.pattern.permute.xlu0 8
      %2009 = vperm.xlu0 %2008, %v343
      %v2010 = vpop.permute.xlu0 %2009
      %2012 = vset.pattern.permute.xlu0 8
      %2013 = vperm.xlu0 %2012, %v344
      %v2014 = vpop.permute.xlu0 %2013
      %2016 = vset.pattern.permute.xlu0 8
      %2017 = vperm.xlu0 %2016, %v345
      %v2018 = vpop.permute.xlu0 %2017
      %2020 = vset.pattern.permute.xlu0 8
      %2021 = vperm.xlu0 %2020, %v346
      %v2022 = vpop.permute.xlu0 %2021
      %2024 = vset.pattern.permute.xlu0 8
      %2025 = vperm.xlu0 %2024, %v347
      %v2026 = vpop.permute.xlu0 %2025
      %2028 = vset.pattern.permute.xlu0 8
      %2029 = vperm.xlu0 %2028, %v348
      %v2030 = vpop.permute.xlu0 %2029
      %2032 = vset.pattern.permute.xlu0 8
      %2033 = vperm.xlu0 %2032, %v349
      %v2034 = vpop.permute.xlu0 %2033
      %2036 = vset.pattern.permute.xlu0 8
      %2037 = vperm.xlu0 %2036, %v350
      %v2038 = vpop.permute.xlu0 %2037
      %2040 = vset.pattern.permute.xlu0 8
      %2041 = vperm.xlu0 %2040, %v351
      %v2042 = vpop.permute.xlu0 %2041
      %2044 = vset.pattern.permute.xlu0 8
      %2045 = vperm.xlu0 %2044, %v352
      %v2046 = vpop.permute.xlu0 %2045
      %2048 = vset.pattern.permute.xlu0 8
      %2049 = vperm.xlu0 %2048, %v353
      %v2050 = vpop.permute.xlu0 %2049
      %v2052 = vlaneseq
      %v2053 = vshrl.u32 %v2052, 7
      %v2054 = vsub.s32 0, %v2053
      %v2055 = vrot.slane %v1923, %v2054
      %v2056 = vmul.f32 %v1926, %v2055
      %v2057 = vmul.f32 %v1930, %v2055
      %v2058 = vmul.f32 %v1934, %v2055
      %v2059 = vmul.f32 %v1938, %v2055
      %v2060 = vmul.f32 %v1942, %v2055
      %v2061 = vmul.f32 %v1946, %v2055
      %v2062 = vmul.f32 %v1950, %v2055
      %v2063 = vmul.f32 %v1954, %v2055
      %v2064 = vmul.f32 %v1958, %v2055
      %v2065 = vmul.f32 %v1962, %v2055
      %v2066 = vmul.f32 %v1966, %v2055
      %v2067 = vmul.f32 %v1970, %v2055
      %v2068 = vmul.f32 %v1974, %v2055
      %v2069 = vmul.f32 %v1978, %v2055
      %v2070 = vmul.f32 %v1982, %v2055
      %v2071 = vmul.f32 %v1986, %v2055
      %v2072 = vmul.f32 %v1990, %v2055
      %v2073 = vmul.f32 %v1994, %v2055
      %v2074 = vmul.f32 %v1998, %v2055
      %v2075 = vmul.f32 %v2002, %v2055
      %v2076 = vmul.f32 %v2006, %v2055
      %v2077 = vmul.f32 %v2010, %v2055
      %v2078 = vmul.f32 %v2014, %v2055
      %v2079 = vmul.f32 %v2018, %v2055
      %v2080 = vmul.f32 %v2022, %v2055
      %v2081 = vmul.f32 %v2026, %v2055
      %v2082 = vmul.f32 %v2030, %v2055
      %v2083 = vmul.f32 %v2034, %v2055
      %v2084 = vmul.f32 %v2038, %v2055
      %v2085 = vmul.f32 %v2042, %v2055
      %v2086 = vmul.f32 %v2046, %v2055
      %v2087 = vmul.f32 %v2050, %v2055
      %v2088 = vadd.f32 %v1891, %v2056
      %v2089 = vadd.f32 %v1892, %v2057
      %v2090 = vadd.f32 %v1893, %v2058
      %v2091 = vadd.f32 %v1894, %v2059
      %v2092 = vadd.f32 %v1895, %v2060
      %v2093 = vadd.f32 %v1896, %v2061
      %v2094 = vadd.f32 %v1897, %v2062
      %v2095 = vadd.f32 %v1898, %v2063
      %v2096 = vadd.f32 %v1899, %v2064
      %v2097 = vadd.f32 %v1900, %v2065
      %v2098 = vadd.f32 %v1901, %v2066
      %v2099 = vadd.f32 %v1902, %v2067
      %v2100 = vadd.f32 %v1903, %v2068
      %v2101 = vadd.f32 %v1904, %v2069
      %v2102 = vadd.f32 %v1905, %v2070
      %v2103 = vadd.f32 %v1906, %v2071
      %v2104 = vadd.f32 %v1907, %v2072
      %v2105 = vadd.f32 %v1908, %v2073
      %v2106 = vadd.f32 %v1909, %v2074
      %v2107 = vadd.f32 %v1910, %v2075
      %v2108 = vadd.f32 %v1911, %v2076
      %v2109 = vadd.f32 %v1912, %v2077
      %v2110 = vadd.f32 %v1913, %v2078
      %v2111 = vadd.f32 %v1914, %v2079
      %v2112 = vadd.f32 %v1915, %v2080
      %v2113 = vadd.f32 %v1916, %v2081
      %v2114 = vadd.f32 %v1917, %v2082
      %v2115 = vadd.f32 %v1918, %v2083
      %v2116 = vadd.f32 %v1919, %v2084
      %v2117 = vadd.f32 %v1920, %v2085
      %v2118 = vadd.f32 %v1921, %v2086
      %v2119 = vadd.f32 %v1922, %v2087
      %v2120 = vadd.f32 %v256, %v2088
      %v2121 = vadd.f32 %v257, %v2089
      %v2122 = vadd.f32 %v258, %v2090
      %v2123 = vadd.f32 %v259, %v2091
      %v2124 = vadd.f32 %v260, %v2092
      %v2125 = vadd.f32 %v261, %v2093
      %v2126 = vadd.f32 %v262, %v2094
      %v2127 = vadd.f32 %v263, %v2095
      %v2128 = vadd.f32 %v264, %v2096
      %v2129 = vadd.f32 %v265, %v2097
      %v2130 = vadd.f32 %v266, %v2098
      %v2131 = vadd.f32 %v267, %v2099
      %v2132 = vadd.f32 %v268, %v2100
      %v2133 = vadd.f32 %v269, %v2101
      %v2134 = vadd.f32 %v270, %v2102
      %v2135 = vadd.f32 %v271, %v2103
      %v2136 = vadd.f32 %v272, %v2104
      %v2137 = vadd.f32 %v273, %v2105
      %v2138 = vadd.f32 %v274, %v2106
      %v2139 = vadd.f32 %v275, %v2107
      %v2140 = vadd.f32 %v276, %v2108
      %v2141 = vadd.f32 %v277, %v2109
      %v2142 = vadd.f32 %v278, %v2110
      %v2143 = vadd.f32 %v279, %v2111
      %v2144 = vadd.f32 %v280, %v2112
      %v2145 = vadd.f32 %v281, %v2113
      %v2146 = vadd.f32 %v282, %v2114
      %v2147 = vadd.f32 %v283, %v2115
      %v2148 = vadd.f32 %v284, %v2116
      %v2149 = vadd.f32 %v285, %v2117
      %v2150 = vadd.f32 %v286, %v2118
      %v2151 = vadd.f32 %v287, %v2119
      %vm2152 = vcmask 523264
      %2153 = vst.msk [vmem:[#allocation2] sm:$0xff] %vm2152, %v2120
      %2154 = vst.msk [vmem:[#allocation2 + $0x8] sm:$0xff] %vm2152, %v2121
      %2155 = vst.msk [vmem:[#allocation2 + $0x10] sm:$0xff] %vm2152, %v2122
      %2156 = vst.msk [vmem:[#allocation2 + $0x18] sm:$0xff] %vm2152, %v2123
      %2157 = vst.msk [vmem:[#allocation2 + $0x20] sm:$0xff] %vm2152, %v2124
      %2158 = vst.msk [vmem:[#allocation2 + $0x28] sm:$0xff] %vm2152, %v2125
      %2159 = vst.msk [vmem:[#allocation2 + $0x30] sm:$0xff] %vm2152, %v2126
      %2160 = vst.msk [vmem:[#allocation2 + $0x38] sm:$0xff] %vm2152, %v2127
      %2161 = vst.msk [vmem:[#allocation2 + $0x40] sm:$0xff] %vm2152, %v2128
      %2162 = vst.msk [vmem:[#allocation2 + $0x48] sm:$0xff] %vm2152, %v2129
      %2163 = vst.msk [vmem:[#allocation2 + $0x50] sm:$0xff] %vm2152, %v2130
      %2164 = vst.msk [vmem:[#allocation2 + $0x58] sm:$0xff] %vm2152, %v2131
      %2165 = vst.msk [vmem:[#allocation2 + $0x60] sm:$0xff] %vm2152, %v2132
      %2166 = vst.msk [vmem:[#allocation2 + $0x68] sm:$0xff] %vm2152, %v2133
      %2167 = vst.msk [vmem:[#allocation2 + $0x70] sm:$0xff] %vm2152, %v2134
      %2168 = vst.msk [vmem:[#allocation2 + $0x78] sm:$0xff] %vm2152, %v2135
      %2169 = vst.msk [vmem:[#allocation2 + $0x80] sm:$0xff] %vm2152, %v2136
      %2170 = vst.msk [vmem:[#allocation2 + $0x88] sm:$0xff] %vm2152, %v2137
      %2171 = vst.msk [vmem:[#allocation2 + $0x90] sm:$0xff] %vm2152, %v2138
      %2172 = vst.msk [vmem:[#allocation2 + $0x98] sm:$0xff] %vm2152, %v2139
      %2173 = vst.msk [vmem:[#allocation2 + $0xa0] sm:$0xff] %vm2152, %v2140
      %2174 = vst.msk [vmem:[#allocation2 + $0xa8] sm:$0xff] %vm2152, %v2141
      %2175 = vst.msk [vmem:[#allocation2 + $0xb0] sm:$0xff] %vm2152, %v2142
      %2176 = vst.msk [vmem:[#allocation2 + $0xb8] sm:$0xff] %vm2152, %v2143
      %2177 = vst.msk [vmem:[#allocation2 + $0xc0] sm:$0xff] %vm2152, %v2144
      %2178 = vst.msk [vmem:[#allocation2 + $0xc8] sm:$0xff] %vm2152, %v2145
      %2179 = vst.msk [vmem:[#allocation2 + $0xd0] sm:$0xff] %vm2152, %v2146
      %2180 = vst.msk [vmem:[#allocation2 + $0xd8] sm:$0xff] %vm2152, %v2147
      %2181 = vst.msk [vmem:[#allocation2 + $0xe0] sm:$0xff] %vm2152, %v2148
      %2182 = vst.msk [vmem:[#allocation2 + $0xe8] sm:$0xff] %vm2152, %v2149
      %2183 = vst.msk [vmem:[#allocation2 + $0xf0] sm:$0xff] %vm2152, %v2150
      %2184 = vst.msk [vmem:[#allocation2 + $0xf8] sm:$0xff] %vm2152, %v2151
      // Predicated region
      $region37: #{discriminator_forward.7} parent=31 // pred_check
        %p2185 = pneg %p219
      $region38: #{discriminator_forward.7} parent=31 // pred_check_branch
        %2187 = sbr.rel (%p2185) target = $region40
      $region39: #{discriminator_forward.7} parent=31 // pred_region
        %v2188 = vld [vmem:[#allocation2] sm:$0xff]
        %v2189 = vld [vmem:[#allocation2 + $0x8] sm:$0xff]
        %v2190 = vld [vmem:[#allocation2 + $0x10] sm:$0xff]
        %v2191 = vld [vmem:[#allocation2 + $0x18] sm:$0xff]
        %v2192 = vld [vmem:[#allocation2 + $0x20] sm:$0xff]
        %v2193 = vld [vmem:[#allocation2 + $0x28] sm:$0xff]
        %v2194 = vld [vmem:[#allocation2 + $0x30] sm:$0xff]
        %v2195 = vld [vmem:[#allocation2 + $0x38] sm:$0xff]
        %v2196 = vld [vmem:[#allocation2 + $0x40] sm:$0xff]
        %v2197 = vld [vmem:[#allocation2 + $0x48] sm:$0xff]
        %v2198 = vld [vmem:[#allocation2 + $0x50] sm:$0xff]
        %v2199 = vld [vmem:[#allocation2 + $0x58] sm:$0xff]
        %v2200 = vld [vmem:[#allocation2 + $0x60] sm:$0xff]
        %v2201 = vld [vmem:[#allocation2 + $0x68] sm:$0xff]
        %v2202 = vld [vmem:[#allocation2 + $0x70] sm:$0xff]
        %v2203 = vld [vmem:[#allocation2 + $0x78] sm:$0xff]
        %v2204 = vld [vmem:[#allocation2 + $0x80] sm:$0xff]
        %v2205 = vld [vmem:[#allocation2 + $0x88] sm:$0xff]
        %v2206 = vld [vmem:[#allocation2 + $0x90] sm:$0xff]
        %v2207 = vld [vmem:[#allocation2 + $0x98] sm:$0xff]
        %v2208 = vld [vmem:[#allocation2 + $0xa0] sm:$0xff]
        %v2209 = vld [vmem:[#allocation2 + $0xa8] sm:$0xff]
        %v2210 = vld [vmem:[#allocation2 + $0xb0] sm:$0xff]
        %v2211 = vld [vmem:[#allocation2 + $0xb8] sm:$0xff]
        %v2212 = vld [vmem:[#allocation2 + $0xc0] sm:$0xff]
        %v2213 = vld [vmem:[#allocation2 + $0xc8] sm:$0xff]
        %v2214 = vld [vmem:[#allocation2 + $0xd0] sm:$0xff]
        %v2215 = vld [vmem:[#allocation2 + $0xd8] sm:$0xff]
        %v2216 = vld [vmem:[#allocation2 + $0xe0] sm:$0xff]
        %v2217 = vld [vmem:[#allocation2 + $0xe8] sm:$0xff]
        %v2218 = vld [vmem:[#allocation2 + $0xf0] sm:$0xff]
        %v2219 = vld [vmem:[#allocation2 + $0xf8] sm:$0xff]
        %v2220 = vld [vmem:[%s2] sm:$0x1]
        %v2222 = vlaneseq
        %v2223 = vshrl.u32 %v2222, 7
        %v2224 = vsub.s32 0, %v2223
        %v2225 = vrot.slane %v2220, %v2224
        %v2227 = vadd.f32 %v2188, %v2225
        %v2228 = vadd.f32 %v2189, %v2225
        %v2229 = vadd.f32 %v2190, %v2225
        %v2230 = vadd.f32 %v2191, %v2225
        %v2231 = vadd.f32 %v2192, %v2225
        %v2232 = vadd.f32 %v2193, %v2225
        %v2233 = vadd.f32 %v2194, %v2225
        %v2234 = vadd.f32 %v2195, %v2225
        %v2235 = vadd.f32 %v2196, %v2225
        %v2236 = vadd.f32 %v2197, %v2225
        %v2237 = vadd.f32 %v2198, %v2225
        %v2238 = vadd.f32 %v2199, %v2225
        %v2239 = vadd.f32 %v2200, %v2225
        %v2240 = vadd.f32 %v2201, %v2225
        %v2241 = vadd.f32 %v2202, %v2225
        %v2242 = vadd.f32 %v2203, %v2225
        %v2243 = vadd.f32 %v2204, %v2225
        %v2244 = vadd.f32 %v2205, %v2225
        %v2245 = vadd.f32 %v2206, %v2225
        %v2246 = vadd.f32 %v2207, %v2225
        %v2247 = vadd.f32 %v2208, %v2225
        %v2248 = vadd.f32 %v2209, %v2225
        %v2249 = vadd.f32 %v2210, %v2225
        %v2250 = vadd.f32 %v2211, %v2225
        %v2251 = vadd.f32 %v2212, %v2225
        %v2252 = vadd.f32 %v2213, %v2225
        %v2253 = vadd.f32 %v2214, %v2225
        %v2254 = vadd.f32 %v2215, %v2225
        %v2255 = vadd.f32 %v2216, %v2225
        %v2256 = vadd.f32 %v2217, %v2225
        %v2257 = vadd.f32 %v2218, %v2225
        %v2258 = vadd.f32 %v2219, %v2225
        %vm2259 = vcmp.ge.f32.partialorder %v2227, 0.0
        %vm2260 = vcmp.ge.f32.partialorder %v2228, 0.0
        %vm2261 = vcmp.ge.f32.partialorder %v2229, 0.0
        %vm2262 = vcmp.ge.f32.partialorder %v2230, 0.0
        %vm2263 = vcmp.ge.f32.partialorder %v2231, 0.0
        %vm2264 = vcmp.ge.f32.partialorder %v2232, 0.0
        %vm2265 = vcmp.ge.f32.partialorder %v2233, 0.0
        %vm2266 = vcmp.ge.f32.partialorder %v2234, 0.0
        %vm2267 = vcmp.ge.f32.partialorder %v2235, 0.0
        %vm2268 = vcmp.ge.f32.partialorder %v2236, 0.0
        %vm2269 = vcmp.ge.f32.partialorder %v2237, 0.0
        %vm2270 = vcmp.ge.f32.partialorder %v2238, 0.0
        %vm2271 = vcmp.ge.f32.partialorder %v2239, 0.0
        %vm2272 = vcmp.ge.f32.partialorder %v2240, 0.0
        %vm2273 = vcmp.ge.f32.partialorder %v2241, 0.0
        %vm2274 = vcmp.ge.f32.partialorder %v2242, 0.0
        %vm2275 = vcmp.ge.f32.partialorder %v2243, 0.0
        %vm2276 = vcmp.ge.f32.partialorder %v2244, 0.0
        %vm2277 = vcmp.ge.f32.partialorder %v2245, 0.0
        %vm2278 = vcmp.ge.f32.partialorder %v2246, 0.0
        %vm2279 = vcmp.ge.f32.partialorder %v2247, 0.0
        %vm2280 = vcmp.ge.f32.partialorder %v2248, 0.0
        %vm2281 = vcmp.ge.f32.partialorder %v2249, 0.0
        %vm2282 = vcmp.ge.f32.partialorder %v2250, 0.0
        %vm2283 = vcmp.ge.f32.partialorder %v2251, 0.0
        %vm2284 = vcmp.ge.f32.partialorder %v2252, 0.0
        %vm2285 = vcmp.ge.f32.partialorder %v2253, 0.0
        %vm2286 = vcmp.ge.f32.partialorder %v2254, 0.0
        %vm2287 = vcmp.ge.f32.partialorder %v2255, 0.0
        %vm2288 = vcmp.ge.f32.partialorder %v2256, 0.0
        %vm2289 = vcmp.ge.f32.partialorder %v2257, 0.0
        %vm2290 = vcmp.ge.f32.partialorder %v2258, 0.0
        %v2291 = vmul.f32 %v2227, 0.01
        %v2292 = vmul.f32 %v2228, 0.01
        %v2293 = vmul.f32 %v2229, 0.01
        %v2294 = vmul.f32 %v2230, 0.01
        %v2295 = vmul.f32 %v2231, 0.01
        %v2296 = vmul.f32 %v2232, 0.01
        %v2297 = vmul.f32 %v2233, 0.01
        %v2298 = vmul.f32 %v2234, 0.01
        %v2299 = vmul.f32 %v2235, 0.01
        %v2300 = vmul.f32 %v2236, 0.01
        %v2301 = vmul.f32 %v2237, 0.01
        %v2302 = vmul.f32 %v2238, 0.01
        %v2303 = vmul.f32 %v2239, 0.01
        %v2304 = vmul.f32 %v2240, 0.01
        %v2305 = vmul.f32 %v2241, 0.01
        %v2306 = vmul.f32 %v2242, 0.01
        %v2307 = vmul.f32 %v2243, 0.01
        %v2308 = vmul.f32 %v2244, 0.01
        %v2309 = vmul.f32 %v2245, 0.01
        %v2310 = vmul.f32 %v2246, 0.01
        %v2311 = vmul.f32 %v2247, 0.01
        %v2312 = vmul.f32 %v2248, 0.01
        %v2313 = vmul.f32 %v2249, 0.01
        %v2314 = vmul.f32 %v2250, 0.01
        %v2315 = vmul.f32 %v2251, 0.01
        %v2316 = vmul.f32 %v2252, 0.01
        %v2317 = vmul.f32 %v2253, 0.01
        %v2318 = vmul.f32 %v2254, 0.01
        %v2319 = vmul.f32 %v2255, 0.01
        %v2320 = vmul.f32 %v2256, 0.01
        %v2321 = vmul.f32 %v2257, 0.01
        %v2322 = vmul.f32 %v2258, 0.01
        %v2323 = vsel %vm2259, %v2227, %v2291
        %v2324 = vsel %vm2260, %v2228, %v2292
        %v2325 = vsel %vm2261, %v2229, %v2293
        %v2326 = vsel %vm2262, %v2230, %v2294
        %v2327 = vsel %vm2263, %v2231, %v2295
        %v2328 = vsel %vm2264, %v2232, %v2296
        %v2329 = vsel %vm2265, %v2233, %v2297
        %v2330 = vsel %vm2266, %v2234, %v2298
        %v2331 = vsel %vm2267, %v2235, %v2299
        %v2332 = vsel %vm2268, %v2236, %v2300
        %v2333 = vsel %vm2269, %v2237, %v2301
        %v2334 = vsel %vm2270, %v2238, %v2302
        %v2335 = vsel %vm2271, %v2239, %v2303
        %v2336 = vsel %vm2272, %v2240, %v2304
        %v2337 = vsel %vm2273, %v2241, %v2305
        %v2338 = vsel %vm2274, %v2242, %v2306
        %v2339 = vsel %vm2275, %v2243, %v2307
        %v2340 = vsel %vm2276, %v2244, %v2308
        %v2341 = vsel %vm2277, %v2245, %v2309
        %v2342 = vsel %vm2278, %v2246, %v2310
        %v2343 = vsel %vm2279, %v2247, %v2311
        %v2344 = vsel %vm2280, %v2248, %v2312
        %v2345 = vsel %vm2281, %v2249, %v2313
        %v2346 = vsel %vm2282, %v2250, %v2314
        %v2347 = vsel %vm2283, %v2251, %v2315
        %v2348 = vsel %vm2284, %v2252, %v2316
        %v2349 = vsel %vm2285, %v2253, %v2317
        %v2350 = vsel %vm2286, %v2254, %v2318
        %v2351 = vsel %vm2287, %v2255, %v2319
        %v2352 = vsel %vm2288, %v2256, %v2320
        %v2353 = vsel %vm2289, %v2257, %v2321
        %v2354 = vsel %vm2290, %v2258, %v2322
        %v2355 = vpack.c.bf16 %v2324, %v2323
        %v2356 = vpack.c.bf16 %v2326, %v2325
        %v2357 = vpack.c.bf16 %v2328, %v2327
        %v2358 = vpack.c.bf16 %v2330, %v2329
        %v2359 = vpack.c.bf16 %v2332, %v2331
        %v2360 = vpack.c.bf16 %v2334, %v2333
        %v2361 = vpack.c.bf16 %v2336, %v2335
        %v2362 = vpack.c.bf16 %v2338, %v2337
        %v2363 = vpack.c.bf16 %v2340, %v2339
        %v2364 = vpack.c.bf16 %v2342, %v2341
        %v2365 = vpack.c.bf16 %v2344, %v2343
        %v2366 = vpack.c.bf16 %v2346, %v2345
        %v2367 = vpack.c.bf16 %v2348, %v2347
        %v2368 = vpack.c.bf16 %v2350, %v2349
        %v2369 = vpack.c.bf16 %v2352, %v2351
        %v2370 = vpack.c.bf16 %v2354, %v2353
        %v2387 = vunpack.c.l.b16 %v2355
        %v2388 = vunpack.c.h.b16 %v2355
        %v2389 = vunpack.c.l.b16 %v2356
        %v2390 = vunpack.c.h.b16 %v2356
        %v2391 = vunpack.c.l.b16 %v2357
        %v2392 = vunpack.c.h.b16 %v2357
        %v2393 = vunpack.c.l.b16 %v2358
        %v2394 = vunpack.c.h.b16 %v2358
        %v2395 = vunpack.c.l.b16 %v2359
        %v2396 = vunpack.c.h.b16 %v2359
        %v2397 = vunpack.c.l.b16 %v2360
        %v2398 = vunpack.c.h.b16 %v2360
        %v2399 = vunpack.c.l.b16 %v2361
        %v2400 = vunpack.c.h.b16 %v2361
        %v2401 = vunpack.c.l.b16 %v2362
        %v2402 = vunpack.c.h.b16 %v2362
        %v2403 = vunpack.c.l.b16 %v2363
        %v2404 = vunpack.c.h.b16 %v2363
        %v2405 = vunpack.c.l.b16 %v2364
        %v2406 = vunpack.c.h.b16 %v2364
        %v2407 = vunpack.c.l.b16 %v2365
        %v2408 = vunpack.c.h.b16 %v2365
        %v2409 = vunpack.c.l.b16 %v2366
        %v2410 = vunpack.c.h.b16 %v2366
        %v2411 = vunpack.c.l.b16 %v2367
        %v2412 = vunpack.c.h.b16 %v2367
        %v2413 = vunpack.c.l.b16 %v2368
        %v2414 = vunpack.c.h.b16 %v2368
        %v2415 = vunpack.c.l.b16 %v2369
        %v2416 = vunpack.c.h.b16 %v2369
        %v2417 = vunpack.c.l.b16 %v2370
        %v2418 = vunpack.c.h.b16 %v2370
        %v2419 = vpack.c.b16 %v2387, %v2387
        %v2420 = vpack.c.b16 %v2388, %v2388
        %v2421 = vpack.c.b16 %v2389, %v2389
        %v2422 = vpack.c.b16 %v2390, %v2390
        %v2423 = vpack.c.b16 %v2391, %v2391
        %v2424 = vpack.c.b16 %v2392, %v2392
        %v2425 = vpack.c.b16 %v2393, %v2393
        %v2426 = vpack.c.b16 %v2394, %v2394
        %v2427 = vpack.c.b16 %v2395, %v2395
        %v2428 = vpack.c.b16 %v2396, %v2396
        %v2429 = vpack.c.b16 %v2397, %v2397
        %v2430 = vpack.c.b16 %v2398, %v2398
        %v2431 = vpack.c.b16 %v2399, %v2399
        %v2432 = vpack.c.b16 %v2400, %v2400
        %v2433 = vpack.c.b16 %v2401, %v2401
        %v2434 = vpack.c.b16 %v2402, %v2402
        %v2435 = vpack.c.b16 %v2403, %v2403
        %v2436 = vpack.c.b16 %v2404, %v2404
        %v2437 = vpack.c.b16 %v2405, %v2405
        %v2438 = vpack.c.b16 %v2406, %v2406
        %v2439 = vpack.c.b16 %v2407, %v2407
        %v2440 = vpack.c.b16 %v2408, %v2408
        %v2441 = vpack.c.b16 %v2409, %v2409
        %v2442 = vpack.c.b16 %v2410, %v2410
        %v2443 = vpack.c.b16 %v2411, %v2411
        %v2444 = vpack.c.b16 %v2412, %v2412
        %v2445 = vpack.c.b16 %v2413, %v2413
        %v2446 = vpack.c.b16 %v2414, %v2414
        %v2447 = vpack.c.b16 %v2415, %v2415
        %v2448 = vpack.c.b16 %v2416, %v2416
        %v2449 = vpack.c.b16 %v2417, %v2417
        %v2450 = vpack.c.b16 %v2418, %v2418
        %vm2483 = vcmask 519168
        %2484 = vst.msk [vmem:[%s217] sm:$0xf] %vm2483, %v2419
        %2485 = vst.msk [vmem:[%s217 + $0x4] sm:$0xf] %vm2483, %v2420
        %2486 = vst.msk [vmem:[%s217 + $0x8] sm:$0xf] %vm2483, %v2421
        %2487 = vst.msk [vmem:[%s217 + $0xc] sm:$0xf] %vm2483, %v2422
        %2488 = vst.msk [vmem:[%s217 + $0x10] sm:$0xf] %vm2483, %v2423
        %2489 = vst.msk [vmem:[%s217 + $0x14] sm:$0xf] %vm2483, %v2424
        %2490 = vst.msk [vmem:[%s217 + $0x18] sm:$0xf] %vm2483, %v2425
        %2491 = vst.msk [vmem:[%s217 + $0x1c] sm:$0xf] %vm2483, %v2426
        %2492 = vst.msk [vmem:[%s217 + $0x20] sm:$0xf] %vm2483, %v2427
        %2493 = vst.msk [vmem:[%s217 + $0x24] sm:$0xf] %vm2483, %v2428
        %2494 = vst.msk [vmem:[%s217 + $0x28] sm:$0xf] %vm2483, %v2429
        %2495 = vst.msk [vmem:[%s217 + $0x2c] sm:$0xf] %vm2483, %v2430
        %2496 = vst.msk [vmem:[%s217 + $0x30] sm:$0xf] %vm2483, %v2431
        %2497 = vst.msk [vmem:[%s217 + $0x34] sm:$0xf] %vm2483, %v2432
        %2498 = vst.msk [vmem:[%s217 + $0x38] sm:$0xf] %vm2483, %v2433
        %2499 = vst.msk [vmem:[%s217 + $0x3c] sm:$0xf] %vm2483, %v2434
        %2500 = vst.msk [vmem:[%s217 + $0x40] sm:$0xf] %vm2483, %v2435
        %2501 = vst.msk [vmem:[%s217 + $0x44] sm:$0xf] %vm2483, %v2436
        %2502 = vst.msk [vmem:[%s217 + $0x48] sm:$0xf] %vm2483, %v2437
        %2503 = vst.msk [vmem:[%s217 + $0x4c] sm:$0xf] %vm2483, %v2438
        %2504 = vst.msk [vmem:[%s217 + $0x50] sm:$0xf] %vm2483, %v2439
        %2505 = vst.msk [vmem:[%s217 + $0x54] sm:$0xf] %vm2483, %v2440
        %2506 = vst.msk [vmem:[%s217 + $0x58] sm:$0xf] %vm2483, %v2441
        %2507 = vst.msk [vmem:[%s217 + $0x5c] sm:$0xf] %vm2483, %v2442
        %2508 = vst.msk [vmem:[%s217 + $0x60] sm:$0xf] %vm2483, %v2443
        %2509 = vst.msk [vmem:[%s217 + $0x64] sm:$0xf] %vm2483, %v2444
        %2510 = vst.msk [vmem:[%s217 + $0x68] sm:$0xf] %vm2483, %v2445
        %2511 = vst.msk [vmem:[%s217 + $0x6c] sm:$0xf] %vm2483, %v2446
        %2512 = vst.msk [vmem:[%s217 + $0x70] sm:$0xf] %vm2483, %v2447
        %2513 = vst.msk [vmem:[%s217 + $0x74] sm:$0xf] %vm2483, %v2448
        %2514 = vst.msk [vmem:[%s217 + $0x78] sm:$0xf] %vm2483, %v2449
        %2515 = vst.msk [vmem:[%s217 + $0x7c] sm:$0xf] %vm2483, %v2450
      $region40: #{discriminator_forward.7} parent=31 // pred_fallthru
        _
      %s2516 = smul.u32 32, %s18
      %p2517 = scmp.lt.s32.totalorder %s2516, 191
      %s2518 = scalar_select %p2517, %s2516, 191
      %s2519 = smul.addr %s2518, 4
      %s2520 = scalar_lea.vmem %s3, %s2519
      // Predicated region
      $region41: #{discriminator_forward.7} parent=31 // pred_check
        %p2521 = pneg %p119
      $region42: #{discriminator_forward.7} parent=31 // pred_check_branch
        %2523 = sbr.rel (%p2521) target = $region44
      $region43: #{discriminator_forward.7} parent=31 // pred_region
        %s2524 = smul.u32 32, %s18
      $region44: #{discriminator_forward.7} parent=31 // pred_fallthru
        _
    $region32: #{discriminator_forward.7} parent=5 // pred_fallthru
      _
    %p2525 = scmp.le.s32.totalorder 2, %s9
    // Predicated region
    $region45: #{discriminator_forward.7} parent=5 // pred_check
      %p2526 = pneg %p2525
    $region46: #{discriminator_forward.7} parent=5 // pred_check_branch
      %2528 = sbr.rel (%p2526) target = $region48
    $region47: #{discriminator_forward.7} parent=5 // pred_region
      %s2529 = ssub.s32 %s9, 2
      // Predicated region
      $region49: #{discriminator_forward.7} parent=47 // pred_check
        %p2530 = pneg %p125
      $region50: #{discriminator_forward.7} parent=47 // pred_check_branch
        %2532 = sbr.rel (%p2530) target = $region52
      $region51: #{discriminator_forward.7} parent=47 // pred_region
        %s2533 = smul.u32 32, %s20
        %p2534 = scmp.lt.s32.totalorder %s2533, 191
        %s2535 = scalar_select %p2534, %s2533, 191
        %s2536 = smul.addr %s2535, 4
        %s2537 = scalar_lea.vmem %s3, %s2536
      $region52: #{discriminator_forward.7} parent=47 // pred_fallthru
        _
    $region48: #{discriminator_forward.7} parent=5 // pred_fallthru
      _
  $region6: #{discriminator_forward.7} parent=0 // loop_footer
    %s13 = sadd.s32 1, %s9
  $region7: #{discriminator_forward.7} parent=0 // loop_footer_branch
    %8 = sbr.rel target = $region3
  $region8: #{discriminator_forward.7} parent=0 // loop_exit
    _

// kernel: discriminator_forward.8
$region0: #{discriminator_forward.8}
  #allocation0 [shape = 'u32[]', space=smem, size = 0x4, offset = 0x4, fixed_abs, tag = 'smem constant byte address 0x4 - core index']
  #allocation1 [shape = 'u32[144,128]{1,0:T(1,128)}', space=vmem, size = 0x12000, scoped, tag = 'internal scratch']
  #allocation2 [shape = 'f32[338,128]{1,0:T(8,128)}', space=vmem, size = 0x2b000, scoped, tag = 'scratch operand']
  %s0 = inlined_call_operand.vmem [shape: bf16[338,576], index: 0, kind: input, shape index: {}]
  %s1 = inlined_call_operand.vmem [shape: bf16[576,128], index: 1, kind: input, shape index: {}]
  %s2 = inlined_call_operand.vmem [shape: f32[1,128], index: 2, kind: input, shape index: {}]
  %s3 = inlined_call_operand.vmem [shape: bf16[338,128], index: 3, kind: output, shape index: {}]
  %s4 = sld [smem:[#allocation0]]
  $region30: #{discriminator_forward.8} parent=0
    _
  %s6 = ssub.s32 1, %s4
  %s7 = scalar_select 0, %s6, %s4
  // Predicated region
  $region2: #{discriminator_forward.8} parent=0 // pred_check
    _
  $region3: #{discriminator_forward.8} parent=0 // pred_check_branch
    %9 = sbr.rel (0) target = $region5
  $region4: #{discriminator_forward.8} parent=0 // pred_region
    _
  $region5: #{discriminator_forward.8} parent=0 // pred_fallthru
    _
  // Predicated region
  $region6: #{discriminator_forward.8} parent=0 // pred_check
    _
  $region7: #{discriminator_forward.8} parent=0 // pred_check_branch
    %11 = sbr.rel (0) target = $region9
  $region8: #{discriminator_forward.8} parent=0 // pred_region
    _
  $region9: #{discriminator_forward.8} parent=0 // pred_fallthru
    _
  // Predicated region
  $region10: #{discriminator_forward.8} parent=0 // pred_check
    _
  $region11: #{discriminator_forward.8} parent=0 // pred_check_branch
    %13 = sbr.rel (0) target = $region13
  $region12: #{discriminator_forward.8} parent=0 // pred_region
    _
  $region13: #{discriminator_forward.8} parent=0 // pred_fallthru
    _
  %p15 = scmp.eq.s32.totalorder 0, 0
  // Predicated region
  $region14: #{discriminator_forward.8} parent=0 // pred_check
    %p16 = pneg %p15
  $region15: #{discriminator_forward.8} parent=0 // pred_check_branch
    %18 = sbr.rel (%p16) target = $region17
  $region16: #{discriminator_forward.8} parent=0 // pred_region
    %19 = vst [vmem:[#allocation2] sm:$0xff] 0.0
    %20 = vst [vmem:[#allocation2 + $0x8] sm:$0xff] 0.0
    %21 = vst [vmem:[#allocation2 + $0x10] sm:$0xff] 0.0
    %22 = vst [vmem:[#allocation2 + $0x18] sm:$0xff] 0.0
    %23 = vst [vmem:[#allocation2 + $0x20] sm:$0xff] 0.0
    %24 = vst [vmem:[#allocation2 + $0x28] sm:$0xff] 0.0
    %25 = vst [vmem:[#allocation2 + $0x30] sm:$0xff] 0.0
    %26 = vst [vmem:[#allocation2 + $0x38] sm:$0xff] 0.0
    %27 = vst [vmem:[#allocation2 + $0x40] sm:$0xff] 0.0
    %28 = vst [vmem:[#allocation2 + $0x48] sm:$0xff] 0.0
    %29 = vst [vmem:[#allocation2 + $0x50] sm:$0xff] 0.0
    %30 = vst [vmem:[#allocation2 + $0x58] sm:$0xff] 0.0
    %31 = vst [vmem:[#allocation2 + $0x60] sm:$0xff] 0.0
    %32 = vst [vmem:[#allocation2 + $0x68] sm:$0xff] 0.0
    %33 = vst [vmem:[#allocation2 + $0x70] sm:$0xff] 0.0
    %34 = vst [vmem:[#allocation2 + $0x78] sm:$0xff] 0.0
    %35 = vst [vmem:[#allocation2 + $0x80] sm:$0xff] 0.0
    %36 = vst [vmem:[#allocation2 + $0x88] sm:$0xff] 0.0
    %37 = vst [vmem:[#allocation2 + $0x90] sm:$0xff] 0.0
    %38 = vst [vmem:[#allocation2 + $0x98] sm:$0xff] 0.0
    %39 = vst [vmem:[#allocation2 + $0xa0] sm:$0xff] 0.0
    %40 = vst [vmem:[#allocation2 + $0xa8] sm:$0xff] 0.0
    %41 = vst [vmem:[#allocation2 + $0xb0] sm:$0xff] 0.0
    %42 = vst [vmem:[#allocation2 + $0xb8] sm:$0xff] 0.0
    %43 = vst [vmem:[#allocation2 + $0xc0] sm:$0xff] 0.0
    %44 = vst [vmem:[#allocation2 + $0xc8] sm:$0xff] 0.0
    %45 = vst [vmem:[#allocation2 + $0xd0] sm:$0xff] 0.0
    %46 = vst [vmem:[#allocation2 + $0xd8] sm:$0xff] 0.0
    %47 = vst [vmem:[#allocation2 + $0xe0] sm:$0xff] 0.0
    %48 = vst [vmem:[#allocation2 + $0xe8] sm:$0xff] 0.0
    %49 = vst [vmem:[#allocation2 + $0xf0] sm:$0xff] 0.0
    %50 = vst [vmem:[#allocation2 + $0xf8] sm:$0xff] 0.0
    %51 = vst [vmem:[#allocation2 + $0x100] sm:$0xff] 0.0
    %52 = vst [vmem:[#allocation2 + $0x108] sm:$0xff] 0.0
    %53 = vst [vmem:[#allocation2 + $0x110] sm:$0xff] 0.0
    %54 = vst [vmem:[#allocation2 + $0x118] sm:$0xff] 0.0
    %55 = vst [vmem:[#allocation2 + $0x120] sm:$0xff] 0.0
    %56 = vst [vmem:[#allocation2 + $0x128] sm:$0xff] 0.0
    %57 = vst [vmem:[#allocation2 + $0x130] sm:$0xff] 0.0
    %58 = vst [vmem:[#allocation2 + $0x138] sm:$0xff] 0.0
    %59 = vst [vmem:[#allocation2 + $0x140] sm:$0xff] 0.0
    %60 = vst [vmem:[#allocation2 + $0x148] sm:$0xff] 0.0
    %61 = vst [vmem:[#allocation2 + $0x150] sm:$0x3] 0.0
  $region17: #{discriminator_forward.8} parent=0 // pred_fallthru
    _
  %v62 = vld [vmem:[#allocation2] sm:$0xff]
  %v63 = vld [vmem:[#allocation2 + $0x8] sm:$0xff]
  %v64 = vld [vmem:[#allocation2 + $0x10] sm:$0xff]
  %v65 = vld [vmem:[#allocation2 + $0x18] sm:$0xff]
  %v66 = vld [vmem:[#allocation2 + $0x20] sm:$0xff]
  %v67 = vld [vmem:[#allocation2 + $0x28] sm:$0xff]
  %v68 = vld [vmem:[#allocation2 + $0x30] sm:$0xff]
  %v69 = vld [vmem:[#allocation2 + $0x38] sm:$0xff]
  %v70 = vld [vmem:[#allocation2 + $0x40] sm:$0xff]
  %v71 = vld [vmem:[#allocation2 + $0x48] sm:$0xff]
  %v72 = vld [vmem:[#allocation2 + $0x50] sm:$0xff]
  %v73 = vld [vmem:[#allocation2 + $0x58] sm:$0xff]
  %v74 = vld [vmem:[#allocation2 + $0x60] sm:$0xff]
  %v75 = vld [vmem:[#allocation2 + $0x68] sm:$0xff]
  %v76 = vld [vmem:[#allocation2 + $0x70] sm:$0xff]
  %v77 = vld [vmem:[#allocation2 + $0x78] sm:$0xff]
  %v78 = vld [vmem:[#allocation2 + $0x80] sm:$0xff]
  %v79 = vld [vmem:[#allocation2 + $0x88] sm:$0xff]
  %v80 = vld [vmem:[#allocation2 + $0x90] sm:$0xff]
  %v81 = vld [vmem:[#allocation2 + $0x98] sm:$0xff]
  %v82 = vld [vmem:[#allocation2 + $0xa0] sm:$0xff]
  %v83 = vld [vmem:[#allocation2 + $0xa8] sm:$0xff]
  %v84 = vld [vmem:[#allocation2 + $0xb0] sm:$0xff]
  %v85 = vld [vmem:[#allocation2 + $0xb8] sm:$0xff]
  %v86 = vld [vmem:[#allocation2 + $0xc0] sm:$0xff]
  %v87 = vld [vmem:[#allocation2 + $0xc8] sm:$0xff]
  %v88 = vld [vmem:[#allocation2 + $0xd0] sm:$0xff]
  %v89 = vld [vmem:[#allocation2 + $0xd8] sm:$0xff]
  %v90 = vld [vmem:[#allocation2 + $0xe0] sm:$0xff]
  %v91 = vld [vmem:[#allocation2 + $0xe8] sm:$0xff]
  %v92 = vld [vmem:[#allocation2 + $0xf0] sm:$0xff]
  %v93 = vld [vmem:[#allocation2 + $0xf8] sm:$0xff]
  %v94 = vld [vmem:[#allocation2 + $0x100] sm:$0xff]
  %v95 = vld [vmem:[#allocation2 + $0x108] sm:$0xff]
  %v96 = vld [vmem:[#allocation2 + $0x110] sm:$0xff]
  %v97 = vld [vmem:[#allocation2 + $0x118] sm:$0xff]
  %v98 = vld [vmem:[#allocation2 + $0x120] sm:$0xff]
  %v99 = vld [vmem:[#allocation2 + $0x128] sm:$0xff]
  %v100 = vld [vmem:[#allocation2 + $0x130] sm:$0xff]
  %v101 = vld [vmem:[#allocation2 + $0x138] sm:$0xff]
  %v102 = vld [vmem:[#allocation2 + $0x140] sm:$0xff]
  %v103 = vld [vmem:[#allocation2 + $0x148] sm:$0xff]
  %v104 = vld [vmem:[#allocation2 + $0x150] sm:$0x3]
  %v105 = vld [vmem:[%s0] sm:$0xff]
  %v106 = vld [vmem:[%s0 + $0x8] sm:$0xff]
  %v107 = vld [vmem:[%s0 + $0x10] sm:$0xf]
  %v108 = vld [vmem:[%s0 + $0x14] sm:$0xff]
  %v109 = vld [vmem:[%s0 + $0x1c] sm:$0xff]
  %v110 = vld [vmem:[%s0 + $0x24] sm:$0xf]
  %v111 = vld [vmem:[%s0 + $0x28] sm:$0xff]
  %v112 = vld [vmem:[%s0 + $0x30] sm:$0xff]
  %v113 = vld [vmem:[%s0 + $0x38] sm:$0xf]
  %v114 = vld [vmem:[%s0 + $0x3c] sm:$0xff]
  %v115 = vld [vmem:[%s0 + $0x44] sm:$0xff]
  %v116 = vld [vmem:[%s0 + $0x4c] sm:$0xf]
  %v117 = vld [vmem:[%s0 + $0x50] sm:$0xff]
  %v118 = vld [vmem:[%s0 + $0x58] sm:$0xff]
  %v119 = vld [vmem:[%s0 + $0x60] sm:$0xf]
  %v120 = vld [vmem:[%s0 + $0x64] sm:$0xff]
  %v121 = vld [vmem:[%s0 + $0x6c] sm:$0xff]
  %v122 = vld [vmem:[%s0 + $0x74] sm:$0xf]
  %v123 = vld [vmem:[%s0 + $0x78] sm:$0xff]
  %v124 = vld [vmem:[%s0 + $0x80] sm:$0xff]
  %v125 = vld [vmem:[%s0 + $0x88] sm:$0xf]
  %v126 = vld [vmem:[%s0 + $0x8c] sm:$0xff]
  %v127 = vld [vmem:[%s0 + $0x94] sm:$0xff]
  %v128 = vld [vmem:[%s0 + $0x9c] sm:$0xf]
  %v129 = vld [vmem:[%s0 + $0xa0] sm:$0xff]
  %v130 = vld [vmem:[%s0 + $0xa8] sm:$0xff]
  %v131 = vld [vmem:[%s0 + $0xb0] sm:$0xf]
  %v132 = vld [vmem:[%s0 + $0xb4] sm:$0xff]
  %v133 = vld [vmem:[%s0 + $0xbc] sm:$0xff]
  %v134 = vld [vmem:[%s0 + $0xc4] sm:$0xf]
  %v135 = vld [vmem:[%s0 + $0xc8] sm:$0xff]
  %v136 = vld [vmem:[%s0 + $0xd0] sm:$0xff]
  %v137 = vld [vmem:[%s0 + $0xd8] sm:$0xf]
  %v138 = vld [vmem:[%s0 + $0xdc] sm:$0xff]
  %v139 = vld [vmem:[%s0 + $0xe4] sm:$0xff]
  %v140 = vld [vmem:[%s0 + $0xec] sm:$0xf]
  %v141 = vld [vmem:[%s0 + $0xf0] sm:$0xff]
  %v142 = vld [vmem:[%s0 + $0xf8] sm:$0xff]
  %v143 = vld [vmem:[%s0 + $0x100] sm:$0xf]
  %v144 = vld [vmem:[%s0 + $0x104] sm:$0xff]
  %v145 = vld [vmem:[%s0 + $0x10c] sm:$0xff]
  %v146 = vld [vmem:[%s0 + $0x114] sm:$0xf]
  %v147 = vld [vmem:[%s0 + $0x118] sm:$0xff]
  %v148 = vld [vmem:[%s0 + $0x120] sm:$0xff]
  %v149 = vld [vmem:[%s0 + $0x128] sm:$0xf]
  %v150 = vld [vmem:[%s0 + $0x12c] sm:$0xff]
  %v151 = vld [vmem:[%s0 + $0x134] sm:$0xff]
  %v152 = vld [vmem:[%s0 + $0x13c] sm:$0xf]
  %v153 = vld [vmem:[%s0 + $0x140] sm:$0xff]
  %v154 = vld [vmem:[%s0 + $0x148] sm:$0xff]
  %v155 = vld [vmem:[%s0 + $0x150] sm:$0xf]
  %v156 = vld [vmem:[%s0 + $0x154] sm:$0xff]
  %v157 = vld [vmem:[%s0 + $0x15c] sm:$0xff]
  %v158 = vld [vmem:[%s0 + $0x164] sm:$0xf]
  %v159 = vld [vmem:[%s0 + $0x168] sm:$0xff]
  %v160 = vld [vmem:[%s0 + $0x170] sm:$0xff]
  %v161 = vld [vmem:[%s0 + $0x178] sm:$0xf]
  %v162 = vld [vmem:[%s0 + $0x17c] sm:$0xff]
  %v163 = vld [vmem:[%s0 + $0x184] sm:$0xff]
  %v164 = vld [vmem:[%s0 + $0x18c] sm:$0xf]
  %v165 = vld [vmem:[%s0 + $0x190] sm:$0xff]
  %v166 = vld [vmem:[%s0 + $0x198] sm:$0xff]
  %v167 = vld [vmem:[%s0 + $0x1a0] sm:$0xf]
  %v168 = vld [vmem:[%s0 + $0x1a4] sm:$0xff]
  %v169 = vld [vmem:[%s0 + $0x1ac] sm:$0xff]
  %v170 = vld [vmem:[%s0 + $0x1b4] sm:$0xf]
  %v171 = vld [vmem:[%s0 + $0x1b8] sm:$0xff]
  %v172 = vld [vmem:[%s0 + $0x1c0] sm:$0xff]
  %v173 = vld [vmem:[%s0 + $0x1c8] sm:$0xf]
  %v174 = vld [vmem:[%s0 + $0x1cc] sm:$0xff]
  %v175 = vld [vmem:[%s0 + $0x1d4] sm:$0xff]
  %v176 = vld [vmem:[%s0 + $0x1dc] sm:$0xf]
  %v177 = vld [vmem:[%s0 + $0x1e0] sm:$0xff]
  %v178 = vld [vmem:[%s0 + $0x1e8] sm:$0xff]
  %v179 = vld [vmem:[%s0 + $0x1f0] sm:$0xf]
  %v180 = vld [vmem:[%s0 + $0x1f4] sm:$0xff]
  %v181 = vld [vmem:[%s0 + $0x1fc] sm:$0xff]
  %v182 = vld [vmem:[%s0 + $0x204] sm:$0xf]
  %v183 = vld [vmem:[%s0 + $0x208] sm:$0xff]
  %v184 = vld [vmem:[%s0 + $0x210] sm:$0xff]
  %v185 = vld [vmem:[%s0 + $0x218] sm:$0xf]
  %v186 = vld [vmem:[%s0 + $0x21c] sm:$0xff]
  %v187 = vld [vmem:[%s0 + $0x224] sm:$0xff]
  %v188 = vld [vmem:[%s0 + $0x22c] sm:$0xf]
  %v189 = vld [vmem:[%s0 + $0x230] sm:$0xff]
  %v190 = vld [vmem:[%s0 + $0x238] sm:$0xff]
  %v191 = vld [vmem:[%s0 + $0x240] sm:$0xf]
  %v192 = vld [vmem:[%s0 + $0x244] sm:$0xff]
  %v193 = vld [vmem:[%s0 + $0x24c] sm:$0xff]
  %v194 = vld [vmem:[%s0 + $0x254] sm:$0xf]
  %v195 = vld [vmem:[%s0 + $0x258] sm:$0xff]
  %v196 = vld [vmem:[%s0 + $0x260] sm:$0xff]
  %v197 = vld [vmem:[%s0 + $0x268] sm:$0xf]
  %v198 = vld [vmem:[%s0 + $0x26c] sm:$0xff]
  %v199 = vld [vmem:[%s0 + $0x274] sm:$0xff]
  %v200 = vld [vmem:[%s0 + $0x27c] sm:$0xf]
  %v201 = vld [vmem:[%s0 + $0x280] sm:$0xff]
  %v202 = vld [vmem:[%s0 + $0x288] sm:$0xff]
  %v203 = vld [vmem:[%s0 + $0x290] sm:$0xf]
  %v204 = vld [vmem:[%s0 + $0x294] sm:$0xff]
  %v205 = vld [vmem:[%s0 + $0x29c] sm:$0xff]
  %v206 = vld [vmem:[%s0 + $0x2a4] sm:$0xf]
  %v207 = vld [vmem:[%s0 + $0x2a8] sm:$0xff]
  %v208 = vld [vmem:[%s0 + $0x2b0] sm:$0xff]
  %v209 = vld [vmem:[%s0 + $0x2b8] sm:$0xf]
  %v210 = vld [vmem:[%s0 + $0x2bc] sm:$0xff]
  %v211 = vld [vmem:[%s0 + $0x2c4] sm:$0xff]
  %v212 = vld [vmem:[%s0 + $0x2cc] sm:$0xf]
  %v213 = vld [vmem:[%s0 + $0x2d0] sm:$0xff]
  %v214 = vld [vmem:[%s0 + $0x2d8] sm:$0xff]
  %v215 = vld [vmem:[%s0 + $0x2e0] sm:$0xf]
  %v216 = vld [vmem:[%s0 + $0x2e4] sm:$0xff]
  %v217 = vld [vmem:[%s0 + $0x2ec] sm:$0xff]
  %v218 = vld [vmem:[%s0 + $0x2f4] sm:$0xf]
  %v219 = vld [vmem:[%s0 + $0x2f8] sm:$0xff]
  %v220 = vld [vmem:[%s0 + $0x300] sm:$0xff]
  %v221 = vld [vmem:[%s0 + $0x308] sm:$0xf]
  %v222 = vld [vmem:[%s0 + $0x30c] sm:$0xff]
  %v223 = vld [vmem:[%s0 + $0x314] sm:$0xff]
  %v224 = vld [vmem:[%s0 + $0x31c] sm:$0xf]
  %v225 = vld [vmem:[%s0 + $0x320] sm:$0xff]
  %v226 = vld [vmem:[%s0 + $0x328] sm:$0xff]
  %v227 = vld [vmem:[%s0 + $0x330] sm:$0xf]
  %v228 = vld [vmem:[%s0 + $0x334] sm:$0xff]
  %v229 = vld [vmem:[%s0 + $0x33c] sm:$0xff]
  %v230 = vld [vmem:[%s0 + $0x344] sm:$0xf]
  %v231 = vld [vmem:[%s0 + $0x348] sm:$0x11]
  %v232 = vld [vmem:[%s0 + $0x350] sm:$0x11]
  %v233 = vld [vmem:[%s0 + $0x358] sm:$0x1]
  %v234 = vld [vmem:[%s1] sm:$0xf]
  %v235 = vld [vmem:[%s1 + $0x4] sm:$0xf]
  %v236 = vld [vmem:[%s1 + $0x8] sm:$0xf]
  %v237 = vld [vmem:[%s1 + $0xc] sm:$0xf]
  %v238 = vld [vmem:[%s1 + $0x10] sm:$0xf]
  %v239 = vld [vmem:[%s1 + $0x14] sm:$0xf]
  %v240 = vld [vmem:[%s1 + $0x18] sm:$0xf]
  %v241 = vld [vmem:[%s1 + $0x1c] sm:$0xf]
  %v242 = vld [vmem:[%s1 + $0x20] sm:$0xf]
  %v243 = vld [vmem:[%s1 + $0x24] sm:$0xf]
  %v244 = vld [vmem:[%s1 + $0x28] sm:$0xf]
  %v245 = vld [vmem:[%s1 + $0x2c] sm:$0xf]
  %v246 = vld [vmem:[%s1 + $0x30] sm:$0xf]
  %v247 = vld [vmem:[%s1 + $0x34] sm:$0xf]
  %v248 = vld [vmem:[%s1 + $0x38] sm:$0xf]
  %v249 = vld [vmem:[%s1 + $0x3c] sm:$0xf]
  %v250 = vld [vmem:[%s1 + $0x40] sm:$0xf]
  %v251 = vld [vmem:[%s1 + $0x44] sm:$0xf]
  %v252 = vld [vmem:[%s1 + $0x48] sm:$0xf]
  %v253 = vld [vmem:[%s1 + $0x4c] sm:$0xf]
  %v254 = vld [vmem:[%s1 + $0x50] sm:$0xf]
  %v255 = vld [vmem:[%s1 + $0x54] sm:$0xf]
  %v256 = vld [vmem:[%s1 + $0x58] sm:$0xf]
  %v257 = vld [vmem:[%s1 + $0x5c] sm:$0xf]
  %v258 = vld [vmem:[%s1 + $0x60] sm:$0xf]
  %v259 = vld [vmem:[%s1 + $0x64] sm:$0xf]
  %v260 = vld [vmem:[%s1 + $0x68] sm:$0xf]
  %v261 = vld [vmem:[%s1 + $0x6c] sm:$0xf]
  %v262 = vld [vmem:[%s1 + $0x70] sm:$0xf]
  %v263 = vld [vmem:[%s1 + $0x74] sm:$0xf]
  %v264 = vld [vmem:[%s1 + $0x78] sm:$0xf]
  %v265 = vld [vmem:[%s1 + $0x7c] sm:$0xf]
  %v266 = vld [vmem:[%s1 + $0x80] sm:$0xf]
  %v267 = vld [vmem:[%s1 + $0x84] sm:$0xf]
  %v268 = vld [vmem:[%s1 + $0x88] sm:$0xf]
  %v269 = vld [vmem:[%s1 + $0x8c] sm:$0xf]
  %v270 = vld [vmem:[%s1 + $0x90] sm:$0xf]
  %v271 = vld [vmem:[%s1 + $0x94] sm:$0xf]
  %v272 = vld [vmem:[%s1 + $0x98] sm:$0xf]
  %v273 = vld [vmem:[%s1 + $0x9c] sm:$0xf]
  %v274 = vld [vmem:[%s1 + $0xa0] sm:$0xf]
  %v275 = vld [vmem:[%s1 + $0xa4] sm:$0xf]
  %v276 = vld [vmem:[%s1 + $0xa8] sm:$0xf]
  %v277 = vld [vmem:[%s1 + $0xac] sm:$0xf]
  %v278 = vld [vmem:[%s1 + $0xb0] sm:$0xf]
  %v279 = vld [vmem:[%s1 + $0xb4] sm:$0xf]
  %v280 = vld [vmem:[%s1 + $0xb8] sm:$0xf]
  %v281 = vld [vmem:[%s1 + $0xbc] sm:$0xf]
  %v282 = vld [vmem:[%s1 + $0xc0] sm:$0xf]
  %v283 = vld [vmem:[%s1 + $0xc4] sm:$0xf]
  %v284 = vld [vmem:[%s1 + $0xc8] sm:$0xf]
  %v285 = vld [vmem:[%s1 + $0xcc] sm:$0xf]
  %v286 = vld [vmem:[%s1 + $0xd0] sm:$0xf]
  %v287 = vld [vmem:[%s1 + $0xd4] sm:$0xf]
  %v288 = vld [vmem:[%s1 + $0xd8] sm:$0xf]
  %v289 = vld [vmem:[%s1 + $0xdc] sm:$0xf]
  %v290 = vld [vmem:[%s1 + $0xe0] sm:$0xf]
  %v291 = vld [vmem:[%s1 + $0xe4] sm:$0xf]
  %v292 = vld [vmem:[%s1 + $0xe8] sm:$0xf]
  %v293 = vld [vmem:[%s1 + $0xec] sm:$0xf]
  %v294 = vld [vmem:[%s1 + $0xf0] sm:$0xf]
  %v295 = vld [vmem:[%s1 + $0xf4] sm:$0xf]
  %v296 = vld [vmem:[%s1 + $0xf8] sm:$0xf]
  %v297 = vld [vmem:[%s1 + $0xfc] sm:$0xf]
  %v298 = vld [vmem:[%s1 + $0x100] sm:$0xf]
  %v299 = vld [vmem:[%s1 + $0x104] sm:$0xf]
  %v300 = vld [vmem:[%s1 + $0x108] sm:$0xf]
  %v301 = vld [vmem:[%s1 + $0x10c] sm:$0xf]
  %v302 = vld [vmem:[%s1 + $0x110] sm:$0xf]
  %v303 = vld [vmem:[%s1 + $0x114] sm:$0xf]
  %v304 = vld [vmem:[%s1 + $0x118] sm:$0xf]
  %v305 = vld [vmem:[%s1 + $0x11c] sm:$0xf]
  %v435 = vunpack.c.l.b16 %v105
  %v436 = vunpack.c.h.b16 %v105
  %v437 = vunpack.c.l.b16 %v106
  %v438 = vunpack.c.h.b16 %v106
  %v439 = vunpack.c.l.b16 %v107
  %v440 = vunpack.c.l.b16 %v108
  %v441 = vunpack.c.h.b16 %v108
  %v442 = vunpack.c.l.b16 %v109
  %v443 = vunpack.c.h.b16 %v109
  %v444 = vunpack.c.l.b16 %v110
  %v445 = vunpack.c.l.b16 %v111
  %v446 = vunpack.c.h.b16 %v111
  %v447 = vunpack.c.l.b16 %v112
  %v448 = vunpack.c.h.b16 %v112
  %v449 = vunpack.c.l.b16 %v113
  %v450 = vunpack.c.l.b16 %v114
  %v451 = vunpack.c.h.b16 %v114
  %v452 = vunpack.c.l.b16 %v115
  %v453 = vunpack.c.h.b16 %v115
  %v454 = vunpack.c.l.b16 %v116
  %v455 = vunpack.c.l.b16 %v117
  %v456 = vunpack.c.h.b16 %v117
  %v457 = vunpack.c.l.b16 %v118
  %v458 = vunpack.c.h.b16 %v118
  %v459 = vunpack.c.l.b16 %v119
  %v460 = vunpack.c.l.b16 %v120
  %v461 = vunpack.c.h.b16 %v120
  %v462 = vunpack.c.l.b16 %v121
  %v463 = vunpack.c.h.b16 %v121
  %v464 = vunpack.c.l.b16 %v122
  %v465 = vunpack.c.l.b16 %v123
  %v466 = vunpack.c.h.b16 %v123
  %v467 = vunpack.c.l.b16 %v124
  %v468 = vunpack.c.h.b16 %v124
  %v469 = vunpack.c.l.b16 %v125
  %v470 = vunpack.c.l.b16 %v126
  %v471 = vunpack.c.h.b16 %v126
  %v472 = vunpack.c.l.b16 %v127
  %v473 = vunpack.c.h.b16 %v127
  %v474 = vunpack.c.l.b16 %v128
  %v475 = vunpack.c.l.b16 %v129
  %v476 = vunpack.c.h.b16 %v129
  %v477 = vunpack.c.l.b16 %v130
  %v478 = vunpack.c.h.b16 %v130
  %v479 = vunpack.c.l.b16 %v131
  %v480 = vunpack.c.l.b16 %v132
  %v481 = vunpack.c.h.b16 %v132
  %v482 = vunpack.c.l.b16 %v133
  %v483 = vunpack.c.h.b16 %v133
  %v484 = vunpack.c.l.b16 %v134
  %v485 = vunpack.c.l.b16 %v135
  %v486 = vunpack.c.h.b16 %v135
  %v487 = vunpack.c.l.b16 %v136
  %v488 = vunpack.c.h.b16 %v136
  %v489 = vunpack.c.l.b16 %v137
  %v490 = vunpack.c.l.b16 %v138
  %v491 = vunpack.c.h.b16 %v138
  %v492 = vunpack.c.l.b16 %v139
  %v493 = vunpack.c.h.b16 %v139
  %v494 = vunpack.c.l.b16 %v140
  %v495 = vunpack.c.l.b16 %v141
  %v496 = vunpack.c.h.b16 %v141
  %v497 = vunpack.c.l.b16 %v142
  %v498 = vunpack.c.h.b16 %v142
  %v499 = vunpack.c.l.b16 %v143
  %v500 = vunpack.c.l.b16 %v144
  %v501 = vunpack.c.h.b16 %v144
  %v502 = vunpack.c.l.b16 %v145
  %v503 = vunpack.c.h.b16 %v145
  %v504 = vunpack.c.l.b16 %v146
  %v505 = vunpack.c.l.b16 %v147
  %v506 = vunpack.c.h.b16 %v147
  %v507 = vunpack.c.l.b16 %v148
  %v508 = vunpack.c.h.b16 %v148
  %v509 = vunpack.c.l.b16 %v149
  %v510 = vunpack.c.l.b16 %v150
  %v511 = vunpack.c.h.b16 %v150
  %v512 = vunpack.c.l.b16 %v151
  %v513 = vunpack.c.h.b16 %v151
  %v514 = vunpack.c.l.b16 %v152
  %v515 = vunpack.c.l.b16 %v153
  %v516 = vunpack.c.h.b16 %v153
  %v517 = vunpack.c.l.b16 %v154
  %v518 = vunpack.c.h.b16 %v154
  %v519 = vunpack.c.l.b16 %v155
  %v520 = vunpack.c.l.b16 %v156
  %v521 = vunpack.c.h.b16 %v156
  %v522 = vunpack.c.l.b16 %v157
  %v523 = vunpack.c.h.b16 %v157
  %v524 = vunpack.c.l.b16 %v158
  %v525 = vunpack.c.l.b16 %v159
  %v526 = vunpack.c.h.b16 %v159
  %v527 = vunpack.c.l.b16 %v160
  %v528 = vunpack.c.h.b16 %v160
  %v529 = vunpack.c.l.b16 %v161
  %v530 = vunpack.c.l.b16 %v162
  %v531 = vunpack.c.h.b16 %v162
  %v532 = vunpack.c.l.b16 %v163
  %v533 = vunpack.c.h.b16 %v163
  %v534 = vunpack.c.l.b16 %v164
  %v535 = vunpack.c.l.b16 %v165
  %v536 = vunpack.c.h.b16 %v165
  %v537 = vunpack.c.l.b16 %v166
  %v538 = vunpack.c.h.b16 %v166
  %v539 = vunpack.c.l.b16 %v167
  %v540 = vunpack.c.l.b16 %v168
  %v541 = vunpack.c.h.b16 %v168
  %v542 = vunpack.c.l.b16 %v169
  %v543 = vunpack.c.h.b16 %v169
  %v544 = vunpack.c.l.b16 %v170
  %v545 = vunpack.c.l.b16 %v171
  %v546 = vunpack.c.h.b16 %v171
  %v547 = vunpack.c.l.b16 %v172
  %v548 = vunpack.c.h.b16 %v172
  %v549 = vunpack.c.l.b16 %v173
  %v550 = vunpack.c.l.b16 %v174
  %v551 = vunpack.c.h.b16 %v174
  %v552 = vunpack.c.l.b16 %v175
  %v553 = vunpack.c.h.b16 %v175
  %v554 = vunpack.c.l.b16 %v176
  %v555 = vunpack.c.l.b16 %v177
  %v556 = vunpack.c.h.b16 %v177
  %v557 = vunpack.c.l.b16 %v178
  %v558 = vunpack.c.h.b16 %v178
  %v559 = vunpack.c.l.b16 %v179
  %v560 = vunpack.c.l.b16 %v180
  %v561 = vunpack.c.h.b16 %v180
  %v562 = vunpack.c.l.b16 %v181
  %v563 = vunpack.c.h.b16 %v181
  %v564 = vunpack.c.l.b16 %v182
  %v565 = vunpack.c.l.b16 %v183
  %v566 = vunpack.c.h.b16 %v183
  %v567 = vunpack.c.l.b16 %v184
  %v568 = vunpack.c.h.b16 %v184
  %v569 = vunpack.c.l.b16 %v185
  %v570 = vunpack.c.l.b16 %v186
  %v571 = vunpack.c.h.b16 %v186
  %v572 = vunpack.c.l.b16 %v187
  %v573 = vunpack.c.h.b16 %v187
  %v574 = vunpack.c.l.b16 %v188
  %v575 = vunpack.c.l.b16 %v189
  %v576 = vunpack.c.h.b16 %v189
  %v577 = vunpack.c.l.b16 %v190
  %v578 = vunpack.c.h.b16 %v190
  %v579 = vunpack.c.l.b16 %v191
  %v580 = vunpack.c.l.b16 %v192
  %v581 = vunpack.c.h.b16 %v192
  %v582 = vunpack.c.l.b16 %v193
  %v583 = vunpack.c.h.b16 %v193
  %v584 = vunpack.c.l.b16 %v194
  %v585 = vunpack.c.l.b16 %v195
  %v586 = vunpack.c.h.b16 %v195
  %v587 = vunpack.c.l.b16 %v196
  %v588 = vunpack.c.h.b16 %v196
  %v589 = vunpack.c.l.b16 %v197
  %v590 = vunpack.c.l.b16 %v198
  %v591 = vunpack.c.h.b16 %v198
  %v592 = vunpack.c.l.b16 %v199
  %v593 = vunpack.c.h.b16 %v199
  %v594 = vunpack.c.l.b16 %v200
  %v595 = vunpack.c.l.b16 %v201
  %v596 = vunpack.c.h.b16 %v201
  %v597 = vunpack.c.l.b16 %v202
  %v598 = vunpack.c.h.b16 %v202
  %v599 = vunpack.c.l.b16 %v203
  %v600 = vunpack.c.l.b16 %v204
  %v601 = vunpack.c.h.b16 %v204
  %v602 = vunpack.c.l.b16 %v205
  %v603 = vunpack.c.h.b16 %v205
  %v604 = vunpack.c.l.b16 %v206
  %v605 = vunpack.c.l.b16 %v207
  %v606 = vunpack.c.h.b16 %v207
  %v607 = vunpack.c.l.b16 %v208
  %v608 = vunpack.c.h.b16 %v208
  %v609 = vunpack.c.l.b16 %v209
  %v610 = vunpack.c.l.b16 %v210
  %v611 = vunpack.c.h.b16 %v210
  %v612 = vunpack.c.l.b16 %v211
  %v613 = vunpack.c.h.b16 %v211
  %v614 = vunpack.c.l.b16 %v212
  %v615 = vunpack.c.l.b16 %v213
  %v616 = vunpack.c.h.b16 %v213
  %v617 = vunpack.c.l.b16 %v214
  %v618 = vunpack.c.h.b16 %v214
  %v619 = vunpack.c.l.b16 %v215
  %v620 = vunpack.c.l.b16 %v216
  %v621 = vunpack.c.h.b16 %v216
  %v622 = vunpack.c.l.b16 %v217
  %v623 = vunpack.c.h.b16 %v217
  %v624 = vunpack.c.l.b16 %v218
  %v625 = vunpack.c.l.b16 %v219
  %v626 = vunpack.c.h.b16 %v219
  %v627 = vunpack.c.l.b16 %v220
  %v628 = vunpack.c.h.b16 %v220
  %v629 = vunpack.c.l.b16 %v221
  %v630 = vunpack.c.l.b16 %v222
  %v631 = vunpack.c.h.b16 %v222
  %v632 = vunpack.c.l.b16 %v223
  %v633 = vunpack.c.h.b16 %v223
  %v634 = vunpack.c.l.b16 %v224
  %v635 = vunpack.c.l.b16 %v225
  %v636 = vunpack.c.h.b16 %v225
  %v637 = vunpack.c.l.b16 %v226
  %v638 = vunpack.c.h.b16 %v226
  %v639 = vunpack.c.l.b16 %v227
  %v640 = vunpack.c.l.b16 %v228
  %v641 = vunpack.c.h.b16 %v228
  %v642 = vunpack.c.l.b16 %v229
  %v643 = vunpack.c.h.b16 %v229
  %v644 = vunpack.c.l.b16 %v230
  %v645 = vunpack.c.l.b16 %v231
  %v646 = vunpack.c.h.b16 %v231
  %v647 = vunpack.c.l.b16 %v232
  %v648 = vunpack.c.h.b16 %v232
  %v649 = vunpack.c.l.b16 %v233
  %v650 = vpack.c.b16 %v440, %v435
  %v651 = vpack.c.b16 %v441, %v436
  %v652 = vpack.c.b16 %v442, %v437
  %v653 = vpack.c.b16 %v443, %v438
  %v654 = vpack.c.b16 %v444, %v439
  %v655 = vpack.c.b16 %v450, %v445
  %v656 = vpack.c.b16 %v451, %v446
  %v657 = vpack.c.b16 %v452, %v447
  %v658 = vpack.c.b16 %v453, %v448
  %v659 = vpack.c.b16 %v454, %v449
  %v660 = vpack.c.b16 %v460, %v455
  %v661 = vpack.c.b16 %v461, %v456
  %v662 = vpack.c.b16 %v462, %v457
  %v663 = vpack.c.b16 %v463, %v458
  %v664 = vpack.c.b16 %v464, %v459
  %v665 = vpack.c.b16 %v470, %v465
  %v666 = vpack.c.b16 %v471, %v466
  %v667 = vpack.c.b16 %v472, %v467
  %v668 = vpack.c.b16 %v473, %v468
  %v669 = vpack.c.b16 %v474, %v469
  %v670 = vpack.c.b16 %v480, %v475
  %v671 = vpack.c.b16 %v481, %v476
  %v672 = vpack.c.b16 %v482, %v477
  %v673 = vpack.c.b16 %v483, %v478
  %v674 = vpack.c.b16 %v484, %v479
  %v675 = vpack.c.b16 %v490, %v485
  %v676 = vpack.c.b16 %v491, %v486
  %v677 = vpack.c.b16 %v492, %v487
  %v678 = vpack.c.b16 %v493, %v488
  %v679 = vpack.c.b16 %v494, %v489
  %v680 = vpack.c.b16 %v500, %v495
  %v681 = vpack.c.b16 %v501, %v496
  %v682 = vpack.c.b16 %v502, %v497
  %v683 = vpack.c.b16 %v503, %v498
  %v684 = vpack.c.b16 %v504, %v499
  %v685 = vpack.c.b16 %v510, %v505
  %v686 = vpack.c.b16 %v511, %v506
  %v687 = vpack.c.b16 %v512, %v507
  %v688 = vpack.c.b16 %v513, %v508
  %v689 = vpack.c.b16 %v514, %v509
  %v690 = vpack.c.b16 %v520, %v515
  %v691 = vpack.c.b16 %v521, %v516
  %v692 = vpack.c.b16 %v522, %v517
  %v693 = vpack.c.b16 %v523, %v518
  %v694 = vpack.c.b16 %v524, %v519
  %v695 = vpack.c.b16 %v530, %v525
  %v696 = vpack.c.b16 %v531, %v526
  %v697 = vpack.c.b16 %v532, %v527
  %v698 = vpack.c.b16 %v533, %v528
  %v699 = vpack.c.b16 %v534, %v529
  %v700 = vpack.c.b16 %v540, %v535
  %v701 = vpack.c.b16 %v541, %v536
  %v702 = vpack.c.b16 %v542, %v537
  %v703 = vpack.c.b16 %v543, %v538
  %v704 = vpack.c.b16 %v544, %v539
  %v705 = vpack.c.b16 %v550, %v545
  %v706 = vpack.c.b16 %v551, %v546
  %v707 = vpack.c.b16 %v552, %v547
  %v708 = vpack.c.b16 %v553, %v548
  %v709 = vpack.c.b16 %v554, %v549
  %v710 = vpack.c.b16 %v560, %v555
  %v711 = vpack.c.b16 %v561, %v556
  %v712 = vpack.c.b16 %v562, %v557
  %v713 = vpack.c.b16 %v563, %v558
  %v714 = vpack.c.b16 %v564, %v559
  %v715 = vpack.c.b16 %v570, %v565
  %v716 = vpack.c.b16 %v571, %v566
  %v717 = vpack.c.b16 %v572, %v567
  %v718 = vpack.c.b16 %v573, %v568
  %v719 = vpack.c.b16 %v574, %v569
  %v720 = vpack.c.b16 %v580, %v575
  %v721 = vpack.c.b16 %v581, %v576
  %v722 = vpack.c.b16 %v582, %v577
  %v723 = vpack.c.b16 %v583, %v578
  %v724 = vpack.c.b16 %v584, %v579
  %v725 = vpack.c.b16 %v590, %v585
  %v726 = vpack.c.b16 %v591, %v586
  %v727 = vpack.c.b16 %v592, %v587
  %v728 = vpack.c.b16 %v593, %v588
  %v729 = vpack.c.b16 %v594, %v589
  %v730 = vpack.c.b16 %v600, %v595
  %v731 = vpack.c.b16 %v601, %v596
  %v732 = vpack.c.b16 %v602, %v597
  %v733 = vpack.c.b16 %v603, %v598
  %v734 = vpack.c.b16 %v604, %v599
  %v735 = vpack.c.b16 %v610, %v605
  %v736 = vpack.c.b16 %v611, %v606
  %v737 = vpack.c.b16 %v612, %v607
  %v738 = vpack.c.b16 %v613, %v608
  %v739 = vpack.c.b16 %v614, %v609
  %v740 = vpack.c.b16 %v620, %v615
  %v741 = vpack.c.b16 %v621, %v616
  %v742 = vpack.c.b16 %v622, %v617
  %v743 = vpack.c.b16 %v623, %v618
  %v744 = vpack.c.b16 %v624, %v619
  %v745 = vpack.c.b16 %v630, %v625
  %v746 = vpack.c.b16 %v631, %v626
  %v747 = vpack.c.b16 %v632, %v627
  %v748 = vpack.c.b16 %v633, %v628
  %v749 = vpack.c.b16 %v634, %v629
  %v750 = vpack.c.b16 %v640, %v635
  %v751 = vpack.c.b16 %v641, %v636
  %v752 = vpack.c.b16 %v642, %v637
  %v753 = vpack.c.b16 %v643, %v638
  %v754 = vpack.c.b16 %v644, %v639
  %v755 = vpack.c.b16 %v645, %v645
  %v756 = vpack.c.b16 %v646, %v646
  %v757 = vpack.c.b16 %v647, %v647
  %v758 = vpack.c.b16 %v648, %v648
  %v759 = vpack.c.b16 %v649, %v649
  %v920 = vunpack.c.l.b16 %v234
  %v921 = vunpack.c.l.b16 %v235
  %v922 = vunpack.c.l.b16 %v236
  %v923 = vunpack.c.l.b16 %v237
  %v924 = vunpack.c.l.b16 %v238
  %v925 = vunpack.c.l.b16 %v239
  %v926 = vunpack.c.l.b16 %v240
  %v927 = vunpack.c.l.b16 %v241
  %v928 = vunpack.c.l.b16 %v242
  %v929 = vunpack.c.l.b16 %v243
  %v930 = vunpack.c.l.b16 %v244
  %v931 = vunpack.c.l.b16 %v245
  %v932 = vunpack.c.l.b16 %v246
  %v933 = vunpack.c.l.b16 %v247
  %v934 = vunpack.c.l.b16 %v248
  %v935 = vunpack.c.l.b16 %v249
  %v936 = vunpack.c.l.b16 %v250
  %v937 = vunpack.c.l.b16 %v251
  %v938 = vunpack.c.l.b16 %v252
  %v939 = vunpack.c.l.b16 %v253
  %v940 = vunpack.c.l.b16 %v254
  %v941 = vunpack.c.l.b16 %v255
  %v942 = vunpack.c.l.b16 %v256
  %v943 = vunpack.c.l.b16 %v257
  %v944 = vunpack.c.l.b16 %v258
  %v945 = vunpack.c.l.b16 %v259
  %v946 = vunpack.c.l.b16 %v260
  %v947 = vunpack.c.l.b16 %v261
  %v948 = vunpack.c.l.b16 %v262
  %v949 = vunpack.c.l.b16 %v263
  %v950 = vunpack.c.l.b16 %v264
  %v951 = vunpack.c.l.b16 %v265
  %v952 = vunpack.c.l.b16 %v266
  %v953 = vunpack.c.l.b16 %v267
  %v954 = vunpack.c.l.b16 %v268
  %v955 = vunpack.c.l.b16 %v269
  %v956 = vunpack.c.l.b16 %v270
  %v957 = vunpack.c.l.b16 %v271
  %v958 = vunpack.c.l.b16 %v272
  %v959 = vunpack.c.l.b16 %v273
  %v960 = vunpack.c.l.b16 %v274
  %v961 = vunpack.c.l.b16 %v275
  %v962 = vunpack.c.l.b16 %v276
  %v963 = vunpack.c.l.b16 %v277
  %v964 = vunpack.c.l.b16 %v278
  %v965 = vunpack.c.l.b16 %v279
  %v966 = vunpack.c.l.b16 %v280
  %v967 = vunpack.c.l.b16 %v281
  %v968 = vunpack.c.l.b16 %v282
  %v969 = vunpack.c.l.b16 %v283
  %v970 = vunpack.c.l.b16 %v284
  %v971 = vunpack.c.l.b16 %v285
  %v972 = vunpack.c.l.b16 %v286
  %v973 = vunpack.c.l.b16 %v287
  %v974 = vunpack.c.l.b16 %v288
  %v975 = vunpack.c.l.b16 %v289
  %v976 = vunpack.c.l.b16 %v290
  %v977 = vunpack.c.l.b16 %v291
  %v978 = vunpack.c.l.b16 %v292
  %v979 = vunpack.c.l.b16 %v293
  %v980 = vunpack.c.l.b16 %v294
  %v981 = vunpack.c.l.b16 %v295
  %v982 = vunpack.c.l.b16 %v296
  %v983 = vunpack.c.l.b16 %v297
  %v984 = vunpack.c.l.b16 %v298
  %v985 = vunpack.c.l.b16 %v299
  %v986 = vunpack.c.l.b16 %v300
  %v987 = vunpack.c.l.b16 %v301
  %v988 = vunpack.c.l.b16 %v302
  %v989 = vunpack.c.l.b16 %v303
  %v990 = vunpack.c.l.b16 %v304
  %v991 = vunpack.c.l.b16 %v305
  %v992 = vpack.c.b16 %v921, %v920
  %v993 = vpack.c.b16 %v923, %v922
  %v994 = vpack.c.b16 %v925, %v924
  %v995 = vpack.c.b16 %v927, %v926
  %v996 = vpack.c.b16 %v929, %v928
  %v997 = vpack.c.b16 %v931, %v930
  %v998 = vpack.c.b16 %v933, %v932
  %v999 = vpack.c.b16 %v935, %v934
  %v1000 = vpack.c.b16 %v937, %v936
  %v1001 = vpack.c.b16 %v939, %v938
  %v1002 = vpack.c.b16 %v941, %v940
  %v1003 = vpack.c.b16 %v943, %v942
  %v1004 = vpack.c.b16 %v945, %v944
  %v1005 = vpack.c.b16 %v947, %v946
  %v1006 = vpack.c.b16 %v949, %v948
  %v1007 = vpack.c.b16 %v951, %v950
  %v1008 = vpack.c.b16 %v953, %v952
  %v1009 = vpack.c.b16 %v955, %v954
  %v1010 = vpack.c.b16 %v957, %v956
  %v1011 = vpack.c.b16 %v959, %v958
  %v1012 = vpack.c.b16 %v961, %v960
  %v1013 = vpack.c.b16 %v963, %v962
  %v1014 = vpack.c.b16 %v965, %v964
  %v1015 = vpack.c.b16 %v967, %v966
  %v1016 = vpack.c.b16 %v969, %v968
  %v1017 = vpack.c.b16 %v971, %v970
  %v1018 = vpack.c.b16 %v973, %v972
  %v1019 = vpack.c.b16 %v975, %v974
  %v1020 = vpack.c.b16 %v977, %v976
  %v1021 = vpack.c.b16 %v979, %v978
  %v1022 = vpack.c.b16 %v981, %v980
  %v1023 = vpack.c.b16 %v983, %v982
  %v1024 = vpack.c.b16 %v985, %v984
  %v1025 = vpack.c.b16 %v987, %v986
  %v1026 = vpack.c.b16 %v989, %v988
  %v1027 = vpack.c.b16 %v991, %v990
  %vm1064 = vcmask 523264
  %v1066 = vsel %vm1064, %v654, 0
  %v1069 = vsel %vm1064, %v659, 0
  %v1072 = vsel %vm1064, %v664, 0
  %v1075 = vsel %vm1064, %v669, 0
  %v1078 = vsel %vm1064, %v674, 0
  %v1081 = vsel %vm1064, %v679, 0
  %v1084 = vsel %vm1064, %v684, 0
  %v1087 = vsel %vm1064, %v689, 0
  %v1090 = vsel %vm1064, %v694, 0
  %v1093 = vsel %vm1064, %v699, 0
  %v1096 = vsel %vm1064, %v704, 0
  %v1099 = vsel %vm1064, %v709, 0
  %v1102 = vsel %vm1064, %v714, 0
  %v1105 = vsel %vm1064, %v719, 0
  %v1108 = vsel %vm1064, %v724, 0
  %v1111 = vsel %vm1064, %v729, 0
  %v1114 = vsel %vm1064, %v734, 0
  %v1117 = vsel %vm1064, %v739, 0
  %v1120 = vsel %vm1064, %v744, 0
  %v1123 = vsel %vm1064, %v749, 0
  %v1126 = vsel %vm1064, %v754, 0
  %v1129 = vsel %vm1064, %v759, 0
  %1131 = vmatprep.subr.bf16.mxu0 0
  %1132 = vmatpush1.bf16.msra.mxu0 %v992
  %1133 = vmatprep.subr.bf16.mxu0 0
  %1134 = vmatpush1.bf16.msra.mxu0 %v993
  %1135 = vmatprep.subr.bf16.mxu0 0
  %1136 = vmatpush1.bf16.msra.mxu0 %v994
  %1137 = vmatprep.subr.bf16.mxu0 0
  %1138 = vmatpush1.bf16.msra.mxu0 %v995
  %1139 = vmatprep.subr.bf16.mxu0 0
  %1140 = vmatpush1.bf16.msra.mxu0 %v996
  %1141 = vmatprep.subr.bf16.mxu0 0
  %1142 = vmatpush1.bf16.msra.mxu0 %v997
  %1143 = vmatprep.subr.bf16.mxu0 0
  %1144 = vmatpush1.bf16.msra.mxu0 %v998
  %1145 = vmatprep.subr.bf16.mxu0 0
  %1146 = vmatpush1.bf16.msra.mxu0 %v999
  %1147 = vmatprep.subr.bf16.mxu0 0
  %1148 = vmatpush1.bf16.msra.mxu0 %v1000
  %1149 = vmatprep.subr.bf16.mxu0 0
  %1150 = vmatpush1.bf16.msra.mxu0 %v1001
  %1151 = vmatprep.subr.bf16.mxu0 0
  %1152 = vmatpush1.bf16.msra.mxu0 %v1002
  %1153 = vmatprep.subr.bf16.mxu0 0
  %1154 = vmatpush1.bf16.msra.mxu0 %v1003
  %1155 = vmatprep.subr.bf16.mxu0 0
  %1156 = vmatpush1.bf16.msra.mxu0 %v1004
  %1157 = vmatprep.subr.bf16.mxu0 0
  %1158 = vmatpush1.bf16.msra.mxu0 %v1005
  %1159 = vmatprep.subr.bf16.mxu0 0
  %1160 = vmatpush1.bf16.msra.mxu0 %v1006
  %1161 = vmatprep.subr.bf16.mxu0 0
  %1162 = vmatpush1.bf16.msra.mxu0 %v1007
  %1163 = vmatprep.mubr.bf16.mxu0 %v651
  %1164 = vmatmul.mubr.bf16.gmra.mrb[0].mxu0 %v650
  %v1165 = vpop.f32.mrb[0].mxu0
  %v1166 = vadd.f32 0.0, %v1165
  %v1167 = vpop.f32.mrb[0].mxu0
  %v1168 = vpop.f32.mrb[0].mxu0
  %v1169 = vadd.f32 0.0, %v1168
  %v1170 = vpop.f32.mrb[0].mxu0
  %1171 = vmatprep.mubr.bf16.mxu0 %v656
  %1172 = vmatmul.mubr.bf16.gmra.mrb[0].mxu0 %v655
  %v1173 = vpop.f32.mrb[0].mxu0
  %v1174 = vadd.f32 0.0, %v1173
  %v1175 = vpop.f32.mrb[0].mxu0
  %v1176 = vpop.f32.mrb[0].mxu0
  %v1177 = vadd.f32 0.0, %v1176
  %v1178 = vpop.f32.mrb[0].mxu0
  %1179 = vmatprep.mubr.bf16.mxu0 %v661
  %1180 = vmatmul.mubr.bf16.gmra.mrb[0].mxu0 %v660
  %v1181 = vpop.f32.mrb[0].mxu0
  %v1182 = vadd.f32 0.0, %v1181
  %v1183 = vpop.f32.mrb[0].mxu0
  %v1184 = vpop.f32.mrb[0].mxu0
  %v1185 = vadd.f32 0.0, %v1184
  %v1186 = vpop.f32.mrb[0].mxu0
  %1187 = vmatprep.mubr.bf16.mxu0 %v666
  %1188 = vmatmul.mubr.bf16.gmra.mrb[0].mxu0 %v665
  %v1189 = vpop.f32.mrb[0].mxu0
  %v1190 = vadd.f32 0.0, %v1189
  %v1191 = vpop.f32.mrb[0].mxu0
  %v1192 = vpop.f32.mrb[0].mxu0
  %v1193 = vadd.f32 0.0, %v1192
  %v1194 = vpop.f32.mrb[0].mxu0
  %1195 = vmatprep.mubr.bf16.mxu0 %v671
  %1196 = vmatmul.mubr.bf16.gmra.mrb[0].mxu0 %v670
  %v1197 = vpop.f32.mrb[0].mxu0
  %v1198 = vadd.f32 0.0, %v1197
  %v1199 = vpop.f32.mrb[0].mxu0
  %v1200 = vpop.f32.mrb[0].mxu0
  %v1201 = vadd.f32 0.0, %v1200
  %v1202 = vpop.f32.mrb[0].mxu0
  %1203 = vmatprep.mubr.bf16.mxu0 %v676
  %1204 = vmatmul.mubr.bf16.gmra.mrb[0].mxu0 %v675
  %v1205 = vpop.f32.mrb[0].mxu0
  %v1206 = vadd.f32 0.0, %v1205
  %v1207 = vpop.f32.mrb[0].mxu0
  %v1208 = vpop.f32.mrb[0].mxu0
  %v1209 = vadd.f32 0.0, %v1208
  %v1210 = vpop.f32.mrb[0].mxu0
  %1211 = vmatprep.mubr.bf16.mxu0 %v681
  %1212 = vmatmul.mubr.bf16.gmra.mrb[0].mxu0 %v680
  %v1213 = vpop.f32.mrb[0].mxu0
  %v1214 = vadd.f32 0.0, %v1213
  %v1215 = vpop.f32.mrb[0].mxu0
  %v1216 = vpop.f32.mrb[0].mxu0
  %v1217 = vadd.f32 0.0, %v1216
  %v1218 = vpop.f32.mrb[0].mxu0
  %1219 = vmatprep.mubr.bf16.mxu0 %v686
  %1220 = vmatmul.mubr.bf16.gmra.mrb[0].mxu0 %v685
  %v1221 = vpop.f32.mrb[0].mxu0
  %v1222 = vadd.f32 0.0, %v1221
  %v1223 = vpop.f32.mrb[0].mxu0
  %v1224 = vpop.f32.mrb[0].mxu0
  %v1225 = vadd.f32 0.0, %v1224
  %v1226 = vpop.f32.mrb[0].mxu0
  %1227 = vmatprep.mubr.bf16.mxu0 %v691
  %1228 = vmatmul.mubr.bf16.gmra.mrb[0].mxu0 %v690
  %v1229 = vpop.f32.mrb[0].mxu0
  %v1230 = vadd.f32 0.0, %v1229
  %v1231 = vpop.f32.mrb[0].mxu0
  %v1232 = vpop.f32.mrb[0].mxu0
  %v1233 = vadd.f32 0.0, %v1232
  %v1234 = vpop.f32.mrb[0].mxu0
  %1235 = vmatprep.mubr.bf16.mxu0 %v696
  %1236 = vmatmul.mubr.bf16.gmra.mrb[0].mxu0 %v695
  %v1237 = vpop.f32.mrb[0].mxu0
  %v1238 = vadd.f32 0.0, %v1237
  %v1239 = vpop.f32.mrb[0].mxu0
  %v1240 = vpop.f32.mrb[0].mxu0
  %v1241 = vadd.f32 0.0, %v1240
  %v1242 = vpop.f32.mrb[0].mxu0
  %1243 = vmatprep.mubr.bf16.mxu0 %v701
  %1244 = vmatmul.mubr.bf16.gmra.mrb[0].mxu0 %v700
  %v1245 = vpop.f32.mrb[0].mxu0
  %v1246 = vadd.f32 0.0, %v1245
  %v1247 = vpop.f32.mrb[0].mxu0
  %v1248 = vpop.f32.mrb[0].mxu0
  %v1249 = vadd.f32 0.0, %v1248
  %v1250 = vpop.f32.mrb[0].mxu0
  %1251 = vmatprep.mubr.bf16.mxu0 %v706
  %1252 = vmatmul.mubr.bf16.gmra.mrb[0].mxu0 %v705
  %v1253 = vpop.f32.mrb[0].mxu0
  %v1254 = vadd.f32 0.0, %v1253
  %v1255 = vpop.f32.mrb[0].mxu0
  %v1256 = vpop.f32.mrb[0].mxu0
  %v1257 = vadd.f32 0.0, %v1256
  %v1258 = vpop.f32.mrb[0].mxu0
  %1259 = vmatprep.mubr.bf16.mxu0 %v711
  %1260 = vmatmul.mubr.bf16.gmra.mrb[0].mxu0 %v710
  %v1261 = vpop.f32.mrb[0].mxu0
  %v1262 = vadd.f32 0.0, %v1261
  %v1263 = vpop.f32.mrb[0].mxu0
  %v1264 = vpop.f32.mrb[0].mxu0
  %v1265 = vadd.f32 0.0, %v1264
  %v1266 = vpop.f32.mrb[0].mxu0
  %1267 = vmatprep.mubr.bf16.mxu0 %v716
  %1268 = vmatmul.mubr.bf16.gmra.mrb[0].mxu0 %v715
  %v1269 = vpop.f32.mrb[0].mxu0
  %v1270 = vadd.f32 0.0, %v1269
  %v1271 = vpop.f32.mrb[0].mxu0
  %v1272 = vpop.f32.mrb[0].mxu0
  %v1273 = vadd.f32 0.0, %v1272
  %v1274 = vpop.f32.mrb[0].mxu0
  %1275 = vmatprep.mubr.bf16.mxu0 %v721
  %1276 = vmatmul.mubr.bf16.gmra.mrb[0].mxu0 %v720
  %v1277 = vpop.f32.mrb[0].mxu0
  %v1278 = vadd.f32 0.0, %v1277
  %v1279 = vpop.f32.mrb[0].mxu0
  %v1280 = vpop.f32.mrb[0].mxu0
  %v1281 = vadd.f32 0.0, %v1280
  %v1282 = vpop.f32.mrb[0].mxu0
  %1283 = vmatprep.mubr.bf16.mxu0 %v726
  %1284 = vmatmul.mubr.bf16.gmra.mrb[0].mxu0 %v725
  %v1285 = vpop.f32.mrb[0].mxu0
  %v1286 = vadd.f32 0.0, %v1285
  %v1287 = vpop.f32.mrb[0].mxu0
  %v1288 = vpop.f32.mrb[0].mxu0
  %v1289 = vadd.f32 0.0, %v1288
  %v1290 = vpop.f32.mrb[0].mxu0
  %1291 = vmatprep.mubr.bf16.mxu0 %v731
  %1292 = vmatmul.mubr.bf16.gmra.mrb[0].mxu0 %v730
  %v1293 = vpop.f32.mrb[0].mxu0
  %v1294 = vadd.f32 0.0, %v1293
  %v1295 = vpop.f32.mrb[0].mxu0
  %v1296 = vpop.f32.mrb[0].mxu0
  %v1297 = vadd.f32 0.0, %v1296
  %v1298 = vpop.f32.mrb[0].mxu0
  %1299 = vmatprep.mubr.bf16.mxu0 %v736
  %1300 = vmatmul.mubr.bf16.gmra.mrb[0].mxu0 %v735
  %v1301 = vpop.f32.mrb[0].mxu0
  %v1302 = vadd.f32 0.0, %v1301
  %v1303 = vpop.f32.mrb[0].mxu0
  %v1304 = vpop.f32.mrb[0].mxu0
  %v1305 = vadd.f32 0.0, %v1304
  %v1306 = vpop.f32.mrb[0].mxu0
  %1307 = vmatprep.mubr.bf16.mxu0 %v741
  %1308 = vmatmul.mubr.bf16.gmra.mrb[0].mxu0 %v740
  %v1309 = vpop.f32.mrb[0].mxu0
  %v1310 = vadd.f32 0.0, %v1309
  %v1311 = vpop.f32.mrb[0].mxu0
  %v1312 = vpop.f32.mrb[0].mxu0
  %v1313 = vadd.f32 0.0, %v1312
  %v1314 = vpop.f32.mrb[0].mxu0
  %1315 = vmatprep.mubr.bf16.mxu0 %v746
  %1316 = vmatmul.mubr.bf16.gmra.mrb[0].mxu0 %v745
  %v1317 = vpop.f32.mrb[0].mxu0
  %v1318 = vadd.f32 0.0, %v1317
  %v1319 = vpop.f32.mrb[0].mxu0
  %v1320 = vpop.f32.mrb[0].mxu0
  %v1321 = vadd.f32 0.0, %v1320
  %v1322 = vpop.f32.mrb[0].mxu0
  %1323 = vmatprep.mubr.bf16.mxu0 %v751
  %1324 = vmatmul.mubr.bf16.gmra.mrb[0].mxu0 %v750
  %v1325 = vpop.f32.mrb[0].mxu0
  %v1326 = vadd.f32 0.0, %v1325
  %v1327 = vpop.f32.mrb[0].mxu0
  %v1328 = vpop.f32.mrb[0].mxu0
  %v1329 = vadd.f32 0.0, %v1328
  %v1330 = vpop.f32.mrb[0].mxu0
  %1331 = vmatprep.mubr.bf16.mxu0 %v756
  %1332 = vmatmul.mubr.bf16.gmra.mrb[0].mxu0 %v755
  %v1333 = vpop.f32.mrb[0].mxu0
  %v1334 = vadd.f32 0.0, %v1333
  %v1335 = vpop.f32.mrb[0].mxu0
  %v1336 = vpop.f32.mrb[0].mxu0
  %v1337 = vpop.f32.mrb[0].mxu0
  %1338 = vdwg.mxu0
  %1339 = vmatprep.subr.bf16.mxu0 0
  %1340 = vmatpush1.bf16.msra.mxu0 %v1008
  %1341 = vmatprep.subr.bf16.mxu0 0
  %1342 = vmatpush1.bf16.msra.mxu0 %v1009
  %1343 = vmatprep.subr.bf16.mxu0 0
  %1344 = vmatpush1.bf16.msra.mxu0 %v1010
  %1345 = vmatprep.subr.bf16.mxu0 0
  %1346 = vmatpush1.bf16.msra.mxu0 %v1011
  %1347 = vmatprep.subr.bf16.mxu0 0
  %1348 = vmatpush1.bf16.msra.mxu0 %v1012
  %1349 = vmatprep.subr.bf16.mxu0 0
  %1350 = vmatpush1.bf16.msra.mxu0 %v1013
  %1351 = vmatprep.subr.bf16.mxu0 0
  %1352 = vmatpush1.bf16.msra.mxu0 %v1014
  %1353 = vmatprep.subr.bf16.mxu0 0
  %1354 = vmatpush1.bf16.msra.mxu0 %v1015
  %1355 = vmatprep.subr.bf16.mxu0 0
  %1356 = vmatpush1.bf16.msra.mxu0 %v1016
  %1357 = vmatprep.subr.bf16.mxu0 0
  %1358 = vmatpush1.bf16.msra.mxu0 %v1017
  %1359 = vmatprep.subr.bf16.mxu0 0
  %1360 = vmatpush1.bf16.msra.mxu0 %v1018
  %1361 = vmatprep.subr.bf16.mxu0 0
  %1362 = vmatpush1.bf16.msra.mxu0 %v1019
  %1363 = vmatprep.subr.bf16.mxu0 0
  %1364 = vmatpush1.bf16.msra.mxu0 %v1020
  %1365 = vmatprep.subr.bf16.mxu0 0
  %1366 = vmatpush1.bf16.msra.mxu0 %v1021
  %1367 = vmatprep.subr.bf16.mxu0 0
  %1368 = vmatpush1.bf16.msra.mxu0 %v1022
  %1369 = vmatprep.subr.bf16.mxu0 0
  %1370 = vmatpush1.bf16.msra.mxu0 %v1023
  %1371 = vmatprep.mubr.bf16.mxu0 %v653
  %1372 = vmatmul.mubr.bf16.gmra.mrb[0].mxu0 %v652
  %v1373 = vpop.f32.mrb[0].mxu0
  %v1374 = vadd.f32 %v1166, %v1373
  %v1375 = vpop.f32.mrb[0].mxu0
  %v1376 = vpop.f32.mrb[0].mxu0
  %v1377 = vadd.f32 %v1169, %v1376
  %v1378 = vpop.f32.mrb[0].mxu0
  %1379 = vmatprep.mubr.bf16.mxu0 %v658
  %1380 = vmatmul.mubr.bf16.gmra.mrb[0].mxu0 %v657
  %v1381 = vpop.f32.mrb[0].mxu0
  %v1382 = vadd.f32 %v1174, %v1381
  %v1383 = vpop.f32.mrb[0].mxu0
  %v1384 = vpop.f32.mrb[0].mxu0
  %v1385 = vadd.f32 %v1177, %v1384
  %v1386 = vpop.f32.mrb[0].mxu0
  %1387 = vmatprep.mubr.bf16.mxu0 %v663
  %1388 = vmatmul.mubr.bf16.gmra.mrb[0].mxu0 %v662
  %v1389 = vpop.f32.mrb[0].mxu0
  %v1390 = vadd.f32 %v1182, %v1389
  %v1391 = vpop.f32.mrb[0].mxu0
  %v1392 = vpop.f32.mrb[0].mxu0
  %v1393 = vadd.f32 %v1185, %v1392
  %v1394 = vpop.f32.mrb[0].mxu0
  %1395 = vmatprep.mubr.bf16.mxu0 %v668
  %1396 = vmatmul.mubr.bf16.gmra.mrb[0].mxu0 %v667
  %v1397 = vpop.f32.mrb[0].mxu0
  %v1398 = vadd.f32 %v1190, %v1397
  %v1399 = vpop.f32.mrb[0].mxu0
  %v1400 = vpop.f32.mrb[0].mxu0
  %v1401 = vadd.f32 %v1193, %v1400
  %v1402 = vpop.f32.mrb[0].mxu0
  %1403 = vmatprep.mubr.bf16.mxu0 %v673
  %1404 = vmatmul.mubr.bf16.gmra.mrb[0].mxu0 %v672
  %v1405 = vpop.f32.mrb[0].mxu0
  %v1406 = vadd.f32 %v1198, %v1405
  %v1407 = vpop.f32.mrb[0].mxu0
  %v1408 = vpop.f32.mrb[0].mxu0
  %v1409 = vadd.f32 %v1201, %v1408
  %v1410 = vpop.f32.mrb[0].mxu0
  %1411 = vmatprep.mubr.bf16.mxu0 %v678
  %1412 = vmatmul.mubr.bf16.gmra.mrb[0].mxu0 %v677
  %v1413 = vpop.f32.mrb[0].mxu0
  %v1414 = vadd.f32 %v1206, %v1413
  %v1415 = vpop.f32.mrb[0].mxu0
  %v1416 = vpop.f32.mrb[0].mxu0
  %v1417 = vadd.f32 %v1209, %v1416
  %v1418 = vpop.f32.mrb[0].mxu0
  %1419 = vmatprep.mubr.bf16.mxu0 %v683
  %1420 = vmatmul.mubr.bf16.gmra.mrb[0].mxu0 %v682
  %v1421 = vpop.f32.mrb[0].mxu0
  %v1422 = vadd.f32 %v1214, %v1421
  %v1423 = vpop.f32.mrb[0].mxu0
  %v1424 = vpop.f32.mrb[0].mxu0
  %v1425 = vadd.f32 %v1217, %v1424
  %v1426 = vpop.f32.mrb[0].mxu0
  %1427 = vmatprep.mubr.bf16.mxu0 %v688
  %1428 = vmatmul.mubr.bf16.gmra.mrb[0].mxu0 %v687
  %v1429 = vpop.f32.mrb[0].mxu0
  %v1430 = vadd.f32 %v1222, %v1429
  %v1431 = vpop.f32.mrb[0].mxu0
  %v1432 = vpop.f32.mrb[0].mxu0
  %v1433 = vadd.f32 %v1225, %v1432
  %v1434 = vpop.f32.mrb[0].mxu0
  %1435 = vmatprep.mubr.bf16.mxu0 %v693
  %1436 = vmatmul.mubr.bf16.gmra.mrb[0].mxu0 %v692
  %v1437 = vpop.f32.mrb[0].mxu0
  %v1438 = vadd.f32 %v1230, %v1437
  %v1439 = vpop.f32.mrb[0].mxu0
  %v1440 = vpop.f32.mrb[0].mxu0
  %v1441 = vadd.f32 %v1233, %v1440
  %v1442 = vpop.f32.mrb[0].mxu0
  %1443 = vmatprep.mubr.bf16.mxu0 %v698
  %1444 = vmatmul.mubr.bf16.gmra.mrb[0].mxu0 %v697
  %v1445 = vpop.f32.mrb[0].mxu0
  %v1446 = vadd.f32 %v1238, %v1445
  %v1447 = vpop.f32.mrb[0].mxu0
  %v1448 = vpop.f32.mrb[0].mxu0
  %v1449 = vadd.f32 %v1241, %v1448
  %v1450 = vpop.f32.mrb[0].mxu0
  %1451 = vmatprep.mubr.bf16.mxu0 %v703
  %1452 = vmatmul.mubr.bf16.gmra.mrb[0].mxu0 %v702
  %v1453 = vpop.f32.mrb[0].mxu0
  %v1454 = vadd.f32 %v1246, %v1453
  %v1455 = vpop.f32.mrb[0].mxu0
  %v1456 = vpop.f32.mrb[0].mxu0
  %v1457 = vadd.f32 %v1249, %v1456
  %v1458 = vpop.f32.mrb[0].mxu0
  %1459 = vmatprep.mubr.bf16.mxu0 %v708
  %1460 = vmatmul.mubr.bf16.gmra.mrb[0].mxu0 %v707
  %v1461 = vpop.f32.mrb[0].mxu0
  %v1462 = vadd.f32 %v1254, %v1461
  %v1463 = vpop.f32.mrb[0].mxu0
  %v1464 = vpop.f32.mrb[0].mxu0
  %v1465 = vadd.f32 %v1257, %v1464
  %v1466 = vpop.f32.mrb[0].mxu0
  %1467 = vmatprep.mubr.bf16.mxu0 %v713
  %1468 = vmatmul.mubr.bf16.gmra.mrb[0].mxu0 %v712
  %v1469 = vpop.f32.mrb[0].mxu0
  %v1470 = vadd.f32 %v1262, %v1469
  %v1471 = vpop.f32.mrb[0].mxu0
  %v1472 = vpop.f32.mrb[0].mxu0
  %v1473 = vadd.f32 %v1265, %v1472
  %v1474 = vpop.f32.mrb[0].mxu0
  %1475 = vmatprep.mubr.bf16.mxu0 %v718
  %1476 = vmatmul.mubr.bf16.gmra.mrb[0].mxu0 %v717
  %v1477 = vpop.f32.mrb[0].mxu0
  %v1478 = vadd.f32 %v1270, %v1477
  %v1479 = vpop.f32.mrb[0].mxu0
  %v1480 = vpop.f32.mrb[0].mxu0
  %v1481 = vadd.f32 %v1273, %v1480
  %v1482 = vpop.f32.mrb[0].mxu0
  %1483 = vmatprep.mubr.bf16.mxu0 %v723
  %1484 = vmatmul.mubr.bf16.gmra.mrb[0].mxu0 %v722
  %v1485 = vpop.f32.mrb[0].mxu0
  %v1486 = vadd.f32 %v1278, %v1485
  %v1487 = vpop.f32.mrb[0].mxu0
  %v1488 = vpop.f32.mrb[0].mxu0
  %v1489 = vadd.f32 %v1281, %v1488
  %v1490 = vpop.f32.mrb[0].mxu0
  %1491 = vmatprep.mubr.bf16.mxu0 %v728
  %1492 = vmatmul.mubr.bf16.gmra.mrb[0].mxu0 %v727
  %v1493 = vpop.f32.mrb[0].mxu0
  %v1494 = vadd.f32 %v1286, %v1493
  %v1495 = vpop.f32.mrb[0].mxu0
  %v1496 = vpop.f32.mrb[0].mxu0
  %v1497 = vadd.f32 %v1289, %v1496
  %v1498 = vpop.f32.mrb[0].mxu0
  %1499 = vmatprep.mubr.bf16.mxu0 %v733
  %1500 = vmatmul.mubr.bf16.gmra.mrb[0].mxu0 %v732
  %v1501 = vpop.f32.mrb[0].mxu0
  %v1502 = vadd.f32 %v1294, %v1501
  %v1503 = vpop.f32.mrb[0].mxu0
  %v1504 = vpop.f32.mrb[0].mxu0
  %v1505 = vadd.f32 %v1297, %v1504
  %v1506 = vpop.f32.mrb[0].mxu0
  %1507 = vmatprep.mubr.bf16.mxu0 %v738
  %1508 = vmatmul.mubr.bf16.gmra.mrb[0].mxu0 %v737
  %v1509 = vpop.f32.mrb[0].mxu0
  %v1510 = vadd.f32 %v1302, %v1509
  %v1511 = vpop.f32.mrb[0].mxu0
  %v1512 = vpop.f32.mrb[0].mxu0
  %v1513 = vadd.f32 %v1305, %v1512
  %v1514 = vpop.f32.mrb[0].mxu0
  %1515 = vmatprep.mubr.bf16.mxu0 %v743
  %1516 = vmatmul.mubr.bf16.gmra.mrb[0].mxu0 %v742
  %v1517 = vpop.f32.mrb[0].mxu0
  %v1518 = vadd.f32 %v1310, %v1517
  %v1519 = vpop.f32.mrb[0].mxu0
  %v1520 = vpop.f32.mrb[0].mxu0
  %v1521 = vadd.f32 %v1313, %v1520
  %v1522 = vpop.f32.mrb[0].mxu0
  %1523 = vmatprep.mubr.bf16.mxu0 %v748
  %1524 = vmatmul.mubr.bf16.gmra.mrb[0].mxu0 %v747
  %v1525 = vpop.f32.mrb[0].mxu0
  %v1526 = vadd.f32 %v1318, %v1525
  %v1527 = vpop.f32.mrb[0].mxu0
  %v1528 = vpop.f32.mrb[0].mxu0
  %v1529 = vadd.f32 %v1321, %v1528
  %v1530 = vpop.f32.mrb[0].mxu0
  %1531 = vmatprep.mubr.bf16.mxu0 %v753
  %1532 = vmatmul.mubr.bf16.gmra.mrb[0].mxu0 %v752
  %v1533 = vpop.f32.mrb[0].mxu0
  %v1534 = vadd.f32 %v1326, %v1533
  %v1535 = vpop.f32.mrb[0].mxu0
  %v1536 = vpop.f32.mrb[0].mxu0
  %v1537 = vadd.f32 %v1329, %v1536
  %v1538 = vpop.f32.mrb[0].mxu0
  %1539 = vmatprep.mubr.bf16.mxu0 %v758
  %1540 = vmatmul.mubr.bf16.gmra.mrb[0].mxu0 %v757
  %v1541 = vpop.f32.mrb[0].mxu0
  %v1542 = vadd.f32 %v1334, %v1541
  %v1543 = vpop.f32.mrb[0].mxu0
  %v1544 = vpop.f32.mrb[0].mxu0
  %v1545 = vpop.f32.mrb[0].mxu0
  %1546 = vdwg.mxu0
  %1547 = vmatprep.subr.bf16.mxu0 0
  %1548 = vmatpush1.bf16.msra.mxu0 %v1024
  %1549 = vmatprep.subr.bf16.mxu0 0
  %1550 = vmatpush1.bf16.msra.mxu0 %v1025
  %1551 = vmatprep.subr.bf16.mxu0 0
  %1552 = vmatpush1.bf16.msra.mxu0 %v1026
  %1553 = vmatprep.subr.bf16.mxu0 0
  %1554 = vmatpush1.bf16.msra.mxu0 %v1027
  %1555 = vmatprep.subr.bf16.mxu0 0
  %1556 = vmatpush1.bf16.msra.mxu0 0
  %1557 = vmatprep.subr.bf16.mxu0 0
  %1558 = vmatpush1.bf16.msra.mxu0 0
  %1559 = vmatprep.subr.bf16.mxu0 0
  %1560 = vmatpush1.bf16.msra.mxu0 0
  %1561 = vmatprep.subr.bf16.mxu0 0
  %1562 = vmatpush1.bf16.msra.mxu0 0
  %1563 = vmatprep.subr.bf16.mxu0 0
  %1564 = vmatpush1.bf16.msra.mxu0 0
  %1565 = vmatprep.subr.bf16.mxu0 0
  %1566 = vmatpush1.bf16.msra.mxu0 0
  %1567 = vmatprep.subr.bf16.mxu0 0
  %1568 = vmatpush1.bf16.msra.mxu0 0
  %1569 = vmatprep.subr.bf16.mxu0 0
  %1570 = vmatpush1.bf16.msra.mxu0 0
  %1571 = vmatprep.subr.bf16.mxu0 0
  %1572 = vmatpush1.bf16.msra.mxu0 0
  %1573 = vmatprep.subr.bf16.mxu0 0
  %1574 = vmatpush1.bf16.msra.mxu0 0
  %1575 = vmatprep.subr.bf16.mxu0 0
  %1576 = vmatpush1.bf16.msra.mxu0 0
  %1577 = vmatprep.subr.bf16.mxu0 0
  %1578 = vmatpush1.bf16.msra.mxu0 0
  %1579 = vmatprep.mubr.bf16.mxu0 0
  %1580 = vmatmul.mubr.bf16.gmra.mrb[0].mxu0 %v1066
  %v1581 = vpop.f32.mrb[0].mxu0
  %v1582 = vadd.f32 %v1374, %v1581
  %v1583 = vpop.f32.mrb[0].mxu0
  %v1584 = vpop.f32.mrb[0].mxu0
  %v1585 = vadd.f32 %v1377, %v1584
  %v1586 = vpop.f32.mrb[0].mxu0
  %1587 = vmatprep.mubr.bf16.mxu0 0
  %1588 = vmatmul.mubr.bf16.gmra.mrb[0].mxu0 %v1069
  %v1589 = vpop.f32.mrb[0].mxu0
  %v1590 = vadd.f32 %v1382, %v1589
  %v1591 = vpop.f32.mrb[0].mxu0
  %v1592 = vpop.f32.mrb[0].mxu0
  %v1593 = vadd.f32 %v1385, %v1592
  %v1594 = vpop.f32.mrb[0].mxu0
  %1595 = vmatprep.mubr.bf16.mxu0 0
  %1596 = vmatmul.mubr.bf16.gmra.mrb[0].mxu0 %v1072
  %v1597 = vpop.f32.mrb[0].mxu0
  %v1598 = vadd.f32 %v1390, %v1597
  %v1599 = vpop.f32.mrb[0].mxu0
  %v1600 = vpop.f32.mrb[0].mxu0
  %v1601 = vadd.f32 %v1393, %v1600
  %v1602 = vpop.f32.mrb[0].mxu0
  %1603 = vmatprep.mubr.bf16.mxu0 0
  %1604 = vmatmul.mubr.bf16.gmra.mrb[0].mxu0 %v1075
  %v1605 = vpop.f32.mrb[0].mxu0
  %v1606 = vadd.f32 %v1398, %v1605
  %v1607 = vpop.f32.mrb[0].mxu0
  %v1608 = vpop.f32.mrb[0].mxu0
  %v1609 = vadd.f32 %v1401, %v1608
  %v1610 = vpop.f32.mrb[0].mxu0
  %1611 = vmatprep.mubr.bf16.mxu0 0
  %1612 = vmatmul.mubr.bf16.gmra.mrb[0].mxu0 %v1078
  %v1613 = vpop.f32.mrb[0].mxu0
  %v1614 = vadd.f32 %v1406, %v1613
  %v1615 = vpop.f32.mrb[0].mxu0
  %v1616 = vpop.f32.mrb[0].mxu0
  %v1617 = vadd.f32 %v1409, %v1616
  %v1618 = vpop.f32.mrb[0].mxu0
  %1619 = vmatprep.mubr.bf16.mxu0 0
  %1620 = vmatmul.mubr.bf16.gmra.mrb[0].mxu0 %v1081
  %v1621 = vpop.f32.mrb[0].mxu0
  %v1622 = vadd.f32 %v1414, %v1621
  %v1623 = vpop.f32.mrb[0].mxu0
  %v1624 = vpop.f32.mrb[0].mxu0
  %v1625 = vadd.f32 %v1417, %v1624
  %v1626 = vpop.f32.mrb[0].mxu0
  %1627 = vmatprep.mubr.bf16.mxu0 0
  %1628 = vmatmul.mubr.bf16.gmra.mrb[0].mxu0 %v1084
  %v1629 = vpop.f32.mrb[0].mxu0
  %v1630 = vadd.f32 %v1422, %v1629
  %v1631 = vpop.f32.mrb[0].mxu0
  %v1632 = vpop.f32.mrb[0].mxu0
  %v1633 = vadd.f32 %v1425, %v1632
  %v1634 = vpop.f32.mrb[0].mxu0
  %1635 = vmatprep.mubr.bf16.mxu0 0
  %1636 = vmatmul.mubr.bf16.gmra.mrb[0].mxu0 %v1087
  %v1637 = vpop.f32.mrb[0].mxu0
  %v1638 = vadd.f32 %v1430, %v1637
  %v1639 = vpop.f32.mrb[0].mxu0
  %v1640 = vpop.f32.mrb[0].mxu0
  %v1641 = vadd.f32 %v1433, %v1640
  %v1642 = vpop.f32.mrb[0].mxu0
  %1643 = vmatprep.mubr.bf16.mxu0 0
  %1644 = vmatmul.mubr.bf16.gmra.mrb[0].mxu0 %v1090
  %v1645 = vpop.f32.mrb[0].mxu0
  %v1646 = vadd.f32 %v1438, %v1645
  %v1647 = vpop.f32.mrb[0].mxu0
  %v1648 = vpop.f32.mrb[0].mxu0
  %v1649 = vadd.f32 %v1441, %v1648
  %v1650 = vpop.f32.mrb[0].mxu0
  %1651 = vmatprep.mubr.bf16.mxu0 0
  %1652 = vmatmul.mubr.bf16.gmra.mrb[0].mxu0 %v1093
  %v1653 = vpop.f32.mrb[0].mxu0
  %v1654 = vadd.f32 %v1446, %v1653
  %v1655 = vpop.f32.mrb[0].mxu0
  %v1656 = vpop.f32.mrb[0].mxu0
  %v1657 = vadd.f32 %v1449, %v1656
  %v1658 = vpop.f32.mrb[0].mxu0
  %1659 = vmatprep.mubr.bf16.mxu0 0
  %1660 = vmatmul.mubr.bf16.gmra.mrb[0].mxu0 %v1096
  %v1661 = vpop.f32.mrb[0].mxu0
  %v1662 = vadd.f32 %v1454, %v1661
  %v1663 = vpop.f32.mrb[0].mxu0
  %v1664 = vpop.f32.mrb[0].mxu0
  %v1665 = vadd.f32 %v1457, %v1664
  %v1666 = vpop.f32.mrb[0].mxu0
  %1667 = vmatprep.mubr.bf16.mxu0 0
  %1668 = vmatmul.mubr.bf16.gmra.mrb[0].mxu0 %v1099
  %v1669 = vpop.f32.mrb[0].mxu0
  %v1670 = vadd.f32 %v1462, %v1669
  %v1671 = vpop.f32.mrb[0].mxu0
  %v1672 = vpop.f32.mrb[0].mxu0
  %v1673 = vadd.f32 %v1465, %v1672
  %v1674 = vpop.f32.mrb[0].mxu0
  %1675 = vmatprep.mubr.bf16.mxu0 0
  %1676 = vmatmul.mubr.bf16.gmra.mrb[0].mxu0 %v1102
  %v1677 = vpop.f32.mrb[0].mxu0
  %v1678 = vadd.f32 %v1470, %v1677
  %v1679 = vpop.f32.mrb[0].mxu0
  %v1680 = vpop.f32.mrb[0].mxu0
  %v1681 = vadd.f32 %v1473, %v1680
  %v1682 = vpop.f32.mrb[0].mxu0
  %1683 = vmatprep.mubr.bf16.mxu0 0
  %1684 = vmatmul.mubr.bf16.gmra.mrb[0].mxu0 %v1105
  %v1685 = vpop.f32.mrb[0].mxu0
  %v1686 = vadd.f32 %v1478, %v1685
  %v1687 = vpop.f32.mrb[0].mxu0
  %v1688 = vpop.f32.mrb[0].mxu0
  %v1689 = vadd.f32 %v1481, %v1688
  %v1690 = vpop.f32.mrb[0].mxu0
  %1691 = vmatprep.mubr.bf16.mxu0 0
  %1692 = vmatmul.mubr.bf16.gmra.mrb[0].mxu0 %v1108
  %v1693 = vpop.f32.mrb[0].mxu0
  %v1694 = vadd.f32 %v1486, %v1693
  %v1695 = vpop.f32.mrb[0].mxu0
  %v1696 = vpop.f32.mrb[0].mxu0
  %v1697 = vadd.f32 %v1489, %v1696
  %v1698 = vpop.f32.mrb[0].mxu0
  %1699 = vmatprep.mubr.bf16.mxu0 0
  %1700 = vmatmul.mubr.bf16.gmra.mrb[0].mxu0 %v1111
  %v1701 = vpop.f32.mrb[0].mxu0
  %v1702 = vadd.f32 %v1494, %v1701
  %v1703 = vpop.f32.mrb[0].mxu0
  %v1704 = vpop.f32.mrb[0].mxu0
  %v1705 = vadd.f32 %v1497, %v1704
  %v1706 = vpop.f32.mrb[0].mxu0
  %1707 = vmatprep.mubr.bf16.mxu0 0
  %1708 = vmatmul.mubr.bf16.gmra.mrb[0].mxu0 %v1114
  %v1709 = vpop.f32.mrb[0].mxu0
  %v1710 = vadd.f32 %v1502, %v1709
  %v1711 = vpop.f32.mrb[0].mxu0
  %v1712 = vpop.f32.mrb[0].mxu0
  %v1713 = vadd.f32 %v1505, %v1712
  %v1714 = vpop.f32.mrb[0].mxu0
  %1715 = vmatprep.mubr.bf16.mxu0 0
  %1716 = vmatmul.mubr.bf16.gmra.mrb[0].mxu0 %v1117
  %v1717 = vpop.f32.mrb[0].mxu0
  %v1718 = vadd.f32 %v1510, %v1717
  %v1719 = vpop.f32.mrb[0].mxu0
  %v1720 = vpop.f32.mrb[0].mxu0
  %v1721 = vadd.f32 %v1513, %v1720
  %v1722 = vpop.f32.mrb[0].mxu0
  %1723 = vmatprep.mubr.bf16.mxu0 0
  %1724 = vmatmul.mubr.bf16.gmra.mrb[0].mxu0 %v1120
  %v1725 = vpop.f32.mrb[0].mxu0
  %v1726 = vadd.f32 %v1518, %v1725
  %v1727 = vpop.f32.mrb[0].mxu0
  %v1728 = vpop.f32.mrb[0].mxu0
  %v1729 = vadd.f32 %v1521, %v1728
  %v1730 = vpop.f32.mrb[0].mxu0
  %1731 = vmatprep.mubr.bf16.mxu0 0
  %1732 = vmatmul.mubr.bf16.gmra.mrb[0].mxu0 %v1123
  %v1733 = vpop.f32.mrb[0].mxu0
  %v1734 = vadd.f32 %v1526, %v1733
  %v1735 = vpop.f32.mrb[0].mxu0
  %v1736 = vpop.f32.mrb[0].mxu0
  %v1737 = vadd.f32 %v1529, %v1736
  %v1738 = vpop.f32.mrb[0].mxu0
  %1739 = vmatprep.mubr.bf16.mxu0 0
  %1740 = vmatmul.mubr.bf16.gmra.mrb[0].mxu0 %v1126
  %v1741 = vpop.f32.mrb[0].mxu0
  %v1742 = vadd.f32 %v1534, %v1741
  %v1743 = vpop.f32.mrb[0].mxu0
  %v1744 = vpop.f32.mrb[0].mxu0
  %v1745 = vadd.f32 %v1537, %v1744
  %v1746 = vpop.f32.mrb[0].mxu0
  %1747 = vmatprep.mubr.bf16.mxu0 0
  %1748 = vmatmul.mubr.bf16.gmra.mrb[0].mxu0 %v1129
  %v1749 = vpop.f32.mrb[0].mxu0
  %v1750 = vadd.f32 %v1542, %v1749
  %v1751 = vpop.f32.mrb[0].mxu0
  %v1752 = vpop.f32.mrb[0].mxu0
  %v1753 = vpop.f32.mrb[0].mxu0
  %1754 = vdwg.mxu0
  %v1755 = vadd.f32 %v62, %v1582
  %v1756 = vadd.f32 %v63, %v1585
  %v1757 = vadd.f32 %v64, %v1590
  %v1758 = vadd.f32 %v65, %v1593
  %v1759 = vadd.f32 %v66, %v1598
  %v1760 = vadd.f32 %v67, %v1601
  %v1761 = vadd.f32 %v68, %v1606
  %v1762 = vadd.f32 %v69, %v1609
  %v1763 = vadd.f32 %v70, %v1614
  %v1764 = vadd.f32 %v71, %v1617
  %v1765 = vadd.f32 %v72, %v1622
  %v1766 = vadd.f32 %v73, %v1625
  %v1767 = vadd.f32 %v74, %v1630
  %v1768 = vadd.f32 %v75, %v1633
  %v1769 = vadd.f32 %v76, %v1638
  %v1770 = vadd.f32 %v77, %v1641
  %v1771 = vadd.f32 %v78, %v1646
  %v1772 = vadd.f32 %v79, %v1649
  %v1773 = vadd.f32 %v80, %v1654
  %v1774 = vadd.f32 %v81, %v1657
  %v1775 = vadd.f32 %v82, %v1662
  %v1776 = vadd.f32 %v83, %v1665
  %v1777 = vadd.f32 %v84, %v1670
  %v1778 = vadd.f32 %v85, %v1673
  %v1779 = vadd.f32 %v86, %v1678
  %v1780 = vadd.f32 %v87, %v1681
  %v1781 = vadd.f32 %v88, %v1686
  %v1782 = vadd.f32 %v89, %v1689
  %v1783 = vadd.f32 %v90, %v1694
  %v1784 = vadd.f32 %v91, %v1697
  %v1785 = vadd.f32 %v92, %v1702
  %v1786 = vadd.f32 %v93, %v1705
  %v1787 = vadd.f32 %v94, %v1710
  %v1788 = vadd.f32 %v95, %v1713
  %v1789 = vadd.f32 %v96, %v1718
  %v1790 = vadd.f32 %v97, %v1721
  %v1791 = vadd.f32 %v98, %v1726
  %v1792 = vadd.f32 %v99, %v1729
  %v1793 = vadd.f32 %v100, %v1734
  %v1794 = vadd.f32 %v101, %v1737
  %v1795 = vadd.f32 %v102, %v1742
  %v1796 = vadd.f32 %v103, %v1745
  %v1797 = vadd.f32 %v104, %v1750
  %1798 = vst [vmem:[#allocation2] sm:$0xff] %v1755
  %1799 = vst [vmem:[#allocation2 + $0x8] sm:$0xff] %v1756
  %1800 = vst [vmem:[#allocation2 + $0x10] sm:$0xff] %v1757
  %1801 = vst [vmem:[#allocation2 + $0x18] sm:$0xff] %v1758
  %1802 = vst [vmem:[#allocation2 + $0x20] sm:$0xff] %v1759
  %1803 = vst [vmem:[#allocation2 + $0x28] sm:$0xff] %v1760
  %1804 = vst [vmem:[#allocation2 + $0x30] sm:$0xff] %v1761
  %1805 = vst [vmem:[#allocation2 + $0x38] sm:$0xff] %v1762
  %1806 = vst [vmem:[#allocation2 + $0x40] sm:$0xff] %v1763
  %1807 = vst [vmem:[#allocation2 + $0x48] sm:$0xff] %v1764
  %1808 = vst [vmem:[#allocation2 + $0x50] sm:$0xff] %v1765
  %1809 = vst [vmem:[#allocation2 + $0x58] sm:$0xff] %v1766
  %1810 = vst [vmem:[#allocation2 + $0x60] sm:$0xff] %v1767
  %1811 = vst [vmem:[#allocation2 + $0x68] sm:$0xff] %v1768
  %1812 = vst [vmem:[#allocation2 + $0x70] sm:$0xff] %v1769
  %1813 = vst [vmem:[#allocation2 + $0x78] sm:$0xff] %v1770
  %1814 = vst [vmem:[#allocation2 + $0x80] sm:$0xff] %v1771
  %1815 = vst [vmem:[#allocation2 + $0x88] sm:$0xff] %v1772
  %1816 = vst [vmem:[#allocation2 + $0x90] sm:$0xff] %v1773
  %1817 = vst [vmem:[#allocation2 + $0x98] sm:$0xff] %v1774
  %1818 = vst [vmem:[#allocation2 + $0xa0] sm:$0xff] %v1775
  %1819 = vst [vmem:[#allocation2 + $0xa8] sm:$0xff] %v1776
  %1820 = vst [vmem:[#allocation2 + $0xb0] sm:$0xff] %v1777
  %1821 = vst [vmem:[#allocation2 + $0xb8] sm:$0xff] %v1778
  %1822 = vst [vmem:[#allocation2 + $0xc0] sm:$0xff] %v1779
  %1823 = vst [vmem:[#allocation2 + $0xc8] sm:$0xff] %v1780
  %1824 = vst [vmem:[#allocation2 + $0xd0] sm:$0xff] %v1781
  %1825 = vst [vmem:[#allocation2 + $0xd8] sm:$0xff] %v1782
  %1826 = vst [vmem:[#allocation2 + $0xe0] sm:$0xff] %v1783
  %1827 = vst [vmem:[#allocation2 + $0xe8] sm:$0xff] %v1784
  %1828 = vst [vmem:[#allocation2 + $0xf0] sm:$0xff] %v1785
  %1829 = vst [vmem:[#allocation2 + $0xf8] sm:$0xff] %v1786
  %1830 = vst [vmem:[#allocation2 + $0x100] sm:$0xff] %v1787
  %1831 = vst [vmem:[#allocation2 + $0x108] sm:$0xff] %v1788
  %1832 = vst [vmem:[#allocation2 + $0x110] sm:$0xff] %v1789
  %1833 = vst [vmem:[#allocation2 + $0x118] sm:$0xff] %v1790
  %1834 = vst [vmem:[#allocation2 + $0x120] sm:$0xff] %v1791
  %1835 = vst [vmem:[#allocation2 + $0x128] sm:$0xff] %v1792
  %1836 = vst [vmem:[#allocation2 + $0x130] sm:$0xff] %v1793
  %1837 = vst [vmem:[#allocation2 + $0x138] sm:$0xff] %v1794
  %1838 = vst [vmem:[#allocation2 + $0x140] sm:$0xff] %v1795
  %1839 = vst [vmem:[#allocation2 + $0x148] sm:$0xff] %v1796
  %1840 = vst [vmem:[#allocation2 + $0x150] sm:$0x3] %v1797
  // Predicated region
  $region18: #{discriminator_forward.8} parent=0 // pred_check
    %p1841 = pneg %p15
  $region19: #{discriminator_forward.8} parent=0 // pred_check_branch
    %1843 = sbr.rel (%p1841) target = $region21
  $region20: #{discriminator_forward.8} parent=0 // pred_region
    %v1844 = vld [vmem:[#allocation2] sm:$0xff]
    %v1845 = vld [vmem:[#allocation2 + $0x8] sm:$0xff]
    %v1846 = vld [vmem:[#allocation2 + $0x10] sm:$0xff]
    %v1847 = vld [vmem:[#allocation2 + $0x18] sm:$0xff]
    %v1848 = vld [vmem:[#allocation2 + $0x20] sm:$0xff]
    %v1849 = vld [vmem:[#allocation2 + $0x28] sm:$0xff]
    %v1850 = vld [vmem:[#allocation2 + $0x30] sm:$0xff]
    %v1851 = vld [vmem:[#allocation2 + $0x38] sm:$0xff]
    %v1852 = vld [vmem:[#allocation2 + $0x40] sm:$0xff]
    %v1853 = vld [vmem:[#allocation2 + $0x48] sm:$0xff]
    %v1854 = vld [vmem:[#allocation2 + $0x50] sm:$0xff]
    %v1855 = vld [vmem:[#allocation2 + $0x58] sm:$0xff]
    %v1856 = vld [vmem:[#allocation2 + $0x60] sm:$0xff]
    %v1857 = vld [vmem:[#allocation2 + $0x68] sm:$0xff]
    %v1858 = vld [vmem:[#allocation2 + $0x70] sm:$0xff]
    %v1859 = vld [vmem:[#allocation2 + $0x78] sm:$0xff]
    %v1860 = vld [vmem:[#allocation2 + $0x80] sm:$0xff]
    %v1861 = vld [vmem:[#allocation2 + $0x88] sm:$0xff]
    %v1862 = vld [vmem:[#allocation2 + $0x90] sm:$0xff]
    %v1863 = vld [vmem:[#allocation2 + $0x98] sm:$0xff]
    %v1864 = vld [vmem:[#allocation2 + $0xa0] sm:$0xff]
    %v1865 = vld [vmem:[#allocation2 + $0xa8] sm:$0xff]
    %v1866 = vld [vmem:[#allocation2 + $0xb0] sm:$0xff]
    %v1867 = vld [vmem:[#allocation2 + $0xb8] sm:$0xff]
    %v1868 = vld [vmem:[#allocation2 + $0xc0] sm:$0xff]
    %v1869 = vld [vmem:[#allocation2 + $0xc8] sm:$0xff]
    %v1870 = vld [vmem:[#allocation2 + $0xd0] sm:$0xff]
    %v1871 = vld [vmem:[#allocation2 + $0xd8] sm:$0xff]
    %v1872 = vld [vmem:[#allocation2 + $0xe0] sm:$0xff]
    %v1873 = vld [vmem:[#allocation2 + $0xe8] sm:$0xff]
    %v1874 = vld [vmem:[#allocation2 + $0xf0] sm:$0xff]
    %v1875 = vld [vmem:[#allocation2 + $0xf8] sm:$0xff]
    %v1876 = vld [vmem:[#allocation2 + $0x100] sm:$0xff]
    %v1877 = vld [vmem:[#allocation2 + $0x108] sm:$0xff]
    %v1878 = vld [vmem:[#allocation2 + $0x110] sm:$0xff]
    %v1879 = vld [vmem:[#allocation2 + $0x118] sm:$0xff]
    %v1880 = vld [vmem:[#allocation2 + $0x120] sm:$0xff]
    %v1881 = vld [vmem:[#allocation2 + $0x128] sm:$0xff]
    %v1882 = vld [vmem:[#allocation2 + $0x130] sm:$0xff]
    %v1883 = vld [vmem:[#allocation2 + $0x138] sm:$0xff]
    %v1884 = vld [vmem:[#allocation2 + $0x140] sm:$0xff]
    %v1885 = vld [vmem:[#allocation2 + $0x148] sm:$0xff]
    %v1886 = vld [vmem:[#allocation2 + $0x150] sm:$0x3]
    %v1887 = vld [vmem:[%s2] sm:$0x1]
    %v1889 = vlaneseq
    %v1890 = vshrl.u32 %v1889, 7
    %v1891 = vsub.s32 0, %v1890
    %v1892 = vrot.slane %v1887, %v1891
    %v1894 = vadd.f32 %v1844, %v1892
    %v1895 = vadd.f32 %v1845, %v1892
    %v1896 = vadd.f32 %v1846, %v1892
    %v1897 = vadd.f32 %v1847, %v1892
    %v1898 = vadd.f32 %v1848, %v1892
    %v1899 = vadd.f32 %v1849, %v1892
    %v1900 = vadd.f32 %v1850, %v1892
    %v1901 = vadd.f32 %v1851, %v1892
    %v1902 = vadd.f32 %v1852, %v1892
    %v1903 = vadd.f32 %v1853, %v1892
    %v1904 = vadd.f32 %v1854, %v1892
    %v1905 = vadd.f32 %v1855, %v1892
    %v1906 = vadd.f32 %v1856, %v1892
    %v1907 = vadd.f32 %v1857, %v1892
    %v1908 = vadd.f32 %v1858, %v1892
    %v1909 = vadd.f32 %v1859, %v1892
    %v1910 = vadd.f32 %v1860, %v1892
    %v1911 = vadd.f32 %v1861, %v1892
    %v1912 = vadd.f32 %v1862, %v1892
    %v1913 = vadd.f32 %v1863, %v1892
    %v1914 = vadd.f32 %v1864, %v1892
    %v1915 = vadd.f32 %v1865, %v1892
    %v1916 = vadd.f32 %v1866, %v1892
    %v1917 = vadd.f32 %v1867, %v1892
    %v1918 = vadd.f32 %v1868, %v1892
    %v1919 = vadd.f32 %v1869, %v1892
    %v1920 = vadd.f32 %v1870, %v1892
    %v1921 = vadd.f32 %v1871, %v1892
    %v1922 = vadd.f32 %v1872, %v1892
    %v1923 = vadd.f32 %v1873, %v1892
    %v1924 = vadd.f32 %v1874, %v1892
    %v1925 = vadd.f32 %v1875, %v1892
    %v1926 = vadd.f32 %v1876, %v1892
    %v1927 = vadd.f32 %v1877, %v1892
    %v1928 = vadd.f32 %v1878, %v1892
    %v1929 = vadd.f32 %v1879, %v1892
    %v1930 = vadd.f32 %v1880, %v1892
    %v1931 = vadd.f32 %v1881, %v1892
    %v1932 = vadd.f32 %v1882, %v1892
    %v1933 = vadd.f32 %v1883, %v1892
    %v1934 = vadd.f32 %v1884, %v1892
    %v1935 = vadd.f32 %v1885, %v1892
    %v1936 = vadd.f32 %v1886, %v1892
    %vm1937 = vcmp.ge.f32.partialorder %v1894, 0.0
    %vm1938 = vcmp.ge.f32.partialorder %v1895, 0.0
    %vm1939 = vcmp.ge.f32.partialorder %v1896, 0.0
    %vm1940 = vcmp.ge.f32.partialorder %v1897, 0.0
    %vm1941 = vcmp.ge.f32.partialorder %v1898, 0.0
    %vm1942 = vcmp.ge.f32.partialorder %v1899, 0.0
    %vm1943 = vcmp.ge.f32.partialorder %v1900, 0.0
    %vm1944 = vcmp.ge.f32.partialorder %v1901, 0.0
    %vm1945 = vcmp.ge.f32.partialorder %v1902, 0.0
    %vm1946 = vcmp.ge.f32.partialorder %v1903, 0.0
    %vm1947 = vcmp.ge.f32.partialorder %v1904, 0.0
    %vm1948 = vcmp.ge.f32.partialorder %v1905, 0.0
    %vm1949 = vcmp.ge.f32.partialorder %v1906, 0.0
    %vm1950 = vcmp.ge.f32.partialorder %v1907, 0.0
    %vm1951 = vcmp.ge.f32.partialorder %v1908, 0.0
    %vm1952 = vcmp.ge.f32.partialorder %v1909, 0.0
    %vm1953 = vcmp.ge.f32.partialorder %v1910, 0.0
    %vm1954 = vcmp.ge.f32.partialorder %v1911, 0.0
    %vm1955 = vcmp.ge.f32.partialorder %v1912, 0.0
    %vm1956 = vcmp.ge.f32.partialorder %v1913, 0.0
    %vm1957 = vcmp.ge.f32.partialorder %v1914, 0.0
    %vm1958 = vcmp.ge.f32.partialorder %v1915, 0.0
    %vm1959 = vcmp.ge.f32.partialorder %v1916, 0.0
    %vm1960 = vcmp.ge.f32.partialorder %v1917, 0.0
    %vm1961 = vcmp.ge.f32.partialorder %v1918, 0.0
    %vm1962 = vcmp.ge.f32.partialorder %v1919, 0.0
    %vm1963 = vcmp.ge.f32.partialorder %v1920, 0.0
    %vm1964 = vcmp.ge.f32.partialorder %v1921, 0.0
    %vm1965 = vcmp.ge.f32.partialorder %v1922, 0.0
    %vm1966 = vcmp.ge.f32.partialorder %v1923, 0.0
    %vm1967 = vcmp.ge.f32.partialorder %v1924, 0.0
    %vm1968 = vcmp.ge.f32.partialorder %v1925, 0.0
    %vm1969 = vcmp.ge.f32.partialorder %v1926, 0.0
    %vm1970 = vcmp.ge.f32.partialorder %v1927, 0.0
    %vm1971 = vcmp.ge.f32.partialorder %v1928, 0.0
    %vm1972 = vcmp.ge.f32.partialorder %v1929, 0.0
    %vm1973 = vcmp.ge.f32.partialorder %v1930, 0.0
    %vm1974 = vcmp.ge.f32.partialorder %v1931, 0.0
    %vm1975 = vcmp.ge.f32.partialorder %v1932, 0.0
    %vm1976 = vcmp.ge.f32.partialorder %v1933, 0.0
    %vm1977 = vcmp.ge.f32.partialorder %v1934, 0.0
    %vm1978 = vcmp.ge.f32.partialorder %v1935, 0.0
    %vm1979 = vcmp.ge.f32.partialorder %v1936, 0.0
    %v1980 = vmul.f32 %v1894, 0.01
    %v1981 = vmul.f32 %v1895, 0.01
    %v1982 = vmul.f32 %v1896, 0.01
    %v1983 = vmul.f32 %v1897, 0.01
    %v1984 = vmul.f32 %v1898, 0.01
    %v1985 = vmul.f32 %v1899, 0.01
    %v1986 = vmul.f32 %v1900, 0.01
    %v1987 = vmul.f32 %v1901, 0.01
    %v1988 = vmul.f32 %v1902, 0.01
    %v1989 = vmul.f32 %v1903, 0.01
    %v1990 = vmul.f32 %v1904, 0.01
    %v1991 = vmul.f32 %v1905, 0.01
    %v1992 = vmul.f32 %v1906, 0.01
    %v1993 = vmul.f32 %v1907, 0.01
    %v1994 = vmul.f32 %v1908, 0.01
    %v1995 = vmul.f32 %v1909, 0.01
    %v1996 = vmul.f32 %v1910, 0.01
    %v1997 = vmul.f32 %v1911, 0.01
    %v1998 = vmul.f32 %v1912, 0.01
    %v1999 = vmul.f32 %v1913, 0.01
    %v2000 = vmul.f32 %v1914, 0.01
    %v2001 = vmul.f32 %v1915, 0.01
    %v2002 = vmul.f32 %v1916, 0.01
    %v2003 = vmul.f32 %v1917, 0.01
    %v2004 = vmul.f32 %v1918, 0.01
    %v2005 = vmul.f32 %v1919, 0.01
    %v2006 = vmul.f32 %v1920, 0.01
    %v2007 = vmul.f32 %v1921, 0.01
    %v2008 = vmul.f32 %v1922, 0.01
    %v2009 = vmul.f32 %v1923, 0.01
    %v2010 = vmul.f32 %v1924, 0.01
    %v2011 = vmul.f32 %v1925, 0.01
    %v2012 = vmul.f32 %v1926, 0.01
    %v2013 = vmul.f32 %v1927, 0.01
    %v2014 = vmul.f32 %v1928, 0.01
    %v2015 = vmul.f32 %v1929, 0.01
    %v2016 = vmul.f32 %v1930, 0.01
    %v2017 = vmul.f32 %v1931, 0.01
    %v2018 = vmul.f32 %v1932, 0.01
    %v2019 = vmul.f32 %v1933, 0.01
    %v2020 = vmul.f32 %v1934, 0.01
    %v2021 = vmul.f32 %v1935, 0.01
    %v2022 = vmul.f32 %v1936, 0.01
    %v2023 = vsel %vm1937, %v1894, %v1980
    %v2024 = vsel %vm1938, %v1895, %v1981
    %v2025 = vsel %vm1939, %v1896, %v1982
    %v2026 = vsel %vm1940, %v1897, %v1983
    %v2027 = vsel %vm1941, %v1898, %v1984
    %v2028 = vsel %vm1942, %v1899, %v1985
    %v2029 = vsel %vm1943, %v1900, %v1986
    %v2030 = vsel %vm1944, %v1901, %v1987
    %v2031 = vsel %vm1945, %v1902, %v1988
    %v2032 = vsel %vm1946, %v1903, %v1989
    %v2033 = vsel %vm1947, %v1904, %v1990
    %v2034 = vsel %vm1948, %v1905, %v1991
    %v2035 = vsel %vm1949, %v1906, %v1992
    %v2036 = vsel %vm1950, %v1907, %v1993
    %v2037 = vsel %vm1951, %v1908, %v1994
    %v2038 = vsel %vm1952, %v1909, %v1995
    %v2039 = vsel %vm1953, %v1910, %v1996
    %v2040 = vsel %vm1954, %v1911, %v1997
    %v2041 = vsel %vm1955, %v1912, %v1998
    %v2042 = vsel %vm1956, %v1913, %v1999
    %v2043 = vsel %vm1957, %v1914, %v2000
    %v2044 = vsel %vm1958, %v1915, %v2001
    %v2045 = vsel %vm1959, %v1916, %v2002
    %v2046 = vsel %vm1960, %v1917, %v2003
    %v2047 = vsel %vm1961, %v1918, %v2004
    %v2048 = vsel %vm1962, %v1919, %v2005
    %v2049 = vsel %vm1963, %v1920, %v2006
    %v2050 = vsel %vm1964, %v1921, %v2007
    %v2051 = vsel %vm1965, %v1922, %v2008
    %v2052 = vsel %vm1966, %v1923, %v2009
    %v2053 = vsel %vm1967, %v1924, %v2010
    %v2054 = vsel %vm1968, %v1925, %v2011
    %v2055 = vsel %vm1969, %v1926, %v2012
    %v2056 = vsel %vm1970, %v1927, %v2013
    %v2057 = vsel %vm1971, %v1928, %v2014
    %v2058 = vsel %vm1972, %v1929, %v2015
    %v2059 = vsel %vm1973, %v1930, %v2016
    %v2060 = vsel %vm1974, %v1931, %v2017
    %v2061 = vsel %vm1975, %v1932, %v2018
    %v2062 = vsel %vm1976, %v1933, %v2019
    %v2063 = vsel %vm1977, %v1934, %v2020
    %v2064 = vsel %vm1978, %v1935, %v2021
    %v2065 = vsel %vm1979, %v1936, %v2022
    %v2066 = vpack.c.bf16 %v2024, %v2023
    %v2067 = vpack.c.bf16 %v2026, %v2025
    %v2068 = vpack.c.bf16 %v2028, %v2027
    %v2069 = vpack.c.bf16 %v2030, %v2029
    %v2070 = vpack.c.bf16 %v2032, %v2031
    %v2071 = vpack.c.bf16 %v2034, %v2033
    %v2072 = vpack.c.bf16 %v2036, %v2035
    %v2073 = vpack.c.bf16 %v2038, %v2037
    %v2074 = vpack.c.bf16 %v2040, %v2039
    %v2075 = vpack.c.bf16 %v2042, %v2041
    %v2076 = vpack.c.bf16 %v2044, %v2043
    %v2077 = vpack.c.bf16 %v2046, %v2045
    %v2078 = vpack.c.bf16 %v2048, %v2047
    %v2079 = vpack.c.bf16 %v2050, %v2049
    %v2080 = vpack.c.bf16 %v2052, %v2051
    %v2081 = vpack.c.bf16 %v2054, %v2053
    %v2082 = vpack.c.bf16 %v2056, %v2055
    %v2083 = vpack.c.bf16 %v2058, %v2057
    %v2084 = vpack.c.bf16 %v2060, %v2059
    %v2085 = vpack.c.bf16 %v2062, %v2061
    %v2086 = vpack.c.bf16 %v2064, %v2063
    %v2087 = vpack.c.bf16 %v2065, %v2065
    %v2110 = vunpack.c.l.b16 %v2066
    %v2111 = vunpack.c.h.b16 %v2066
    %v2112 = vunpack.c.l.b16 %v2067
    %v2113 = vunpack.c.h.b16 %v2067
    %v2114 = vunpack.c.l.b16 %v2068
    %v2115 = vunpack.c.h.b16 %v2068
    %v2116 = vunpack.c.l.b16 %v2069
    %v2117 = vunpack.c.h.b16 %v2069
    %v2118 = vunpack.c.l.b16 %v2070
    %v2119 = vunpack.c.h.b16 %v2070
    %v2120 = vunpack.c.l.b16 %v2071
    %v2121 = vunpack.c.h.b16 %v2071
    %v2122 = vunpack.c.l.b16 %v2072
    %v2123 = vunpack.c.h.b16 %v2072
    %v2124 = vunpack.c.l.b16 %v2073
    %v2125 = vunpack.c.h.b16 %v2073
    %v2126 = vunpack.c.l.b16 %v2074
    %v2127 = vunpack.c.h.b16 %v2074
    %v2128 = vunpack.c.l.b16 %v2075
    %v2129 = vunpack.c.h.b16 %v2075
    %v2130 = vunpack.c.l.b16 %v2076
    %v2131 = vunpack.c.h.b16 %v2076
    %v2132 = vunpack.c.l.b16 %v2077
    %v2133 = vunpack.c.h.b16 %v2077
    %v2134 = vunpack.c.l.b16 %v2078
    %v2135 = vunpack.c.h.b16 %v2078
    %v2136 = vunpack.c.l.b16 %v2079
    %v2137 = vunpack.c.h.b16 %v2079
    %v2138 = vunpack.c.l.b16 %v2080
    %v2139 = vunpack.c.h.b16 %v2080
    %v2140 = vunpack.c.l.b16 %v2081
    %v2141 = vunpack.c.h.b16 %v2081
    %v2142 = vunpack.c.l.b16 %v2082
    %v2143 = vunpack.c.h.b16 %v2082
    %v2144 = vunpack.c.l.b16 %v2083
    %v2145 = vunpack.c.h.b16 %v2083
    %v2146 = vunpack.c.l.b16 %v2084
    %v2147 = vunpack.c.h.b16 %v2084
    %v2148 = vunpack.c.l.b16 %v2085
    %v2149 = vunpack.c.h.b16 %v2085
    %v2150 = vunpack.c.l.b16 %v2086
    %v2151 = vunpack.c.h.b16 %v2086
    %v2152 = vunpack.c.l.b16 %v2087
    %v2153 = vpack.c.b16 %v2110, %v2110
    %v2154 = vpack.c.b16 %v2111, %v2111
    %v2155 = vpack.c.b16 %v2112, %v2112
    %v2156 = vpack.c.b16 %v2113, %v2113
    %v2157 = vpack.c.b16 %v2114, %v2114
    %v2158 = vpack.c.b16 %v2115, %v2115
    %v2159 = vpack.c.b16 %v2116, %v2116
    %v2160 = vpack.c.b16 %v2117, %v2117
    %v2161 = vpack.c.b16 %v2118, %v2118
    %v2162 = vpack.c.b16 %v2119, %v2119
    %v2163 = vpack.c.b16 %v2120, %v2120
    %v2164 = vpack.c.b16 %v2121, %v2121
    %v2165 = vpack.c.b16 %v2122, %v2122
    %v2166 = vpack.c.b16 %v2123, %v2123
    %v2167 = vpack.c.b16 %v2124, %v2124
    %v2168 = vpack.c.b16 %v2125, %v2125
    %v2169 = vpack.c.b16 %v2126, %v2126
    %v2170 = vpack.c.b16 %v2127, %v2127
    %v2171 = vpack.c.b16 %v2128, %v2128
    %v2172 = vpack.c.b16 %v2129, %v2129
    %v2173 = vpack.c.b16 %v2130, %v2130
    %v2174 = vpack.c.b16 %v2131, %v2131
    %v2175 = vpack.c.b16 %v2132, %v2132
    %v2176 = vpack.c.b16 %v2133, %v2133
    %v2177 = vpack.c.b16 %v2134, %v2134
    %v2178 = vpack.c.b16 %v2135, %v2135
    %v2179 = vpack.c.b16 %v2136, %v2136
    %v2180 = vpack.c.b16 %v2137, %v2137
    %v2181 = vpack.c.b16 %v2138, %v2138
    %v2182 = vpack.c.b16 %v2139, %v2139
    %v2183 = vpack.c.b16 %v2140, %v2140
    %v2184 = vpack.c.b16 %v2141, %v2141
    %v2185 = vpack.c.b16 %v2142, %v2142
    %v2186 = vpack.c.b16 %v2143, %v2143
    %v2187 = vpack.c.b16 %v2144, %v2144
    %v2188 = vpack.c.b16 %v2145, %v2145
    %v2189 = vpack.c.b16 %v2146, %v2146
    %v2190 = vpack.c.b16 %v2147, %v2147
    %v2191 = vpack.c.b16 %v2148, %v2148
    %v2192 = vpack.c.b16 %v2149, %v2149
    %v2193 = vpack.c.b16 %v2150, %v2150
    %v2194 = vpack.c.b16 %v2151, %v2151
    %v2195 = vpack.c.b16 %v2152, %v2152
    %2239 = vst [vmem:[%s3] sm:$0xf] %v2153
    %2240 = vst [vmem:[%s3 + $0x4] sm:$0xf] %v2154
    %2241 = vst [vmem:[%s3 + $0x8] sm:$0xf] %v2155
    %2242 = vst [vmem:[%s3 + $0xc] sm:$0xf] %v2156
    %2243 = vst [vmem:[%s3 + $0x10] sm:$0xf] %v2157
    %2244 = vst [vmem:[%s3 + $0x14] sm:$0xf] %v2158
    %2245 = vst [vmem:[%s3 + $0x18] sm:$0xf] %v2159
    %2246 = vst [vmem:[%s3 + $0x1c] sm:$0xf] %v2160
    %2247 = vst [vmem:[%s3 + $0x20] sm:$0xf] %v2161
    %2248 = vst [vmem:[%s3 + $0x24] sm:$0xf] %v2162
    %2249 = vst [vmem:[%s3 + $0x28] sm:$0xf] %v2163
    %2250 = vst [vmem:[%s3 + $0x2c] sm:$0xf] %v2164
    %2251 = vst [vmem:[%s3 + $0x30] sm:$0xf] %v2165
    %2252 = vst [vmem:[%s3 + $0x34] sm:$0xf] %v2166
    %2253 = vst [vmem:[%s3 + $0x38] sm:$0xf] %v2167
    %2254 = vst [vmem:[%s3 + $0x3c] sm:$0xf] %v2168
    %2255 = vst [vmem:[%s3 + $0x40] sm:$0xf] %v2169
    %2256 = vst [vmem:[%s3 + $0x44] sm:$0xf] %v2170
    %2257 = vst [vmem:[%s3 + $0x48] sm:$0xf] %v2171
    %2258 = vst [vmem:[%s3 + $0x4c] sm:$0xf] %v2172
    %2259 = vst [vmem:[%s3 + $0x50] sm:$0xf] %v2173
    %2260 = vst [vmem:[%s3 + $0x54] sm:$0xf] %v2174
    %2261 = vst [vmem:[%s3 + $0x58] sm:$0xf] %v2175
    %2262 = vst [vmem:[%s3 + $0x5c] sm:$0xf] %v2176
    %2263 = vst [vmem:[%s3 + $0x60] sm:$0xf] %v2177
    %2264 = vst [vmem:[%s3 + $0x64] sm:$0xf] %v2178
    %2265 = vst [vmem:[%s3 + $0x68] sm:$0xf] %v2179
    %2266 = vst [vmem:[%s3 + $0x6c] sm:$0xf] %v2180
    %2267 = vst [vmem:[%s3 + $0x70] sm:$0xf] %v2181
    %2268 = vst [vmem:[%s3 + $0x74] sm:$0xf] %v2182
    %2269 = vst [vmem:[%s3 + $0x78] sm:$0xf] %v2183
    %2270 = vst [vmem:[%s3 + $0x7c] sm:$0xf] %v2184
    %2271 = vst [vmem:[%s3 + $0x80] sm:$0xf] %v2185
    %2272 = vst [vmem:[%s3 + $0x84] sm:$0xf] %v2186
    %2273 = vst [vmem:[%s3 + $0x88] sm:$0xf] %v2187
    %2274 = vst [vmem:[%s3 + $0x8c] sm:$0xf] %v2188
    %2275 = vst [vmem:[%s3 + $0x90] sm:$0xf] %v2189
    %2276 = vst [vmem:[%s3 + $0x94] sm:$0xf] %v2190
    %2277 = vst [vmem:[%s3 + $0x98] sm:$0xf] %v2191
    %2278 = vst [vmem:[%s3 + $0x9c] sm:$0xf] %v2192
    %2279 = vst [vmem:[%s3 + $0xa0] sm:$0xf] %v2193
    %2280 = vst [vmem:[%s3 + $0xa4] sm:$0xf] %v2194
    %2281 = vst [vmem:[%s3 + $0xa8] sm:$0x1] %v2195
  $region21: #{discriminator_forward.8} parent=0 // pred_fallthru
    _
  // Predicated region
  $region22: #{discriminator_forward.8} parent=0 // pred_check
    _
  $region23: #{discriminator_forward.8} parent=0 // pred_check_branch
    %2283 = sbr.rel (0) target = $region25
  $region24: #{discriminator_forward.8} parent=0 // pred_region
    _
  $region25: #{discriminator_forward.8} parent=0 // pred_fallthru
    _
  // Predicated region
  $region26: #{discriminator_forward.8} parent=0 // pred_check
    _
  $region27: #{discriminator_forward.8} parent=0 // pred_check_branch
    %2285 = sbr.rel (0) target = $region29
  $region28: #{discriminator_forward.8} parent=0 // pred_region
    _
  $region29: #{discriminator_forward.8} parent=0 // pred_fallthru
    _

// kernel: discriminator_forward.9
$region0: #{discriminator_forward.9}
  #allocation0 [shape = 'u32[]', space=smem, size = 0x4, offset = 0x4, fixed_abs, tag = 'smem constant byte address 0x4 - core index']
  #allocation1 [shape = 'u32[144,128]{1,0:T(1,128)}', space=vmem, size = 0x12000, scoped, tag = 'internal scratch']
  #allocation2 [shape = 'f32[242,128]{1,0:T(8,128)}', space=vmem, size = 0x1f000, scoped, tag = 'scratch operand']
  %s0 = inlined_call_operand.vmem [shape: bf16[242,1152], index: 0, kind: input, shape index: {}]
  %s1 = inlined_call_operand.vmem [shape: bf16[1152,128], index: 1, kind: input, shape index: {}]
  %s2 = inlined_call_operand.vmem [shape: f32[1,128], index: 2, kind: input, shape index: {}]
  %s3 = inlined_call_operand.vmem [shape: bf16[242,128], index: 3, kind: output, shape index: {}]
  %s4 = sld [smem:[#allocation0]]
  $region30: #{discriminator_forward.9} parent=0
    _
  %s6 = ssub.s32 1, %s4
  %s7 = scalar_select 0, %s6, %s4
  // Predicated region
  $region2: #{discriminator_forward.9} parent=0 // pred_check
    _
  $region3: #{discriminator_forward.9} parent=0 // pred_check_branch
    %9 = sbr.rel (0) target = $region5
  $region4: #{discriminator_forward.9} parent=0 // pred_region
    _
  $region5: #{discriminator_forward.9} parent=0 // pred_fallthru
    _
  // Predicated region
  $region6: #{discriminator_forward.9} parent=0 // pred_check
    _
  $region7: #{discriminator_forward.9} parent=0 // pred_check_branch
    %11 = sbr.rel (0) target = $region9
  $region8: #{discriminator_forward.9} parent=0 // pred_region
    _
  $region9: #{discriminator_forward.9} parent=0 // pred_fallthru
    _
  // Predicated region
  $region10: #{discriminator_forward.9} parent=0 // pred_check
    _
  $region11: #{discriminator_forward.9} parent=0 // pred_check_branch
    %13 = sbr.rel (0) target = $region13
  $region12: #{discriminator_forward.9} parent=0 // pred_region
    _
  $region13: #{discriminator_forward.9} parent=0 // pred_fallthru
    _
  %p15 = scmp.eq.s32.totalorder 0, 0
  // Predicated region
  $region14: #{discriminator_forward.9} parent=0 // pred_check
    %p16 = pneg %p15
  $region15: #{discriminator_forward.9} parent=0 // pred_check_branch
    %18 = sbr.rel (%p16) target = $region17
  $region16: #{discriminator_forward.9} parent=0 // pred_region
    %19 = vst [vmem:[#allocation2] sm:$0xff] 0.0
    %20 = vst [vmem:[#allocation2 + $0x8] sm:$0xff] 0.0
    %21 = vst [vmem:[#allocation2 + $0x10] sm:$0xff] 0.0
    %22 = vst [vmem:[#allocation2 + $0x18] sm:$0xff] 0.0
    %23 = vst [vmem:[#allocation2 + $0x20] sm:$0xff] 0.0
    %24 = vst [vmem:[#allocation2 + $0x28] sm:$0xff] 0.0
    %25 = vst [vmem:[#allocation2 + $0x30] sm:$0xff] 0.0
    %26 = vst [vmem:[#allocation2 + $0x38] sm:$0xff] 0.0
    %27 = vst [vmem:[#allocation2 + $0x40] sm:$0xff] 0.0
    %28 = vst [vmem:[#allocation2 + $0x48] sm:$0xff] 0.0
    %29 = vst [vmem:[#allocation2 + $0x50] sm:$0xff] 0.0
    %30 = vst [vmem:[#allocation2 + $0x58] sm:$0xff] 0.0
    %31 = vst [vmem:[#allocation2 + $0x60] sm:$0xff] 0.0
    %32 = vst [vmem:[#allocation2 + $0x68] sm:$0xff] 0.0
    %33 = vst [vmem:[#allocation2 + $0x70] sm:$0xff] 0.0
    %34 = vst [vmem:[#allocation2 + $0x78] sm:$0xff] 0.0
    %35 = vst [vmem:[#allocation2 + $0x80] sm:$0xff] 0.0
    %36 = vst [vmem:[#allocation2 + $0x88] sm:$0xff] 0.0
    %37 = vst [vmem:[#allocation2 + $0x90] sm:$0xff] 0.0
    %38 = vst [vmem:[#allocation2 + $0x98] sm:$0xff] 0.0
    %39 = vst [vmem:[#allocation2 + $0xa0] sm:$0xff] 0.0
    %40 = vst [vmem:[#allocation2 + $0xa8] sm:$0xff] 0.0
    %41 = vst [vmem:[#allocation2 + $0xb0] sm:$0xff] 0.0
    %42 = vst [vmem:[#allocation2 + $0xb8] sm:$0xff] 0.0
    %43 = vst [vmem:[#allocation2 + $0xc0] sm:$0xff] 0.0
    %44 = vst [vmem:[#allocation2 + $0xc8] sm:$0xff] 0.0
    %45 = vst [vmem:[#allocation2 + $0xd0] sm:$0xff] 0.0
    %46 = vst [vmem:[#allocation2 + $0xd8] sm:$0xff] 0.0
    %47 = vst [vmem:[#allocation2 + $0xe0] sm:$0xff] 0.0
    %48 = vst [vmem:[#allocation2 + $0xe8] sm:$0xff] 0.0
    %49 = vst [vmem:[#allocation2 + $0xf0] sm:$0x3] 0.0
  $region17: #{discriminator_forward.9} parent=0 // pred_fallthru
    _
  %v50 = vld [vmem:[#allocation2] sm:$0xff]
  %v51 = vld [vmem:[#allocation2 + $0x8] sm:$0xff]
  %v52 = vld [vmem:[#allocation2 + $0x10] sm:$0xff]
  %v53 = vld [vmem:[#allocation2 + $0x18] sm:$0xff]
  %v54 = vld [vmem:[#allocation2 + $0x20] sm:$0xff]
  %v55 = vld [vmem:[#allocation2 + $0x28] sm:$0xff]
  %v56 = vld [vmem:[#allocation2 + $0x30] sm:$0xff]
  %v57 = vld [vmem:[#allocation2 + $0x38] sm:$0xff]
  %v58 = vld [vmem:[#allocation2 + $0x40] sm:$0xff]
  %v59 = vld [vmem:[#allocation2 + $0x48] sm:$0xff]
  %v60 = vld [vmem:[#allocation2 + $0x50] sm:$0xff]
  %v61 = vld [vmem:[#allocation2 + $0x58] sm:$0xff]
  %v62 = vld [vmem:[#allocation2 + $0x60] sm:$0xff]
  %v63 = vld [vmem:[#allocation2 + $0x68] sm:$0xff]
  %v64 = vld [vmem:[#allocation2 + $0x70] sm:$0xff]
  %v65 = vld [vmem:[#allocation2 + $0x78] sm:$0xff]
  %v66 = vld [vmem:[#allocation2 + $0x80] sm:$0xff]
  %v67 = vld [vmem:[#allocation2 + $0x88] sm:$0xff]
  %v68 = vld [vmem:[#allocation2 + $0x90] sm:$0xff]
  %v69 = vld [vmem:[#allocation2 + $0x98] sm:$0xff]
  %v70 = vld [vmem:[#allocation2 + $0xa0] sm:$0xff]
  %v71 = vld [vmem:[#allocation2 + $0xa8] sm:$0xff]
  %v72 = vld [vmem:[#allocation2 + $0xb0] sm:$0xff]
  %v73 = vld [vmem:[#allocation2 + $0xb8] sm:$0xff]
  %v74 = vld [vmem:[#allocation2 + $0xc0] sm:$0xff]
  %v75 = vld [vmem:[#allocation2 + $0xc8] sm:$0xff]
  %v76 = vld [vmem:[#allocation2 + $0xd0] sm:$0xff]
  %v77 = vld [vmem:[#allocation2 + $0xd8] sm:$0xff]
  %v78 = vld [vmem:[#allocation2 + $0xe0] sm:$0xff]
  %v79 = vld [vmem:[#allocation2 + $0xe8] sm:$0xff]
  %v80 = vld [vmem:[#allocation2 + $0xf0] sm:$0x3]
  %v81 = vld [vmem:[%s0] sm:$0xff]
  %v82 = vld [vmem:[%s0 + $0x8] sm:$0xff]
  %v83 = vld [vmem:[%s0 + $0x10] sm:$0xff]
  %v84 = vld [vmem:[%s0 + $0x18] sm:$0xff]
  %v85 = vld [vmem:[%s0 + $0x20] sm:$0xf]
  %v86 = vld [vmem:[%s0 + $0x24] sm:$0xff]
  %v87 = vld [vmem:[%s0 + $0x2c] sm:$0xff]
  %v88 = vld [vmem:[%s0 + $0x34] sm:$0xff]
  %v89 = vld [vmem:[%s0 + $0x3c] sm:$0xff]
  %v90 = vld [vmem:[%s0 + $0x44] sm:$0xf]
  %v91 = vld [vmem:[%s0 + $0x48] sm:$0xff]
  %v92 = vld [vmem:[%s0 + $0x50] sm:$0xff]
  %v93 = vld [vmem:[%s0 + $0x58] sm:$0xff]
  %v94 = vld [vmem:[%s0 + $0x60] sm:$0xff]
  %v95 = vld [vmem:[%s0 + $0x68] sm:$0xf]
  %v96 = vld [vmem:[%s0 + $0x6c] sm:$0xff]
  %v97 = vld [vmem:[%s0 + $0x74] sm:$0xff]
  %v98 = vld [vmem:[%s0 + $0x7c] sm:$0xff]
  %v99 = vld [vmem:[%s0 + $0x84] sm:$0xff]
  %v100 = vld [vmem:[%s0 + $0x8c] sm:$0xf]
  %v101 = vld [vmem:[%s0 + $0x90] sm:$0xff]
  %v102 = vld [vmem:[%s0 + $0x98] sm:$0xff]
  %v103 = vld [vmem:[%s0 + $0xa0] sm:$0xff]
  %v104 = vld [vmem:[%s0 + $0xa8] sm:$0xff]
  %v105 = vld [vmem:[%s0 + $0xb0] sm:$0xf]
  %v106 = vld [vmem:[%s0 + $0xb4] sm:$0xff]
  %v107 = vld [vmem:[%s0 + $0xbc] sm:$0xff]
  %v108 = vld [vmem:[%s0 + $0xc4] sm:$0xff]
  %v109 = vld [vmem:[%s0 + $0xcc] sm:$0xff]
  %v110 = vld [vmem:[%s0 + $0xd4] sm:$0xf]
  %v111 = vld [vmem:[%s0 + $0xd8] sm:$0xff]
  %v112 = vld [vmem:[%s0 + $0xe0] sm:$0xff]
  %v113 = vld [vmem:[%s0 + $0xe8] sm:$0xff]
  %v114 = vld [vmem:[%s0 + $0xf0] sm:$0xff]
  %v115 = vld [vmem:[%s0 + $0xf8] sm:$0xf]
  %v116 = vld [vmem:[%s0 + $0xfc] sm:$0xff]
  %v117 = vld [vmem:[%s0 + $0x104] sm:$0xff]
  %v118 = vld [vmem:[%s0 + $0x10c] sm:$0xff]
  %v119 = vld [vmem:[%s0 + $0x114] sm:$0xff]
  %v120 = vld [vmem:[%s0 + $0x11c] sm:$0xf]
  %v121 = vld [vmem:[%s0 + $0x120] sm:$0xff]
  %v122 = vld [vmem:[%s0 + $0x128] sm:$0xff]
  %v123 = vld [vmem:[%s0 + $0x130] sm:$0xff]
  %v124 = vld [vmem:[%s0 + $0x138] sm:$0xff]
  %v125 = vld [vmem:[%s0 + $0x140] sm:$0xf]
  %v126 = vld [vmem:[%s0 + $0x144] sm:$0xff]
  %v127 = vld [vmem:[%s0 + $0x14c] sm:$0xff]
  %v128 = vld [vmem:[%s0 + $0x154] sm:$0xff]
  %v129 = vld [vmem:[%s0 + $0x15c] sm:$0xff]
  %v130 = vld [vmem:[%s0 + $0x164] sm:$0xf]
  %v131 = vld [vmem:[%s0 + $0x168] sm:$0xff]
  %v132 = vld [vmem:[%s0 + $0x170] sm:$0xff]
  %v133 = vld [vmem:[%s0 + $0x178] sm:$0xff]
  %v134 = vld [vmem:[%s0 + $0x180] sm:$0xff]
  %v135 = vld [vmem:[%s0 + $0x188] sm:$0xf]
  %v136 = vld [vmem:[%s0 + $0x18c] sm:$0xff]
  %v137 = vld [vmem:[%s0 + $0x194] sm:$0xff]
  %v138 = vld [vmem:[%s0 + $0x19c] sm:$0xff]
  %v139 = vld [vmem:[%s0 + $0x1a4] sm:$0xff]
  %v140 = vld [vmem:[%s0 + $0x1ac] sm:$0xf]
  %v141 = vld [vmem:[%s0 + $0x1b0] sm:$0xff]
  %v142 = vld [vmem:[%s0 + $0x1b8] sm:$0xff]
  %v143 = vld [vmem:[%s0 + $0x1c0] sm:$0xff]
  %v144 = vld [vmem:[%s0 + $0x1c8] sm:$0xff]
  %v145 = vld [vmem:[%s0 + $0x1d0] sm:$0xf]
  %v146 = vld [vmem:[%s0 + $0x1d4] sm:$0xff]
  %v147 = vld [vmem:[%s0 + $0x1dc] sm:$0xff]
  %v148 = vld [vmem:[%s0 + $0x1e4] sm:$0xff]
  %v149 = vld [vmem:[%s0 + $0x1ec] sm:$0xff]
  %v150 = vld [vmem:[%s0 + $0x1f4] sm:$0xf]
  %v151 = vld [vmem:[%s0 + $0x1f8] sm:$0xff]
  %v152 = vld [vmem:[%s0 + $0x200] sm:$0xff]
  %v153 = vld [vmem:[%s0 + $0x208] sm:$0xff]
  %v154 = vld [vmem:[%s0 + $0x210] sm:$0xff]
  %v155 = vld [vmem:[%s0 + $0x218] sm:$0xf]
  %v156 = vld [vmem:[%s0 + $0x21c] sm:$0xff]
  %v157 = vld [vmem:[%s0 + $0x224] sm:$0xff]
  %v158 = vld [vmem:[%s0 + $0x22c] sm:$0xff]
  %v159 = vld [vmem:[%s0 + $0x234] sm:$0xff]
  %v160 = vld [vmem:[%s0 + $0x23c] sm:$0xf]
  %v161 = vld [vmem:[%s0 + $0x240] sm:$0xff]
  %v162 = vld [vmem:[%s0 + $0x248] sm:$0xff]
  %v163 = vld [vmem:[%s0 + $0x250] sm:$0xff]
  %v164 = vld [vmem:[%s0 + $0x258] sm:$0xff]
  %v165 = vld [vmem:[%s0 + $0x260] sm:$0xf]
  %v166 = vld [vmem:[%s0 + $0x264] sm:$0xff]
  %v167 = vld [vmem:[%s0 + $0x26c] sm:$0xff]
  %v168 = vld [vmem:[%s0 + $0x274] sm:$0xff]
  %v169 = vld [vmem:[%s0 + $0x27c] sm:$0xff]
  %v170 = vld [vmem:[%s0 + $0x284] sm:$0xf]
  %v171 = vld [vmem:[%s0 + $0x288] sm:$0xff]
  %v172 = vld [vmem:[%s0 + $0x290] sm:$0xff]
  %v173 = vld [vmem:[%s0 + $0x298] sm:$0xff]
  %v174 = vld [vmem:[%s0 + $0x2a0] sm:$0xff]
  %v175 = vld [vmem:[%s0 + $0x2a8] sm:$0xf]
  %v176 = vld [vmem:[%s0 + $0x2ac] sm:$0xff]
  %v177 = vld [vmem:[%s0 + $0x2b4] sm:$0xff]
  %v178 = vld [vmem:[%s0 + $0x2bc] sm:$0xff]
  %v179 = vld [vmem:[%s0 + $0x2c4] sm:$0xff]
  %v180 = vld [vmem:[%s0 + $0x2cc] sm:$0xf]
  %v181 = vld [vmem:[%s0 + $0x2d0] sm:$0xff]
  %v182 = vld [vmem:[%s0 + $0x2d8] sm:$0xff]
  %v183 = vld [vmem:[%s0 + $0x2e0] sm:$0xff]
  %v184 = vld [vmem:[%s0 + $0x2e8] sm:$0xff]
  %v185 = vld [vmem:[%s0 + $0x2f0] sm:$0xf]
  %v186 = vld [vmem:[%s0 + $0x2f4] sm:$0xff]
  %v187 = vld [vmem:[%s0 + $0x2fc] sm:$0xff]
  %v188 = vld [vmem:[%s0 + $0x304] sm:$0xff]
  %v189 = vld [vmem:[%s0 + $0x30c] sm:$0xff]
  %v190 = vld [vmem:[%s0 + $0x314] sm:$0xf]
  %v191 = vld [vmem:[%s0 + $0x318] sm:$0xff]
  %v192 = vld [vmem:[%s0 + $0x320] sm:$0xff]
  %v193 = vld [vmem:[%s0 + $0x328] sm:$0xff]
  %v194 = vld [vmem:[%s0 + $0x330] sm:$0xff]
  %v195 = vld [vmem:[%s0 + $0x338] sm:$0xf]
  %v196 = vld [vmem:[%s0 + $0x33c] sm:$0xff]
  %v197 = vld [vmem:[%s0 + $0x344] sm:$0xff]
  %v198 = vld [vmem:[%s0 + $0x34c] sm:$0xff]
  %v199 = vld [vmem:[%s0 + $0x354] sm:$0xff]
  %v200 = vld [vmem:[%s0 + $0x35c] sm:$0xf]
  %v201 = vld [vmem:[%s0 + $0x360] sm:$0xff]
  %v202 = vld [vmem:[%s0 + $0x368] sm:$0xff]
  %v203 = vld [vmem:[%s0 + $0x370] sm:$0xff]
  %v204 = vld [vmem:[%s0 + $0x378] sm:$0xff]
  %v205 = vld [vmem:[%s0 + $0x380] sm:$0xf]
  %v206 = vld [vmem:[%s0 + $0x384] sm:$0xff]
  %v207 = vld [vmem:[%s0 + $0x38c] sm:$0xff]
  %v208 = vld [vmem:[%s0 + $0x394] sm:$0xff]
  %v209 = vld [vmem:[%s0 + $0x39c] sm:$0xff]
  %v210 = vld [vmem:[%s0 + $0x3a4] sm:$0xf]
  %v211 = vld [vmem:[%s0 + $0x3a8] sm:$0xff]
  %v212 = vld [vmem:[%s0 + $0x3b0] sm:$0xff]
  %v213 = vld [vmem:[%s0 + $0x3b8] sm:$0xff]
  %v214 = vld [vmem:[%s0 + $0x3c0] sm:$0xff]
  %v215 = vld [vmem:[%s0 + $0x3c8] sm:$0xf]
  %v216 = vld [vmem:[%s0 + $0x3cc] sm:$0xff]
  %v217 = vld [vmem:[%s0 + $0x3d4] sm:$0xff]
  %v218 = vld [vmem:[%s0 + $0x3dc] sm:$0xff]
  %v219 = vld [vmem:[%s0 + $0x3e4] sm:$0xff]
  %v220 = vld [vmem:[%s0 + $0x3ec] sm:$0xf]
  %v221 = vld [vmem:[%s0 + $0x3f0] sm:$0xff]
  %v222 = vld [vmem:[%s0 + $0x3f8] sm:$0xff]
  %v223 = vld [vmem:[%s0 + $0x400] sm:$0xff]
  %v224 = vld [vmem:[%s0 + $0x408] sm:$0xff]
  %v225 = vld [vmem:[%s0 + $0x410] sm:$0xf]
  %v226 = vld [vmem:[%s0 + $0x414] sm:$0xff]
  %v227 = vld [vmem:[%s0 + $0x41c] sm:$0xff]
  %v228 = vld [vmem:[%s0 + $0x424] sm:$0xff]
  %v229 = vld [vmem:[%s0 + $0x42c] sm:$0xff]
  %v230 = vld [vmem:[%s0 + $0x434] sm:$0xf]
  %v231 = vld [vmem:[%s0 + $0x438] sm:$0x11]
  %v232 = vld [vmem:[%s0 + $0x440] sm:$0x11]
  %v233 = vld [vmem:[%s0 + $0x448] sm:$0x11]
  %v234 = vld [vmem:[%s0 + $0x450] sm:$0x11]
  %v235 = vld [vmem:[%s0 + $0x458] sm:$0x1]
  %v236 = vld [vmem:[%s1] sm:$0xf]
  %v237 = vld [vmem:[%s1 + $0x4] sm:$0xf]
  %v238 = vld [vmem:[%s1 + $0x8] sm:$0xf]
  %v239 = vld [vmem:[%s1 + $0xc] sm:$0xf]
  %v240 = vld [vmem:[%s1 + $0x10] sm:$0xf]
  %v241 = vld [vmem:[%s1 + $0x14] sm:$0xf]
  %v242 = vld [vmem:[%s1 + $0x18] sm:$0xf]
  %v243 = vld [vmem:[%s1 + $0x1c] sm:$0xf]
  %v244 = vld [vmem:[%s1 + $0x20] sm:$0xf]
  %v245 = vld [vmem:[%s1 + $0x24] sm:$0xf]
  %v246 = vld [vmem:[%s1 + $0x28] sm:$0xf]
  %v247 = vld [vmem:[%s1 + $0x2c] sm:$0xf]
  %v248 = vld [vmem:[%s1 + $0x30] sm:$0xf]
  %v249 = vld [vmem:[%s1 + $0x34] sm:$0xf]
  %v250 = vld [vmem:[%s1 + $0x38] sm:$0xf]
  %v251 = vld [vmem:[%s1 + $0x3c] sm:$0xf]
  %v252 = vld [vmem:[%s1 + $0x40] sm:$0xf]
  %v253 = vld [vmem:[%s1 + $0x44] sm:$0xf]
  %v254 = vld [vmem:[%s1 + $0x48] sm:$0xf]
  %v255 = vld [vmem:[%s1 + $0x4c] sm:$0xf]
  %v256 = vld [vmem:[%s1 + $0x50] sm:$0xf]
  %v257 = vld [vmem:[%s1 + $0x54] sm:$0xf]
  %v258 = vld [vmem:[%s1 + $0x58] sm:$0xf]
  %v259 = vld [vmem:[%s1 + $0x5c] sm:$0xf]
  %v260 = vld [vmem:[%s1 + $0x60] sm:$0xf]
  %v261 = vld [vmem:[%s1 + $0x64] sm:$0xf]
  %v262 = vld [vmem:[%s1 + $0x68] sm:$0xf]
  %v263 = vld [vmem:[%s1 + $0x6c] sm:$0xf]
  %v264 = vld [vmem:[%s1 + $0x70] sm:$0xf]
  %v265 = vld [vmem:[%s1 + $0x74] sm:$0xf]
  %v266 = vld [vmem:[%s1 + $0x78] sm:$0xf]
  %v267 = vld [vmem:[%s1 + $0x7c] sm:$0xf]
  %v268 = vld [vmem:[%s1 + $0x80] sm:$0xf]
  %v269 = vld [vmem:[%s1 + $0x84] sm:$0xf]
  %v270 = vld [vmem:[%s1 + $0x88] sm:$0xf]
  %v271 = vld [vmem:[%s1 + $0x8c] sm:$0xf]
  %v272 = vld [vmem:[%s1 + $0x90] sm:$0xf]
  %v273 = vld [vmem:[%s1 + $0x94] sm:$0xf]
  %v274 = vld [vmem:[%s1 + $0x98] sm:$0xf]
  %v275 = vld [vmem:[%s1 + $0x9c] sm:$0xf]
  %v276 = vld [vmem:[%s1 + $0xa0] sm:$0xf]
  %v277 = vld [vmem:[%s1 + $0xa4] sm:$0xf]
  %v278 = vld [vmem:[%s1 + $0xa8] sm:$0xf]
  %v279 = vld [vmem:[%s1 + $0xac] sm:$0xf]
  %v280 = vld [vmem:[%s1 + $0xb0] sm:$0xf]
  %v281 = vld [vmem:[%s1 + $0xb4] sm:$0xf]
  %v282 = vld [vmem:[%s1 + $0xb8] sm:$0xf]
  %v283 = vld [vmem:[%s1 + $0xbc] sm:$0xf]
  %v284 = vld [vmem:[%s1 + $0xc0] sm:$0xf]
  %v285 = vld [vmem:[%s1 + $0xc4] sm:$0xf]
  %v286 = vld [vmem:[%s1 + $0xc8] sm:$0xf]
  %v287 = vld [vmem:[%s1 + $0xcc] sm:$0xf]
  %v288 = vld [vmem:[%s1 + $0xd0] sm:$0xf]
  %v289 = vld [vmem:[%s1 + $0xd4] sm:$0xf]
  %v290 = vld [vmem:[%s1 + $0xd8] sm:$0xf]
  %v291 = vld [vmem:[%s1 + $0xdc] sm:$0xf]
  %v292 = vld [vmem:[%s1 + $0xe0] sm:$0xf]
  %v293 = vld [vmem:[%s1 + $0xe4] sm:$0xf]
  %v294 = vld [vmem:[%s1 + $0xe8] sm:$0xf]
  %v295 = vld [vmem:[%s1 + $0xec] sm:$0xf]
  %v296 = vld [vmem:[%s1 + $0xf0] sm:$0xf]
  %v297 = vld [vmem:[%s1 + $0xf4] sm:$0xf]
  %v298 = vld [vmem:[%s1 + $0xf8] sm:$0xf]
  %v299 = vld [vmem:[%s1 + $0xfc] sm:$0xf]
  %v300 = vld [vmem:[%s1 + $0x100] sm:$0xf]
  %v301 = vld [vmem:[%s1 + $0x104] sm:$0xf]
  %v302 = vld [vmem:[%s1 + $0x108] sm:$0xf]
  %v303 = vld [vmem:[%s1 + $0x10c] sm:$0xf]
  %v304 = vld [vmem:[%s1 + $0x110] sm:$0xf]
  %v305 = vld [vmem:[%s1 + $0x114] sm:$0xf]
  %v306 = vld [vmem:[%s1 + $0x118] sm:$0xf]
  %v307 = vld [vmem:[%s1 + $0x11c] sm:$0xf]
  %v308 = vld [vmem:[%s1 + $0x120] sm:$0xf]
  %v309 = vld [vmem:[%s1 + $0x124] sm:$0xf]
  %v310 = vld [vmem:[%s1 + $0x128] sm:$0xf]
  %v311 = vld [vmem:[%s1 + $0x12c] sm:$0xf]
  %v312 = vld [vmem:[%s1 + $0x130] sm:$0xf]
  %v313 = vld [vmem:[%s1 + $0x134] sm:$0xf]
  %v314 = vld [vmem:[%s1 + $0x138] sm:$0xf]
  %v315 = vld [vmem:[%s1 + $0x13c] sm:$0xf]
  %v316 = vld [vmem:[%s1 + $0x140] sm:$0xf]
  %v317 = vld [vmem:[%s1 + $0x144] sm:$0xf]
  %v318 = vld [vmem:[%s1 + $0x148] sm:$0xf]
  %v319 = vld [vmem:[%s1 + $0x14c] sm:$0xf]
  %v320 = vld [vmem:[%s1 + $0x150] sm:$0xf]
  %v321 = vld [vmem:[%s1 + $0x154] sm:$0xf]
  %v322 = vld [vmem:[%s1 + $0x158] sm:$0xf]
  %v323 = vld [vmem:[%s1 + $0x15c] sm:$0xf]
  %v324 = vld [vmem:[%s1 + $0x160] sm:$0xf]
  %v325 = vld [vmem:[%s1 + $0x164] sm:$0xf]
  %v326 = vld [vmem:[%s1 + $0x168] sm:$0xf]
  %v327 = vld [vmem:[%s1 + $0x16c] sm:$0xf]
  %v328 = vld [vmem:[%s1 + $0x170] sm:$0xf]
  %v329 = vld [vmem:[%s1 + $0x174] sm:$0xf]
  %v330 = vld [vmem:[%s1 + $0x178] sm:$0xf]
  %v331 = vld [vmem:[%s1 + $0x17c] sm:$0xf]
  %v332 = vld [vmem:[%s1 + $0x180] sm:$0xf]
  %v333 = vld [vmem:[%s1 + $0x184] sm:$0xf]
  %v334 = vld [vmem:[%s1 + $0x188] sm:$0xf]
  %v335 = vld [vmem:[%s1 + $0x18c] sm:$0xf]
  %v336 = vld [vmem:[%s1 + $0x190] sm:$0xf]
  %v337 = vld [vmem:[%s1 + $0x194] sm:$0xf]
  %v338 = vld [vmem:[%s1 + $0x198] sm:$0xf]
  %v339 = vld [vmem:[%s1 + $0x19c] sm:$0xf]
  %v340 = vld [vmem:[%s1 + $0x1a0] sm:$0xf]
  %v341 = vld [vmem:[%s1 + $0x1a4] sm:$0xf]
  %v342 = vld [vmem:[%s1 + $0x1a8] sm:$0xf]
  %v343 = vld [vmem:[%s1 + $0x1ac] sm:$0xf]
  %v344 = vld [vmem:[%s1 + $0x1b0] sm:$0xf]
  %v345 = vld [vmem:[%s1 + $0x1b4] sm:$0xf]
  %v346 = vld [vmem:[%s1 + $0x1b8] sm:$0xf]
  %v347 = vld [vmem:[%s1 + $0x1bc] sm:$0xf]
  %v348 = vld [vmem:[%s1 + $0x1c0] sm:$0xf]
  %v349 = vld [vmem:[%s1 + $0x1c4] sm:$0xf]
  %v350 = vld [vmem:[%s1 + $0x1c8] sm:$0xf]
  %v351 = vld [vmem:[%s1 + $0x1cc] sm:$0xf]
  %v352 = vld [vmem:[%s1 + $0x1d0] sm:$0xf]
  %v353 = vld [vmem:[%s1 + $0x1d4] sm:$0xf]
  %v354 = vld [vmem:[%s1 + $0x1d8] sm:$0xf]
  %v355 = vld [vmem:[%s1 + $0x1dc] sm:$0xf]
  %v356 = vld [vmem:[%s1 + $0x1e0] sm:$0xf]
  %v357 = vld [vmem:[%s1 + $0x1e4] sm:$0xf]
  %v358 = vld [vmem:[%s1 + $0x1e8] sm:$0xf]
  %v359 = vld [vmem:[%s1 + $0x1ec] sm:$0xf]
  %v360 = vld [vmem:[%s1 + $0x1f0] sm:$0xf]
  %v361 = vld [vmem:[%s1 + $0x1f4] sm:$0xf]
  %v362 = vld [vmem:[%s1 + $0x1f8] sm:$0xf]
  %v363 = vld [vmem:[%s1 + $0x1fc] sm:$0xf]
  %v364 = vld [vmem:[%s1 + $0x200] sm:$0xf]
  %v365 = vld [vmem:[%s1 + $0x204] sm:$0xf]
  %v366 = vld [vmem:[%s1 + $0x208] sm:$0xf]
  %v367 = vld [vmem:[%s1 + $0x20c] sm:$0xf]
  %v368 = vld [vmem:[%s1 + $0x210] sm:$0xf]
  %v369 = vld [vmem:[%s1 + $0x214] sm:$0xf]
  %v370 = vld [vmem:[%s1 + $0x218] sm:$0xf]
  %v371 = vld [vmem:[%s1 + $0x21c] sm:$0xf]
  %v372 = vld [vmem:[%s1 + $0x220] sm:$0xf]
  %v373 = vld [vmem:[%s1 + $0x224] sm:$0xf]
  %v374 = vld [vmem:[%s1 + $0x228] sm:$0xf]
  %v375 = vld [vmem:[%s1 + $0x22c] sm:$0xf]
  %v376 = vld [vmem:[%s1 + $0x230] sm:$0xf]
  %v377 = vld [vmem:[%s1 + $0x234] sm:$0xf]
  %v378 = vld [vmem:[%s1 + $0x238] sm:$0xf]
  %v379 = vld [vmem:[%s1 + $0x23c] sm:$0xf]
  %v535 = vunpack.c.l.b16 %v81
  %v536 = vunpack.c.h.b16 %v81
  %v537 = vunpack.c.l.b16 %v82
  %v538 = vunpack.c.h.b16 %v82
  %v539 = vunpack.c.l.b16 %v83
  %v540 = vunpack.c.h.b16 %v83
  %v541 = vunpack.c.l.b16 %v84
  %v542 = vunpack.c.h.b16 %v84
  %v543 = vunpack.c.l.b16 %v85
  %v544 = vunpack.c.l.b16 %v86
  %v545 = vunpack.c.h.b16 %v86
  %v546 = vunpack.c.l.b16 %v87
  %v547 = vunpack.c.h.b16 %v87
  %v548 = vunpack.c.l.b16 %v88
  %v549 = vunpack.c.h.b16 %v88
  %v550 = vunpack.c.l.b16 %v89
  %v551 = vunpack.c.h.b16 %v89
  %v552 = vunpack.c.l.b16 %v90
  %v553 = vunpack.c.l.b16 %v91
  %v554 = vunpack.c.h.b16 %v91
  %v555 = vunpack.c.l.b16 %v92
  %v556 = vunpack.c.h.b16 %v92
  %v557 = vunpack.c.l.b16 %v93
  %v558 = vunpack.c.h.b16 %v93
  %v559 = vunpack.c.l.b16 %v94
  %v560 = vunpack.c.h.b16 %v94
  %v561 = vunpack.c.l.b16 %v95
  %v562 = vunpack.c.l.b16 %v96
  %v563 = vunpack.c.h.b16 %v96
  %v564 = vunpack.c.l.b16 %v97
  %v565 = vunpack.c.h.b16 %v97
  %v566 = vunpack.c.l.b16 %v98
  %v567 = vunpack.c.h.b16 %v98
  %v568 = vunpack.c.l.b16 %v99
  %v569 = vunpack.c.h.b16 %v99
  %v570 = vunpack.c.l.b16 %v100
  %v571 = vunpack.c.l.b16 %v101
  %v572 = vunpack.c.h.b16 %v101
  %v573 = vunpack.c.l.b16 %v102
  %v574 = vunpack.c.h.b16 %v102
  %v575 = vunpack.c.l.b16 %v103
  %v576 = vunpack.c.h.b16 %v103
  %v577 = vunpack.c.l.b16 %v104
  %v578 = vunpack.c.h.b16 %v104
  %v579 = vunpack.c.l.b16 %v105
  %v580 = vunpack.c.l.b16 %v106
  %v581 = vunpack.c.h.b16 %v106
  %v582 = vunpack.c.l.b16 %v107
  %v583 = vunpack.c.h.b16 %v107
  %v584 = vunpack.c.l.b16 %v108
  %v585 = vunpack.c.h.b16 %v108
  %v586 = vunpack.c.l.b16 %v109
  %v587 = vunpack.c.h.b16 %v109
  %v588 = vunpack.c.l.b16 %v110
  %v589 = vunpack.c.l.b16 %v111
  %v590 = vunpack.c.h.b16 %v111
  %v591 = vunpack.c.l.b16 %v112
  %v592 = vunpack.c.h.b16 %v112
  %v593 = vunpack.c.l.b16 %v113
  %v594 = vunpack.c.h.b16 %v113
  %v595 = vunpack.c.l.b16 %v114
  %v596 = vunpack.c.h.b16 %v114
  %v597 = vunpack.c.l.b16 %v115
  %v598 = vunpack.c.l.b16 %v116
  %v599 = vunpack.c.h.b16 %v116
  %v600 = vunpack.c.l.b16 %v117
  %v601 = vunpack.c.h.b16 %v117
  %v602 = vunpack.c.l.b16 %v118
  %v603 = vunpack.c.h.b16 %v118
  %v604 = vunpack.c.l.b16 %v119
  %v605 = vunpack.c.h.b16 %v119
  %v606 = vunpack.c.l.b16 %v120
  %v607 = vunpack.c.l.b16 %v121
  %v608 = vunpack.c.h.b16 %v121
  %v609 = vunpack.c.l.b16 %v122
  %v610 = vunpack.c.h.b16 %v122
  %v611 = vunpack.c.l.b16 %v123
  %v612 = vunpack.c.h.b16 %v123
  %v613 = vunpack.c.l.b16 %v124
  %v614 = vunpack.c.h.b16 %v124
  %v615 = vunpack.c.l.b16 %v125
  %v616 = vunpack.c.l.b16 %v126
  %v617 = vunpack.c.h.b16 %v126
  %v618 = vunpack.c.l.b16 %v127
  %v619 = vunpack.c.h.b16 %v127
  %v620 = vunpack.c.l.b16 %v128
  %v621 = vunpack.c.h.b16 %v128
  %v622 = vunpack.c.l.b16 %v129
  %v623 = vunpack.c.h.b16 %v129
  %v624 = vunpack.c.l.b16 %v130
  %v625 = vunpack.c.l.b16 %v131
  %v626 = vunpack.c.h.b16 %v131
  %v627 = vunpack.c.l.b16 %v132
  %v628 = vunpack.c.h.b16 %v132
  %v629 = vunpack.c.l.b16 %v133
  %v630 = vunpack.c.h.b16 %v133
  %v631 = vunpack.c.l.b16 %v134
  %v632 = vunpack.c.h.b16 %v134
  %v633 = vunpack.c.l.b16 %v135
  %v634 = vunpack.c.l.b16 %v136
  %v635 = vunpack.c.h.b16 %v136
  %v636 = vunpack.c.l.b16 %v137
  %v637 = vunpack.c.h.b16 %v137
  %v638 = vunpack.c.l.b16 %v138
  %v639 = vunpack.c.h.b16 %v138
  %v640 = vunpack.c.l.b16 %v139
  %v641 = vunpack.c.h.b16 %v139
  %v642 = vunpack.c.l.b16 %v140
  %v643 = vunpack.c.l.b16 %v141
  %v644 = vunpack.c.h.b16 %v141
  %v645 = vunpack.c.l.b16 %v142
  %v646 = vunpack.c.h.b16 %v142
  %v647 = vunpack.c.l.b16 %v143
  %v648 = vunpack.c.h.b16 %v143
  %v649 = vunpack.c.l.b16 %v144
  %v650 = vunpack.c.h.b16 %v144
  %v651 = vunpack.c.l.b16 %v145
  %v652 = vunpack.c.l.b16 %v146
  %v653 = vunpack.c.h.b16 %v146
  %v654 = vunpack.c.l.b16 %v147
  %v655 = vunpack.c.h.b16 %v147
  %v656 = vunpack.c.l.b16 %v148
  %v657 = vunpack.c.h.b16 %v148
  %v658 = vunpack.c.l.b16 %v149
  %v659 = vunpack.c.h.b16 %v149
  %v660 = vunpack.c.l.b16 %v150
  %v661 = vunpack.c.l.b16 %v151
  %v662 = vunpack.c.h.b16 %v151
  %v663 = vunpack.c.l.b16 %v152
  %v664 = vunpack.c.h.b16 %v152
  %v665 = vunpack.c.l.b16 %v153
  %v666 = vunpack.c.h.b16 %v153
  %v667 = vunpack.c.l.b16 %v154
  %v668 = vunpack.c.h.b16 %v154
  %v669 = vunpack.c.l.b16 %v155
  %v670 = vunpack.c.l.b16 %v156
  %v671 = vunpack.c.h.b16 %v156
  %v672 = vunpack.c.l.b16 %v157
  %v673 = vunpack.c.h.b16 %v157
  %v674 = vunpack.c.l.b16 %v158
  %v675 = vunpack.c.h.b16 %v158
  %v676 = vunpack.c.l.b16 %v159
  %v677 = vunpack.c.h.b16 %v159
  %v678 = vunpack.c.l.b16 %v160
  %v679 = vunpack.c.l.b16 %v161
  %v680 = vunpack.c.h.b16 %v161
  %v681 = vunpack.c.l.b16 %v162
  %v682 = vunpack.c.h.b16 %v162
  %v683 = vunpack.c.l.b16 %v163
  %v684 = vunpack.c.h.b16 %v163
  %v685 = vunpack.c.l.b16 %v164
  %v686 = vunpack.c.h.b16 %v164
  %v687 = vunpack.c.l.b16 %v165
  %v688 = vunpack.c.l.b16 %v166
  %v689 = vunpack.c.h.b16 %v166
  %v690 = vunpack.c.l.b16 %v167
  %v691 = vunpack.c.h.b16 %v167
  %v692 = vunpack.c.l.b16 %v168
  %v693 = vunpack.c.h.b16 %v168
  %v694 = vunpack.c.l.b16 %v169
  %v695 = vunpack.c.h.b16 %v169
  %v696 = vunpack.c.l.b16 %v170
  %v697 = vunpack.c.l.b16 %v171
  %v698 = vunpack.c.h.b16 %v171
  %v699 = vunpack.c.l.b16 %v172
  %v700 = vunpack.c.h.b16 %v172
  %v701 = vunpack.c.l.b16 %v173
  %v702 = vunpack.c.h.b16 %v173
  %v703 = vunpack.c.l.b16 %v174
  %v704 = vunpack.c.h.b16 %v174
  %v705 = vunpack.c.l.b16 %v175
  %v706 = vunpack.c.l.b16 %v176
  %v707 = vunpack.c.h.b16 %v176
  %v708 = vunpack.c.l.b16 %v177
  %v709 = vunpack.c.h.b16 %v177
  %v710 = vunpack.c.l.b16 %v178
  %v711 = vunpack.c.h.b16 %v178
  %v712 = vunpack.c.l.b16 %v179
  %v713 = vunpack.c.h.b16 %v179
  %v714 = vunpack.c.l.b16 %v180
  %v715 = vunpack.c.l.b16 %v181
  %v716 = vunpack.c.h.b16 %v181
  %v717 = vunpack.c.l.b16 %v182
  %v718 = vunpack.c.h.b16 %v182
  %v719 = vunpack.c.l.b16 %v183
  %v720 = vunpack.c.h.b16 %v183
  %v721 = vunpack.c.l.b16 %v184
  %v722 = vunpack.c.h.b16 %v184
  %v723 = vunpack.c.l.b16 %v185
  %v724 = vunpack.c.l.b16 %v186
  %v725 = vunpack.c.h.b16 %v186
  %v726 = vunpack.c.l.b16 %v187
  %v727 = vunpack.c.h.b16 %v187
  %v728 = vunpack.c.l.b16 %v188
  %v729 = vunpack.c.h.b16 %v188
  %v730 = vunpack.c.l.b16 %v189
  %v731 = vunpack.c.h.b16 %v189
  %v732 = vunpack.c.l.b16 %v190
  %v733 = vunpack.c.l.b16 %v191
  %v734 = vunpack.c.h.b16 %v191
  %v735 = vunpack.c.l.b16 %v192
  %v736 = vunpack.c.h.b16 %v192
  %v737 = vunpack.c.l.b16 %v193
  %v738 = vunpack.c.h.b16 %v193
  %v739 = vunpack.c.l.b16 %v194
  %v740 = vunpack.c.h.b16 %v194
  %v741 = vunpack.c.l.b16 %v195
  %v742 = vunpack.c.l.b16 %v196
  %v743 = vunpack.c.h.b16 %v196
  %v744 = vunpack.c.l.b16 %v197
  %v745 = vunpack.c.h.b16 %v197
  %v746 = vunpack.c.l.b16 %v198
  %v747 = vunpack.c.h.b16 %v198
  %v748 = vunpack.c.l.b16 %v199
  %v749 = vunpack.c.h.b16 %v199
  %v750 = vunpack.c.l.b16 %v200
  %v751 = vunpack.c.l.b16 %v201
  %v752 = vunpack.c.h.b16 %v201
  %v753 = vunpack.c.l.b16 %v202
  %v754 = vunpack.c.h.b16 %v202
  %v755 = vunpack.c.l.b16 %v203
  %v756 = vunpack.c.h.b16 %v203
  %v757 = vunpack.c.l.b16 %v204
  %v758 = vunpack.c.h.b16 %v204
  %v759 = vunpack.c.l.b16 %v205
  %v760 = vunpack.c.l.b16 %v206
  %v761 = vunpack.c.h.b16 %v206
  %v762 = vunpack.c.l.b16 %v207
  %v763 = vunpack.c.h.b16 %v207
  %v764 = vunpack.c.l.b16 %v208
  %v765 = vunpack.c.h.b16 %v208
  %v766 = vunpack.c.l.b16 %v209
  %v767 = vunpack.c.h.b16 %v209
  %v768 = vunpack.c.l.b16 %v210
  %v769 = vunpack.c.l.b16 %v211
  %v770 = vunpack.c.h.b16 %v211
  %v771 = vunpack.c.l.b16 %v212
  %v772 = vunpack.c.h.b16 %v212
  %v773 = vunpack.c.l.b16 %v213
  %v774 = vunpack.c.h.b16 %v213
  %v775 = vunpack.c.l.b16 %v214
  %v776 = vunpack.c.h.b16 %v214
  %v777 = vunpack.c.l.b16 %v215
  %v778 = vunpack.c.l.b16 %v216
  %v779 = vunpack.c.h.b16 %v216
  %v780 = vunpack.c.l.b16 %v217
  %v781 = vunpack.c.h.b16 %v217
  %v782 = vunpack.c.l.b16 %v218
  %v783 = vunpack.c.h.b16 %v218
  %v784 = vunpack.c.l.b16 %v219
  %v785 = vunpack.c.h.b16 %v219
  %v786 = vunpack.c.l.b16 %v220
  %v787 = vunpack.c.l.b16 %v221
  %v788 = vunpack.c.h.b16 %v221
  %v789 = vunpack.c.l.b16 %v222
  %v790 = vunpack.c.h.b16 %v222
  %v791 = vunpack.c.l.b16 %v223
  %v792 = vunpack.c.h.b16 %v223
  %v793 = vunpack.c.l.b16 %v224
  %v794 = vunpack.c.h.b16 %v224
  %v795 = vunpack.c.l.b16 %v225
  %v796 = vunpack.c.l.b16 %v226
  %v797 = vunpack.c.h.b16 %v226
  %v798 = vunpack.c.l.b16 %v227
  %v799 = vunpack.c.h.b16 %v227
  %v800 = vunpack.c.l.b16 %v228
  %v801 = vunpack.c.h.b16 %v228
  %v802 = vunpack.c.l.b16 %v229
  %v803 = vunpack.c.h.b16 %v229
  %v804 = vunpack.c.l.b16 %v230
  %v805 = vunpack.c.l.b16 %v231
  %v806 = vunpack.c.h.b16 %v231
  %v807 = vunpack.c.l.b16 %v232
  %v808 = vunpack.c.h.b16 %v232
  %v809 = vunpack.c.l.b16 %v233
  %v810 = vunpack.c.h.b16 %v233
  %v811 = vunpack.c.l.b16 %v234
  %v812 = vunpack.c.h.b16 %v234
  %v813 = vunpack.c.l.b16 %v235
  %v814 = vpack.c.b16 %v544, %v535
  %v815 = vpack.c.b16 %v545, %v536
  %v816 = vpack.c.b16 %v546, %v537
  %v817 = vpack.c.b16 %v547, %v538
  %v818 = vpack.c.b16 %v548, %v539
  %v819 = vpack.c.b16 %v549, %v540
  %v820 = vpack.c.b16 %v550, %v541
  %v821 = vpack.c.b16 %v551, %v542
  %v822 = vpack.c.b16 %v552, %v543
  %v823 = vpack.c.b16 %v562, %v553
  %v824 = vpack.c.b16 %v563, %v554
  %v825 = vpack.c.b16 %v564, %v555
  %v826 = vpack.c.b16 %v565, %v556
  %v827 = vpack.c.b16 %v566, %v557
  %v828 = vpack.c.b16 %v567, %v558
  %v829 = vpack.c.b16 %v568, %v559
  %v830 = vpack.c.b16 %v569, %v560
  %v831 = vpack.c.b16 %v570, %v561
  %v832 = vpack.c.b16 %v580, %v571
  %v833 = vpack.c.b16 %v581, %v572
  %v834 = vpack.c.b16 %v582, %v573
  %v835 = vpack.c.b16 %v583, %v574
  %v836 = vpack.c.b16 %v584, %v575
  %v837 = vpack.c.b16 %v585, %v576
  %v838 = vpack.c.b16 %v586, %v577
  %v839 = vpack.c.b16 %v587, %v578
  %v840 = vpack.c.b16 %v588, %v579
  %v841 = vpack.c.b16 %v598, %v589
  %v842 = vpack.c.b16 %v599, %v590
  %v843 = vpack.c.b16 %v600, %v591
  %v844 = vpack.c.b16 %v601, %v592
  %v845 = vpack.c.b16 %v602, %v593
  %v846 = vpack.c.b16 %v603, %v594
  %v847 = vpack.c.b16 %v604, %v595
  %v848 = vpack.c.b16 %v605, %v596
  %v849 = vpack.c.b16 %v606, %v597
  %v850 = vpack.c.b16 %v616, %v607
  %v851 = vpack.c.b16 %v617, %v608
  %v852 = vpack.c.b16 %v618, %v609
  %v853 = vpack.c.b16 %v619, %v610
  %v854 = vpack.c.b16 %v620, %v611
  %v855 = vpack.c.b16 %v621, %v612
  %v856 = vpack.c.b16 %v622, %v613
  %v857 = vpack.c.b16 %v623, %v614
  %v858 = vpack.c.b16 %v624, %v615
  %v859 = vpack.c.b16 %v634, %v625
  %v860 = vpack.c.b16 %v635, %v626
  %v861 = vpack.c.b16 %v636, %v627
  %v862 = vpack.c.b16 %v637, %v628
  %v863 = vpack.c.b16 %v638, %v629
  %v864 = vpack.c.b16 %v639, %v630
  %v865 = vpack.c.b16 %v640, %v631
  %v866 = vpack.c.b16 %v641, %v632
  %v867 = vpack.c.b16 %v642, %v633
  %v868 = vpack.c.b16 %v652, %v643
  %v869 = vpack.c.b16 %v653, %v644
  %v870 = vpack.c.b16 %v654, %v645
  %v871 = vpack.c.b16 %v655, %v646
  %v872 = vpack.c.b16 %v656, %v647
  %v873 = vpack.c.b16 %v657, %v648
  %v874 = vpack.c.b16 %v658, %v649
  %v875 = vpack.c.b16 %v659, %v650
  %v876 = vpack.c.b16 %v660, %v651
  %v877 = vpack.c.b16 %v670, %v661
  %v878 = vpack.c.b16 %v671, %v662
  %v879 = vpack.c.b16 %v672, %v663
  %v880 = vpack.c.b16 %v673, %v664
  %v881 = vpack.c.b16 %v674, %v665
  %v882 = vpack.c.b16 %v675, %v666
  %v883 = vpack.c.b16 %v676, %v667
  %v884 = vpack.c.b16 %v677, %v668
  %v885 = vpack.c.b16 %v678, %v669
  %v886 = vpack.c.b16 %v688, %v679
  %v887 = vpack.c.b16 %v689, %v680
  %v888 = vpack.c.b16 %v690, %v681
  %v889 = vpack.c.b16 %v691, %v682
  %v890 = vpack.c.b16 %v692, %v683
  %v891 = vpack.c.b16 %v693, %v684
  %v892 = vpack.c.b16 %v694, %v685
  %v893 = vpack.c.b16 %v695, %v686
  %v894 = vpack.c.b16 %v696, %v687
  %v895 = vpack.c.b16 %v706, %v697
  %v896 = vpack.c.b16 %v707, %v698
  %v897 = vpack.c.b16 %v708, %v699
  %v898 = vpack.c.b16 %v709, %v700
  %v899 = vpack.c.b16 %v710, %v701
  %v900 = vpack.c.b16 %v711, %v702
  %v901 = vpack.c.b16 %v712, %v703
  %v902 = vpack.c.b16 %v713, %v704
  %v903 = vpack.c.b16 %v714, %v705
  %v904 = vpack.c.b16 %v724, %v715
  %v905 = vpack.c.b16 %v725, %v716
  %v906 = vpack.c.b16 %v726, %v717
  %v907 = vpack.c.b16 %v727, %v718
  %v908 = vpack.c.b16 %v728, %v719
  %v909 = vpack.c.b16 %v729, %v720
  %v910 = vpack.c.b16 %v730, %v721
  %v911 = vpack.c.b16 %v731, %v722
  %v912 = vpack.c.b16 %v732, %v723
  %v913 = vpack.c.b16 %v742, %v733
  %v914 = vpack.c.b16 %v743, %v734
  %v915 = vpack.c.b16 %v744, %v735
  %v916 = vpack.c.b16 %v745, %v736
  %v917 = vpack.c.b16 %v746, %v737
  %v918 = vpack.c.b16 %v747, %v738
  %v919 = vpack.c.b16 %v748, %v739
  %v920 = vpack.c.b16 %v749, %v740
  %v921 = vpack.c.b16 %v750, %v741
  %v922 = vpack.c.b16 %v760, %v751
  %v923 = vpack.c.b16 %v761, %v752
  %v924 = vpack.c.b16 %v762, %v753
  %v925 = vpack.c.b16 %v763, %v754
  %v926 = vpack.c.b16 %v764, %v755
  %v927 = vpack.c.b16 %v765, %v756
  %v928 = vpack.c.b16 %v766, %v757
  %v929 = vpack.c.b16 %v767, %v758
  %v930 = vpack.c.b16 %v768, %v759
  %v931 = vpack.c.b16 %v778, %v769
  %v932 = vpack.c.b16 %v779, %v770
  %v933 = vpack.c.b16 %v780, %v771
  %v934 = vpack.c.b16 %v781, %v772
  %v935 = vpack.c.b16 %v782, %v773
  %v936 = vpack.c.b16 %v783, %v774
  %v937 = vpack.c.b16 %v784, %v775
  %v938 = vpack.c.b16 %v785, %v776
  %v939 = vpack.c.b16 %v786, %v777
  %v940 = vpack.c.b16 %v796, %v787
  %v941 = vpack.c.b16 %v797, %v788
  %v942 = vpack.c.b16 %v798, %v789
  %v943 = vpack.c.b16 %v799, %v790
  %v944 = vpack.c.b16 %v800, %v791
  %v945 = vpack.c.b16 %v801, %v792
  %v946 = vpack.c.b16 %v802, %v793
  %v947 = vpack.c.b16 %v803, %v794
  %v948 = vpack.c.b16 %v804, %v795
  %v949 = vpack.c.b16 %v805, %v805
  %v950 = vpack.c.b16 %v806, %v806
  %v951 = vpack.c.b16 %v807, %v807
  %v952 = vpack.c.b16 %v808, %v808
  %v953 = vpack.c.b16 %v809, %v809
  %v954 = vpack.c.b16 %v810, %v810
  %v955 = vpack.c.b16 %v811, %v811
  %v956 = vpack.c.b16 %v812, %v812
  %v957 = vpack.c.b16 %v813, %v813
  %v1246 = vunpack.c.l.b16 %v236
  %v1247 = vunpack.c.l.b16 %v237
  %v1248 = vunpack.c.l.b16 %v238
  %v1249 = vunpack.c.l.b16 %v239
  %v1250 = vunpack.c.l.b16 %v240
  %v1251 = vunpack.c.l.b16 %v241
  %v1252 = vunpack.c.l.b16 %v242
  %v1253 = vunpack.c.l.b16 %v243
  %v1254 = vunpack.c.l.b16 %v244
  %v1255 = vunpack.c.l.b16 %v245
  %v1256 = vunpack.c.l.b16 %v246
  %v1257 = vunpack.c.l.b16 %v247
  %v1258 = vunpack.c.l.b16 %v248
  %v1259 = vunpack.c.l.b16 %v249
  %v1260 = vunpack.c.l.b16 %v250
  %v1261 = vunpack.c.l.b16 %v251
  %v1262 = vunpack.c.l.b16 %v252
  %v1263 = vunpack.c.l.b16 %v253
  %v1264 = vunpack.c.l.b16 %v254
  %v1265 = vunpack.c.l.b16 %v255
  %v1266 = vunpack.c.l.b16 %v256
  %v1267 = vunpack.c.l.b16 %v257
  %v1268 = vunpack.c.l.b16 %v258
  %v1269 = vunpack.c.l.b16 %v259
  %v1270 = vunpack.c.l.b16 %v260
  %v1271 = vunpack.c.l.b16 %v261
  %v1272 = vunpack.c.l.b16 %v262
  %v1273 = vunpack.c.l.b16 %v263
  %v1274 = vunpack.c.l.b16 %v264
  %v1275 = vunpack.c.l.b16 %v265
  %v1276 = vunpack.c.l.b16 %v266
  %v1277 = vunpack.c.l.b16 %v267
  %v1278 = vunpack.c.l.b16 %v268
  %v1279 = vunpack.c.l.b16 %v269
  %v1280 = vunpack.c.l.b16 %v270
  %v1281 = vunpack.c.l.b16 %v271
  %v1282 = vunpack.c.l.b16 %v272
  %v1283 = vunpack.c.l.b16 %v273
  %v1284 = vunpack.c.l.b16 %v274
  %v1285 = vunpack.c.l.b16 %v275
  %v1286 = vunpack.c.l.b16 %v276
  %v1287 = vunpack.c.l.b16 %v277
  %v1288 = vunpack.c.l.b16 %v278
  %v1289 = vunpack.c.l.b16 %v279
  %v1290 = vunpack.c.l.b16 %v280
  %v1291 = vunpack.c.l.b16 %v281
  %v1292 = vunpack.c.l.b16 %v282
  %v1293 = vunpack.c.l.b16 %v283
  %v1294 = vunpack.c.l.b16 %v284
  %v1295 = vunpack.c.l.b16 %v285
  %v1296 = vunpack.c.l.b16 %v286
  %v1297 = vunpack.c.l.b16 %v287
  %v1298 = vunpack.c.l.b16 %v288
  %v1299 = vunpack.c.l.b16 %v289
  %v1300 = vunpack.c.l.b16 %v290
  %v1301 = vunpack.c.l.b16 %v291
  %v1302 = vunpack.c.l.b16 %v292
  %v1303 = vunpack.c.l.b16 %v293
  %v1304 = vunpack.c.l.b16 %v294
  %v1305 = vunpack.c.l.b16 %v295
  %v1306 = vunpack.c.l.b16 %v296
  %v1307 = vunpack.c.l.b16 %v297
  %v1308 = vunpack.c.l.b16 %v298
  %v1309 = vunpack.c.l.b16 %v299
  %v1310 = vunpack.c.l.b16 %v300
  %v1311 = vunpack.c.l.b16 %v301
  %v1312 = vunpack.c.l.b16 %v302
  %v1313 = vunpack.c.l.b16 %v303
  %v1314 = vunpack.c.l.b16 %v304
  %v1315 = vunpack.c.l.b16 %v305
  %v1316 = vunpack.c.l.b16 %v306
  %v1317 = vunpack.c.l.b16 %v307
  %v1318 = vunpack.c.l.b16 %v308
  %v1319 = vunpack.c.l.b16 %v309
  %v1320 = vunpack.c.l.b16 %v310
  %v1321 = vunpack.c.l.b16 %v311
  %v1322 = vunpack.c.l.b16 %v312
  %v1323 = vunpack.c.l.b16 %v313
  %v1324 = vunpack.c.l.b16 %v314
  %v1325 = vunpack.c.l.b16 %v315
  %v1326 = vunpack.c.l.b16 %v316
  %v1327 = vunpack.c.l.b16 %v317
  %v1328 = vunpack.c.l.b16 %v318
  %v1329 = vunpack.c.l.b16 %v319
  %v1330 = vunpack.c.l.b16 %v320
  %v1331 = vunpack.c.l.b16 %v321
  %v1332 = vunpack.c.l.b16 %v322
  %v1333 = vunpack.c.l.b16 %v323
  %v1334 = vunpack.c.l.b16 %v324
  %v1335 = vunpack.c.l.b16 %v325
  %v1336 = vunpack.c.l.b16 %v326
  %v1337 = vunpack.c.l.b16 %v327
  %v1338 = vunpack.c.l.b16 %v328
  %v1339 = vunpack.c.l.b16 %v329
  %v1340 = vunpack.c.l.b16 %v330
  %v1341 = vunpack.c.l.b16 %v331
  %v1342 = vunpack.c.l.b16 %v332
  %v1343 = vunpack.c.l.b16 %v333
  %v1344 = vunpack.c.l.b16 %v334
  %v1345 = vunpack.c.l.b16 %v335
  %v1346 = vunpack.c.l.b16 %v336
  %v1347 = vunpack.c.l.b16 %v337
  %v1348 = vunpack.c.l.b16 %v338
  %v1349 = vunpack.c.l.b16 %v339
  %v1350 = vunpack.c.l.b16 %v340
  %v1351 = vunpack.c.l.b16 %v341
  %v1352 = vunpack.c.l.b16 %v342
  %v1353 = vunpack.c.l.b16 %v343
  %v1354 = vunpack.c.l.b16 %v344
  %v1355 = vunpack.c.l.b16 %v345
  %v1356 = vunpack.c.l.b16 %v346
  %v1357 = vunpack.c.l.b16 %v347
  %v1358 = vunpack.c.l.b16 %v348
  %v1359 = vunpack.c.l.b16 %v349
  %v1360 = vunpack.c.l.b16 %v350
  %v1361 = vunpack.c.l.b16 %v351
  %v1362 = vunpack.c.l.b16 %v352
  %v1363 = vunpack.c.l.b16 %v353
  %v1364 = vunpack.c.l.b16 %v354
  %v1365 = vunpack.c.l.b16 %v355
  %v1366 = vunpack.c.l.b16 %v356
  %v1367 = vunpack.c.l.b16 %v357
  %v1368 = vunpack.c.l.b16 %v358
  %v1369 = vunpack.c.l.b16 %v359
  %v1370 = vunpack.c.l.b16 %v360
  %v1371 = vunpack.c.l.b16 %v361
  %v1372 = vunpack.c.l.b16 %v362
  %v1373 = vunpack.c.l.b16 %v363
  %v1374 = vunpack.c.l.b16 %v364
  %v1375 = vunpack.c.l.b16 %v365
  %v1376 = vunpack.c.l.b16 %v366
  %v1377 = vunpack.c.l.b16 %v367
  %v1378 = vunpack.c.l.b16 %v368
  %v1379 = vunpack.c.l.b16 %v369
  %v1380 = vunpack.c.l.b16 %v370
  %v1381 = vunpack.c.l.b16 %v371
  %v1382 = vunpack.c.l.b16 %v372
  %v1383 = vunpack.c.l.b16 %v373
  %v1384 = vunpack.c.l.b16 %v374
  %v1385 = vunpack.c.l.b16 %v375
  %v1386 = vunpack.c.l.b16 %v376
  %v1387 = vunpack.c.l.b16 %v377
  %v1388 = vunpack.c.l.b16 %v378
  %v1389 = vunpack.c.l.b16 %v379
  %v1390 = vpack.c.b16 %v1247, %v1246
  %v1391 = vpack.c.b16 %v1249, %v1248
  %v1392 = vpack.c.b16 %v1251, %v1250
  %v1393 = vpack.c.b16 %v1253, %v1252
  %v1394 = vpack.c.b16 %v1255, %v1254
  %v1395 = vpack.c.b16 %v1257, %v1256
  %v1396 = vpack.c.b16 %v1259, %v1258
  %v1397 = vpack.c.b16 %v1261, %v1260
  %v1398 = vpack.c.b16 %v1263, %v1262
  %v1399 = vpack.c.b16 %v1265, %v1264
  %v1400 = vpack.c.b16 %v1267, %v1266
  %v1401 = vpack.c.b16 %v1269, %v1268
  %v1402 = vpack.c.b16 %v1271, %v1270
  %v1403 = vpack.c.b16 %v1273, %v1272
  %v1404 = vpack.c.b16 %v1275, %v1274
  %v1405 = vpack.c.b16 %v1277, %v1276
  %v1406 = vpack.c.b16 %v1279, %v1278
  %v1407 = vpack.c.b16 %v1281, %v1280
  %v1408 = vpack.c.b16 %v1283, %v1282
  %v1409 = vpack.c.b16 %v1285, %v1284
  %v1410 = vpack.c.b16 %v1287, %v1286
  %v1411 = vpack.c.b16 %v1289, %v1288
  %v1412 = vpack.c.b16 %v1291, %v1290
  %v1413 = vpack.c.b16 %v1293, %v1292
  %v1414 = vpack.c.b16 %v1295, %v1294
  %v1415 = vpack.c.b16 %v1297, %v1296
  %v1416 = vpack.c.b16 %v1299, %v1298
  %v1417 = vpack.c.b16 %v1301, %v1300
  %v1418 = vpack.c.b16 %v1303, %v1302
  %v1419 = vpack.c.b16 %v1305, %v1304
  %v1420 = vpack.c.b16 %v1307, %v1306
  %v1421 = vpack.c.b16 %v1309, %v1308
  %v1422 = vpack.c.b16 %v1311, %v1310
  %v1423 = vpack.c.b16 %v1313, %v1312
  %v1424 = vpack.c.b16 %v1315, %v1314
  %v1425 = vpack.c.b16 %v1317, %v1316
  %v1426 = vpack.c.b16 %v1319, %v1318
  %v1427 = vpack.c.b16 %v1321, %v1320
  %v1428 = vpack.c.b16 %v1323, %v1322
  %v1429 = vpack.c.b16 %v1325, %v1324
  %v1430 = vpack.c.b16 %v1327, %v1326
  %v1431 = vpack.c.b16 %v1329, %v1328
  %v1432 = vpack.c.b16 %v1331, %v1330
  %v1433 = vpack.c.b16 %v1333, %v1332
  %v1434 = vpack.c.b16 %v1335, %v1334
  %v1435 = vpack.c.b16 %v1337, %v1336
  %v1436 = vpack.c.b16 %v1339, %v1338
  %v1437 = vpack.c.b16 %v1341, %v1340
  %v1438 = vpack.c.b16 %v1343, %v1342
  %v1439 = vpack.c.b16 %v1345, %v1344
  %v1440 = vpack.c.b16 %v1347, %v1346
  %v1441 = vpack.c.b16 %v1349, %v1348
  %v1442 = vpack.c.b16 %v1351, %v1350
  %v1443 = vpack.c.b16 %v1353, %v1352
  %v1444 = vpack.c.b16 %v1355, %v1354
  %v1445 = vpack.c.b16 %v1357, %v1356
  %v1446 = vpack.c.b16 %v1359, %v1358
  %v1447 = vpack.c.b16 %v1361, %v1360
  %v1448 = vpack.c.b16 %v1363, %v1362
  %v1449 = vpack.c.b16 %v1365, %v1364
  %v1450 = vpack.c.b16 %v1367, %v1366
  %v1451 = vpack.c.b16 %v1369, %v1368
  %v1452 = vpack.c.b16 %v1371, %v1370
  %v1453 = vpack.c.b16 %v1373, %v1372
  %v1454 = vpack.c.b16 %v1375, %v1374
  %v1455 = vpack.c.b16 %v1377, %v1376
  %v1456 = vpack.c.b16 %v1379, %v1378
  %v1457 = vpack.c.b16 %v1381, %v1380
  %v1458 = vpack.c.b16 %v1383, %v1382
  %v1459 = vpack.c.b16 %v1385, %v1384
  %v1460 = vpack.c.b16 %v1387, %v1386
  %v1461 = vpack.c.b16 %v1389, %v1388
  %1534 = vmatprep.subr.bf16.mxu0 0
  %1535 = vmatpush1.bf16.msra.mxu0 %v1390
  %1536 = vmatprep.subr.bf16.mxu0 0
  %1537 = vmatpush1.bf16.msra.mxu0 %v1391
  %1538 = vmatprep.subr.bf16.mxu0 0
  %1539 = vmatpush1.bf16.msra.mxu0 %v1392
  %1540 = vmatprep.subr.bf16.mxu0 0
  %1541 = vmatpush1.bf16.msra.mxu0 %v1393
  %1542 = vmatprep.subr.bf16.mxu0 0
  %1543 = vmatpush1.bf16.msra.mxu0 %v1394
  %1544 = vmatprep.subr.bf16.mxu0 0
  %1545 = vmatpush1.bf16.msra.mxu0 %v1395
  %1546 = vmatprep.subr.bf16.mxu0 0
  %1547 = vmatpush1.bf16.msra.mxu0 %v1396
  %1548 = vmatprep.subr.bf16.mxu0 0
  %1549 = vmatpush1.bf16.msra.mxu0 %v1397
  %1550 = vmatprep.subr.bf16.mxu0 0
  %1551 = vmatpush1.bf16.msra.mxu0 %v1398
  %1552 = vmatprep.subr.bf16.mxu0 0
  %1553 = vmatpush1.bf16.msra.mxu0 %v1399
  %1554 = vmatprep.subr.bf16.mxu0 0
  %1555 = vmatpush1.bf16.msra.mxu0 %v1400
  %1556 = vmatprep.subr.bf16.mxu0 0
  %1557 = vmatpush1.bf16.msra.mxu0 %v1401
  %1558 = vmatprep.subr.bf16.mxu0 0
  %1559 = vmatpush1.bf16.msra.mxu0 %v1402
  %1560 = vmatprep.subr.bf16.mxu0 0
  %1561 = vmatpush1.bf16.msra.mxu0 %v1403
  %1562 = vmatprep.subr.bf16.mxu0 0
  %1563 = vmatpush1.bf16.msra.mxu0 %v1404
  %1564 = vmatprep.subr.bf16.mxu0 0
  %1565 = vmatpush1.bf16.msra.mxu0 %v1405
  %1566 = vmatprep.mubr.bf16.mxu0 %v815
  %1567 = vmatmul.mubr.bf16.gmra.mrb[0].mxu0 %v814
  %v1568 = vpop.f32.mrb[0].mxu0
  %v1569 = vadd.f32 0.0, %v1568
  %v1570 = vpop.f32.mrb[0].mxu0
  %v1571 = vpop.f32.mrb[0].mxu0
  %v1572 = vadd.f32 0.0, %v1571
  %v1573 = vpop.f32.mrb[0].mxu0
  %1574 = vmatprep.mubr.bf16.mxu0 %v824
  %1575 = vmatmul.mubr.bf16.gmra.mrb[0].mxu0 %v823
  %v1576 = vpop.f32.mrb[0].mxu0
  %v1577 = vadd.f32 0.0, %v1576
  %v1578 = vpop.f32.mrb[0].mxu0
  %v1579 = vpop.f32.mrb[0].mxu0
  %v1580 = vadd.f32 0.0, %v1579
  %v1581 = vpop.f32.mrb[0].mxu0
  %1582 = vmatprep.mubr.bf16.mxu0 %v833
  %1583 = vmatmul.mubr.bf16.gmra.mrb[0].mxu0 %v832
  %v1584 = vpop.f32.mrb[0].mxu0
  %v1585 = vadd.f32 0.0, %v1584
  %v1586 = vpop.f32.mrb[0].mxu0
  %v1587 = vpop.f32.mrb[0].mxu0
  %v1588 = vadd.f32 0.0, %v1587
  %v1589 = vpop.f32.mrb[0].mxu0
  %1590 = vmatprep.mubr.bf16.mxu0 %v842
  %1591 = vmatmul.mubr.bf16.gmra.mrb[0].mxu0 %v841
  %v1592 = vpop.f32.mrb[0].mxu0
  %v1593 = vadd.f32 0.0, %v1592
  %v1594 = vpop.f32.mrb[0].mxu0
  %v1595 = vpop.f32.mrb[0].mxu0
  %v1596 = vadd.f32 0.0, %v1595
  %v1597 = vpop.f32.mrb[0].mxu0
  %1598 = vmatprep.mubr.bf16.mxu0 %v851
  %1599 = vmatmul.mubr.bf16.gmra.mrb[0].mxu0 %v850
  %v1600 = vpop.f32.mrb[0].mxu0
  %v1601 = vadd.f32 0.0, %v1600
  %v1602 = vpop.f32.mrb[0].mxu0
  %v1603 = vpop.f32.mrb[0].mxu0
  %v1604 = vadd.f32 0.0, %v1603
  %v1605 = vpop.f32.mrb[0].mxu0
  %1606 = vmatprep.mubr.bf16.mxu0 %v860
  %1607 = vmatmul.mubr.bf16.gmra.mrb[0].mxu0 %v859
  %v1608 = vpop.f32.mrb[0].mxu0
  %v1609 = vadd.f32 0.0, %v1608
  %v1610 = vpop.f32.mrb[0].mxu0
  %v1611 = vpop.f32.mrb[0].mxu0
  %v1612 = vadd.f32 0.0, %v1611
  %v1613 = vpop.f32.mrb[0].mxu0
  %1614 = vmatprep.mubr.bf16.mxu0 %v869
  %1615 = vmatmul.mubr.bf16.gmra.mrb[0].mxu0 %v868
  %v1616 = vpop.f32.mrb[0].mxu0
  %v1617 = vadd.f32 0.0, %v1616
  %v1618 = vpop.f32.mrb[0].mxu0
  %v1619 = vpop.f32.mrb[0].mxu0
  %v1620 = vadd.f32 0.0, %v1619
  %v1621 = vpop.f32.mrb[0].mxu0
  %1622 = vmatprep.mubr.bf16.mxu0 %v878
  %1623 = vmatmul.mubr.bf16.gmra.mrb[0].mxu0 %v877
  %v1624 = vpop.f32.mrb[0].mxu0
  %v1625 = vadd.f32 0.0, %v1624
  %v1626 = vpop.f32.mrb[0].mxu0
  %v1627 = vpop.f32.mrb[0].mxu0
  %v1628 = vadd.f32 0.0, %v1627
  %v1629 = vpop.f32.mrb[0].mxu0
  %1630 = vmatprep.mubr.bf16.mxu0 %v887
  %1631 = vmatmul.mubr.bf16.gmra.mrb[0].mxu0 %v886
  %v1632 = vpop.f32.mrb[0].mxu0
  %v1633 = vadd.f32 0.0, %v1632
  %v1634 = vpop.f32.mrb[0].mxu0
  %v1635 = vpop.f32.mrb[0].mxu0
  %v1636 = vadd.f32 0.0, %v1635
  %v1637 = vpop.f32.mrb[0].mxu0
  %1638 = vmatprep.mubr.bf16.mxu0 %v896
  %1639 = vmatmul.mubr.bf16.gmra.mrb[0].mxu0 %v895
  %v1640 = vpop.f32.mrb[0].mxu0
  %v1641 = vadd.f32 0.0, %v1640
  %v1642 = vpop.f32.mrb[0].mxu0
  %v1643 = vpop.f32.mrb[0].mxu0
  %v1644 = vadd.f32 0.0, %v1643
  %v1645 = vpop.f32.mrb[0].mxu0
  %1646 = vmatprep.mubr.bf16.mxu0 %v905
  %1647 = vmatmul.mubr.bf16.gmra.mrb[0].mxu0 %v904
  %v1648 = vpop.f32.mrb[0].mxu0
  %v1649 = vadd.f32 0.0, %v1648
  %v1650 = vpop.f32.mrb[0].mxu0
  %v1651 = vpop.f32.mrb[0].mxu0
  %v1652 = vadd.f32 0.0, %v1651
  %v1653 = vpop.f32.mrb[0].mxu0
  %1654 = vmatprep.mubr.bf16.mxu0 %v914
  %1655 = vmatmul.mubr.bf16.gmra.mrb[0].mxu0 %v913
  %v1656 = vpop.f32.mrb[0].mxu0
  %v1657 = vadd.f32 0.0, %v1656
  %v1658 = vpop.f32.mrb[0].mxu0
  %v1659 = vpop.f32.mrb[0].mxu0
  %v1660 = vadd.f32 0.0, %v1659
  %v1661 = vpop.f32.mrb[0].mxu0
  %1662 = vmatprep.mubr.bf16.mxu0 %v923
  %1663 = vmatmul.mubr.bf16.gmra.mrb[0].mxu0 %v922
  %v1664 = vpop.f32.mrb[0].mxu0
  %v1665 = vadd.f32 0.0, %v1664
  %v1666 = vpop.f32.mrb[0].mxu0
  %v1667 = vpop.f32.mrb[0].mxu0
  %v1668 = vadd.f32 0.0, %v1667
  %v1669 = vpop.f32.mrb[0].mxu0
  %1670 = vmatprep.mubr.bf16.mxu0 %v932
  %1671 = vmatmul.mubr.bf16.gmra.mrb[0].mxu0 %v931
  %v1672 = vpop.f32.mrb[0].mxu0
  %v1673 = vadd.f32 0.0, %v1672
  %v1674 = vpop.f32.mrb[0].mxu0
  %v1675 = vpop.f32.mrb[0].mxu0
  %v1676 = vadd.f32 0.0, %v1675
  %v1677 = vpop.f32.mrb[0].mxu0
  %1678 = vmatprep.mubr.bf16.mxu0 %v941
  %1679 = vmatmul.mubr.bf16.gmra.mrb[0].mxu0 %v940
  %v1680 = vpop.f32.mrb[0].mxu0
  %v1681 = vadd.f32 0.0, %v1680
  %v1682 = vpop.f32.mrb[0].mxu0
  %v1683 = vpop.f32.mrb[0].mxu0
  %v1684 = vadd.f32 0.0, %v1683
  %v1685 = vpop.f32.mrb[0].mxu0
  %1686 = vmatprep.mubr.bf16.mxu0 %v950
  %1687 = vmatmul.mubr.bf16.gmra.mrb[0].mxu0 %v949
  %v1688 = vpop.f32.mrb[0].mxu0
  %v1689 = vadd.f32 0.0, %v1688
  %v1690 = vpop.f32.mrb[0].mxu0
  %v1691 = vpop.f32.mrb[0].mxu0
  %v1692 = vpop.f32.mrb[0].mxu0
  %1693 = vdwg.mxu0
  %1694 = vmatprep.subr.bf16.mxu0 0
  %1695 = vmatpush1.bf16.msra.mxu0 %v1406
  %1696 = vmatprep.subr.bf16.mxu0 0
  %1697 = vmatpush1.bf16.msra.mxu0 %v1407
  %1698 = vmatprep.subr.bf16.mxu0 0
  %1699 = vmatpush1.bf16.msra.mxu0 %v1408
  %1700 = vmatprep.subr.bf16.mxu0 0
  %1701 = vmatpush1.bf16.msra.mxu0 %v1409
  %1702 = vmatprep.subr.bf16.mxu0 0
  %1703 = vmatpush1.bf16.msra.mxu0 %v1410
  %1704 = vmatprep.subr.bf16.mxu0 0
  %1705 = vmatpush1.bf16.msra.mxu0 %v1411
  %1706 = vmatprep.subr.bf16.mxu0 0
  %1707 = vmatpush1.bf16.msra.mxu0 %v1412
  %1708 = vmatprep.subr.bf16.mxu0 0
  %1709 = vmatpush1.bf16.msra.mxu0 %v1413
  %1710 = vmatprep.subr.bf16.mxu0 0
  %1711 = vmatpush1.bf16.msra.mxu0 %v1414
  %1712 = vmatprep.subr.bf16.mxu0 0
  %1713 = vmatpush1.bf16.msra.mxu0 %v1415
  %1714 = vmatprep.subr.bf16.mxu0 0
  %1715 = vmatpush1.bf16.msra.mxu0 %v1416
  %1716 = vmatprep.subr.bf16.mxu0 0
  %1717 = vmatpush1.bf16.msra.mxu0 %v1417
  %1718 = vmatprep.subr.bf16.mxu0 0
  %1719 = vmatpush1.bf16.msra.mxu0 %v1418
  %1720 = vmatprep.subr.bf16.mxu0 0
  %1721 = vmatpush1.bf16.msra.mxu0 %v1419
  %1722 = vmatprep.subr.bf16.mxu0 0
  %1723 = vmatpush1.bf16.msra.mxu0 %v1420
  %1724 = vmatprep.subr.bf16.mxu0 0
  %1725 = vmatpush1.bf16.msra.mxu0 %v1421
  %1726 = vmatprep.mubr.bf16.mxu0 %v817
  %1727 = vmatmul.mubr.bf16.gmra.mrb[0].mxu0 %v816
  %v1728 = vpop.f32.mrb[0].mxu0
  %v1729 = vadd.f32 %v1569, %v1728
  %v1730 = vpop.f32.mrb[0].mxu0
  %v1731 = vpop.f32.mrb[0].mxu0
  %v1732 = vadd.f32 %v1572, %v1731
  %v1733 = vpop.f32.mrb[0].mxu0
  %1734 = vmatprep.mubr.bf16.mxu0 %v826
  %1735 = vmatmul.mubr.bf16.gmra.mrb[0].mxu0 %v825
  %v1736 = vpop.f32.mrb[0].mxu0
  %v1737 = vadd.f32 %v1577, %v1736
  %v1738 = vpop.f32.mrb[0].mxu0
  %v1739 = vpop.f32.mrb[0].mxu0
  %v1740 = vadd.f32 %v1580, %v1739
  %v1741 = vpop.f32.mrb[0].mxu0
  %1742 = vmatprep.mubr.bf16.mxu0 %v835
  %1743 = vmatmul.mubr.bf16.gmra.mrb[0].mxu0 %v834
  %v1744 = vpop.f32.mrb[0].mxu0
  %v1745 = vadd.f32 %v1585, %v1744
  %v1746 = vpop.f32.mrb[0].mxu0
  %v1747 = vpop.f32.mrb[0].mxu0
  %v1748 = vadd.f32 %v1588, %v1747
  %v1749 = vpop.f32.mrb[0].mxu0
  %1750 = vmatprep.mubr.bf16.mxu0 %v844
  %1751 = vmatmul.mubr.bf16.gmra.mrb[0].mxu0 %v843
  %v1752 = vpop.f32.mrb[0].mxu0
  %v1753 = vadd.f32 %v1593, %v1752
  %v1754 = vpop.f32.mrb[0].mxu0
  %v1755 = vpop.f32.mrb[0].mxu0
  %v1756 = vadd.f32 %v1596, %v1755
  %v1757 = vpop.f32.mrb[0].mxu0
  %1758 = vmatprep.mubr.bf16.mxu0 %v853
  %1759 = vmatmul.mubr.bf16.gmra.mrb[0].mxu0 %v852
  %v1760 = vpop.f32.mrb[0].mxu0
  %v1761 = vadd.f32 %v1601, %v1760
  %v1762 = vpop.f32.mrb[0].mxu0
  %v1763 = vpop.f32.mrb[0].mxu0
  %v1764 = vadd.f32 %v1604, %v1763
  %v1765 = vpop.f32.mrb[0].mxu0
  %1766 = vmatprep.mubr.bf16.mxu0 %v862
  %1767 = vmatmul.mubr.bf16.gmra.mrb[0].mxu0 %v861
  %v1768 = vpop.f32.mrb[0].mxu0
  %v1769 = vadd.f32 %v1609, %v1768
  %v1770 = vpop.f32.mrb[0].mxu0
  %v1771 = vpop.f32.mrb[0].mxu0
  %v1772 = vadd.f32 %v1612, %v1771
  %v1773 = vpop.f32.mrb[0].mxu0
  %1774 = vmatprep.mubr.bf16.mxu0 %v871
  %1775 = vmatmul.mubr.bf16.gmra.mrb[0].mxu0 %v870
  %v1776 = vpop.f32.mrb[0].mxu0
  %v1777 = vadd.f32 %v1617, %v1776
  %v1778 = vpop.f32.mrb[0].mxu0
  %v1779 = vpop.f32.mrb[0].mxu0
  %v1780 = vadd.f32 %v1620, %v1779
  %v1781 = vpop.f32.mrb[0].mxu0
  %1782 = vmatprep.mubr.bf16.mxu0 %v880
  %1783 = vmatmul.mubr.bf16.gmra.mrb[0].mxu0 %v879
  %v1784 = vpop.f32.mrb[0].mxu0
  %v1785 = vadd.f32 %v1625, %v1784
  %v1786 = vpop.f32.mrb[0].mxu0
  %v1787 = vpop.f32.mrb[0].mxu0
  %v1788 = vadd.f32 %v1628, %v1787
  %v1789 = vpop.f32.mrb[0].mxu0
  %1790 = vmatprep.mubr.bf16.mxu0 %v889
  %1791 = vmatmul.mubr.bf16.gmra.mrb[0].mxu0 %v888
  %v1792 = vpop.f32.mrb[0].mxu0
  %v1793 = vadd.f32 %v1633, %v1792
  %v1794 = vpop.f32.mrb[0].mxu0
  %v1795 = vpop.f32.mrb[0].mxu0
  %v1796 = vadd.f32 %v1636, %v1795
  %v1797 = vpop.f32.mrb[0].mxu0
  %1798 = vmatprep.mubr.bf16.mxu0 %v898
  %1799 = vmatmul.mubr.bf16.gmra.mrb[0].mxu0 %v897
  %v1800 = vpop.f32.mrb[0].mxu0
  %v1801 = vadd.f32 %v1641, %v1800
  %v1802 = vpop.f32.mrb[0].mxu0
  %v1803 = vpop.f32.mrb[0].mxu0
  %v1804 = vadd.f32 %v1644, %v1803
  %v1805 = vpop.f32.mrb[0].mxu0
  %1806 = vmatprep.mubr.bf16.mxu0 %v907
  %1807 = vmatmul.mubr.bf16.gmra.mrb[0].mxu0 %v906
  %v1808 = vpop.f32.mrb[0].mxu0
  %v1809 = vadd.f32 %v1649, %v1808
  %v1810 = vpop.f32.mrb[0].mxu0
  %v1811 = vpop.f32.mrb[0].mxu0
  %v1812 = vadd.f32 %v1652, %v1811
  %v1813 = vpop.f32.mrb[0].mxu0
  %1814 = vmatprep.mubr.bf16.mxu0 %v916
  %1815 = vmatmul.mubr.bf16.gmra.mrb[0].mxu0 %v915
  %v1816 = vpop.f32.mrb[0].mxu0
  %v1817 = vadd.f32 %v1657, %v1816
  %v1818 = vpop.f32.mrb[0].mxu0
  %v1819 = vpop.f32.mrb[0].mxu0
  %v1820 = vadd.f32 %v1660, %v1819
  %v1821 = vpop.f32.mrb[0].mxu0
  %1822 = vmatprep.mubr.bf16.mxu0 %v925
  %1823 = vmatmul.mubr.bf16.gmra.mrb[0].mxu0 %v924
  %v1824 = vpop.f32.mrb[0].mxu0
  %v1825 = vadd.f32 %v1665, %v1824
  %v1826 = vpop.f32.mrb[0].mxu0
  %v1827 = vpop.f32.mrb[0].mxu0
  %v1828 = vadd.f32 %v1668, %v1827
  %v1829 = vpop.f32.mrb[0].mxu0
  %1830 = vmatprep.mubr.bf16.mxu0 %v934
  %1831 = vmatmul.mubr.bf16.gmra.mrb[0].mxu0 %v933
  %v1832 = vpop.f32.mrb[0].mxu0
  %v1833 = vadd.f32 %v1673, %v1832
  %v1834 = vpop.f32.mrb[0].mxu0
  %v1835 = vpop.f32.mrb[0].mxu0
  %v1836 = vadd.f32 %v1676, %v1835
  %v1837 = vpop.f32.mrb[0].mxu0
  %1838 = vmatprep.mubr.bf16.mxu0 %v943
  %1839 = vmatmul.mubr.bf16.gmra.mrb[0].mxu0 %v942
  %v1840 = vpop.f32.mrb[0].mxu0
  %v1841 = vadd.f32 %v1681, %v1840
  %v1842 = vpop.f32.mrb[0].mxu0
  %v1843 = vpop.f32.mrb[0].mxu0
  %v1844 = vadd.f32 %v1684, %v1843
  %v1845 = vpop.f32.mrb[0].mxu0
  %1846 = vmatprep.mubr.bf16.mxu0 %v952
  %1847 = vmatmul.mubr.bf16.gmra.mrb[0].mxu0 %v951
  %v1848 = vpop.f32.mrb[0].mxu0
  %v1849 = vadd.f32 %v1689, %v1848
  %v1850 = vpop.f32.mrb[0].mxu0
  %v1851 = vpop.f32.mrb[0].mxu0
  %v1852 = vpop.f32.mrb[0].mxu0
  %1853 = vdwg.mxu0
  %1854 = vmatprep.subr.bf16.mxu0 0
  %1855 = vmatpush1.bf16.msra.mxu0 %v1422
  %1856 = vmatprep.subr.bf16.mxu0 0
  %1857 = vmatpush1.bf16.msra.mxu0 %v1423
  %1858 = vmatprep.subr.bf16.mxu0 0
  %1859 = vmatpush1.bf16.msra.mxu0 %v1424
  %1860 = vmatprep.subr.bf16.mxu0 0
  %1861 = vmatpush1.bf16.msra.mxu0 %v1425
  %1862 = vmatprep.subr.bf16.mxu0 0
  %1863 = vmatpush1.bf16.msra.mxu0 %v1426
  %1864 = vmatprep.subr.bf16.mxu0 0
  %1865 = vmatpush1.bf16.msra.mxu0 %v1427
  %1866 = vmatprep.subr.bf16.mxu0 0
  %1867 = vmatpush1.bf16.msra.mxu0 %v1428
  %1868 = vmatprep.subr.bf16.mxu0 0
  %1869 = vmatpush1.bf16.msra.mxu0 %v1429
  %1870 = vmatprep.subr.bf16.mxu0 0
  %1871 = vmatpush1.bf16.msra.mxu0 %v1430
  %1872 = vmatprep.subr.bf16.mxu0 0
  %1873 = vmatpush1.bf16.msra.mxu0 %v1431
  %1874 = vmatprep.subr.bf16.mxu0 0
  %1875 = vmatpush1.bf16.msra.mxu0 %v1432
  %1876 = vmatprep.subr.bf16.mxu0 0
  %1877 = vmatpush1.bf16.msra.mxu0 %v1433
  %1878 = vmatprep.subr.bf16.mxu0 0
  %1879 = vmatpush1.bf16.msra.mxu0 %v1434
  %1880 = vmatprep.subr.bf16.mxu0 0
  %1881 = vmatpush1.bf16.msra.mxu0 %v1435
  %1882 = vmatprep.subr.bf16.mxu0 0
  %1883 = vmatpush1.bf16.msra.mxu0 %v1436
  %1884 = vmatprep.subr.bf16.mxu0 0
  %1885 = vmatpush1.bf16.msra.mxu0 %v1437
  %1886 = vmatprep.mubr.bf16.mxu0 %v819
  %1887 = vmatmul.mubr.bf16.gmra.mrb[0].mxu0 %v818
  %v1888 = vpop.f32.mrb[0].mxu0
  %v1889 = vadd.f32 %v1729, %v1888
  %v1890 = vpop.f32.mrb[0].mxu0
  %v1891 = vpop.f32.mrb[0].mxu0
  %v1892 = vadd.f32 %v1732, %v1891
  %v1893 = vpop.f32.mrb[0].mxu0
  %1894 = vmatprep.mubr.bf16.mxu0 %v828
  %1895 = vmatmul.mubr.bf16.gmra.mrb[0].mxu0 %v827
  %v1896 = vpop.f32.mrb[0].mxu0
  %v1897 = vadd.f32 %v1737, %v1896
  %v1898 = vpop.f32.mrb[0].mxu0
  %v1899 = vpop.f32.mrb[0].mxu0
  %v1900 = vadd.f32 %v1740, %v1899
  %v1901 = vpop.f32.mrb[0].mxu0
  %1902 = vmatprep.mubr.bf16.mxu0 %v837
  %1903 = vmatmul.mubr.bf16.gmra.mrb[0].mxu0 %v836
  %v1904 = vpop.f32.mrb[0].mxu0
  %v1905 = vadd.f32 %v1745, %v1904
  %v1906 = vpop.f32.mrb[0].mxu0
  %v1907 = vpop.f32.mrb[0].mxu0
  %v1908 = vadd.f32 %v1748, %v1907
  %v1909 = vpop.f32.mrb[0].mxu0
  %1910 = vmatprep.mubr.bf16.mxu0 %v846
  %1911 = vmatmul.mubr.bf16.gmra.mrb[0].mxu0 %v845
  %v1912 = vpop.f32.mrb[0].mxu0
  %v1913 = vadd.f32 %v1753, %v1912
  %v1914 = vpop.f32.mrb[0].mxu0
  %v1915 = vpop.f32.mrb[0].mxu0
  %v1916 = vadd.f32 %v1756, %v1915
  %v1917 = vpop.f32.mrb[0].mxu0
  %1918 = vmatprep.mubr.bf16.mxu0 %v855
  %1919 = vmatmul.mubr.bf16.gmra.mrb[0].mxu0 %v854
  %v1920 = vpop.f32.mrb[0].mxu0
  %v1921 = vadd.f32 %v1761, %v1920
  %v1922 = vpop.f32.mrb[0].mxu0
  %v1923 = vpop.f32.mrb[0].mxu0
  %v1924 = vadd.f32 %v1764, %v1923
  %v1925 = vpop.f32.mrb[0].mxu0
  %1926 = vmatprep.mubr.bf16.mxu0 %v864
  %1927 = vmatmul.mubr.bf16.gmra.mrb[0].mxu0 %v863
  %v1928 = vpop.f32.mrb[0].mxu0
  %v1929 = vadd.f32 %v1769, %v1928
  %v1930 = vpop.f32.mrb[0].mxu0
  %v1931 = vpop.f32.mrb[0].mxu0
  %v1932 = vadd.f32 %v1772, %v1931
  %v1933 = vpop.f32.mrb[0].mxu0
  %1934 = vmatprep.mubr.bf16.mxu0 %v873
  %1935 = vmatmul.mubr.bf16.gmra.mrb[0].mxu0 %v872
  %v1936 = vpop.f32.mrb[0].mxu0
  %v1937 = vadd.f32 %v1777, %v1936
  %v1938 = vpop.f32.mrb[0].mxu0
  %v1939 = vpop.f32.mrb[0].mxu0
  %v1940 = vadd.f32 %v1780, %v1939
  %v1941 = vpop.f32.mrb[0].mxu0
  %1942 = vmatprep.mubr.bf16.mxu0 %v882
  %1943 = vmatmul.mubr.bf16.gmra.mrb[0].mxu0 %v881
  %v1944 = vpop.f32.mrb[0].mxu0
  %v1945 = vadd.f32 %v1785, %v1944
  %v1946 = vpop.f32.mrb[0].mxu0
  %v1947 = vpop.f32.mrb[0].mxu0
  %v1948 = vadd.f32 %v1788, %v1947
  %v1949 = vpop.f32.mrb[0].mxu0
  %1950 = vmatprep.mubr.bf16.mxu0 %v891
  %1951 = vmatmul.mubr.bf16.gmra.mrb[0].mxu0 %v890
  %v1952 = vpop.f32.mrb[0].mxu0
  %v1953 = vadd.f32 %v1793, %v1952
  %v1954 = vpop.f32.mrb[0].mxu0
  %v1955 = vpop.f32.mrb[0].mxu0
  %v1956 = vadd.f32 %v1796, %v1955
  %v1957 = vpop.f32.mrb[0].mxu0
  %1958 = vmatprep.mubr.bf16.mxu0 %v900
  %1959 = vmatmul.mubr.bf16.gmra.mrb[0].mxu0 %v899
  %v1960 = vpop.f32.mrb[0].mxu0
  %v1961 = vadd.f32 %v1801, %v1960
  %v1962 = vpop.f32.mrb[0].mxu0
  %v1963 = vpop.f32.mrb[0].mxu0
  %v1964 = vadd.f32 %v1804, %v1963
  %v1965 = vpop.f32.mrb[0].mxu0
  %1966 = vmatprep.mubr.bf16.mxu0 %v909
  %1967 = vmatmul.mubr.bf16.gmra.mrb[0].mxu0 %v908
  %v1968 = vpop.f32.mrb[0].mxu0
  %v1969 = vadd.f32 %v1809, %v1968
  %v1970 = vpop.f32.mrb[0].mxu0
  %v1971 = vpop.f32.mrb[0].mxu0
  %v1972 = vadd.f32 %v1812, %v1971
  %v1973 = vpop.f32.mrb[0].mxu0
  %1974 = vmatprep.mubr.bf16.mxu0 %v918
  %1975 = vmatmul.mubr.bf16.gmra.mrb[0].mxu0 %v917
  %v1976 = vpop.f32.mrb[0].mxu0
  %v1977 = vadd.f32 %v1817, %v1976
  %v1978 = vpop.f32.mrb[0].mxu0
  %v1979 = vpop.f32.mrb[0].mxu0
  %v1980 = vadd.f32 %v1820, %v1979
  %v1981 = vpop.f32.mrb[0].mxu0
  %1982 = vmatprep.mubr.bf16.mxu0 %v927
  %1983 = vmatmul.mubr.bf16.gmra.mrb[0].mxu0 %v926
  %v1984 = vpop.f32.mrb[0].mxu0
  %v1985 = vadd.f32 %v1825, %v1984
  %v1986 = vpop.f32.mrb[0].mxu0
  %v1987 = vpop.f32.mrb[0].mxu0
  %v1988 = vadd.f32 %v1828, %v1987
  %v1989 = vpop.f32.mrb[0].mxu0
  %1990 = vmatprep.mubr.bf16.mxu0 %v936
  %1991 = vmatmul.mubr.bf16.gmra.mrb[0].mxu0 %v935
  %v1992 = vpop.f32.mrb[0].mxu0
  %v1993 = vadd.f32 %v1833, %v1992
  %v1994 = vpop.f32.mrb[0].mxu0
  %v1995 = vpop.f32.mrb[0].mxu0
  %v1996 = vadd.f32 %v1836, %v1995
  %v1997 = vpop.f32.mrb[0].mxu0
  %1998 = vmatprep.mubr.bf16.mxu0 %v945
  %1999 = vmatmul.mubr.bf16.gmra.mrb[0].mxu0 %v944
  %v2000 = vpop.f32.mrb[0].mxu0
  %v2001 = vadd.f32 %v1841, %v2000
  %v2002 = vpop.f32.mrb[0].mxu0
  %v2003 = vpop.f32.mrb[0].mxu0
  %v2004 = vadd.f32 %v1844, %v2003
  %v2005 = vpop.f32.mrb[0].mxu0
  %2006 = vmatprep.mubr.bf16.mxu0 %v954
  %2007 = vmatmul.mubr.bf16.gmra.mrb[0].mxu0 %v953
  %v2008 = vpop.f32.mrb[0].mxu0
  %v2009 = vadd.f32 %v1849, %v2008
  %v2010 = vpop.f32.mrb[0].mxu0
  %v2011 = vpop.f32.mrb[0].mxu0
  %v2012 = vpop.f32.mrb[0].mxu0
  %2013 = vdwg.mxu0
  %2014 = vmatprep.subr.bf16.mxu0 0
  %2015 = vmatpush1.bf16.msra.mxu0 %v1438
  %2016 = vmatprep.subr.bf16.mxu0 0
  %2017 = vmatpush1.bf16.msra.mxu0 %v1439
  %2018 = vmatprep.subr.bf16.mxu0 0
  %2019 = vmatpush1.bf16.msra.mxu0 %v1440
  %2020 = vmatprep.subr.bf16.mxu0 0
  %2021 = vmatpush1.bf16.msra.mxu0 %v1441
  %2022 = vmatprep.subr.bf16.mxu0 0
  %2023 = vmatpush1.bf16.msra.mxu0 %v1442
  %2024 = vmatprep.subr.bf16.mxu0 0
  %2025 = vmatpush1.bf16.msra.mxu0 %v1443
  %2026 = vmatprep.subr.bf16.mxu0 0
  %2027 = vmatpush1.bf16.msra.mxu0 %v1444
  %2028 = vmatprep.subr.bf16.mxu0 0
  %2029 = vmatpush1.bf16.msra.mxu0 %v1445
  %2030 = vmatprep.subr.bf16.mxu0 0
  %2031 = vmatpush1.bf16.msra.mxu0 %v1446
  %2032 = vmatprep.subr.bf16.mxu0 0
  %2033 = vmatpush1.bf16.msra.mxu0 %v1447
  %2034 = vmatprep.subr.bf16.mxu0 0
  %2035 = vmatpush1.bf16.msra.mxu0 %v1448
  %2036 = vmatprep.subr.bf16.mxu0 0
  %2037 = vmatpush1.bf16.msra.mxu0 %v1449
  %2038 = vmatprep.subr.bf16.mxu0 0
  %2039 = vmatpush1.bf16.msra.mxu0 %v1450
  %2040 = vmatprep.subr.bf16.mxu0 0
  %2041 = vmatpush1.bf16.msra.mxu0 %v1451
  %2042 = vmatprep.subr.bf16.mxu0 0
  %2043 = vmatpush1.bf16.msra.mxu0 %v1452
  %2044 = vmatprep.subr.bf16.mxu0 0
  %2045 = vmatpush1.bf16.msra.mxu0 %v1453
  %2046 = vmatprep.mubr.bf16.mxu0 %v821
  %2047 = vmatmul.mubr.bf16.gmra.mrb[0].mxu0 %v820
  %v2048 = vpop.f32.mrb[0].mxu0
  %v2049 = vadd.f32 %v1889, %v2048
  %v2050 = vpop.f32.mrb[0].mxu0
  %v2051 = vpop.f32.mrb[0].mxu0
  %v2052 = vadd.f32 %v1892, %v2051
  %v2053 = vpop.f32.mrb[0].mxu0
  %2054 = vmatprep.mubr.bf16.mxu0 %v830
  %2055 = vmatmul.mubr.bf16.gmra.mrb[0].mxu0 %v829
  %v2056 = vpop.f32.mrb[0].mxu0
  %v2057 = vadd.f32 %v1897, %v2056
  %v2058 = vpop.f32.mrb[0].mxu0
  %v2059 = vpop.f32.mrb[0].mxu0
  %v2060 = vadd.f32 %v1900, %v2059
  %v2061 = vpop.f32.mrb[0].mxu0
  %2062 = vmatprep.mubr.bf16.mxu0 %v839
  %2063 = vmatmul.mubr.bf16.gmra.mrb[0].mxu0 %v838
  %v2064 = vpop.f32.mrb[0].mxu0
  %v2065 = vadd.f32 %v1905, %v2064
  %v2066 = vpop.f32.mrb[0].mxu0
  %v2067 = vpop.f32.mrb[0].mxu0
  %v2068 = vadd.f32 %v1908, %v2067
  %v2069 = vpop.f32.mrb[0].mxu0
  %2070 = vmatprep.mubr.bf16.mxu0 %v848
  %2071 = vmatmul.mubr.bf16.gmra.mrb[0].mxu0 %v847
  %v2072 = vpop.f32.mrb[0].mxu0
  %v2073 = vadd.f32 %v1913, %v2072
  %v2074 = vpop.f32.mrb[0].mxu0
  %v2075 = vpop.f32.mrb[0].mxu0
  %v2076 = vadd.f32 %v1916, %v2075
  %v2077 = vpop.f32.mrb[0].mxu0
  %2078 = vmatprep.mubr.bf16.mxu0 %v857
  %2079 = vmatmul.mubr.bf16.gmra.mrb[0].mxu0 %v856
  %v2080 = vpop.f32.mrb[0].mxu0
  %v2081 = vadd.f32 %v1921, %v2080
  %v2082 = vpop.f32.mrb[0].mxu0
  %v2083 = vpop.f32.mrb[0].mxu0
  %v2084 = vadd.f32 %v1924, %v2083
  %v2085 = vpop.f32.mrb[0].mxu0
  %2086 = vmatprep.mubr.bf16.mxu0 %v866
  %2087 = vmatmul.mubr.bf16.gmra.mrb[0].mxu0 %v865
  %v2088 = vpop.f32.mrb[0].mxu0
  %v2089 = vadd.f32 %v1929, %v2088
  %v2090 = vpop.f32.mrb[0].mxu0
  %v2091 = vpop.f32.mrb[0].mxu0
  %v2092 = vadd.f32 %v1932, %v2091
  %v2093 = vpop.f32.mrb[0].mxu0
  %2094 = vmatprep.mubr.bf16.mxu0 %v875
  %2095 = vmatmul.mubr.bf16.gmra.mrb[0].mxu0 %v874
  %v2096 = vpop.f32.mrb[0].mxu0
  %v2097 = vadd.f32 %v1937, %v2096
  %v2098 = vpop.f32.mrb[0].mxu0
  %v2099 = vpop.f32.mrb[0].mxu0
  %v2100 = vadd.f32 %v1940, %v2099
  %v2101 = vpop.f32.mrb[0].mxu0
  %2102 = vmatprep.mubr.bf16.mxu0 %v884
  %2103 = vmatmul.mubr.bf16.gmra.mrb[0].mxu0 %v883
  %v2104 = vpop.f32.mrb[0].mxu0
  %v2105 = vadd.f32 %v1945, %v2104
  %v2106 = vpop.f32.mrb[0].mxu0
  %v2107 = vpop.f32.mrb[0].mxu0
  %v2108 = vadd.f32 %v1948, %v2107
  %v2109 = vpop.f32.mrb[0].mxu0
  %2110 = vmatprep.mubr.bf16.mxu0 %v893
  %2111 = vmatmul.mubr.bf16.gmra.mrb[0].mxu0 %v892
  %v2112 = vpop.f32.mrb[0].mxu0
  %v2113 = vadd.f32 %v1953, %v2112
  %v2114 = vpop.f32.mrb[0].mxu0
  %v2115 = vpop.f32.mrb[0].mxu0
  %v2116 = vadd.f32 %v1956, %v2115
  %v2117 = vpop.f32.mrb[0].mxu0
  %2118 = vmatprep.mubr.bf16.mxu0 %v902
  %2119 = vmatmul.mubr.bf16.gmra.mrb[0].mxu0 %v901
  %v2120 = vpop.f32.mrb[0].mxu0
  %v2121 = vadd.f32 %v1961, %v2120
  %v2122 = vpop.f32.mrb[0].mxu0
  %v2123 = vpop.f32.mrb[0].mxu0
  %v2124 = vadd.f32 %v1964, %v2123
  %v2125 = vpop.f32.mrb[0].mxu0
  %2126 = vmatprep.mubr.bf16.mxu0 %v911
  %2127 = vmatmul.mubr.bf16.gmra.mrb[0].mxu0 %v910
  %v2128 = vpop.f32.mrb[0].mxu0
  %v2129 = vadd.f32 %v1969, %v2128
  %v2130 = vpop.f32.mrb[0].mxu0
  %v2131 = vpop.f32.mrb[0].mxu0
  %v2132 = vadd.f32 %v1972, %v2131
  %v2133 = vpop.f32.mrb[0].mxu0
  %2134 = vmatprep.mubr.bf16.mxu0 %v920
  %2135 = vmatmul.mubr.bf16.gmra.mrb[0].mxu0 %v919
  %v2136 = vpop.f32.mrb[0].mxu0
  %v2137 = vadd.f32 %v1977, %v2136
  %v2138 = vpop.f32.mrb[0].mxu0
  %v2139 = vpop.f32.mrb[0].mxu0
  %v2140 = vadd.f32 %v1980, %v2139
  %v2141 = vpop.f32.mrb[0].mxu0
  %2142 = vmatprep.mubr.bf16.mxu0 %v929
  %2143 = vmatmul.mubr.bf16.gmra.mrb[0].mxu0 %v928
  %v2144 = vpop.f32.mrb[0].mxu0
  %v2145 = vadd.f32 %v1985, %v2144
  %v2146 = vpop.f32.mrb[0].mxu0
  %v2147 = vpop.f32.mrb[0].mxu0
  %v2148 = vadd.f32 %v1988, %v2147
  %v2149 = vpop.f32.mrb[0].mxu0
  %2150 = vmatprep.mubr.bf16.mxu0 %v938
  %2151 = vmatmul.mubr.bf16.gmra.mrb[0].mxu0 %v937
  %v2152 = vpop.f32.mrb[0].mxu0
  %v2153 = vadd.f32 %v1993, %v2152
  %v2154 = vpop.f32.mrb[0].mxu0
  %v2155 = vpop.f32.mrb[0].mxu0
  %v2156 = vadd.f32 %v1996, %v2155
  %v2157 = vpop.f32.mrb[0].mxu0
  %2158 = vmatprep.mubr.bf16.mxu0 %v947
  %2159 = vmatmul.mubr.bf16.gmra.mrb[0].mxu0 %v946
  %v2160 = vpop.f32.mrb[0].mxu0
  %v2161 = vadd.f32 %v2001, %v2160
  %v2162 = vpop.f32.mrb[0].mxu0
  %v2163 = vpop.f32.mrb[0].mxu0
  %v2164 = vadd.f32 %v2004, %v2163
  %v2165 = vpop.f32.mrb[0].mxu0
  %2166 = vmatprep.mubr.bf16.mxu0 %v956
  %2167 = vmatmul.mubr.bf16.gmra.mrb[0].mxu0 %v955
  %v2168 = vpop.f32.mrb[0].mxu0
  %v2169 = vadd.f32 %v2009, %v2168
  %v2170 = vpop.f32.mrb[0].mxu0
  %v2171 = vpop.f32.mrb[0].mxu0
  %v2172 = vpop.f32.mrb[0].mxu0
  %2173 = vdwg.mxu0
  %2174 = vmatprep.subr.bf16.mxu0 0
  %2175 = vmatpush1.bf16.msra.mxu0 %v1454
  %2176 = vmatprep.subr.bf16.mxu0 0
  %2177 = vmatpush1.bf16.msra.mxu0 %v1455
  %2178 = vmatprep.subr.bf16.mxu0 0
  %2179 = vmatpush1.bf16.msra.mxu0 %v1456
  %2180 = vmatprep.subr.bf16.mxu0 0
  %2181 = vmatpush1.bf16.msra.mxu0 %v1457
  %2182 = vmatprep.subr.bf16.mxu0 0
  %2183 = vmatpush1.bf16.msra.mxu0 %v1458
  %2184 = vmatprep.subr.bf16.mxu0 0
  %2185 = vmatpush1.bf16.msra.mxu0 %v1459
  %2186 = vmatprep.subr.bf16.mxu0 0
  %2187 = vmatpush1.bf16.msra.mxu0 %v1460
  %2188 = vmatprep.subr.bf16.mxu0 0
  %2189 = vmatpush1.bf16.msra.mxu0 %v1461
  %2190 = vmatprep.subr.bf16.mxu0 0
  %2191 = vmatpush1.bf16.msra.mxu0 0
  %2192 = vmatprep.subr.bf16.mxu0 0
  %2193 = vmatpush1.bf16.msra.mxu0 0
  %2194 = vmatprep.subr.bf16.mxu0 0
  %2195 = vmatpush1.bf16.msra.mxu0 0
  %2196 = vmatprep.subr.bf16.mxu0 0
  %2197 = vmatpush1.bf16.msra.mxu0 0
  %2198 = vmatprep.subr.bf16.mxu0 0
  %2199 = vmatpush1.bf16.msra.mxu0 0
  %2200 = vmatprep.subr.bf16.mxu0 0
  %2201 = vmatpush1.bf16.msra.mxu0 0
  %2202 = vmatprep.subr.bf16.mxu0 0
  %2203 = vmatpush1.bf16.msra.mxu0 0
  %2204 = vmatprep.subr.bf16.mxu0 0
  %2205 = vmatpush1.bf16.msra.mxu0 0
  %2206 = vmatprep.mubr.bf16.mxu0 0
  %2207 = vmatmul.mubr.bf16.gmra.mrb[0].mxu0 %v822
  %v2208 = vpop.f32.mrb[0].mxu0
  %v2209 = vadd.f32 %v2049, %v2208
  %v2210 = vpop.f32.mrb[0].mxu0
  %v2211 = vpop.f32.mrb[0].mxu0
  %v2212 = vadd.f32 %v2052, %v2211
  %v2213 = vpop.f32.mrb[0].mxu0
  %2214 = vmatprep.mubr.bf16.mxu0 0
  %2215 = vmatmul.mubr.bf16.gmra.mrb[0].mxu0 %v831
  %v2216 = vpop.f32.mrb[0].mxu0
  %v2217 = vadd.f32 %v2057, %v2216
  %v2218 = vpop.f32.mrb[0].mxu0
  %v2219 = vpop.f32.mrb[0].mxu0
  %v2220 = vadd.f32 %v2060, %v2219
  %v2221 = vpop.f32.mrb[0].mxu0
  %2222 = vmatprep.mubr.bf16.mxu0 0
  %2223 = vmatmul.mubr.bf16.gmra.mrb[0].mxu0 %v840
  %v2224 = vpop.f32.mrb[0].mxu0
  %v2225 = vadd.f32 %v2065, %v2224
  %v2226 = vpop.f32.mrb[0].mxu0
  %v2227 = vpop.f32.mrb[0].mxu0
  %v2228 = vadd.f32 %v2068, %v2227
  %v2229 = vpop.f32.mrb[0].mxu0
  %2230 = vmatprep.mubr.bf16.mxu0 0
  %2231 = vmatmul.mubr.bf16.gmra.mrb[0].mxu0 %v849
  %v2232 = vpop.f32.mrb[0].mxu0
  %v2233 = vadd.f32 %v2073, %v2232
  %v2234 = vpop.f32.mrb[0].mxu0
  %v2235 = vpop.f32.mrb[0].mxu0
  %v2236 = vadd.f32 %v2076, %v2235
  %v2237 = vpop.f32.mrb[0].mxu0
  %2238 = vmatprep.mubr.bf16.mxu0 0
  %2239 = vmatmul.mubr.bf16.gmra.mrb[0].mxu0 %v858
  %v2240 = vpop.f32.mrb[0].mxu0
  %v2241 = vadd.f32 %v2081, %v2240
  %v2242 = vpop.f32.mrb[0].mxu0
  %v2243 = vpop.f32.mrb[0].mxu0
  %v2244 = vadd.f32 %v2084, %v2243
  %v2245 = vpop.f32.mrb[0].mxu0
  %2246 = vmatprep.mubr.bf16.mxu0 0
  %2247 = vmatmul.mubr.bf16.gmra.mrb[0].mxu0 %v867
  %v2248 = vpop.f32.mrb[0].mxu0
  %v2249 = vadd.f32 %v2089, %v2248
  %v2250 = vpop.f32.mrb[0].mxu0
  %v2251 = vpop.f32.mrb[0].mxu0
  %v2252 = vadd.f32 %v2092, %v2251
  %v2253 = vpop.f32.mrb[0].mxu0
  %2254 = vmatprep.mubr.bf16.mxu0 0
  %2255 = vmatmul.mubr.bf16.gmra.mrb[0].mxu0 %v876
  %v2256 = vpop.f32.mrb[0].mxu0
  %v2257 = vadd.f32 %v2097, %v2256
  %v2258 = vpop.f32.mrb[0].mxu0
  %v2259 = vpop.f32.mrb[0].mxu0
  %v2260 = vadd.f32 %v2100, %v2259
  %v2261 = vpop.f32.mrb[0].mxu0
  %2262 = vmatprep.mubr.bf16.mxu0 0
  %2263 = vmatmul.mubr.bf16.gmra.mrb[0].mxu0 %v885
  %v2264 = vpop.f32.mrb[0].mxu0
  %v2265 = vadd.f32 %v2105, %v2264
  %v2266 = vpop.f32.mrb[0].mxu0
  %v2267 = vpop.f32.mrb[0].mxu0
  %v2268 = vadd.f32 %v2108, %v2267
  %v2269 = vpop.f32.mrb[0].mxu0
  %2270 = vmatprep.mubr.bf16.mxu0 0
  %2271 = vmatmul.mubr.bf16.gmra.mrb[0].mxu0 %v894
  %v2272 = vpop.f32.mrb[0].mxu0
  %v2273 = vadd.f32 %v2113, %v2272
  %v2274 = vpop.f32.mrb[0].mxu0
  %v2275 = vpop.f32.mrb[0].mxu0
  %v2276 = vadd.f32 %v2116, %v2275
  %v2277 = vpop.f32.mrb[0].mxu0
  %2278 = vmatprep.mubr.bf16.mxu0 0
  %2279 = vmatmul.mubr.bf16.gmra.mrb[0].mxu0 %v903
  %v2280 = vpop.f32.mrb[0].mxu0
  %v2281 = vadd.f32 %v2121, %v2280
  %v2282 = vpop.f32.mrb[0].mxu0
  %v2283 = vpop.f32.mrb[0].mxu0
  %v2284 = vadd.f32 %v2124, %v2283
  %v2285 = vpop.f32.mrb[0].mxu0
  %2286 = vmatprep.mubr.bf16.mxu0 0
  %2287 = vmatmul.mubr.bf16.gmra.mrb[0].mxu0 %v912
  %v2288 = vpop.f32.mrb[0].mxu0
  %v2289 = vadd.f32 %v2129, %v2288
  %v2290 = vpop.f32.mrb[0].mxu0
  %v2291 = vpop.f32.mrb[0].mxu0
  %v2292 = vadd.f32 %v2132, %v2291
  %v2293 = vpop.f32.mrb[0].mxu0
  %2294 = vmatprep.mubr.bf16.mxu0 0
  %2295 = vmatmul.mubr.bf16.gmra.mrb[0].mxu0 %v921
  %v2296 = vpop.f32.mrb[0].mxu0
  %v2297 = vadd.f32 %v2137, %v2296
  %v2298 = vpop.f32.mrb[0].mxu0
  %v2299 = vpop.f32.mrb[0].mxu0
  %v2300 = vadd.f32 %v2140, %v2299
  %v2301 = vpop.f32.mrb[0].mxu0
  %2302 = vmatprep.mubr.bf16.mxu0 0
  %2303 = vmatmul.mubr.bf16.gmra.mrb[0].mxu0 %v930
  %v2304 = vpop.f32.mrb[0].mxu0
  %v2305 = vadd.f32 %v2145, %v2304
  %v2306 = vpop.f32.mrb[0].mxu0
  %v2307 = vpop.f32.mrb[0].mxu0
  %v2308 = vadd.f32 %v2148, %v2307
  %v2309 = vpop.f32.mrb[0].mxu0
  %2310 = vmatprep.mubr.bf16.mxu0 0
  %2311 = vmatmul.mubr.bf16.gmra.mrb[0].mxu0 %v939
  %v2312 = vpop.f32.mrb[0].mxu0
  %v2313 = vadd.f32 %v2153, %v2312
  %v2314 = vpop.f32.mrb[0].mxu0
  %v2315 = vpop.f32.mrb[0].mxu0
  %v2316 = vadd.f32 %v2156, %v2315
  %v2317 = vpop.f32.mrb[0].mxu0
  %2318 = vmatprep.mubr.bf16.mxu0 0
  %2319 = vmatmul.mubr.bf16.gmra.mrb[0].mxu0 %v948
  %v2320 = vpop.f32.mrb[0].mxu0
  %v2321 = vadd.f32 %v2161, %v2320
  %v2322 = vpop.f32.mrb[0].mxu0
  %v2323 = vpop.f32.mrb[0].mxu0
  %v2324 = vadd.f32 %v2164, %v2323
  %v2325 = vpop.f32.mrb[0].mxu0
  %2326 = vmatprep.mubr.bf16.mxu0 0
  %2327 = vmatmul.mubr.bf16.gmra.mrb[0].mxu0 %v957
  %v2328 = vpop.f32.mrb[0].mxu0
  %v2329 = vadd.f32 %v2169, %v2328
  %v2330 = vpop.f32.mrb[0].mxu0
  %v2331 = vpop.f32.mrb[0].mxu0
  %v2332 = vpop.f32.mrb[0].mxu0
  %2333 = vdwg.mxu0
  %v2334 = vadd.f32 %v50, %v2209
  %v2335 = vadd.f32 %v51, %v2212
  %v2336 = vadd.f32 %v52, %v2217
  %v2337 = vadd.f32 %v53, %v2220
  %v2338 = vadd.f32 %v54, %v2225
  %v2339 = vadd.f32 %v55, %v2228
  %v2340 = vadd.f32 %v56, %v2233
  %v2341 = vadd.f32 %v57, %v2236
  %v2342 = vadd.f32 %v58, %v2241
  %v2343 = vadd.f32 %v59, %v2244
  %v2344 = vadd.f32 %v60, %v2249
  %v2345 = vadd.f32 %v61, %v2252
  %v2346 = vadd.f32 %v62, %v2257
  %v2347 = vadd.f32 %v63, %v2260
  %v2348 = vadd.f32 %v64, %v2265
  %v2349 = vadd.f32 %v65, %v2268
  %v2350 = vadd.f32 %v66, %v2273
  %v2351 = vadd.f32 %v67, %v2276
  %v2352 = vadd.f32 %v68, %v2281
  %v2353 = vadd.f32 %v69, %v2284
  %v2354 = vadd.f32 %v70, %v2289
  %v2355 = vadd.f32 %v71, %v2292
  %v2356 = vadd.f32 %v72, %v2297
  %v2357 = vadd.f32 %v73, %v2300
  %v2358 = vadd.f32 %v74, %v2305
  %v2359 = vadd.f32 %v75, %v2308
  %v2360 = vadd.f32 %v76, %v2313
  %v2361 = vadd.f32 %v77, %v2316
  %v2362 = vadd.f32 %v78, %v2321
  %v2363 = vadd.f32 %v79, %v2324
  %v2364 = vadd.f32 %v80, %v2329
  %2365 = vst [vmem:[#allocation2] sm:$0xff] %v2334
  %2366 = vst [vmem:[#allocation2 + $0x8] sm:$0xff] %v2335
  %2367 = vst [vmem:[#allocation2 + $0x10] sm:$0xff] %v2336
  %2368 = vst [vmem:[#allocation2 + $0x18] sm:$0xff] %v2337
  %2369 = vst [vmem:[#allocation2 + $0x20] sm:$0xff] %v2338
  %2370 = vst [vmem:[#allocation2 + $0x28] sm:$0xff] %v2339
  %2371 = vst [vmem:[#allocation2 + $0x30] sm:$0xff] %v2340
  %2372 = vst [vmem:[#allocation2 + $0x38] sm:$0xff] %v2341
  %2373 = vst [vmem:[#allocation2 + $0x40] sm:$0xff] %v2342
  %2374 = vst [vmem:[#allocation2 + $0x48] sm:$0xff] %v2343
  %2375 = vst [vmem:[#allocation2 + $0x50] sm:$0xff] %v2344
  %2376 = vst [vmem:[#allocation2 + $0x58] sm:$0xff] %v2345
  %2377 = vst [vmem:[#allocation2 + $0x60] sm:$0xff] %v2346
  %2378 = vst [vmem:[#allocation2 + $0x68] sm:$0xff] %v2347
  %2379 = vst [vmem:[#allocation2 + $0x70] sm:$0xff] %v2348
  %2380 = vst [vmem:[#allocation2 + $0x78] sm:$0xff] %v2349
  %2381 = vst [vmem:[#allocation2 + $0x80] sm:$0xff] %v2350
  %2382 = vst [vmem:[#allocation2 + $0x88] sm:$0xff] %v2351
  %2383 = vst [vmem:[#allocation2 + $0x90] sm:$0xff] %v2352
  %2384 = vst [vmem:[#allocation2 + $0x98] sm:$0xff] %v2353
  %2385 = vst [vmem:[#allocation2 + $0xa0] sm:$0xff] %v2354
  %2386 = vst [vmem:[#allocation2 + $0xa8] sm:$0xff] %v2355
  %2387 = vst [vmem:[#allocation2 + $0xb0] sm:$0xff] %v2356
  %2388 = vst [vmem:[#allocation2 + $0xb8] sm:$0xff] %v2357
  %2389 = vst [vmem:[#allocation2 + $0xc0] sm:$0xff] %v2358
  %2390 = vst [vmem:[#allocation2 + $0xc8] sm:$0xff] %v2359
  %2391 = vst [vmem:[#allocation2 + $0xd0] sm:$0xff] %v2360
  %2392 = vst [vmem:[#allocation2 + $0xd8] sm:$0xff] %v2361
  %2393 = vst [vmem:[#allocation2 + $0xe0] sm:$0xff] %v2362
  %2394 = vst [vmem:[#allocation2 + $0xe8] sm:$0xff] %v2363
  %2395 = vst [vmem:[#allocation2 + $0xf0] sm:$0x3] %v2364
  // Predicated region
  $region18: #{discriminator_forward.9} parent=0 // pred_check
    %p2396 = pneg %p15
  $region19: #{discriminator_forward.9} parent=0 // pred_check_branch
    %2398 = sbr.rel (%p2396) target = $region21
  $region20: #{discriminator_forward.9} parent=0 // pred_region
    %v2399 = vld [vmem:[#allocation2] sm:$0xff]
    %v2400 = vld [vmem:[#allocation2 + $0x8] sm:$0xff]
    %v2401 = vld [vmem:[#allocation2 + $0x10] sm:$0xff]
    %v2402 = vld [vmem:[#allocation2 + $0x18] sm:$0xff]
    %v2403 = vld [vmem:[#allocation2 + $0x20] sm:$0xff]
    %v2404 = vld [vmem:[#allocation2 + $0x28] sm:$0xff]
    %v2405 = vld [vmem:[#allocation2 + $0x30] sm:$0xff]
    %v2406 = vld [vmem:[#allocation2 + $0x38] sm:$0xff]
    %v2407 = vld [vmem:[#allocation2 + $0x40] sm:$0xff]
    %v2408 = vld [vmem:[#allocation2 + $0x48] sm:$0xff]
    %v2409 = vld [vmem:[#allocation2 + $0x50] sm:$0xff]
    %v2410 = vld [vmem:[#allocation2 + $0x58] sm:$0xff]
    %v2411 = vld [vmem:[#allocation2 + $0x60] sm:$0xff]
    %v2412 = vld [vmem:[#allocation2 + $0x68] sm:$0xff]
    %v2413 = vld [vmem:[#allocation2 + $0x70] sm:$0xff]
    %v2414 = vld [vmem:[#allocation2 + $0x78] sm:$0xff]
    %v2415 = vld [vmem:[#allocation2 + $0x80] sm:$0xff]
    %v2416 = vld [vmem:[#allocation2 + $0x88] sm:$0xff]
    %v2417 = vld [vmem:[#allocation2 + $0x90] sm:$0xff]
    %v2418 = vld [vmem:[#allocation2 + $0x98] sm:$0xff]
    %v2419 = vld [vmem:[#allocation2 + $0xa0] sm:$0xff]
    %v2420 = vld [vmem:[#allocation2 + $0xa8] sm:$0xff]
    %v2421 = vld [vmem:[#allocation2 + $0xb0] sm:$0xff]
    %v2422 = vld [vmem:[#allocation2 + $0xb8] sm:$0xff]
    %v2423 = vld [vmem:[#allocation2 + $0xc0] sm:$0xff]
    %v2424 = vld [vmem:[#allocation2 + $0xc8] sm:$0xff]
    %v2425 = vld [vmem:[#allocation2 + $0xd0] sm:$0xff]
    %v2426 = vld [vmem:[#allocation2 + $0xd8] sm:$0xff]
    %v2427 = vld [vmem:[#allocation2 + $0xe0] sm:$0xff]
    %v2428 = vld [vmem:[#allocation2 + $0xe8] sm:$0xff]
    %v2429 = vld [vmem:[#allocation2 + $0xf0] sm:$0x3]
    %v2430 = vld [vmem:[%s2] sm:$0x1]
    %v2432 = vlaneseq
    %v2433 = vshrl.u32 %v2432, 7
    %v2434 = vsub.s32 0, %v2433
    %v2435 = vrot.slane %v2430, %v2434
    %v2437 = vadd.f32 %v2399, %v2435
    %v2438 = vadd.f32 %v2400, %v2435
    %v2439 = vadd.f32 %v2401, %v2435
    %v2440 = vadd.f32 %v2402, %v2435
    %v2441 = vadd.f32 %v2403, %v2435
    %v2442 = vadd.f32 %v2404, %v2435
    %v2443 = vadd.f32 %v2405, %v2435
    %v2444 = vadd.f32 %v2406, %v2435
    %v2445 = vadd.f32 %v2407, %v2435
    %v2446 = vadd.f32 %v2408, %v2435
    %v2447 = vadd.f32 %v2409, %v2435
    %v2448 = vadd.f32 %v2410, %v2435
    %v2449 = vadd.f32 %v2411, %v2435
    %v2450 = vadd.f32 %v2412, %v2435
    %v2451 = vadd.f32 %v2413, %v2435
    %v2452 = vadd.f32 %v2414, %v2435
    %v2453 = vadd.f32 %v2415, %v2435
    %v2454 = vadd.f32 %v2416, %v2435
    %v2455 = vadd.f32 %v2417, %v2435
    %v2456 = vadd.f32 %v2418, %v2435
    %v2457 = vadd.f32 %v2419, %v2435
    %v2458 = vadd.f32 %v2420, %v2435
    %v2459 = vadd.f32 %v2421, %v2435
    %v2460 = vadd.f32 %v2422, %v2435
    %v2461 = vadd.f32 %v2423, %v2435
    %v2462 = vadd.f32 %v2424, %v2435
    %v2463 = vadd.f32 %v2425, %v2435
    %v2464 = vadd.f32 %v2426, %v2435
    %v2465 = vadd.f32 %v2427, %v2435
    %v2466 = vadd.f32 %v2428, %v2435
    %v2467 = vadd.f32 %v2429, %v2435
    %vm2468 = vcmp.ge.f32.partialorder %v2437, 0.0
    %vm2469 = vcmp.ge.f32.partialorder %v2438, 0.0
    %vm2470 = vcmp.ge.f32.partialorder %v2439, 0.0
    %vm2471 = vcmp.ge.f32.partialorder %v2440, 0.0
    %vm2472 = vcmp.ge.f32.partialorder %v2441, 0.0
    %vm2473 = vcmp.ge.f32.partialorder %v2442, 0.0
    %vm2474 = vcmp.ge.f32.partialorder %v2443, 0.0
    %vm2475 = vcmp.ge.f32.partialorder %v2444, 0.0
    %vm2476 = vcmp.ge.f32.partialorder %v2445, 0.0
    %vm2477 = vcmp.ge.f32.partialorder %v2446, 0.0
    %vm2478 = vcmp.ge.f32.partialorder %v2447, 0.0
    %vm2479 = vcmp.ge.f32.partialorder %v2448, 0.0
    %vm2480 = vcmp.ge.f32.partialorder %v2449, 0.0
    %vm2481 = vcmp.ge.f32.partialorder %v2450, 0.0
    %vm2482 = vcmp.ge.f32.partialorder %v2451, 0.0
    %vm2483 = vcmp.ge.f32.partialorder %v2452, 0.0
    %vm2484 = vcmp.ge.f32.partialorder %v2453, 0.0
    %vm2485 = vcmp.ge.f32.partialorder %v2454, 0.0
    %vm2486 = vcmp.ge.f32.partialorder %v2455, 0.0
    %vm2487 = vcmp.ge.f32.partialorder %v2456, 0.0
    %vm2488 = vcmp.ge.f32.partialorder %v2457, 0.0
    %vm2489 = vcmp.ge.f32.partialorder %v2458, 0.0
    %vm2490 = vcmp.ge.f32.partialorder %v2459, 0.0
    %vm2491 = vcmp.ge.f32.partialorder %v2460, 0.0
    %vm2492 = vcmp.ge.f32.partialorder %v2461, 0.0
    %vm2493 = vcmp.ge.f32.partialorder %v2462, 0.0
    %vm2494 = vcmp.ge.f32.partialorder %v2463, 0.0
    %vm2495 = vcmp.ge.f32.partialorder %v2464, 0.0
    %vm2496 = vcmp.ge.f32.partialorder %v2465, 0.0
    %vm2497 = vcmp.ge.f32.partialorder %v2466, 0.0
    %vm2498 = vcmp.ge.f32.partialorder %v2467, 0.0
    %v2499 = vmul.f32 %v2437, 0.01
    %v2500 = vmul.f32 %v2438, 0.01
    %v2501 = vmul.f32 %v2439, 0.01
    %v2502 = vmul.f32 %v2440, 0.01
    %v2503 = vmul.f32 %v2441, 0.01
    %v2504 = vmul.f32 %v2442, 0.01
    %v2505 = vmul.f32 %v2443, 0.01
    %v2506 = vmul.f32 %v2444, 0.01
    %v2507 = vmul.f32 %v2445, 0.01
    %v2508 = vmul.f32 %v2446, 0.01
    %v2509 = vmul.f32 %v2447, 0.01
    %v2510 = vmul.f32 %v2448, 0.01
    %v2511 = vmul.f32 %v2449, 0.01
    %v2512 = vmul.f32 %v2450, 0.01
    %v2513 = vmul.f32 %v2451, 0.01
    %v2514 = vmul.f32 %v2452, 0.01
    %v2515 = vmul.f32 %v2453, 0.01
    %v2516 = vmul.f32 %v2454, 0.01
    %v2517 = vmul.f32 %v2455, 0.01
    %v2518 = vmul.f32 %v2456, 0.01
    %v2519 = vmul.f32 %v2457, 0.01
    %v2520 = vmul.f32 %v2458, 0.01
    %v2521 = vmul.f32 %v2459, 0.01
    %v2522 = vmul.f32 %v2460, 0.01
    %v2523 = vmul.f32 %v2461, 0.01
    %v2524 = vmul.f32 %v2462, 0.01
    %v2525 = vmul.f32 %v2463, 0.01
    %v2526 = vmul.f32 %v2464, 0.01
    %v2527 = vmul.f32 %v2465, 0.01
    %v2528 = vmul.f32 %v2466, 0.01
    %v2529 = vmul.f32 %v2467, 0.01
    %v2530 = vsel %vm2468, %v2437, %v2499
    %v2531 = vsel %vm2469, %v2438, %v2500
    %v2532 = vsel %vm2470, %v2439, %v2501
    %v2533 = vsel %vm2471, %v2440, %v2502
    %v2534 = vsel %vm2472, %v2441, %v2503
    %v2535 = vsel %vm2473, %v2442, %v2504
    %v2536 = vsel %vm2474, %v2443, %v2505
    %v2537 = vsel %vm2475, %v2444, %v2506
    %v2538 = vsel %vm2476, %v2445, %v2507
    %v2539 = vsel %vm2477, %v2446, %v2508
    %v2540 = vsel %vm2478, %v2447, %v2509
    %v2541 = vsel %vm2479, %v2448, %v2510
    %v2542 = vsel %vm2480, %v2449, %v2511
    %v2543 = vsel %vm2481, %v2450, %v2512
    %v2544 = vsel %vm2482, %v2451, %v2513
    %v2545 = vsel %vm2483, %v2452, %v2514
    %v2546 = vsel %vm2484, %v2453, %v2515
    %v2547 = vsel %vm2485, %v2454, %v2516
    %v2548 = vsel %vm2486, %v2455, %v2517
    %v2549 = vsel %vm2487, %v2456, %v2518
    %v2550 = vsel %vm2488, %v2457, %v2519
    %v2551 = vsel %vm2489, %v2458, %v2520
    %v2552 = vsel %vm2490, %v2459, %v2521
    %v2553 = vsel %vm2491, %v2460, %v2522
    %v2554 = vsel %vm2492, %v2461, %v2523
    %v2555 = vsel %vm2493, %v2462, %v2524
    %v2556 = vsel %vm2494, %v2463, %v2525
    %v2557 = vsel %vm2495, %v2464, %v2526
    %v2558 = vsel %vm2496, %v2465, %v2527
    %v2559 = vsel %vm2497, %v2466, %v2528
    %v2560 = vsel %vm2498, %v2467, %v2529
    %v2561 = vpack.c.bf16 %v2531, %v2530
    %v2562 = vpack.c.bf16 %v2533, %v2532
    %v2563 = vpack.c.bf16 %v2535, %v2534
    %v2564 = vpack.c.bf16 %v2537, %v2536
    %v2565 = vpack.c.bf16 %v2539, %v2538
    %v2566 = vpack.c.bf16 %v2541, %v2540
    %v2567 = vpack.c.bf16 %v2543, %v2542
    %v2568 = vpack.c.bf16 %v2545, %v2544
    %v2569 = vpack.c.bf16 %v2547, %v2546
    %v2570 = vpack.c.bf16 %v2549, %v2548
    %v2571 = vpack.c.bf16 %v2551, %v2550
    %v2572 = vpack.c.bf16 %v2553, %v2552
    %v2573 = vpack.c.bf16 %v2555, %v2554
    %v2574 = vpack.c.bf16 %v2557, %v2556
    %v2575 = vpack.c.bf16 %v2559, %v2558
    %v2576 = vpack.c.bf16 %v2560, %v2560
    %v2593 = vunpack.c.l.b16 %v2561
    %v2594 = vunpack.c.h.b16 %v2561
    %v2595 = vunpack.c.l.b16 %v2562
    %v2596 = vunpack.c.h.b16 %v2562
    %v2597 = vunpack.c.l.b16 %v2563
    %v2598 = vunpack.c.h.b16 %v2563
    %v2599 = vunpack.c.l.b16 %v2564
    %v2600 = vunpack.c.h.b16 %v2564
    %v2601 = vunpack.c.l.b16 %v2565
    %v2602 = vunpack.c.h.b16 %v2565
    %v2603 = vunpack.c.l.b16 %v2566
    %v2604 = vunpack.c.h.b16 %v2566
    %v2605 = vunpack.c.l.b16 %v2567
    %v2606 = vunpack.c.h.b16 %v2567
    %v2607 = vunpack.c.l.b16 %v2568
    %v2608 = vunpack.c.h.b16 %v2568
    %v2609 = vunpack.c.l.b16 %v2569
    %v2610 = vunpack.c.h.b16 %v2569
    %v2611 = vunpack.c.l.b16 %v2570
    %v2612 = vunpack.c.h.b16 %v2570
    %v2613 = vunpack.c.l.b16 %v2571
    %v2614 = vunpack.c.h.b16 %v2571
    %v2615 = vunpack.c.l.b16 %v2572
    %v2616 = vunpack.c.h.b16 %v2572
    %v2617 = vunpack.c.l.b16 %v2573
    %v2618 = vunpack.c.h.b16 %v2573
    %v2619 = vunpack.c.l.b16 %v2574
    %v2620 = vunpack.c.h.b16 %v2574
    %v2621 = vunpack.c.l.b16 %v2575
    %v2622 = vunpack.c.h.b16 %v2575
    %v2623 = vunpack.c.l.b16 %v2576
    %v2624 = vpack.c.b16 %v2593, %v2593
    %v2625 = vpack.c.b16 %v2594, %v2594
    %v2626 = vpack.c.b16 %v2595, %v2595
    %v2627 = vpack.c.b16 %v2596, %v2596
    %v2628 = vpack.c.b16 %v2597, %v2597
    %v2629 = vpack.c.b16 %v2598, %v2598
    %v2630 = vpack.c.b16 %v2599, %v2599
    %v2631 = vpack.c.b16 %v2600, %v2600
    %v2632 = vpack.c.b16 %v2601, %v2601
    %v2633 = vpack.c.b16 %v2602, %v2602
    %v2634 = vpack.c.b16 %v2603, %v2603
    %v2635 = vpack.c.b16 %v2604, %v2604
    %v2636 = vpack.c.b16 %v2605, %v2605
    %v2637 = vpack.c.b16 %v2606, %v2606
    %v2638 = vpack.c.b16 %v2607, %v2607
    %v2639 = vpack.c.b16 %v2608, %v2608
    %v2640 = vpack.c.b16 %v2609, %v2609
    %v2641 = vpack.c.b16 %v2610, %v2610
    %v2642 = vpack.c.b16 %v2611, %v2611
    %v2643 = vpack.c.b16 %v2612, %v2612
    %v2644 = vpack.c.b16 %v2613, %v2613
    %v2645 = vpack.c.b16 %v2614, %v2614
    %v2646 = vpack.c.b16 %v2615, %v2615
    %v2647 = vpack.c.b16 %v2616, %v2616
    %v2648 = vpack.c.b16 %v2617, %v2617
    %v2649 = vpack.c.b16 %v2618, %v2618
    %v2650 = vpack.c.b16 %v2619, %v2619
    %v2651 = vpack.c.b16 %v2620, %v2620
    %v2652 = vpack.c.b16 %v2621, %v2621
    %v2653 = vpack.c.b16 %v2622, %v2622
    %v2654 = vpack.c.b16 %v2623, %v2623
    %2686 = vst [vmem:[%s3] sm:$0xf] %v2624
    %2687 = vst [vmem:[%s3 + $0x4] sm:$0xf] %v2625
    %2688 = vst [vmem:[%s3 + $0x8] sm:$0xf] %v2626
    %2689 = vst [vmem:[%s3 + $0xc] sm:$0xf] %v2627
    %2690 = vst [vmem:[%s3 + $0x10] sm:$0xf] %v2628
    %2691 = vst [vmem:[%s3 + $0x14] sm:$0xf] %v2629
    %2692 = vst [vmem:[%s3 + $0x18] sm:$0xf] %v2630
    %2693 = vst [vmem:[%s3 + $0x1c] sm:$0xf] %v2631
    %2694 = vst [vmem:[%s3 + $0x20] sm:$0xf] %v2632
    %2695 = vst [vmem:[%s3 + $0x24] sm:$0xf] %v2633
    %2696 = vst [vmem:[%s3 + $0x28] sm:$0xf] %v2634
    %2697 = vst [vmem:[%s3 + $0x2c] sm:$0xf] %v2635
    %2698 = vst [vmem:[%s3 + $0x30] sm:$0xf] %v2636
    %2699 = vst [vmem:[%s3 + $0x34] sm:$0xf] %v2637
    %2700 = vst [vmem:[%s3 + $0x38] sm:$0xf] %v2638
    %2701 = vst [vmem:[%s3 + $0x3c] sm:$0xf] %v2639
    %2702 = vst [vmem:[%s3 + $0x40] sm:$0xf] %v2640
    %2703 = vst [vmem:[%s3 + $0x44] sm:$0xf] %v2641
    %2704 = vst [vmem:[%s3 + $0x48] sm:$0xf] %v2642
    %2705 = vst [vmem:[%s3 + $0x4c] sm:$0xf] %v2643
    %2706 = vst [vmem:[%s3 + $0x50] sm:$0xf] %v2644
    %2707 = vst [vmem:[%s3 + $0x54] sm:$0xf] %v2645
    %2708 = vst [vmem:[%s3 + $0x58] sm:$0xf] %v2646
    %2709 = vst [vmem:[%s3 + $0x5c] sm:$0xf] %v2647
    %2710 = vst [vmem:[%s3 + $0x60] sm:$0xf] %v2648
    %2711 = vst [vmem:[%s3 + $0x64] sm:$0xf] %v2649
    %2712 = vst [vmem:[%s3 + $0x68] sm:$0xf] %v2650
    %2713 = vst [vmem:[%s3 + $0x6c] sm:$0xf] %v2651
    %2714 = vst [vmem:[%s3 + $0x70] sm:$0xf] %v2652
    %2715 = vst [vmem:[%s3 + $0x74] sm:$0xf] %v2653
    %2716 = vst [vmem:[%s3 + $0x78] sm:$0x1] %v2654
  $region21: #{discriminator_forward.9} parent=0 // pred_fallthru
    _
  // Predicated region
  $region22: #{discriminator_forward.9} parent=0 // pred_check
    _
  $region23: #{discriminator_forward.9} parent=0 // pred_check_branch
    %2718 = sbr.rel (0) target = $region25
  $region24: #{discriminator_forward.9} parent=0 // pred_region
    _
  $region25: #{discriminator_forward.9} parent=0 // pred_fallthru
    _
  // Predicated region
  $region26: #{discriminator_forward.9} parent=0 // pred_check
    _
  $region27: #{discriminator_forward.9} parent=0 // pred_check_branch
    %2720 = sbr.rel (0) target = $region29
  $region28: #{discriminator_forward.9} parent=0 // pred_region
    _
  $region29: #{discriminator_forward.9} parent=0 // pred_fallthru
    _

// kernel: discriminator_forward.10
$region0: #{discriminator_forward.10}
  #allocation0 [shape = 'u32[]', space=smem, size = 0x4, offset = 0x4, fixed_abs, tag = 'smem constant byte address 0x4 - core index']
  #allocation1 [shape = 'u32[144,128]{1,0:T(1,128)}', space=vmem, size = 0x12000, scoped, tag = 'internal scratch']
  #allocation2 [shape = 'f32[50,128]{1,0:T(8,128)}', space=vmem, size = 0x7000, scoped, tag = 'scratch operand']
  %s0 = inlined_call_operand.vmem [shape: bf16[50,1152], index: 0, kind: input, shape index: {}]
  %s1 = inlined_call_operand.vmem [shape: bf16[1152,128], index: 1, kind: input, shape index: {}]
  %s2 = inlined_call_operand.vmem [shape: f32[1,128], index: 2, kind: input, shape index: {}]
  %s3 = inlined_call_operand.vmem [shape: bf16[50,128], index: 3, kind: output, shape index: {}]
  %s4 = sld [smem:[#allocation0]]
  $region30: #{discriminator_forward.10} parent=0
    _
  %s6 = ssub.s32 1, %s4
  %s7 = scalar_select 0, %s6, %s4
  // Predicated region
  $region2: #{discriminator_forward.10} parent=0 // pred_check
    _
  $region3: #{discriminator_forward.10} parent=0 // pred_check_branch
    %9 = sbr.rel (0) target = $region5
  $region4: #{discriminator_forward.10} parent=0 // pred_region
    _
  $region5: #{discriminator_forward.10} parent=0 // pred_fallthru
    _
  // Predicated region
  $region6: #{discriminator_forward.10} parent=0 // pred_check
    _
  $region7: #{discriminator_forward.10} parent=0 // pred_check_branch
    %11 = sbr.rel (0) target = $region9
  $region8: #{discriminator_forward.10} parent=0 // pred_region
    _
  $region9: #{discriminator_forward.10} parent=0 // pred_fallthru
    _
  // Predicated region
  $region10: #{discriminator_forward.10} parent=0 // pred_check
    _
  $region11: #{discriminator_forward.10} parent=0 // pred_check_branch
    %13 = sbr.rel (0) target = $region13
  $region12: #{discriminator_forward.10} parent=0 // pred_region
    _
  $region13: #{discriminator_forward.10} parent=0 // pred_fallthru
    _
  %p15 = scmp.eq.s32.totalorder 0, 0
  // Predicated region
  $region14: #{discriminator_forward.10} parent=0 // pred_check
    %p16 = pneg %p15
  $region15: #{discriminator_forward.10} parent=0 // pred_check_branch
    %18 = sbr.rel (%p16) target = $region17
  $region16: #{discriminator_forward.10} parent=0 // pred_region
    %19 = vst [vmem:[#allocation2] sm:$0xff] 0.0
    %20 = vst [vmem:[#allocation2 + $0x8] sm:$0xff] 0.0
    %21 = vst [vmem:[#allocation2 + $0x10] sm:$0xff] 0.0
    %22 = vst [vmem:[#allocation2 + $0x18] sm:$0xff] 0.0
    %23 = vst [vmem:[#allocation2 + $0x20] sm:$0xff] 0.0
    %24 = vst [vmem:[#allocation2 + $0x28] sm:$0xff] 0.0
    %25 = vst [vmem:[#allocation2 + $0x30] sm:$0x3] 0.0
  $region17: #{discriminator_forward.10} parent=0 // pred_fallthru
    _
  %v26 = vld [vmem:[#allocation2] sm:$0xff]
  %v27 = vld [vmem:[#allocation2 + $0x8] sm:$0xff]
  %v28 = vld [vmem:[#allocation2 + $0x10] sm:$0xff]
  %v29 = vld [vmem:[#allocation2 + $0x18] sm:$0xff]
  %v30 = vld [vmem:[#allocation2 + $0x20] sm:$0xff]
  %v31 = vld [vmem:[#allocation2 + $0x28] sm:$0xff]
  %v32 = vld [vmem:[#allocation2 + $0x30] sm:$0x3]
  %v33 = vld [vmem:[%s0] sm:$0xff]
  %v34 = vld [vmem:[%s0 + $0x8] sm:$0xff]
  %v35 = vld [vmem:[%s0 + $0x10] sm:$0xff]
  %v36 = vld [vmem:[%s0 + $0x18] sm:$0xff]
  %v37 = vld [vmem:[%s0 + $0x20] sm:$0xf]
  %v38 = vld [vmem:[%s0 + $0x24] sm:$0xff]
  %v39 = vld [vmem:[%s0 + $0x2c] sm:$0xff]
  %v40 = vld [vmem:[%s0 + $0x34] sm:$0xff]
  %v41 = vld [vmem:[%s0 + $0x3c] sm:$0xff]
  %v42 = vld [vmem:[%s0 + $0x44] sm:$0xf]
  %v43 = vld [vmem:[%s0 + $0x48] sm:$0xff]
  %v44 = vld [vmem:[%s0 + $0x50] sm:$0xff]
  %v45 = vld [vmem:[%s0 + $0x58] sm:$0xff]
  %v46 = vld [vmem:[%s0 + $0x60] sm:$0xff]
  %v47 = vld [vmem:[%s0 + $0x68] sm:$0xf]
  %v48 = vld [vmem:[%s0 + $0x6c] sm:$0xff]
  %v49 = vld [vmem:[%s0 + $0x74] sm:$0xff]
  %v50 = vld [vmem:[%s0 + $0x7c] sm:$0xff]
  %v51 = vld [vmem:[%s0 + $0x84] sm:$0xff]
  %v52 = vld [vmem:[%s0 + $0x8c] sm:$0xf]
  %v53 = vld [vmem:[%s0 + $0x90] sm:$0xff]
  %v54 = vld [vmem:[%s0 + $0x98] sm:$0xff]
  %v55 = vld [vmem:[%s0 + $0xa0] sm:$0xff]
  %v56 = vld [vmem:[%s0 + $0xa8] sm:$0xff]
  %v57 = vld [vmem:[%s0 + $0xb0] sm:$0xf]
  %v58 = vld [vmem:[%s0 + $0xb4] sm:$0xff]
  %v59 = vld [vmem:[%s0 + $0xbc] sm:$0xff]
  %v60 = vld [vmem:[%s0 + $0xc4] sm:$0xff]
  %v61 = vld [vmem:[%s0 + $0xcc] sm:$0xff]
  %v62 = vld [vmem:[%s0 + $0xd4] sm:$0xf]
  %v63 = vld [vmem:[%s0 + $0xd8] sm:$0x11]
  %v64 = vld [vmem:[%s0 + $0xe0] sm:$0x11]
  %v65 = vld [vmem:[%s0 + $0xe8] sm:$0x11]
  %v66 = vld [vmem:[%s0 + $0xf0] sm:$0x11]
  %v67 = vld [vmem:[%s0 + $0xf8] sm:$0x1]
  %v68 = vld [vmem:[%s1] sm:$0xf]
  %v69 = vld [vmem:[%s1 + $0x4] sm:$0xf]
  %v70 = vld [vmem:[%s1 + $0x8] sm:$0xf]
  %v71 = vld [vmem:[%s1 + $0xc] sm:$0xf]
  %v72 = vld [vmem:[%s1 + $0x10] sm:$0xf]
  %v73 = vld [vmem:[%s1 + $0x14] sm:$0xf]
  %v74 = vld [vmem:[%s1 + $0x18] sm:$0xf]
  %v75 = vld [vmem:[%s1 + $0x1c] sm:$0xf]
  %v76 = vld [vmem:[%s1 + $0x20] sm:$0xf]
  %v77 = vld [vmem:[%s1 + $0x24] sm:$0xf]
  %v78 = vld [vmem:[%s1 + $0x28] sm:$0xf]
  %v79 = vld [vmem:[%s1 + $0x2c] sm:$0xf]
  %v80 = vld [vmem:[%s1 + $0x30] sm:$0xf]
  %v81 = vld [vmem:[%s1 + $0x34] sm:$0xf]
  %v82 = vld [vmem:[%s1 + $0x38] sm:$0xf]
  %v83 = vld [vmem:[%s1 + $0x3c] sm:$0xf]
  %v84 = vld [vmem:[%s1 + $0x40] sm:$0xf]
  %v85 = vld [vmem:[%s1 + $0x44] sm:$0xf]
  %v86 = vld [vmem:[%s1 + $0x48] sm:$0xf]
  %v87 = vld [vmem:[%s1 + $0x4c] sm:$0xf]
  %v88 = vld [vmem:[%s1 + $0x50] sm:$0xf]
  %v89 = vld [vmem:[%s1 + $0x54] sm:$0xf]
  %v90 = vld [vmem:[%s1 + $0x58] sm:$0xf]
  %v91 = vld [vmem:[%s1 + $0x5c] sm:$0xf]
  %v92 = vld [vmem:[%s1 + $0x60] sm:$0xf]
  %v93 = vld [vmem:[%s1 + $0x64] sm:$0xf]
  %v94 = vld [vmem:[%s1 + $0x68] sm:$0xf]
  %v95 = vld [vmem:[%s1 + $0x6c] sm:$0xf]
  %v96 = vld [vmem:[%s1 + $0x70] sm:$0xf]
  %v97 = vld [vmem:[%s1 + $0x74] sm:$0xf]
  %v98 = vld [vmem:[%s1 + $0x78] sm:$0xf]
  %v99 = vld [vmem:[%s1 + $0x7c] sm:$0xf]
  %v100 = vld [vmem:[%s1 + $0x80] sm:$0xf]
  %v101 = vld [vmem:[%s1 + $0x84] sm:$0xf]
  %v102 = vld [vmem:[%s1 + $0x88] sm:$0xf]
  %v103 = vld [vmem:[%s1 + $0x8c] sm:$0xf]
  %v104 = vld [vmem:[%s1 + $0x90] sm:$0xf]
  %v105 = vld [vmem:[%s1 + $0x94] sm:$0xf]
  %v106 = vld [vmem:[%s1 + $0x98] sm:$0xf]
  %v107 = vld [vmem:[%s1 + $0x9c] sm:$0xf]
  %v108 = vld [vmem:[%s1 + $0xa0] sm:$0xf]
  %v109 = vld [vmem:[%s1 + $0xa4] sm:$0xf]
  %v110 = vld [vmem:[%s1 + $0xa8] sm:$0xf]
  %v111 = vld [vmem:[%s1 + $0xac] sm:$0xf]
  %v112 = vld [vmem:[%s1 + $0xb0] sm:$0xf]
  %v113 = vld [vmem:[%s1 + $0xb4] sm:$0xf]
  %v114 = vld [vmem:[%s1 + $0xb8] sm:$0xf]
  %v115 = vld [vmem:[%s1 + $0xbc] sm:$0xf]
  %v116 = vld [vmem:[%s1 + $0xc0] sm:$0xf]
  %v117 = vld [vmem:[%s1 + $0xc4] sm:$0xf]
  %v118 = vld [vmem:[%s1 + $0xc8] sm:$0xf]
  %v119 = vld [vmem:[%s1 + $0xcc] sm:$0xf]
  %v120 = vld [vmem:[%s1 + $0xd0] sm:$0xf]
  %v121 = vld [vmem:[%s1 + $0xd4] sm:$0xf]
  %v122 = vld [vmem:[%s1 + $0xd8] sm:$0xf]
  %v123 = vld [vmem:[%s1 + $0xdc] sm:$0xf]
  %v124 = vld [vmem:[%s1 + $0xe0] sm:$0xf]
  %v125 = vld [vmem:[%s1 + $0xe4] sm:$0xf]
  %v126 = vld [vmem:[%s1 + $0xe8] sm:$0xf]
  %v127 = vld [vmem:[%s1 + $0xec] sm:$0xf]
  %v128 = vld [vmem:[%s1 + $0xf0] sm:$0xf]
  %v129 = vld [vmem:[%s1 + $0xf4] sm:$0xf]
  %v130 = vld [vmem:[%s1 + $0xf8] sm:$0xf]
  %v131 = vld [vmem:[%s1 + $0xfc] sm:$0xf]
  %v132 = vld [vmem:[%s1 + $0x100] sm:$0xf]
  %v133 = vld [vmem:[%s1 + $0x104] sm:$0xf]
  %v134 = vld [vmem:[%s1 + $0x108] sm:$0xf]
  %v135 = vld [vmem:[%s1 + $0x10c] sm:$0xf]
  %v136 = vld [vmem:[%s1 + $0x110] sm:$0xf]
  %v137 = vld [vmem:[%s1 + $0x114] sm:$0xf]
  %v138 = vld [vmem:[%s1 + $0x118] sm:$0xf]
  %v139 = vld [vmem:[%s1 + $0x11c] sm:$0xf]
  %v140 = vld [vmem:[%s1 + $0x120] sm:$0xf]
  %v141 = vld [vmem:[%s1 + $0x124] sm:$0xf]
  %v142 = vld [vmem:[%s1 + $0x128] sm:$0xf]
  %v143 = vld [vmem:[%s1 + $0x12c] sm:$0xf]
  %v144 = vld [vmem:[%s1 + $0x130] sm:$0xf]
  %v145 = vld [vmem:[%s1 + $0x134] sm:$0xf]
  %v146 = vld [vmem:[%s1 + $0x138] sm:$0xf]
  %v147 = vld [vmem:[%s1 + $0x13c] sm:$0xf]
  %v148 = vld [vmem:[%s1 + $0x140] sm:$0xf]
  %v149 = vld [vmem:[%s1 + $0x144] sm:$0xf]
  %v150 = vld [vmem:[%s1 + $0x148] sm:$0xf]
  %v151 = vld [vmem:[%s1 + $0x14c] sm:$0xf]
  %v152 = vld [vmem:[%s1 + $0x150] sm:$0xf]
  %v153 = vld [vmem:[%s1 + $0x154] sm:$0xf]
  %v154 = vld [vmem:[%s1 + $0x158] sm:$0xf]
  %v155 = vld [vmem:[%s1 + $0x15c] sm:$0xf]
  %v156 = vld [vmem:[%s1 + $0x160] sm:$0xf]
  %v157 = vld [vmem:[%s1 + $0x164] sm:$0xf]
  %v158 = vld [vmem:[%s1 + $0x168] sm:$0xf]
  %v159 = vld [vmem:[%s1 + $0x16c] sm:$0xf]
  %v160 = vld [vmem:[%s1 + $0x170] sm:$0xf]
  %v161 = vld [vmem:[%s1 + $0x174] sm:$0xf]
  %v162 = vld [vmem:[%s1 + $0x178] sm:$0xf]
  %v163 = vld [vmem:[%s1 + $0x17c] sm:$0xf]
  %v164 = vld [vmem:[%s1 + $0x180] sm:$0xf]
  %v165 = vld [vmem:[%s1 + $0x184] sm:$0xf]
  %v166 = vld [vmem:[%s1 + $0x188] sm:$0xf]
  %v167 = vld [vmem:[%s1 + $0x18c] sm:$0xf]
  %v168 = vld [vmem:[%s1 + $0x190] sm:$0xf]
  %v169 = vld [vmem:[%s1 + $0x194] sm:$0xf]
  %v170 = vld [vmem:[%s1 + $0x198] sm:$0xf]
  %v171 = vld [vmem:[%s1 + $0x19c] sm:$0xf]
  %v172 = vld [vmem:[%s1 + $0x1a0] sm:$0xf]
  %v173 = vld [vmem:[%s1 + $0x1a4] sm:$0xf]
  %v174 = vld [vmem:[%s1 + $0x1a8] sm:$0xf]
  %v175 = vld [vmem:[%s1 + $0x1ac] sm:$0xf]
  %v176 = vld [vmem:[%s1 + $0x1b0] sm:$0xf]
  %v177 = vld [vmem:[%s1 + $0x1b4] sm:$0xf]
  %v178 = vld [vmem:[%s1 + $0x1b8] sm:$0xf]
  %v179 = vld [vmem:[%s1 + $0x1bc] sm:$0xf]
  %v180 = vld [vmem:[%s1 + $0x1c0] sm:$0xf]
  %v181 = vld [vmem:[%s1 + $0x1c4] sm:$0xf]
  %v182 = vld [vmem:[%s1 + $0x1c8] sm:$0xf]
  %v183 = vld [vmem:[%s1 + $0x1cc] sm:$0xf]
  %v184 = vld [vmem:[%s1 + $0x1d0] sm:$0xf]
  %v185 = vld [vmem:[%s1 + $0x1d4] sm:$0xf]
  %v186 = vld [vmem:[%s1 + $0x1d8] sm:$0xf]
  %v187 = vld [vmem:[%s1 + $0x1dc] sm:$0xf]
  %v188 = vld [vmem:[%s1 + $0x1e0] sm:$0xf]
  %v189 = vld [vmem:[%s1 + $0x1e4] sm:$0xf]
  %v190 = vld [vmem:[%s1 + $0x1e8] sm:$0xf]
  %v191 = vld [vmem:[%s1 + $0x1ec] sm:$0xf]
  %v192 = vld [vmem:[%s1 + $0x1f0] sm:$0xf]
  %v193 = vld [vmem:[%s1 + $0x1f4] sm:$0xf]
  %v194 = vld [vmem:[%s1 + $0x1f8] sm:$0xf]
  %v195 = vld [vmem:[%s1 + $0x1fc] sm:$0xf]
  %v196 = vld [vmem:[%s1 + $0x200] sm:$0xf]
  %v197 = vld [vmem:[%s1 + $0x204] sm:$0xf]
  %v198 = vld [vmem:[%s1 + $0x208] sm:$0xf]
  %v199 = vld [vmem:[%s1 + $0x20c] sm:$0xf]
  %v200 = vld [vmem:[%s1 + $0x210] sm:$0xf]
  %v201 = vld [vmem:[%s1 + $0x214] sm:$0xf]
  %v202 = vld [vmem:[%s1 + $0x218] sm:$0xf]
  %v203 = vld [vmem:[%s1 + $0x21c] sm:$0xf]
  %v204 = vld [vmem:[%s1 + $0x220] sm:$0xf]
  %v205 = vld [vmem:[%s1 + $0x224] sm:$0xf]
  %v206 = vld [vmem:[%s1 + $0x228] sm:$0xf]
  %v207 = vld [vmem:[%s1 + $0x22c] sm:$0xf]
  %v208 = vld [vmem:[%s1 + $0x230] sm:$0xf]
  %v209 = vld [vmem:[%s1 + $0x234] sm:$0xf]
  %v210 = vld [vmem:[%s1 + $0x238] sm:$0xf]
  %v211 = vld [vmem:[%s1 + $0x23c] sm:$0xf]
  %v247 = vunpack.c.l.b16 %v33
  %v248 = vunpack.c.h.b16 %v33
  %v249 = vunpack.c.l.b16 %v34
  %v250 = vunpack.c.h.b16 %v34
  %v251 = vunpack.c.l.b16 %v35
  %v252 = vunpack.c.h.b16 %v35
  %v253 = vunpack.c.l.b16 %v36
  %v254 = vunpack.c.h.b16 %v36
  %v255 = vunpack.c.l.b16 %v37
  %v256 = vunpack.c.l.b16 %v38
  %v257 = vunpack.c.h.b16 %v38
  %v258 = vunpack.c.l.b16 %v39
  %v259 = vunpack.c.h.b16 %v39
  %v260 = vunpack.c.l.b16 %v40
  %v261 = vunpack.c.h.b16 %v40
  %v262 = vunpack.c.l.b16 %v41
  %v263 = vunpack.c.h.b16 %v41
  %v264 = vunpack.c.l.b16 %v42
  %v265 = vunpack.c.l.b16 %v43
  %v266 = vunpack.c.h.b16 %v43
  %v267 = vunpack.c.l.b16 %v44
  %v268 = vunpack.c.h.b16 %v44
  %v269 = vunpack.c.l.b16 %v45
  %v270 = vunpack.c.h.b16 %v45
  %v271 = vunpack.c.l.b16 %v46
  %v272 = vunpack.c.h.b16 %v46
  %v273 = vunpack.c.l.b16 %v47
  %v274 = vunpack.c.l.b16 %v48
  %v275 = vunpack.c.h.b16 %v48
  %v276 = vunpack.c.l.b16 %v49
  %v277 = vunpack.c.h.b16 %v49
  %v278 = vunpack.c.l.b16 %v50
  %v279 = vunpack.c.h.b16 %v50
  %v280 = vunpack.c.l.b16 %v51
  %v281 = vunpack.c.h.b16 %v51
  %v282 = vunpack.c.l.b16 %v52
  %v283 = vunpack.c.l.b16 %v53
  %v284 = vunpack.c.h.b16 %v53
  %v285 = vunpack.c.l.b16 %v54
  %v286 = vunpack.c.h.b16 %v54
  %v287 = vunpack.c.l.b16 %v55
  %v288 = vunpack.c.h.b16 %v55
  %v289 = vunpack.c.l.b16 %v56
  %v290 = vunpack.c.h.b16 %v56
  %v291 = vunpack.c.l.b16 %v57
  %v292 = vunpack.c.l.b16 %v58
  %v293 = vunpack.c.h.b16 %v58
  %v294 = vunpack.c.l.b16 %v59
  %v295 = vunpack.c.h.b16 %v59
  %v296 = vunpack.c.l.b16 %v60
  %v297 = vunpack.c.h.b16 %v60
  %v298 = vunpack.c.l.b16 %v61
  %v299 = vunpack.c.h.b16 %v61
  %v300 = vunpack.c.l.b16 %v62
  %v301 = vunpack.c.l.b16 %v63
  %v302 = vunpack.c.h.b16 %v63
  %v303 = vunpack.c.l.b16 %v64
  %v304 = vunpack.c.h.b16 %v64
  %v305 = vunpack.c.l.b16 %v65
  %v306 = vunpack.c.h.b16 %v65
  %v307 = vunpack.c.l.b16 %v66
  %v308 = vunpack.c.h.b16 %v66
  %v309 = vunpack.c.l.b16 %v67
  %v310 = vpack.c.b16 %v256, %v247
  %v311 = vpack.c.b16 %v257, %v248
  %v312 = vpack.c.b16 %v258, %v249
  %v313 = vpack.c.b16 %v259, %v250
  %v314 = vpack.c.b16 %v260, %v251
  %v315 = vpack.c.b16 %v261, %v252
  %v316 = vpack.c.b16 %v262, %v253
  %v317 = vpack.c.b16 %v263, %v254
  %v318 = vpack.c.b16 %v264, %v255
  %v319 = vpack.c.b16 %v274, %v265
  %v320 = vpack.c.b16 %v275, %v266
  %v321 = vpack.c.b16 %v276, %v267
  %v322 = vpack.c.b16 %v277, %v268
  %v323 = vpack.c.b16 %v278, %v269
  %v324 = vpack.c.b16 %v279, %v270
  %v325 = vpack.c.b16 %v280, %v271
  %v326 = vpack.c.b16 %v281, %v272
  %v327 = vpack.c.b16 %v282, %v273
  %v328 = vpack.c.b16 %v292, %v283
  %v329 = vpack.c.b16 %v293, %v284
  %v330 = vpack.c.b16 %v294, %v285
  %v331 = vpack.c.b16 %v295, %v286
  %v332 = vpack.c.b16 %v296, %v287
  %v333 = vpack.c.b16 %v297, %v288
  %v334 = vpack.c.b16 %v298, %v289
  %v335 = vpack.c.b16 %v299, %v290
  %v336 = vpack.c.b16 %v300, %v291
  %v337 = vpack.c.b16 %v301, %v301
  %v338 = vpack.c.b16 %v302, %v302
  %v339 = vpack.c.b16 %v303, %v303
  %v340 = vpack.c.b16 %v304, %v304
  %v341 = vpack.c.b16 %v305, %v305
  %v342 = vpack.c.b16 %v306, %v306
  %v343 = vpack.c.b16 %v307, %v307
  %v344 = vpack.c.b16 %v308, %v308
  %v345 = vpack.c.b16 %v309, %v309
  %v526 = vunpack.c.l.b16 %v68
  %v527 = vunpack.c.l.b16 %v69
  %v528 = vunpack.c.l.b16 %v70
  %v529 = vunpack.c.l.b16 %v71
  %v530 = vunpack.c.l.b16 %v72
  %v531 = vunpack.c.l.b16 %v73
  %v532 = vunpack.c.l.b16 %v74
  %v533 = vunpack.c.l.b16 %v75
  %v534 = vunpack.c.l.b16 %v76
  %v535 = vunpack.c.l.b16 %v77
  %v536 = vunpack.c.l.b16 %v78
  %v537 = vunpack.c.l.b16 %v79
  %v538 = vunpack.c.l.b16 %v80
  %v539 = vunpack.c.l.b16 %v81
  %v540 = vunpack.c.l.b16 %v82
  %v541 = vunpack.c.l.b16 %v83
  %v542 = vunpack.c.l.b16 %v84
  %v543 = vunpack.c.l.b16 %v85
  %v544 = vunpack.c.l.b16 %v86
  %v545 = vunpack.c.l.b16 %v87
  %v546 = vunpack.c.l.b16 %v88
  %v547 = vunpack.c.l.b16 %v89
  %v548 = vunpack.c.l.b16 %v90
  %v549 = vunpack.c.l.b16 %v91
  %v550 = vunpack.c.l.b16 %v92
  %v551 = vunpack.c.l.b16 %v93
  %v552 = vunpack.c.l.b16 %v94
  %v553 = vunpack.c.l.b16 %v95
  %v554 = vunpack.c.l.b16 %v96
  %v555 = vunpack.c.l.b16 %v97
  %v556 = vunpack.c.l.b16 %v98
  %v557 = vunpack.c.l.b16 %v99
  %v558 = vunpack.c.l.b16 %v100
  %v559 = vunpack.c.l.b16 %v101
  %v560 = vunpack.c.l.b16 %v102
  %v561 = vunpack.c.l.b16 %v103
  %v562 = vunpack.c.l.b16 %v104
  %v563 = vunpack.c.l.b16 %v105
  %v564 = vunpack.c.l.b16 %v106
  %v565 = vunpack.c.l.b16 %v107
  %v566 = vunpack.c.l.b16 %v108
  %v567 = vunpack.c.l.b16 %v109
  %v568 = vunpack.c.l.b16 %v110
  %v569 = vunpack.c.l.b16 %v111
  %v570 = vunpack.c.l.b16 %v112
  %v571 = vunpack.c.l.b16 %v113
  %v572 = vunpack.c.l.b16 %v114
  %v573 = vunpack.c.l.b16 %v115
  %v574 = vunpack.c.l.b16 %v116
  %v575 = vunpack.c.l.b16 %v117
  %v576 = vunpack.c.l.b16 %v118
  %v577 = vunpack.c.l.b16 %v119
  %v578 = vunpack.c.l.b16 %v120
  %v579 = vunpack.c.l.b16 %v121
  %v580 = vunpack.c.l.b16 %v122
  %v581 = vunpack.c.l.b16 %v123
  %v582 = vunpack.c.l.b16 %v124
  %v583 = vunpack.c.l.b16 %v125
  %v584 = vunpack.c.l.b16 %v126
  %v585 = vunpack.c.l.b16 %v127
  %v586 = vunpack.c.l.b16 %v128
  %v587 = vunpack.c.l.b16 %v129
  %v588 = vunpack.c.l.b16 %v130
  %v589 = vunpack.c.l.b16 %v131
  %v590 = vunpack.c.l.b16 %v132
  %v591 = vunpack.c.l.b16 %v133
  %v592 = vunpack.c.l.b16 %v134
  %v593 = vunpack.c.l.b16 %v135
  %v594 = vunpack.c.l.b16 %v136
  %v595 = vunpack.c.l.b16 %v137
  %v596 = vunpack.c.l.b16 %v138
  %v597 = vunpack.c.l.b16 %v139
  %v598 = vunpack.c.l.b16 %v140
  %v599 = vunpack.c.l.b16 %v141
  %v600 = vunpack.c.l.b16 %v142
  %v601 = vunpack.c.l.b16 %v143
  %v602 = vunpack.c.l.b16 %v144
  %v603 = vunpack.c.l.b16 %v145
  %v604 = vunpack.c.l.b16 %v146
  %v605 = vunpack.c.l.b16 %v147
  %v606 = vunpack.c.l.b16 %v148
  %v607 = vunpack.c.l.b16 %v149
  %v608 = vunpack.c.l.b16 %v150
  %v609 = vunpack.c.l.b16 %v151
  %v610 = vunpack.c.l.b16 %v152
  %v611 = vunpack.c.l.b16 %v153
  %v612 = vunpack.c.l.b16 %v154
  %v613 = vunpack.c.l.b16 %v155
  %v614 = vunpack.c.l.b16 %v156
  %v615 = vunpack.c.l.b16 %v157
  %v616 = vunpack.c.l.b16 %v158
  %v617 = vunpack.c.l.b16 %v159
  %v618 = vunpack.c.l.b16 %v160
  %v619 = vunpack.c.l.b16 %v161
  %v620 = vunpack.c.l.b16 %v162
  %v621 = vunpack.c.l.b16 %v163
  %v622 = vunpack.c.l.b16 %v164
  %v623 = vunpack.c.l.b16 %v165
  %v624 = vunpack.c.l.b16 %v166
  %v625 = vunpack.c.l.b16 %v167
  %v626 = vunpack.c.l.b16 %v168
  %v627 = vunpack.c.l.b16 %v169
  %v628 = vunpack.c.l.b16 %v170
  %v629 = vunpack.c.l.b16 %v171
  %v630 = vunpack.c.l.b16 %v172
  %v631 = vunpack.c.l.b16 %v173
  %v632 = vunpack.c.l.b16 %v174
  %v633 = vunpack.c.l.b16 %v175
  %v634 = vunpack.c.l.b16 %v176
  %v635 = vunpack.c.l.b16 %v177
  %v636 = vunpack.c.l.b16 %v178
  %v637 = vunpack.c.l.b16 %v179
  %v638 = vunpack.c.l.b16 %v180
  %v639 = vunpack.c.l.b16 %v181
  %v640 = vunpack.c.l.b16 %v182
  %v641 = vunpack.c.l.b16 %v183
  %v642 = vunpack.c.l.b16 %v184
  %v643 = vunpack.c.l.b16 %v185
  %v644 = vunpack.c.l.b16 %v186
  %v645 = vunpack.c.l.b16 %v187
  %v646 = vunpack.c.l.b16 %v188
  %v647 = vunpack.c.l.b16 %v189
  %v648 = vunpack.c.l.b16 %v190
  %v649 = vunpack.c.l.b16 %v191
  %v650 = vunpack.c.l.b16 %v192
  %v651 = vunpack.c.l.b16 %v193
  %v652 = vunpack.c.l.b16 %v194
  %v653 = vunpack.c.l.b16 %v195
  %v654 = vunpack.c.l.b16 %v196
  %v655 = vunpack.c.l.b16 %v197
  %v656 = vunpack.c.l.b16 %v198
  %v657 = vunpack.c.l.b16 %v199
  %v658 = vunpack.c.l.b16 %v200
  %v659 = vunpack.c.l.b16 %v201
  %v660 = vunpack.c.l.b16 %v202
  %v661 = vunpack.c.l.b16 %v203
  %v662 = vunpack.c.l.b16 %v204
  %v663 = vunpack.c.l.b16 %v205
  %v664 = vunpack.c.l.b16 %v206
  %v665 = vunpack.c.l.b16 %v207
  %v666 = vunpack.c.l.b16 %v208
  %v667 = vunpack.c.l.b16 %v209
  %v668 = vunpack.c.l.b16 %v210
  %v669 = vunpack.c.l.b16 %v211
  %v670 = vpack.c.b16 %v527, %v526
  %v671 = vpack.c.b16 %v529, %v528
  %v672 = vpack.c.b16 %v531, %v530
  %v673 = vpack.c.b16 %v533, %v532
  %v674 = vpack.c.b16 %v535, %v534
  %v675 = vpack.c.b16 %v537, %v536
  %v676 = vpack.c.b16 %v539, %v538
  %v677 = vpack.c.b16 %v541, %v540
  %v678 = vpack.c.b16 %v543, %v542
  %v679 = vpack.c.b16 %v545, %v544
  %v680 = vpack.c.b16 %v547, %v546
  %v681 = vpack.c.b16 %v549, %v548
  %v682 = vpack.c.b16 %v551, %v550
  %v683 = vpack.c.b16 %v553, %v552
  %v684 = vpack.c.b16 %v555, %v554
  %v685 = vpack.c.b16 %v557, %v556
  %v686 = vpack.c.b16 %v559, %v558
  %v687 = vpack.c.b16 %v561, %v560
  %v688 = vpack.c.b16 %v563, %v562
  %v689 = vpack.c.b16 %v565, %v564
  %v690 = vpack.c.b16 %v567, %v566
  %v691 = vpack.c.b16 %v569, %v568
  %v692 = vpack.c.b16 %v571, %v570
  %v693 = vpack.c.b16 %v573, %v572
  %v694 = vpack.c.b16 %v575, %v574
  %v695 = vpack.c.b16 %v577, %v576
  %v696 = vpack.c.b16 %v579, %v578
  %v697 = vpack.c.b16 %v581, %v580
  %v698 = vpack.c.b16 %v583, %v582
  %v699 = vpack.c.b16 %v585, %v584
  %v700 = vpack.c.b16 %v587, %v586
  %v701 = vpack.c.b16 %v589, %v588
  %v702 = vpack.c.b16 %v591, %v590
  %v703 = vpack.c.b16 %v593, %v592
  %v704 = vpack.c.b16 %v595, %v594
  %v705 = vpack.c.b16 %v597, %v596
  %v706 = vpack.c.b16 %v599, %v598
  %v707 = vpack.c.b16 %v601, %v600
  %v708 = vpack.c.b16 %v603, %v602
  %v709 = vpack.c.b16 %v605, %v604
  %v710 = vpack.c.b16 %v607, %v606
  %v711 = vpack.c.b16 %v609, %v608
  %v712 = vpack.c.b16 %v611, %v610
  %v713 = vpack.c.b16 %v613, %v612
  %v714 = vpack.c.b16 %v615, %v614
  %v715 = vpack.c.b16 %v617, %v616
  %v716 = vpack.c.b16 %v619, %v618
  %v717 = vpack.c.b16 %v621, %v620
  %v718 = vpack.c.b16 %v623, %v622
  %v719 = vpack.c.b16 %v625, %v624
  %v720 = vpack.c.b16 %v627, %v626
  %v721 = vpack.c.b16 %v629, %v628
  %v722 = vpack.c.b16 %v631, %v630
  %v723 = vpack.c.b16 %v633, %v632
  %v724 = vpack.c.b16 %v635, %v634
  %v725 = vpack.c.b16 %v637, %v636
  %v726 = vpack.c.b16 %v639, %v638
  %v727 = vpack.c.b16 %v641, %v640
  %v728 = vpack.c.b16 %v643, %v642
  %v729 = vpack.c.b16 %v645, %v644
  %v730 = vpack.c.b16 %v647, %v646
  %v731 = vpack.c.b16 %v649, %v648
  %v732 = vpack.c.b16 %v651, %v650
  %v733 = vpack.c.b16 %v653, %v652
  %v734 = vpack.c.b16 %v655, %v654
  %v735 = vpack.c.b16 %v657, %v656
  %v736 = vpack.c.b16 %v659, %v658
  %v737 = vpack.c.b16 %v661, %v660
  %v738 = vpack.c.b16 %v663, %v662
  %v739 = vpack.c.b16 %v665, %v664
  %v740 = vpack.c.b16 %v667, %v666
  %v741 = vpack.c.b16 %v669, %v668
  %814 = vmatprep.subr.bf16.mxu0 0
  %815 = vmatpush1.bf16.msra.mxu0 %v670
  %816 = vmatprep.subr.bf16.mxu0 0
  %817 = vmatpush1.bf16.msra.mxu0 %v671
  %818 = vmatprep.subr.bf16.mxu0 0
  %819 = vmatpush1.bf16.msra.mxu0 %v672
  %820 = vmatprep.subr.bf16.mxu0 0
  %821 = vmatpush1.bf16.msra.mxu0 %v673
  %822 = vmatprep.subr.bf16.mxu0 0
  %823 = vmatpush1.bf16.msra.mxu0 %v674
  %824 = vmatprep.subr.bf16.mxu0 0
  %825 = vmatpush1.bf16.msra.mxu0 %v675
  %826 = vmatprep.subr.bf16.mxu0 0
  %827 = vmatpush1.bf16.msra.mxu0 %v676
  %828 = vmatprep.subr.bf16.mxu0 0
  %829 = vmatpush1.bf16.msra.mxu0 %v677
  %830 = vmatprep.subr.bf16.mxu0 0
  %831 = vmatpush1.bf16.msra.mxu0 %v678
  %832 = vmatprep.subr.bf16.mxu0 0
  %833 = vmatpush1.bf16.msra.mxu0 %v679
  %834 = vmatprep.subr.bf16.mxu0 0
  %835 = vmatpush1.bf16.msra.mxu0 %v680
  %836 = vmatprep.subr.bf16.mxu0 0
  %837 = vmatpush1.bf16.msra.mxu0 %v681
  %838 = vmatprep.subr.bf16.mxu0 0
  %839 = vmatpush1.bf16.msra.mxu0 %v682
  %840 = vmatprep.subr.bf16.mxu0 0
  %841 = vmatpush1.bf16.msra.mxu0 %v683
  %842 = vmatprep.subr.bf16.mxu0 0
  %843 = vmatpush1.bf16.msra.mxu0 %v684
  %844 = vmatprep.subr.bf16.mxu0 0
  %845 = vmatpush1.bf16.msra.mxu0 %v685
  %846 = vmatprep.mubr.bf16.mxu0 %v311
  %847 = vmatmul.mubr.bf16.gmra.mrb[0].mxu0 %v310
  %v848 = vpop.f32.mrb[0].mxu0
  %v849 = vadd.f32 0.0, %v848
  %v850 = vpop.f32.mrb[0].mxu0
  %v851 = vpop.f32.mrb[0].mxu0
  %v852 = vadd.f32 0.0, %v851
  %v853 = vpop.f32.mrb[0].mxu0
  %854 = vmatprep.mubr.bf16.mxu0 %v320
  %855 = vmatmul.mubr.bf16.gmra.mrb[0].mxu0 %v319
  %v856 = vpop.f32.mrb[0].mxu0
  %v857 = vadd.f32 0.0, %v856
  %v858 = vpop.f32.mrb[0].mxu0
  %v859 = vpop.f32.mrb[0].mxu0
  %v860 = vadd.f32 0.0, %v859
  %v861 = vpop.f32.mrb[0].mxu0
  %862 = vmatprep.mubr.bf16.mxu0 %v329
  %863 = vmatmul.mubr.bf16.gmra.mrb[0].mxu0 %v328
  %v864 = vpop.f32.mrb[0].mxu0
  %v865 = vadd.f32 0.0, %v864
  %v866 = vpop.f32.mrb[0].mxu0
  %v867 = vpop.f32.mrb[0].mxu0
  %v868 = vadd.f32 0.0, %v867
  %v869 = vpop.f32.mrb[0].mxu0
  %870 = vmatprep.mubr.bf16.mxu0 %v338
  %871 = vmatmul.mubr.bf16.gmra.mrb[0].mxu0 %v337
  %v872 = vpop.f32.mrb[0].mxu0
  %v873 = vadd.f32 0.0, %v872
  %v874 = vpop.f32.mrb[0].mxu0
  %v875 = vpop.f32.mrb[0].mxu0
  %v876 = vpop.f32.mrb[0].mxu0
  %877 = vdwg.mxu0
  %878 = vmatprep.subr.bf16.mxu0 0
  %879 = vmatpush1.bf16.msra.mxu0 %v686
  %880 = vmatprep.subr.bf16.mxu0 0
  %881 = vmatpush1.bf16.msra.mxu0 %v687
  %882 = vmatprep.subr.bf16.mxu0 0
  %883 = vmatpush1.bf16.msra.mxu0 %v688
  %884 = vmatprep.subr.bf16.mxu0 0
  %885 = vmatpush1.bf16.msra.mxu0 %v689
  %886 = vmatprep.subr.bf16.mxu0 0
  %887 = vmatpush1.bf16.msra.mxu0 %v690
  %888 = vmatprep.subr.bf16.mxu0 0
  %889 = vmatpush1.bf16.msra.mxu0 %v691
  %890 = vmatprep.subr.bf16.mxu0 0
  %891 = vmatpush1.bf16.msra.mxu0 %v692
  %892 = vmatprep.subr.bf16.mxu0 0
  %893 = vmatpush1.bf16.msra.mxu0 %v693
  %894 = vmatprep.subr.bf16.mxu0 0
  %895 = vmatpush1.bf16.msra.mxu0 %v694
  %896 = vmatprep.subr.bf16.mxu0 0
  %897 = vmatpush1.bf16.msra.mxu0 %v695
  %898 = vmatprep.subr.bf16.mxu0 0
  %899 = vmatpush1.bf16.msra.mxu0 %v696
  %900 = vmatprep.subr.bf16.mxu0 0
  %901 = vmatpush1.bf16.msra.mxu0 %v697
  %902 = vmatprep.subr.bf16.mxu0 0
  %903 = vmatpush1.bf16.msra.mxu0 %v698
  %904 = vmatprep.subr.bf16.mxu0 0
  %905 = vmatpush1.bf16.msra.mxu0 %v699
  %906 = vmatprep.subr.bf16.mxu0 0
  %907 = vmatpush1.bf16.msra.mxu0 %v700
  %908 = vmatprep.subr.bf16.mxu0 0
  %909 = vmatpush1.bf16.msra.mxu0 %v701
  %910 = vmatprep.mubr.bf16.mxu0 %v313
  %911 = vmatmul.mubr.bf16.gmra.mrb[0].mxu0 %v312
  %v912 = vpop.f32.mrb[0].mxu0
  %v913 = vadd.f32 %v849, %v912
  %v914 = vpop.f32.mrb[0].mxu0
  %v915 = vpop.f32.mrb[0].mxu0
  %v916 = vadd.f32 %v852, %v915
  %v917 = vpop.f32.mrb[0].mxu0
  %918 = vmatprep.mubr.bf16.mxu0 %v322
  %919 = vmatmul.mubr.bf16.gmra.mrb[0].mxu0 %v321
  %v920 = vpop.f32.mrb[0].mxu0
  %v921 = vadd.f32 %v857, %v920
  %v922 = vpop.f32.mrb[0].mxu0
  %v923 = vpop.f32.mrb[0].mxu0
  %v924 = vadd.f32 %v860, %v923
  %v925 = vpop.f32.mrb[0].mxu0
  %926 = vmatprep.mubr.bf16.mxu0 %v331
  %927 = vmatmul.mubr.bf16.gmra.mrb[0].mxu0 %v330
  %v928 = vpop.f32.mrb[0].mxu0
  %v929 = vadd.f32 %v865, %v928
  %v930 = vpop.f32.mrb[0].mxu0
  %v931 = vpop.f32.mrb[0].mxu0
  %v932 = vadd.f32 %v868, %v931
  %v933 = vpop.f32.mrb[0].mxu0
  %934 = vmatprep.mubr.bf16.mxu0 %v340
  %935 = vmatmul.mubr.bf16.gmra.mrb[0].mxu0 %v339
  %v936 = vpop.f32.mrb[0].mxu0
  %v937 = vadd.f32 %v873, %v936
  %v938 = vpop.f32.mrb[0].mxu0
  %v939 = vpop.f32.mrb[0].mxu0
  %v940 = vpop.f32.mrb[0].mxu0
  %941 = vdwg.mxu0
  %942 = vmatprep.subr.bf16.mxu0 0
  %943 = vmatpush1.bf16.msra.mxu0 %v702
  %944 = vmatprep.subr.bf16.mxu0 0
  %945 = vmatpush1.bf16.msra.mxu0 %v703
  %946 = vmatprep.subr.bf16.mxu0 0
  %947 = vmatpush1.bf16.msra.mxu0 %v704
  %948 = vmatprep.subr.bf16.mxu0 0
  %949 = vmatpush1.bf16.msra.mxu0 %v705
  %950 = vmatprep.subr.bf16.mxu0 0
  %951 = vmatpush1.bf16.msra.mxu0 %v706
  %952 = vmatprep.subr.bf16.mxu0 0
  %953 = vmatpush1.bf16.msra.mxu0 %v707
  %954 = vmatprep.subr.bf16.mxu0 0
  %955 = vmatpush1.bf16.msra.mxu0 %v708
  %956 = vmatprep.subr.bf16.mxu0 0
  %957 = vmatpush1.bf16.msra.mxu0 %v709
  %958 = vmatprep.subr.bf16.mxu0 0
  %959 = vmatpush1.bf16.msra.mxu0 %v710
  %960 = vmatprep.subr.bf16.mxu0 0
  %961 = vmatpush1.bf16.msra.mxu0 %v711
  %962 = vmatprep.subr.bf16.mxu0 0
  %963 = vmatpush1.bf16.msra.mxu0 %v712
  %964 = vmatprep.subr.bf16.mxu0 0
  %965 = vmatpush1.bf16.msra.mxu0 %v713
  %966 = vmatprep.subr.bf16.mxu0 0
  %967 = vmatpush1.bf16.msra.mxu0 %v714
  %968 = vmatprep.subr.bf16.mxu0 0
  %969 = vmatpush1.bf16.msra.mxu0 %v715
  %970 = vmatprep.subr.bf16.mxu0 0
  %971 = vmatpush1.bf16.msra.mxu0 %v716
  %972 = vmatprep.subr.bf16.mxu0 0
  %973 = vmatpush1.bf16.msra.mxu0 %v717
  %974 = vmatprep.mubr.bf16.mxu0 %v315
  %975 = vmatmul.mubr.bf16.gmra.mrb[0].mxu0 %v314
  %v976 = vpop.f32.mrb[0].mxu0
  %v977 = vadd.f32 %v913, %v976
  %v978 = vpop.f32.mrb[0].mxu0
  %v979 = vpop.f32.mrb[0].mxu0
  %v980 = vadd.f32 %v916, %v979
  %v981 = vpop.f32.mrb[0].mxu0
  %982 = vmatprep.mubr.bf16.mxu0 %v324
  %983 = vmatmul.mubr.bf16.gmra.mrb[0].mxu0 %v323
  %v984 = vpop.f32.mrb[0].mxu0
  %v985 = vadd.f32 %v921, %v984
  %v986 = vpop.f32.mrb[0].mxu0
  %v987 = vpop.f32.mrb[0].mxu0
  %v988 = vadd.f32 %v924, %v987
  %v989 = vpop.f32.mrb[0].mxu0
  %990 = vmatprep.mubr.bf16.mxu0 %v333
  %991 = vmatmul.mubr.bf16.gmra.mrb[0].mxu0 %v332
  %v992 = vpop.f32.mrb[0].mxu0
  %v993 = vadd.f32 %v929, %v992
  %v994 = vpop.f32.mrb[0].mxu0
  %v995 = vpop.f32.mrb[0].mxu0
  %v996 = vadd.f32 %v932, %v995
  %v997 = vpop.f32.mrb[0].mxu0
  %998 = vmatprep.mubr.bf16.mxu0 %v342
  %999 = vmatmul.mubr.bf16.gmra.mrb[0].mxu0 %v341
  %v1000 = vpop.f32.mrb[0].mxu0
  %v1001 = vadd.f32 %v937, %v1000
  %v1002 = vpop.f32.mrb[0].mxu0
  %v1003 = vpop.f32.mrb[0].mxu0
  %v1004 = vpop.f32.mrb[0].mxu0
  %1005 = vdwg.mxu0
  %1006 = vmatprep.subr.bf16.mxu0 0
  %1007 = vmatpush1.bf16.msra.mxu0 %v718
  %1008 = vmatprep.subr.bf16.mxu0 0
  %1009 = vmatpush1.bf16.msra.mxu0 %v719
  %1010 = vmatprep.subr.bf16.mxu0 0
  %1011 = vmatpush1.bf16.msra.mxu0 %v720
  %1012 = vmatprep.subr.bf16.mxu0 0
  %1013 = vmatpush1.bf16.msra.mxu0 %v721
  %1014 = vmatprep.subr.bf16.mxu0 0
  %1015 = vmatpush1.bf16.msra.mxu0 %v722
  %1016 = vmatprep.subr.bf16.mxu0 0
  %1017 = vmatpush1.bf16.msra.mxu0 %v723
  %1018 = vmatprep.subr.bf16.mxu0 0
  %1019 = vmatpush1.bf16.msra.mxu0 %v724
  %1020 = vmatprep.subr.bf16.mxu0 0
  %1021 = vmatpush1.bf16.msra.mxu0 %v725
  %1022 = vmatprep.subr.bf16.mxu0 0
  %1023 = vmatpush1.bf16.msra.mxu0 %v726
  %1024 = vmatprep.subr.bf16.mxu0 0
  %1025 = vmatpush1.bf16.msra.mxu0 %v727
  %1026 = vmatprep.subr.bf16.mxu0 0
  %1027 = vmatpush1.bf16.msra.mxu0 %v728
  %1028 = vmatprep.subr.bf16.mxu0 0
  %1029 = vmatpush1.bf16.msra.mxu0 %v729
  %1030 = vmatprep.subr.bf16.mxu0 0
  %1031 = vmatpush1.bf16.msra.mxu0 %v730
  %1032 = vmatprep.subr.bf16.mxu0 0
  %1033 = vmatpush1.bf16.msra.mxu0 %v731
  %1034 = vmatprep.subr.bf16.mxu0 0
  %1035 = vmatpush1.bf16.msra.mxu0 %v732
  %1036 = vmatprep.subr.bf16.mxu0 0
  %1037 = vmatpush1.bf16.msra.mxu0 %v733
  %1038 = vmatprep.mubr.bf16.mxu0 %v317
  %1039 = vmatmul.mubr.bf16.gmra.mrb[0].mxu0 %v316
  %v1040 = vpop.f32.mrb[0].mxu0
  %v1041 = vadd.f32 %v977, %v1040
  %v1042 = vpop.f32.mrb[0].mxu0
  %v1043 = vpop.f32.mrb[0].mxu0
  %v1044 = vadd.f32 %v980, %v1043
  %v1045 = vpop.f32.mrb[0].mxu0
  %1046 = vmatprep.mubr.bf16.mxu0 %v326
  %1047 = vmatmul.mubr.bf16.gmra.mrb[0].mxu0 %v325
  %v1048 = vpop.f32.mrb[0].mxu0
  %v1049 = vadd.f32 %v985, %v1048
  %v1050 = vpop.f32.mrb[0].mxu0
  %v1051 = vpop.f32.mrb[0].mxu0
  %v1052 = vadd.f32 %v988, %v1051
  %v1053 = vpop.f32.mrb[0].mxu0
  %1054 = vmatprep.mubr.bf16.mxu0 %v335
  %1055 = vmatmul.mubr.bf16.gmra.mrb[0].mxu0 %v334
  %v1056 = vpop.f32.mrb[0].mxu0
  %v1057 = vadd.f32 %v993, %v1056
  %v1058 = vpop.f32.mrb[0].mxu0
  %v1059 = vpop.f32.mrb[0].mxu0
  %v1060 = vadd.f32 %v996, %v1059
  %v1061 = vpop.f32.mrb[0].mxu0
  %1062 = vmatprep.mubr.bf16.mxu0 %v344
  %1063 = vmatmul.mubr.bf16.gmra.mrb[0].mxu0 %v343
  %v1064 = vpop.f32.mrb[0].mxu0
  %v1065 = vadd.f32 %v1001, %v1064
  %v1066 = vpop.f32.mrb[0].mxu0
  %v1067 = vpop.f32.mrb[0].mxu0
  %v1068 = vpop.f32.mrb[0].mxu0
  %1069 = vdwg.mxu0
  %1070 = vmatprep.subr.bf16.mxu0 0
  %1071 = vmatpush1.bf16.msra.mxu0 %v734
  %1072 = vmatprep.subr.bf16.mxu0 0
  %1073 = vmatpush1.bf16.msra.mxu0 %v735
  %1074 = vmatprep.subr.bf16.mxu0 0
  %1075 = vmatpush1.bf16.msra.mxu0 %v736
  %1076 = vmatprep.subr.bf16.mxu0 0
  %1077 = vmatpush1.bf16.msra.mxu0 %v737
  %1078 = vmatprep.subr.bf16.mxu0 0
  %1079 = vmatpush1.bf16.msra.mxu0 %v738
  %1080 = vmatprep.subr.bf16.mxu0 0
  %1081 = vmatpush1.bf16.msra.mxu0 %v739
  %1082 = vmatprep.subr.bf16.mxu0 0
  %1083 = vmatpush1.bf16.msra.mxu0 %v740
  %1084 = vmatprep.subr.bf16.mxu0 0
  %1085 = vmatpush1.bf16.msra.mxu0 %v741
  %1086 = vmatprep.subr.bf16.mxu0 0
  %1087 = vmatpush1.bf16.msra.mxu0 0
  %1088 = vmatprep.subr.bf16.mxu0 0
  %1089 = vmatpush1.bf16.msra.mxu0 0
  %1090 = vmatprep.subr.bf16.mxu0 0
  %1091 = vmatpush1.bf16.msra.mxu0 0
  %1092 = vmatprep.subr.bf16.mxu0 0
  %1093 = vmatpush1.bf16.msra.mxu0 0
  %1094 = vmatprep.subr.bf16.mxu0 0
  %1095 = vmatpush1.bf16.msra.mxu0 0
  %1096 = vmatprep.subr.bf16.mxu0 0
  %1097 = vmatpush1.bf16.msra.mxu0 0
  %1098 = vmatprep.subr.bf16.mxu0 0
  %1099 = vmatpush1.bf16.msra.mxu0 0
  %1100 = vmatprep.subr.bf16.mxu0 0
  %1101 = vmatpush1.bf16.msra.mxu0 0
  %1102 = vmatprep.mubr.bf16.mxu0 0
  %1103 = vmatmul.mubr.bf16.gmra.mrb[0].mxu0 %v318
  %v1104 = vpop.f32.mrb[0].mxu0
  %v1105 = vadd.f32 %v1041, %v1104
  %v1106 = vpop.f32.mrb[0].mxu0
  %v1107 = vpop.f32.mrb[0].mxu0
  %v1108 = vadd.f32 %v1044, %v1107
  %v1109 = vpop.f32.mrb[0].mxu0
  %1110 = vmatprep.mubr.bf16.mxu0 0
  %1111 = vmatmul.mubr.bf16.gmra.mrb[0].mxu0 %v327
  %v1112 = vpop.f32.mrb[0].mxu0
  %v1113 = vadd.f32 %v1049, %v1112
  %v1114 = vpop.f32.mrb[0].mxu0
  %v1115 = vpop.f32.mrb[0].mxu0
  %v1116 = vadd.f32 %v1052, %v1115
  %v1117 = vpop.f32.mrb[0].mxu0
  %1118 = vmatprep.mubr.bf16.mxu0 0
  %1119 = vmatmul.mubr.bf16.gmra.mrb[0].mxu0 %v336
  %v1120 = vpop.f32.mrb[0].mxu0
  %v1121 = vadd.f32 %v1057, %v1120
  %v1122 = vpop.f32.mrb[0].mxu0
  %v1123 = vpop.f32.mrb[0].mxu0
  %v1124 = vadd.f32 %v1060, %v1123
  %v1125 = vpop.f32.mrb[0].mxu0
  %1126 = vmatprep.mubr.bf16.mxu0 0
  %1127 = vmatmul.mubr.bf16.gmra.mrb[0].mxu0 %v345
  %v1128 = vpop.f32.mrb[0].mxu0
  %v1129 = vadd.f32 %v1065, %v1128
  %v1130 = vpop.f32.mrb[0].mxu0
  %v1131 = vpop.f32.mrb[0].mxu0
  %v1132 = vpop.f32.mrb[0].mxu0
  %1133 = vdwg.mxu0
  %v1134 = vadd.f32 %v26, %v1105
  %v1135 = vadd.f32 %v27, %v1108
  %v1136 = vadd.f32 %v28, %v1113
  %v1137 = vadd.f32 %v29, %v1116
  %v1138 = vadd.f32 %v30, %v1121
  %v1139 = vadd.f32 %v31, %v1124
  %v1140 = vadd.f32 %v32, %v1129
  %1141 = vst [vmem:[#allocation2] sm:$0xff] %v1134
  %1142 = vst [vmem:[#allocation2 + $0x8] sm:$0xff] %v1135
  %1143 = vst [vmem:[#allocation2 + $0x10] sm:$0xff] %v1136
  %1144 = vst [vmem:[#allocation2 + $0x18] sm:$0xff] %v1137
  %1145 = vst [vmem:[#allocation2 + $0x20] sm:$0xff] %v1138
  %1146 = vst [vmem:[#allocation2 + $0x28] sm:$0xff] %v1139
  %1147 = vst [vmem:[#allocation2 + $0x30] sm:$0x3] %v1140
  // Predicated region
  $region18: #{discriminator_forward.10} parent=0 // pred_check
    %p1148 = pneg %p15
  $region19: #{discriminator_forward.10} parent=0 // pred_check_branch
    %1150 = sbr.rel (%p1148) target = $region21
  $region20: #{discriminator_forward.10} parent=0 // pred_region
    %v1151 = vld [vmem:[#allocation2] sm:$0xff]
    %v1152 = vld [vmem:[#allocation2 + $0x8] sm:$0xff]
    %v1153 = vld [vmem:[#allocation2 + $0x10] sm:$0xff]
    %v1154 = vld [vmem:[#allocation2 + $0x18] sm:$0xff]
    %v1155 = vld [vmem:[#allocation2 + $0x20] sm:$0xff]
    %v1156 = vld [vmem:[#allocation2 + $0x28] sm:$0xff]
    %v1157 = vld [vmem:[#allocation2 + $0x30] sm:$0x3]
    %v1158 = vld [vmem:[%s2] sm:$0x1]
    %v1160 = vlaneseq
    %v1161 = vshrl.u32 %v1160, 7
    %v1162 = vsub.s32 0, %v1161
    %v1163 = vrot.slane %v1158, %v1162
    %v1165 = vadd.f32 %v1151, %v1163
    %v1166 = vadd.f32 %v1152, %v1163
    %v1167 = vadd.f32 %v1153, %v1163
    %v1168 = vadd.f32 %v1154, %v1163
    %v1169 = vadd.f32 %v1155, %v1163
    %v1170 = vadd.f32 %v1156, %v1163
    %v1171 = vadd.f32 %v1157, %v1163
    %vm1172 = vcmp.ge.f32.partialorder %v1165, 0.0
    %vm1173 = vcmp.ge.f32.partialorder %v1166, 0.0
    %vm1174 = vcmp.ge.f32.partialorder %v1167, 0.0
    %vm1175 = vcmp.ge.f32.partialorder %v1168, 0.0
    %vm1176 = vcmp.ge.f32.partialorder %v1169, 0.0
    %vm1177 = vcmp.ge.f32.partialorder %v1170, 0.0
    %vm1178 = vcmp.ge.f32.partialorder %v1171, 0.0
    %v1179 = vmul.f32 %v1165, 0.01
    %v1180 = vmul.f32 %v1166, 0.01
    %v1181 = vmul.f32 %v1167, 0.01
    %v1182 = vmul.f32 %v1168, 0.01
    %v1183 = vmul.f32 %v1169, 0.01
    %v1184 = vmul.f32 %v1170, 0.01
    %v1185 = vmul.f32 %v1171, 0.01
    %v1186 = vsel %vm1172, %v1165, %v1179
    %v1187 = vsel %vm1173, %v1166, %v1180
    %v1188 = vsel %vm1174, %v1167, %v1181
    %v1189 = vsel %vm1175, %v1168, %v1182
    %v1190 = vsel %vm1176, %v1169, %v1183
    %v1191 = vsel %vm1177, %v1170, %v1184
    %v1192 = vsel %vm1178, %v1171, %v1185
    %v1193 = vpack.c.bf16 %v1187, %v1186
    %v1194 = vpack.c.bf16 %v1189, %v1188
    %v1195 = vpack.c.bf16 %v1191, %v1190
    %v1196 = vpack.c.bf16 %v1192, %v1192
    %v1201 = vunpack.c.l.b16 %v1193
    %v1202 = vunpack.c.h.b16 %v1193
    %v1203 = vunpack.c.l.b16 %v1194
    %v1204 = vunpack.c.h.b16 %v1194
    %v1205 = vunpack.c.l.b16 %v1195
    %v1206 = vunpack.c.h.b16 %v1195
    %v1207 = vunpack.c.l.b16 %v1196
    %v1208 = vpack.c.b16 %v1201, %v1201
    %v1209 = vpack.c.b16 %v1202, %v1202
    %v1210 = vpack.c.b16 %v1203, %v1203
    %v1211 = vpack.c.b16 %v1204, %v1204
    %v1212 = vpack.c.b16 %v1205, %v1205
    %v1213 = vpack.c.b16 %v1206, %v1206
    %v1214 = vpack.c.b16 %v1207, %v1207
    %1222 = vst [vmem:[%s3] sm:$0xf] %v1208
    %1223 = vst [vmem:[%s3 + $0x4] sm:$0xf] %v1209
    %1224 = vst [vmem:[%s3 + $0x8] sm:$0xf] %v1210
    %1225 = vst [vmem:[%s3 + $0xc] sm:$0xf] %v1211
    %1226 = vst [vmem:[%s3 + $0x10] sm:$0xf] %v1212
    %1227 = vst [vmem:[%s3 + $0x14] sm:$0xf] %v1213
    %1228 = vst [vmem:[%s3 + $0x18] sm:$0x1] %v1214
  $region21: #{discriminator_forward.10} parent=0 // pred_fallthru
    _
  // Predicated region
  $region22: #{discriminator_forward.10} parent=0 // pred_check
    _
  $region23: #{discriminator_forward.10} parent=0 // pred_check_branch
    %1230 = sbr.rel (0) target = $region25
  $region24: #{discriminator_forward.10} parent=0 // pred_region
    _
  $region25: #{discriminator_forward.10} parent=0 // pred_fallthru
    _
  // Predicated region
  $region26: #{discriminator_forward.10} parent=0 // pred_check
    _
  $region27: #{discriminator_forward.10} parent=0 // pred_check_branch
    %1232 = sbr.rel (0) target = $region29
  $region28: #{discriminator_forward.10} parent=0 // pred_region
    _
  $region29: #{discriminator_forward.10} parent=0 // pred_fallthru
    _

// kernel: discriminator_forward.13
$region0: #{discriminator_forward.13}
  #allocation0 [shape = 'u32[]', space=smem, size = 0x4, offset = 0x4, fixed_abs, tag = 'smem constant byte address 0x4 - core index']
  #allocation1 [shape = 'u32[144,128]{1,0:T(1,128)}', space=vmem, size = 0x12000, scoped, tag = 'internal scratch']
  #allocation2 [shape = 'f32[1,1]{1,0:T(1,128)S(1)}', space=vmem, size = 0x200, scoped, tag = 'scoped memory for discriminator_forward.13']
  %s0 = inlined_call_operand.vmem [shape: bf16[2,4], index: 0, kind: input, shape index: {}]
  %s1 = inlined_call_operand.vmem [shape: f32[4,64], index: 1, kind: input, shape index: {}]
  %s2 = inlined_call_operand.vmem [shape: f32[1,64], index: 2, kind: input, shape index: {}]
  %s3 = inlined_call_operand.vmem [shape: f32[1,64], index: 3, kind: input, shape index: {}]
  %s4 = inlined_call_operand.<no memory space> [shape: f32[1,1], index: 4, kind: input, shape index: {}]
  %s5 = inlined_call_operand.vmem [shape: f32[2,1], index: 5, kind: output, shape index: {}]
  %s6 = sld [smem:[#allocation0]]
  $region30: #{discriminator_forward.13} parent=0
    _
  %s8 = ssub.s32 1, %s6
  %s9 = scalar_select 0, %s8, %s6
  %v10 = vstv %s4
  %11 = vst [vmem:[#allocation2] sm:$0x1] %v10
  // Predicated region
  $region2: #{discriminator_forward.13} parent=0 // pred_check
    _
  $region3: #{discriminator_forward.13} parent=0 // pred_check_branch
    %13 = sbr.rel (0) target = $region5
  $region4: #{discriminator_forward.13} parent=0 // pred_region
    _
  $region5: #{discriminator_forward.13} parent=0 // pred_fallthru
    _
  // Predicated region
  $region6: #{discriminator_forward.13} parent=0 // pred_check
    _
  $region7: #{discriminator_forward.13} parent=0 // pred_check_branch
    %15 = sbr.rel (0) target = $region9
  $region8: #{discriminator_forward.13} parent=0 // pred_region
    _
  $region9: #{discriminator_forward.13} parent=0 // pred_fallthru
    _
  // Predicated region
  $region10: #{discriminator_forward.13} parent=0 // pred_check
    _
  $region11: #{discriminator_forward.13} parent=0 // pred_check_branch
    %17 = sbr.rel (0) target = $region13
  $region12: #{discriminator_forward.13} parent=0 // pred_region
    _
  $region13: #{discriminator_forward.13} parent=0 // pred_fallthru
    _
  // Predicated region
  $region14: #{discriminator_forward.13} parent=0 // pred_check
    _
  $region15: #{discriminator_forward.13} parent=0 // pred_check_branch
    %19 = sbr.rel (0) target = $region17
  $region16: #{discriminator_forward.13} parent=0 // pred_region
    _
  $region17: #{discriminator_forward.13} parent=0 // pred_fallthru
    _
  // Predicated region
  $region18: #{discriminator_forward.13} parent=0 // pred_check
    _
  $region19: #{discriminator_forward.13} parent=0 // pred_check_branch
    %21 = sbr.rel (0) target = $region21
  $region20: #{discriminator_forward.13} parent=0 // pred_region
    _
  $region21: #{discriminator_forward.13} parent=0 // pred_fallthru
    _
  %v22 = vld [vmem:[%s0] sm:$0x1]
  %v23 = vunpack.c.l.bf16 %v22
  %v24 = vld [vmem:[%s1] sm:$0xf]
  %26 = vset.pattern.permute.xlu0 0
  %27 = vperm.xlu0 %26, %v23
  %v28 = vpop.permute.xlu0 %27
  %v31 = vunpack.c.l.s4 269488144
  %v32 = vunpack.c.0.s8 %v31
  %v33 = vlaneseq
  %v34 = vshrl.u32 %v33, 7
  %v35 = vsub.s32 %v32, %v34
  %v36 = vrot.slane %v28, %v35
  %v37 = vlaneseq
  %v38 = vshrl.u32 %v37, 7
  %v39 = vsub.s32 0, %v38
  %v40 = vrot.slane %v24, %v39
  %v41 = vmul.f32 %v36, %v40
  %42 = vset.pattern.permute.xlu0 1
  %43 = vperm.xlu0 %42, %v23
  %v44 = vpop.permute.xlu0 %43
  %v47 = vunpack.c.l.s4 269488144
  %v48 = vunpack.c.0.s8 %v47
  %v49 = vlaneseq
  %v50 = vshrl.u32 %v49, 7
  %v51 = vsub.s32 %v48, %v50
  %v52 = vrot.slane %v44, %v51
  %v53 = vlaneseq
  %v54 = vshrl.u32 %v53, 7
  %v55 = vsub.s32 1, %v54
  %v56 = vrot.slane %v24, %v55
  %v57 = vmul.f32 %v52, %v56
  %v58 = vadd.f32 %v41, %v57
  %59 = vset.pattern.permute.xlu0 2
  %60 = vperm.xlu0 %59, %v23
  %v61 = vpop.permute.xlu0 %60
  %v64 = vunpack.c.l.s4 269488144
  %v65 = vunpack.c.0.s8 %v64
  %v66 = vlaneseq
  %v67 = vshrl.u32 %v66, 7
  %v68 = vsub.s32 %v65, %v67
  %v69 = vrot.slane %v61, %v68
  %v70 = vlaneseq
  %v71 = vshrl.u32 %v70, 7
  %v72 = vsub.s32 2, %v71
  %v73 = vrot.slane %v24, %v72
  %v74 = vmul.f32 %v69, %v73
  %v75 = vadd.f32 %v58, %v74
  %76 = vset.pattern.permute.xlu0 3
  %77 = vperm.xlu0 %76, %v23
  %v78 = vpop.permute.xlu0 %77
  %v81 = vunpack.c.l.s4 269488144
  %v82 = vunpack.c.0.s8 %v81
  %v83 = vlaneseq
  %v84 = vshrl.u32 %v83, 7
  %v85 = vsub.s32 %v82, %v84
  %v86 = vrot.slane %v78, %v85
  %v87 = vlaneseq
  %v88 = vshrl.u32 %v87, 7
  %v89 = vsub.s32 3, %v88
  %v90 = vrot.slane %v24, %v89
  %v91 = vmul.f32 %v86, %v90
  %v92 = vadd.f32 %v75, %v91
  %v93 = vld [vmem:[%s2] sm:$0x1]
  %v95 = vlaneseq
  %v96 = vshrl.u32 %v95, 7
  %v97 = vsub.s32 0, %v96
  %v98 = vrot.slane %v93, %v97
  %v100 = vadd.f32 %v92, %v98
  %vm101 = vcmp.ge.f32.partialorder %v100, 0.0
  %v102 = vmul.f32 %v100, 0.2
  %v103 = vsel %vm101, %v100, %v102
  %v104 = vld [vmem:[%s3] sm:$0x1]
  %v106 = vlaneseq
  %v107 = vshrl.u32 %v106, 7
  %v108 = vsub.s32 0, %v107
  %v109 = vrot.slane %v104, %v108
  %v111 = vmul.f32 %v103, %v109
  %vm112 = vcmask 517120
  %v113 = vsel %vm112, %v111, 0.0
  %114 = vadd.xlane.f32.xlu0 %v113
  %v115 = vpop.xlane.xlu0 %114
  %v116 = vld [vmem:[#allocation2] sm:$0x1]
  %v118 = vlaneseq
  %v119 = vshrl.u32 %v118, 7
  %v120 = vsub.s32 0, %v119
  %v121 = vrot.slane %v116, %v120
  %v123 = vadd.f32 %v115, %v121
  %vm124 = vcmask 1024
  %125 = vst.msk [vmem:[%s5] sm:$0x3] %vm124, %v123
  // Predicated region
  $region22: #{discriminator_forward.13} parent=0 // pred_check
    _
  $region23: #{discriminator_forward.13} parent=0 // pred_check_branch
    %127 = sbr.rel (0) target = $region25
  $region24: #{discriminator_forward.13} parent=0 // pred_region
    _
  $region25: #{discriminator_forward.13} parent=0 // pred_fallthru
    _
  // Predicated region
  $region26: #{discriminator_forward.13} parent=0 // pred_check
    _
  $region27: #{discriminator_forward.13} parent=0 // pred_check_branch
    %129 = sbr.rel (0) target = $region29
  $region28: #{discriminator_forward.13} parent=0 // pred_region
    _
  $region29: #{discriminator_forward.13} parent=0 // pred_fallthru
    _

// kernel: discriminator_forward.11
$region0: #{discriminator_forward.11}
  #allocation0 [shape = 'u32[]', space=smem, size = 0x4, offset = 0x4, fixed_abs, tag = 'smem constant byte address 0x4 - core index']
  #allocation1 [shape = 'u32[144,128]{1,0:T(1,128)}', space=vmem, size = 0x12000, scoped, tag = 'internal scratch']
  #allocation2 [shape = 'f32[18,256]{1,0:T(8,128)}', space=vmem, size = 0x6000, scoped, tag = 'scratch operand']
  %s0 = inlined_call_operand.vmem [shape: bf16[18,1152], index: 0, kind: input, shape index: {}]
  %s1 = inlined_call_operand.vmem [shape: bf16[1152,256], index: 1, kind: input, shape index: {}]
  %s2 = inlined_call_operand.vmem [shape: f32[1,256], index: 2, kind: input, shape index: {}]
  %s3 = inlined_call_operand.vmem [shape: bf16[18,256], index: 3, kind: output, shape index: {}]
  %s4 = sld [smem:[#allocation0]]
  $region30: #{discriminator_forward.11} parent=0
    _
  %s6 = ssub.s32 1, %s4
  %s7 = scalar_select 0, %s6, %s4
  // Predicated region
  $region2: #{discriminator_forward.11} parent=0 // pred_check
    _
  $region3: #{discriminator_forward.11} parent=0 // pred_check_branch
    %9 = sbr.rel (0) target = $region5
  $region4: #{discriminator_forward.11} parent=0 // pred_region
    _
  $region5: #{discriminator_forward.11} parent=0 // pred_fallthru
    _
  // Predicated region
  $region6: #{discriminator_forward.11} parent=0 // pred_check
    _
  $region7: #{discriminator_forward.11} parent=0 // pred_check_branch
    %11 = sbr.rel (0) target = $region9
  $region8: #{discriminator_forward.11} parent=0 // pred_region
    _
  $region9: #{discriminator_forward.11} parent=0 // pred_fallthru
    _
  // Predicated region
  $region10: #{discriminator_forward.11} parent=0 // pred_check
    _
  $region11: #{discriminator_forward.11} parent=0 // pred_check_branch
    %13 = sbr.rel (0) target = $region13
  $region12: #{discriminator_forward.11} parent=0 // pred_region
    _
  $region13: #{discriminator_forward.11} parent=0 // pred_fallthru
    _
  %p15 = scmp.eq.s32.totalorder 0, 0
  // Predicated region
  $region14: #{discriminator_forward.11} parent=0 // pred_check
    %p16 = pneg %p15
  $region15: #{discriminator_forward.11} parent=0 // pred_check_branch
    %18 = sbr.rel (%p16) target = $region17
  $region16: #{discriminator_forward.11} parent=0 // pred_region
    %19 = vst [vmem:[#allocation2] sm:$0xff] 0.0
    %20 = vst [vmem:[#allocation2 + $0x8] sm:$0xff] 0.0
    %21 = vst [vmem:[#allocation2 + $0x10] sm:$0xff] 0.0
    %22 = vst [vmem:[#allocation2 + $0x18] sm:$0xff] 0.0
    %23 = vst [vmem:[#allocation2 + $0x20] sm:$0x3] 0.0
    %24 = vst [vmem:[#allocation2 + $0x28] sm:$0x3] 0.0
  $region17: #{discriminator_forward.11} parent=0 // pred_fallthru
    _
  %v25 = vld [vmem:[#allocation2] sm:$0xff]
  %v26 = vld [vmem:[#allocation2 + $0x8] sm:$0xff]
  %v27 = vld [vmem:[#allocation2 + $0x10] sm:$0xff]
  %v28 = vld [vmem:[#allocation2 + $0x18] sm:$0xff]
  %v29 = vld [vmem:[#allocation2 + $0x20] sm:$0x3]
  %v30 = vld [vmem:[#allocation2 + $0x28] sm:$0x3]
  %v31 = vld [vmem:[%s0] sm:$0xff]
  %v32 = vld [vmem:[%s0 + $0x8] sm:$0xff]
  %v33 = vld [vmem:[%s0 + $0x10] sm:$0xff]
  %v34 = vld [vmem:[%s0 + $0x18] sm:$0xff]
  %v35 = vld [vmem:[%s0 + $0x20] sm:$0xf]
  %v36 = vld [vmem:[%s0 + $0x24] sm:$0xff]
  %v37 = vld [vmem:[%s0 + $0x2c] sm:$0xff]
  %v38 = vld [vmem:[%s0 + $0x34] sm:$0xff]
  %v39 = vld [vmem:[%s0 + $0x3c] sm:$0xff]
  %v40 = vld [vmem:[%s0 + $0x44] sm:$0xf]
  %v41 = vld [vmem:[%s0 + $0x48] sm:$0x11]
  %v42 = vld [vmem:[%s0 + $0x50] sm:$0x11]
  %v43 = vld [vmem:[%s0 + $0x58] sm:$0x11]
  %v44 = vld [vmem:[%s0 + $0x60] sm:$0x11]
  %v45 = vld [vmem:[%s0 + $0x68] sm:$0x1]
  %v46 = vld [vmem:[%s1] sm:$0xff]
  %v47 = vld [vmem:[%s1 + $0x8] sm:$0xff]
  %v48 = vld [vmem:[%s1 + $0x10] sm:$0xff]
  %v49 = vld [vmem:[%s1 + $0x18] sm:$0xff]
  %v50 = vld [vmem:[%s1 + $0x20] sm:$0xff]
  %v51 = vld [vmem:[%s1 + $0x28] sm:$0xff]
  %v52 = vld [vmem:[%s1 + $0x30] sm:$0xff]
  %v53 = vld [vmem:[%s1 + $0x38] sm:$0xff]
  %v54 = vld [vmem:[%s1 + $0x40] sm:$0xff]
  %v55 = vld [vmem:[%s1 + $0x48] sm:$0xff]
  %v56 = vld [vmem:[%s1 + $0x50] sm:$0xff]
  %v57 = vld [vmem:[%s1 + $0x58] sm:$0xff]
  %v58 = vld [vmem:[%s1 + $0x60] sm:$0xff]
  %v59 = vld [vmem:[%s1 + $0x68] sm:$0xff]
  %v60 = vld [vmem:[%s1 + $0x70] sm:$0xff]
  %v61 = vld [vmem:[%s1 + $0x78] sm:$0xff]
  %v62 = vld [vmem:[%s1 + $0x80] sm:$0xff]
  %v63 = vld [vmem:[%s1 + $0x88] sm:$0xff]
  %v64 = vld [vmem:[%s1 + $0x90] sm:$0xff]
  %v65 = vld [vmem:[%s1 + $0x98] sm:$0xff]
  %v66 = vld [vmem:[%s1 + $0xa0] sm:$0xff]
  %v67 = vld [vmem:[%s1 + $0xa8] sm:$0xff]
  %v68 = vld [vmem:[%s1 + $0xb0] sm:$0xff]
  %v69 = vld [vmem:[%s1 + $0xb8] sm:$0xff]
  %v70 = vld [vmem:[%s1 + $0xc0] sm:$0xff]
  %v71 = vld [vmem:[%s1 + $0xc8] sm:$0xff]
  %v72 = vld [vmem:[%s1 + $0xd0] sm:$0xff]
  %v73 = vld [vmem:[%s1 + $0xd8] sm:$0xff]
  %v74 = vld [vmem:[%s1 + $0xe0] sm:$0xff]
  %v75 = vld [vmem:[%s1 + $0xe8] sm:$0xff]
  %v76 = vld [vmem:[%s1 + $0xf0] sm:$0xff]
  %v77 = vld [vmem:[%s1 + $0xf8] sm:$0xff]
  %v78 = vld [vmem:[%s1 + $0x100] sm:$0xff]
  %v79 = vld [vmem:[%s1 + $0x108] sm:$0xff]
  %v80 = vld [vmem:[%s1 + $0x110] sm:$0xff]
  %v81 = vld [vmem:[%s1 + $0x118] sm:$0xff]
  %v82 = vld [vmem:[%s1 + $0x120] sm:$0xff]
  %v83 = vld [vmem:[%s1 + $0x128] sm:$0xff]
  %v84 = vld [vmem:[%s1 + $0x130] sm:$0xff]
  %v85 = vld [vmem:[%s1 + $0x138] sm:$0xff]
  %v86 = vld [vmem:[%s1 + $0x140] sm:$0xff]
  %v87 = vld [vmem:[%s1 + $0x148] sm:$0xff]
  %v88 = vld [vmem:[%s1 + $0x150] sm:$0xff]
  %v89 = vld [vmem:[%s1 + $0x158] sm:$0xff]
  %v90 = vld [vmem:[%s1 + $0x160] sm:$0xff]
  %v91 = vld [vmem:[%s1 + $0x168] sm:$0xff]
  %v92 = vld [vmem:[%s1 + $0x170] sm:$0xff]
  %v93 = vld [vmem:[%s1 + $0x178] sm:$0xff]
  %v94 = vld [vmem:[%s1 + $0x180] sm:$0xff]
  %v95 = vld [vmem:[%s1 + $0x188] sm:$0xff]
  %v96 = vld [vmem:[%s1 + $0x190] sm:$0xff]
  %v97 = vld [vmem:[%s1 + $0x198] sm:$0xff]
  %v98 = vld [vmem:[%s1 + $0x1a0] sm:$0xff]
  %v99 = vld [vmem:[%s1 + $0x1a8] sm:$0xff]
  %v100 = vld [vmem:[%s1 + $0x1b0] sm:$0xff]
  %v101 = vld [vmem:[%s1 + $0x1b8] sm:$0xff]
  %v102 = vld [vmem:[%s1 + $0x1c0] sm:$0xff]
  %v103 = vld [vmem:[%s1 + $0x1c8] sm:$0xff]
  %v104 = vld [vmem:[%s1 + $0x1d0] sm:$0xff]
  %v105 = vld [vmem:[%s1 + $0x1d8] sm:$0xff]
  %v106 = vld [vmem:[%s1 + $0x1e0] sm:$0xff]
  %v107 = vld [vmem:[%s1 + $0x1e8] sm:$0xff]
  %v108 = vld [vmem:[%s1 + $0x1f0] sm:$0xff]
  %v109 = vld [vmem:[%s1 + $0x1f8] sm:$0xff]
  %v110 = vld [vmem:[%s1 + $0x200] sm:$0xff]
  %v111 = vld [vmem:[%s1 + $0x208] sm:$0xff]
  %v112 = vld [vmem:[%s1 + $0x210] sm:$0xff]
  %v113 = vld [vmem:[%s1 + $0x218] sm:$0xff]
  %v114 = vld [vmem:[%s1 + $0x220] sm:$0xff]
  %v115 = vld [vmem:[%s1 + $0x228] sm:$0xff]
  %v116 = vld [vmem:[%s1 + $0x230] sm:$0xff]
  %v117 = vld [vmem:[%s1 + $0x238] sm:$0xff]
  %v118 = vld [vmem:[%s1 + $0x240] sm:$0xff]
  %v119 = vld [vmem:[%s1 + $0x248] sm:$0xff]
  %v120 = vld [vmem:[%s1 + $0x250] sm:$0xff]
  %v121 = vld [vmem:[%s1 + $0x258] sm:$0xff]
  %v122 = vld [vmem:[%s1 + $0x260] sm:$0xff]
  %v123 = vld [vmem:[%s1 + $0x268] sm:$0xff]
  %v124 = vld [vmem:[%s1 + $0x270] sm:$0xff]
  %v125 = vld [vmem:[%s1 + $0x278] sm:$0xff]
  %v126 = vld [vmem:[%s1 + $0x280] sm:$0xff]
  %v127 = vld [vmem:[%s1 + $0x288] sm:$0xff]
  %v128 = vld [vmem:[%s1 + $0x290] sm:$0xff]
  %v129 = vld [vmem:[%s1 + $0x298] sm:$0xff]
  %v130 = vld [vmem:[%s1 + $0x2a0] sm:$0xff]
  %v131 = vld [vmem:[%s1 + $0x2a8] sm:$0xff]
  %v132 = vld [vmem:[%s1 + $0x2b0] sm:$0xff]
  %v133 = vld [vmem:[%s1 + $0x2b8] sm:$0xff]
  %v134 = vld [vmem:[%s1 + $0x2c0] sm:$0xff]
  %v135 = vld [vmem:[%s1 + $0x2c8] sm:$0xff]
  %v136 = vld [vmem:[%s1 + $0x2d0] sm:$0xff]
  %v137 = vld [vmem:[%s1 + $0x2d8] sm:$0xff]
  %v138 = vld [vmem:[%s1 + $0x2e0] sm:$0xff]
  %v139 = vld [vmem:[%s1 + $0x2e8] sm:$0xff]
  %v140 = vld [vmem:[%s1 + $0x2f0] sm:$0xff]
  %v141 = vld [vmem:[%s1 + $0x2f8] sm:$0xff]
  %v142 = vld [vmem:[%s1 + $0x300] sm:$0xff]
  %v143 = vld [vmem:[%s1 + $0x308] sm:$0xff]
  %v144 = vld [vmem:[%s1 + $0x310] sm:$0xff]
  %v145 = vld [vmem:[%s1 + $0x318] sm:$0xff]
  %v146 = vld [vmem:[%s1 + $0x320] sm:$0xff]
  %v147 = vld [vmem:[%s1 + $0x328] sm:$0xff]
  %v148 = vld [vmem:[%s1 + $0x330] sm:$0xff]
  %v149 = vld [vmem:[%s1 + $0x338] sm:$0xff]
  %v150 = vld [vmem:[%s1 + $0x340] sm:$0xff]
  %v151 = vld [vmem:[%s1 + $0x348] sm:$0xff]
  %v152 = vld [vmem:[%s1 + $0x350] sm:$0xff]
  %v153 = vld [vmem:[%s1 + $0x358] sm:$0xff]
  %v154 = vld [vmem:[%s1 + $0x360] sm:$0xff]
  %v155 = vld [vmem:[%s1 + $0x368] sm:$0xff]
  %v156 = vld [vmem:[%s1 + $0x370] sm:$0xff]
  %v157 = vld [vmem:[%s1 + $0x378] sm:$0xff]
  %v158 = vld [vmem:[%s1 + $0x380] sm:$0xff]
  %v159 = vld [vmem:[%s1 + $0x388] sm:$0xff]
  %v160 = vld [vmem:[%s1 + $0x390] sm:$0xff]
  %v161 = vld [vmem:[%s1 + $0x398] sm:$0xff]
  %v162 = vld [vmem:[%s1 + $0x3a0] sm:$0xff]
  %v163 = vld [vmem:[%s1 + $0x3a8] sm:$0xff]
  %v164 = vld [vmem:[%s1 + $0x3b0] sm:$0xff]
  %v165 = vld [vmem:[%s1 + $0x3b8] sm:$0xff]
  %v166 = vld [vmem:[%s1 + $0x3c0] sm:$0xff]
  %v167 = vld [vmem:[%s1 + $0x3c8] sm:$0xff]
  %v168 = vld [vmem:[%s1 + $0x3d0] sm:$0xff]
  %v169 = vld [vmem:[%s1 + $0x3d8] sm:$0xff]
  %v170 = vld [vmem:[%s1 + $0x3e0] sm:$0xff]
  %v171 = vld [vmem:[%s1 + $0x3e8] sm:$0xff]
  %v172 = vld [vmem:[%s1 + $0x3f0] sm:$0xff]
  %v173 = vld [vmem:[%s1 + $0x3f8] sm:$0xff]
  %v174 = vld [vmem:[%s1 + $0x400] sm:$0xff]
  %v175 = vld [vmem:[%s1 + $0x408] sm:$0xff]
  %v176 = vld [vmem:[%s1 + $0x410] sm:$0xff]
  %v177 = vld [vmem:[%s1 + $0x418] sm:$0xff]
  %v178 = vld [vmem:[%s1 + $0x420] sm:$0xff]
  %v179 = vld [vmem:[%s1 + $0x428] sm:$0xff]
  %v180 = vld [vmem:[%s1 + $0x430] sm:$0xff]
  %v181 = vld [vmem:[%s1 + $0x438] sm:$0xff]
  %v182 = vld [vmem:[%s1 + $0x440] sm:$0xff]
  %v183 = vld [vmem:[%s1 + $0x448] sm:$0xff]
  %v184 = vld [vmem:[%s1 + $0x450] sm:$0xff]
  %v185 = vld [vmem:[%s1 + $0x458] sm:$0xff]
  %v186 = vld [vmem:[%s1 + $0x460] sm:$0xff]
  %v187 = vld [vmem:[%s1 + $0x468] sm:$0xff]
  %v188 = vld [vmem:[%s1 + $0x470] sm:$0xff]
  %v189 = vld [vmem:[%s1 + $0x478] sm:$0xff]
  %v205 = vunpack.c.l.b16 %v31
  %v206 = vunpack.c.h.b16 %v31
  %v207 = vunpack.c.l.b16 %v32
  %v208 = vunpack.c.h.b16 %v32
  %v209 = vunpack.c.l.b16 %v33
  %v210 = vunpack.c.h.b16 %v33
  %v211 = vunpack.c.l.b16 %v34
  %v212 = vunpack.c.h.b16 %v34
  %v213 = vunpack.c.l.b16 %v35
  %v214 = vunpack.c.l.b16 %v36
  %v215 = vunpack.c.h.b16 %v36
  %v216 = vunpack.c.l.b16 %v37
  %v217 = vunpack.c.h.b16 %v37
  %v218 = vunpack.c.l.b16 %v38
  %v219 = vunpack.c.h.b16 %v38
  %v220 = vunpack.c.l.b16 %v39
  %v221 = vunpack.c.h.b16 %v39
  %v222 = vunpack.c.l.b16 %v40
  %v223 = vunpack.c.l.b16 %v41
  %v224 = vunpack.c.h.b16 %v41
  %v225 = vunpack.c.l.b16 %v42
  %v226 = vunpack.c.h.b16 %v42
  %v227 = vunpack.c.l.b16 %v43
  %v228 = vunpack.c.h.b16 %v43
  %v229 = vunpack.c.l.b16 %v44
  %v230 = vunpack.c.h.b16 %v44
  %v231 = vunpack.c.l.b16 %v45
  %v232 = vpack.c.b16 %v214, %v205
  %v233 = vpack.c.b16 %v215, %v206
  %v234 = vpack.c.b16 %v216, %v207
  %v235 = vpack.c.b16 %v217, %v208
  %v236 = vpack.c.b16 %v218, %v209
  %v237 = vpack.c.b16 %v219, %v210
  %v238 = vpack.c.b16 %v220, %v211
  %v239 = vpack.c.b16 %v221, %v212
  %v240 = vpack.c.b16 %v222, %v213
  %v241 = vpack.c.b16 %v223, %v223
  %v242 = vpack.c.b16 %v224, %v224
  %v243 = vpack.c.b16 %v225, %v225
  %v244 = vpack.c.b16 %v226, %v226
  %v245 = vpack.c.b16 %v227, %v227
  %v246 = vpack.c.b16 %v228, %v228
  %v247 = vpack.c.b16 %v229, %v229
  %v248 = vpack.c.b16 %v230, %v230
  %v249 = vpack.c.b16 %v231, %v231
  %v412 = vunpack.c.l.b16 %v46
  %v413 = vunpack.c.h.b16 %v46
  %v414 = vunpack.c.l.b16 %v47
  %v415 = vunpack.c.h.b16 %v47
  %v416 = vunpack.c.l.b16 %v48
  %v417 = vunpack.c.h.b16 %v48
  %v418 = vunpack.c.l.b16 %v49
  %v419 = vunpack.c.h.b16 %v49
  %v420 = vunpack.c.l.b16 %v50
  %v421 = vunpack.c.h.b16 %v50
  %v422 = vunpack.c.l.b16 %v51
  %v423 = vunpack.c.h.b16 %v51
  %v424 = vunpack.c.l.b16 %v52
  %v425 = vunpack.c.h.b16 %v52
  %v426 = vunpack.c.l.b16 %v53
  %v427 = vunpack.c.h.b16 %v53
  %v428 = vunpack.c.l.b16 %v54
  %v429 = vunpack.c.h.b16 %v54
  %v430 = vunpack.c.l.b16 %v55
  %v431 = vunpack.c.h.b16 %v55
  %v432 = vunpack.c.l.b16 %v56
  %v433 = vunpack.c.h.b16 %v56
  %v434 = vunpack.c.l.b16 %v57
  %v435 = vunpack.c.h.b16 %v57
  %v436 = vunpack.c.l.b16 %v58
  %v437 = vunpack.c.h.b16 %v58
  %v438 = vunpack.c.l.b16 %v59
  %v439 = vunpack.c.h.b16 %v59
  %v440 = vunpack.c.l.b16 %v60
  %v441 = vunpack.c.h.b16 %v60
  %v442 = vunpack.c.l.b16 %v61
  %v443 = vunpack.c.h.b16 %v61
  %v444 = vunpack.c.l.b16 %v62
  %v445 = vunpack.c.h.b16 %v62
  %v446 = vunpack.c.l.b16 %v63
  %v447 = vunpack.c.h.b16 %v63
  %v448 = vunpack.c.l.b16 %v64
  %v449 = vunpack.c.h.b16 %v64
  %v450 = vunpack.c.l.b16 %v65
  %v451 = vunpack.c.h.b16 %v65
  %v452 = vunpack.c.l.b16 %v66
  %v453 = vunpack.c.h.b16 %v66
  %v454 = vunpack.c.l.b16 %v67
  %v455 = vunpack.c.h.b16 %v67
  %v456 = vunpack.c.l.b16 %v68
  %v457 = vunpack.c.h.b16 %v68
  %v458 = vunpack.c.l.b16 %v69
  %v459 = vunpack.c.h.b16 %v69
  %v460 = vunpack.c.l.b16 %v70
  %v461 = vunpack.c.h.b16 %v70
  %v462 = vunpack.c.l.b16 %v71
  %v463 = vunpack.c.h.b16 %v71
  %v464 = vunpack.c.l.b16 %v72
  %v465 = vunpack.c.h.b16 %v72
  %v466 = vunpack.c.l.b16 %v73
  %v467 = vunpack.c.h.b16 %v73
  %v468 = vunpack.c.l.b16 %v74
  %v469 = vunpack.c.h.b16 %v74
  %v470 = vunpack.c.l.b16 %v75
  %v471 = vunpack.c.h.b16 %v75
  %v472 = vunpack.c.l.b16 %v76
  %v473 = vunpack.c.h.b16 %v76
  %v474 = vunpack.c.l.b16 %v77
  %v475 = vunpack.c.h.b16 %v77
  %v476 = vunpack.c.l.b16 %v78
  %v477 = vunpack.c.h.b16 %v78
  %v478 = vunpack.c.l.b16 %v79
  %v479 = vunpack.c.h.b16 %v79
  %v480 = vunpack.c.l.b16 %v80
  %v481 = vunpack.c.h.b16 %v80
  %v482 = vunpack.c.l.b16 %v81
  %v483 = vunpack.c.h.b16 %v81
  %v484 = vunpack.c.l.b16 %v82
  %v485 = vunpack.c.h.b16 %v82
  %v486 = vunpack.c.l.b16 %v83
  %v487 = vunpack.c.h.b16 %v83
  %v488 = vunpack.c.l.b16 %v84
  %v489 = vunpack.c.h.b16 %v84
  %v490 = vunpack.c.l.b16 %v85
  %v491 = vunpack.c.h.b16 %v85
  %v492 = vunpack.c.l.b16 %v86
  %v493 = vunpack.c.h.b16 %v86
  %v494 = vunpack.c.l.b16 %v87
  %v495 = vunpack.c.h.b16 %v87
  %v496 = vunpack.c.l.b16 %v88
  %v497 = vunpack.c.h.b16 %v88
  %v498 = vunpack.c.l.b16 %v89
  %v499 = vunpack.c.h.b16 %v89
  %v500 = vunpack.c.l.b16 %v90
  %v501 = vunpack.c.h.b16 %v90
  %v502 = vunpack.c.l.b16 %v91
  %v503 = vunpack.c.h.b16 %v91
  %v504 = vunpack.c.l.b16 %v92
  %v505 = vunpack.c.h.b16 %v92
  %v506 = vunpack.c.l.b16 %v93
  %v507 = vunpack.c.h.b16 %v93
  %v508 = vunpack.c.l.b16 %v94
  %v509 = vunpack.c.h.b16 %v94
  %v510 = vunpack.c.l.b16 %v95
  %v511 = vunpack.c.h.b16 %v95
  %v512 = vunpack.c.l.b16 %v96
  %v513 = vunpack.c.h.b16 %v96
  %v514 = vunpack.c.l.b16 %v97
  %v515 = vunpack.c.h.b16 %v97
  %v516 = vunpack.c.l.b16 %v98
  %v517 = vunpack.c.h.b16 %v98
  %v518 = vunpack.c.l.b16 %v99
  %v519 = vunpack.c.h.b16 %v99
  %v520 = vunpack.c.l.b16 %v100
  %v521 = vunpack.c.h.b16 %v100
  %v522 = vunpack.c.l.b16 %v101
  %v523 = vunpack.c.h.b16 %v101
  %v524 = vunpack.c.l.b16 %v102
  %v525 = vunpack.c.h.b16 %v102
  %v526 = vunpack.c.l.b16 %v103
  %v527 = vunpack.c.h.b16 %v103
  %v528 = vunpack.c.l.b16 %v104
  %v529 = vunpack.c.h.b16 %v104
  %v530 = vunpack.c.l.b16 %v105
  %v531 = vunpack.c.h.b16 %v105
  %v532 = vunpack.c.l.b16 %v106
  %v533 = vunpack.c.h.b16 %v106
  %v534 = vunpack.c.l.b16 %v107
  %v535 = vunpack.c.h.b16 %v107
  %v536 = vunpack.c.l.b16 %v108
  %v537 = vunpack.c.h.b16 %v108
  %v538 = vunpack.c.l.b16 %v109
  %v539 = vunpack.c.h.b16 %v109
  %v540 = vunpack.c.l.b16 %v110
  %v541 = vunpack.c.h.b16 %v110
  %v542 = vunpack.c.l.b16 %v111
  %v543 = vunpack.c.h.b16 %v111
  %v544 = vunpack.c.l.b16 %v112
  %v545 = vunpack.c.h.b16 %v112
  %v546 = vunpack.c.l.b16 %v113
  %v547 = vunpack.c.h.b16 %v113
  %v548 = vunpack.c.l.b16 %v114
  %v549 = vunpack.c.h.b16 %v114
  %v550 = vunpack.c.l.b16 %v115
  %v551 = vunpack.c.h.b16 %v115
  %v552 = vunpack.c.l.b16 %v116
  %v553 = vunpack.c.h.b16 %v116
  %v554 = vunpack.c.l.b16 %v117
  %v555 = vunpack.c.h.b16 %v117
  %v556 = vunpack.c.l.b16 %v118
  %v557 = vunpack.c.h.b16 %v118
  %v558 = vunpack.c.l.b16 %v119
  %v559 = vunpack.c.h.b16 %v119
  %v560 = vunpack.c.l.b16 %v120
  %v561 = vunpack.c.h.b16 %v120
  %v562 = vunpack.c.l.b16 %v121
  %v563 = vunpack.c.h.b16 %v121
  %v564 = vunpack.c.l.b16 %v122
  %v565 = vunpack.c.h.b16 %v122
  %v566 = vunpack.c.l.b16 %v123
  %v567 = vunpack.c.h.b16 %v123
  %v568 = vunpack.c.l.b16 %v124
  %v569 = vunpack.c.h.b16 %v124
  %v570 = vunpack.c.l.b16 %v125
  %v571 = vunpack.c.h.b16 %v125
  %v572 = vunpack.c.l.b16 %v126
  %v573 = vunpack.c.h.b16 %v126
  %v574 = vunpack.c.l.b16 %v127
  %v575 = vunpack.c.h.b16 %v127
  %v576 = vunpack.c.l.b16 %v128
  %v577 = vunpack.c.h.b16 %v128
  %v578 = vunpack.c.l.b16 %v129
  %v579 = vunpack.c.h.b16 %v129
  %v580 = vunpack.c.l.b16 %v130
  %v581 = vunpack.c.h.b16 %v130
  %v582 = vunpack.c.l.b16 %v131
  %v583 = vunpack.c.h.b16 %v131
  %v584 = vunpack.c.l.b16 %v132
  %v585 = vunpack.c.h.b16 %v132
  %v586 = vunpack.c.l.b16 %v133
  %v587 = vunpack.c.h.b16 %v133
  %v588 = vunpack.c.l.b16 %v134
  %v589 = vunpack.c.h.b16 %v134
  %v590 = vunpack.c.l.b16 %v135
  %v591 = vunpack.c.h.b16 %v135
  %v592 = vunpack.c.l.b16 %v136
  %v593 = vunpack.c.h.b16 %v136
  %v594 = vunpack.c.l.b16 %v137
  %v595 = vunpack.c.h.b16 %v137
  %v596 = vunpack.c.l.b16 %v138
  %v597 = vunpack.c.h.b16 %v138
  %v598 = vunpack.c.l.b16 %v139
  %v599 = vunpack.c.h.b16 %v139
  %v600 = vunpack.c.l.b16 %v140
  %v601 = vunpack.c.h.b16 %v140
  %v602 = vunpack.c.l.b16 %v141
  %v603 = vunpack.c.h.b16 %v141
  %v604 = vunpack.c.l.b16 %v142
  %v605 = vunpack.c.h.b16 %v142
  %v606 = vunpack.c.l.b16 %v143
  %v607 = vunpack.c.h.b16 %v143
  %v608 = vunpack.c.l.b16 %v144
  %v609 = vunpack.c.h.b16 %v144
  %v610 = vunpack.c.l.b16 %v145
  %v611 = vunpack.c.h.b16 %v145
  %v612 = vunpack.c.l.b16 %v146
  %v613 = vunpack.c.h.b16 %v146
  %v614 = vunpack.c.l.b16 %v147
  %v615 = vunpack.c.h.b16 %v147
  %v616 = vunpack.c.l.b16 %v148
  %v617 = vunpack.c.h.b16 %v148
  %v618 = vunpack.c.l.b16 %v149
  %v619 = vunpack.c.h.b16 %v149
  %v620 = vunpack.c.l.b16 %v150
  %v621 = vunpack.c.h.b16 %v150
  %v622 = vunpack.c.l.b16 %v151
  %v623 = vunpack.c.h.b16 %v151
  %v624 = vunpack.c.l.b16 %v152
  %v625 = vunpack.c.h.b16 %v152
  %v626 = vunpack.c.l.b16 %v153
  %v627 = vunpack.c.h.b16 %v153
  %v628 = vunpack.c.l.b16 %v154
  %v629 = vunpack.c.h.b16 %v154
  %v630 = vunpack.c.l.b16 %v155
  %v631 = vunpack.c.h.b16 %v155
  %v632 = vunpack.c.l.b16 %v156
  %v633 = vunpack.c.h.b16 %v156
  %v634 = vunpack.c.l.b16 %v157
  %v635 = vunpack.c.h.b16 %v157
  %v636 = vunpack.c.l.b16 %v158
  %v637 = vunpack.c.h.b16 %v158
  %v638 = vunpack.c.l.b16 %v159
  %v639 = vunpack.c.h.b16 %v159
  %v640 = vunpack.c.l.b16 %v160
  %v641 = vunpack.c.h.b16 %v160
  %v642 = vunpack.c.l.b16 %v161
  %v643 = vunpack.c.h.b16 %v161
  %v644 = vunpack.c.l.b16 %v162
  %v645 = vunpack.c.h.b16 %v162
  %v646 = vunpack.c.l.b16 %v163
  %v647 = vunpack.c.h.b16 %v163
  %v648 = vunpack.c.l.b16 %v164
  %v649 = vunpack.c.h.b16 %v164
  %v650 = vunpack.c.l.b16 %v165
  %v651 = vunpack.c.h.b16 %v165
  %v652 = vunpack.c.l.b16 %v166
  %v653 = vunpack.c.h.b16 %v166
  %v654 = vunpack.c.l.b16 %v167
  %v655 = vunpack.c.h.b16 %v167
  %v656 = vunpack.c.l.b16 %v168
  %v657 = vunpack.c.h.b16 %v168
  %v658 = vunpack.c.l.b16 %v169
  %v659 = vunpack.c.h.b16 %v169
  %v660 = vunpack.c.l.b16 %v170
  %v661 = vunpack.c.h.b16 %v170
  %v662 = vunpack.c.l.b16 %v171
  %v663 = vunpack.c.h.b16 %v171
  %v664 = vunpack.c.l.b16 %v172
  %v665 = vunpack.c.h.b16 %v172
  %v666 = vunpack.c.l.b16 %v173
  %v667 = vunpack.c.h.b16 %v173
  %v668 = vunpack.c.l.b16 %v174
  %v669 = vunpack.c.h.b16 %v174
  %v670 = vunpack.c.l.b16 %v175
  %v671 = vunpack.c.h.b16 %v175
  %v672 = vunpack.c.l.b16 %v176
  %v673 = vunpack.c.h.b16 %v176
  %v674 = vunpack.c.l.b16 %v177
  %v675 = vunpack.c.h.b16 %v177
  %v676 = vunpack.c.l.b16 %v178
  %v677 = vunpack.c.h.b16 %v178
  %v678 = vunpack.c.l.b16 %v179
  %v679 = vunpack.c.h.b16 %v179
  %v680 = vunpack.c.l.b16 %v180
  %v681 = vunpack.c.h.b16 %v180
  %v682 = vunpack.c.l.b16 %v181
  %v683 = vunpack.c.h.b16 %v181
  %v684 = vunpack.c.l.b16 %v182
  %v685 = vunpack.c.h.b16 %v182
  %v686 = vunpack.c.l.b16 %v183
  %v687 = vunpack.c.h.b16 %v183
  %v688 = vunpack.c.l.b16 %v184
  %v689 = vunpack.c.h.b16 %v184
  %v690 = vunpack.c.l.b16 %v185
  %v691 = vunpack.c.h.b16 %v185
  %v692 = vunpack.c.l.b16 %v186
  %v693 = vunpack.c.h.b16 %v186
  %v694 = vunpack.c.l.b16 %v187
  %v695 = vunpack.c.h.b16 %v187
  %v696 = vunpack.c.l.b16 %v188
  %v697 = vunpack.c.h.b16 %v188
  %v698 = vunpack.c.l.b16 %v189
  %v699 = vunpack.c.h.b16 %v189
  %v700 = vpack.c.b16 %v414, %v412
  %v701 = vpack.c.b16 %v415, %v413
  %v702 = vpack.c.b16 %v418, %v416
  %v703 = vpack.c.b16 %v419, %v417
  %v704 = vpack.c.b16 %v422, %v420
  %v705 = vpack.c.b16 %v423, %v421
  %v706 = vpack.c.b16 %v426, %v424
  %v707 = vpack.c.b16 %v427, %v425
  %v708 = vpack.c.b16 %v430, %v428
  %v709 = vpack.c.b16 %v431, %v429
  %v710 = vpack.c.b16 %v434, %v432
  %v711 = vpack.c.b16 %v435, %v433
  %v712 = vpack.c.b16 %v438, %v436
  %v713 = vpack.c.b16 %v439, %v437
  %v714 = vpack.c.b16 %v442, %v440
  %v715 = vpack.c.b16 %v443, %v441
  %v716 = vpack.c.b16 %v446, %v444
  %v717 = vpack.c.b16 %v447, %v445
  %v718 = vpack.c.b16 %v450, %v448
  %v719 = vpack.c.b16 %v451, %v449
  %v720 = vpack.c.b16 %v454, %v452
  %v721 = vpack.c.b16 %v455, %v453
  %v722 = vpack.c.b16 %v458, %v456
  %v723 = vpack.c.b16 %v459, %v457
  %v724 = vpack.c.b16 %v462, %v460
  %v725 = vpack.c.b16 %v463, %v461
  %v726 = vpack.c.b16 %v466, %v464
  %v727 = vpack.c.b16 %v467, %v465
  %v728 = vpack.c.b16 %v470, %v468
  %v729 = vpack.c.b16 %v471, %v469
  %v730 = vpack.c.b16 %v474, %v472
  %v731 = vpack.c.b16 %v475, %v473
  %v732 = vpack.c.b16 %v478, %v476
  %v733 = vpack.c.b16 %v479, %v477
  %v734 = vpack.c.b16 %v482, %v480
  %v735 = vpack.c.b16 %v483, %v481
  %v736 = vpack.c.b16 %v486, %v484
  %v737 = vpack.c.b16 %v487, %v485
  %v738 = vpack.c.b16 %v490, %v488
  %v739 = vpack.c.b16 %v491, %v489
  %v740 = vpack.c.b16 %v494, %v492
  %v741 = vpack.c.b16 %v495, %v493
  %v742 = vpack.c.b16 %v498, %v496
  %v743 = vpack.c.b16 %v499, %v497
  %v744 = vpack.c.b16 %v502, %v500
  %v745 = vpack.c.b16 %v503, %v501
  %v746 = vpack.c.b16 %v506, %v504
  %v747 = vpack.c.b16 %v507, %v505
  %v748 = vpack.c.b16 %v510, %v508
  %v749 = vpack.c.b16 %v511, %v509
  %v750 = vpack.c.b16 %v514, %v512
  %v751 = vpack.c.b16 %v515, %v513
  %v752 = vpack.c.b16 %v518, %v516
  %v753 = vpack.c.b16 %v519, %v517
  %v754 = vpack.c.b16 %v522, %v520
  %v755 = vpack.c.b16 %v523, %v521
  %v756 = vpack.c.b16 %v526, %v524
  %v757 = vpack.c.b16 %v527, %v525
  %v758 = vpack.c.b16 %v530, %v528
  %v759 = vpack.c.b16 %v531, %v529
  %v760 = vpack.c.b16 %v534, %v532
  %v761 = vpack.c.b16 %v535, %v533
  %v762 = vpack.c.b16 %v538, %v536
  %v763 = vpack.c.b16 %v539, %v537
  %v764 = vpack.c.b16 %v542, %v540
  %v765 = vpack.c.b16 %v543, %v541
  %v766 = vpack.c.b16 %v546, %v544
  %v767 = vpack.c.b16 %v547, %v545
  %v768 = vpack.c.b16 %v550, %v548
  %v769 = vpack.c.b16 %v551, %v549
  %v770 = vpack.c.b16 %v554, %v552
  %v771 = vpack.c.b16 %v555, %v553
  %v772 = vpack.c.b16 %v558, %v556
  %v773 = vpack.c.b16 %v559, %v557
  %v774 = vpack.c.b16 %v562, %v560
  %v775 = vpack.c.b16 %v563, %v561
  %v776 = vpack.c.b16 %v566, %v564
  %v777 = vpack.c.b16 %v567, %v565
  %v778 = vpack.c.b16 %v570, %v568
  %v779 = vpack.c.b16 %v571, %v569
  %v780 = vpack.c.b16 %v574, %v572
  %v781 = vpack.c.b16 %v575, %v573
  %v782 = vpack.c.b16 %v578, %v576
  %v783 = vpack.c.b16 %v579, %v577
  %v784 = vpack.c.b16 %v582, %v580
  %v785 = vpack.c.b16 %v583, %v581
  %v786 = vpack.c.b16 %v586, %v584
  %v787 = vpack.c.b16 %v587, %v585
  %v788 = vpack.c.b16 %v590, %v588
  %v789 = vpack.c.b16 %v591, %v589
  %v790 = vpack.c.b16 %v594, %v592
  %v791 = vpack.c.b16 %v595, %v593
  %v792 = vpack.c.b16 %v598, %v596
  %v793 = vpack.c.b16 %v599, %v597
  %v794 = vpack.c.b16 %v602, %v600
  %v795 = vpack.c.b16 %v603, %v601
  %v796 = vpack.c.b16 %v606, %v604
  %v797 = vpack.c.b16 %v607, %v605
  %v798 = vpack.c.b16 %v610, %v608
  %v799 = vpack.c.b16 %v611, %v609
  %v800 = vpack.c.b16 %v614, %v612
  %v801 = vpack.c.b16 %v615, %v613
  %v802 = vpack.c.b16 %v618, %v616
  %v803 = vpack.c.b16 %v619, %v617
  %v804 = vpack.c.b16 %v622, %v620
  %v805 = vpack.c.b16 %v623, %v621
  %v806 = vpack.c.b16 %v626, %v624
  %v807 = vpack.c.b16 %v627, %v625
  %v808 = vpack.c.b16 %v630, %v628
  %v809 = vpack.c.b16 %v631, %v629
  %v810 = vpack.c.b16 %v634, %v632
  %v811 = vpack.c.b16 %v635, %v633
  %v812 = vpack.c.b16 %v638, %v636
  %v813 = vpack.c.b16 %v639, %v637
  %v814 = vpack.c.b16 %v642, %v640
  %v815 = vpack.c.b16 %v643, %v641
  %v816 = vpack.c.b16 %v646, %v644
  %v817 = vpack.c.b16 %v647, %v645
  %v818 = vpack.c.b16 %v650, %v648
  %v819 = vpack.c.b16 %v651, %v649
  %v820 = vpack.c.b16 %v654, %v652
  %v821 = vpack.c.b16 %v655, %v653
  %v822 = vpack.c.b16 %v658, %v656
  %v823 = vpack.c.b16 %v659, %v657
  %v824 = vpack.c.b16 %v662, %v660
  %v825 = vpack.c.b16 %v663, %v661
  %v826 = vpack.c.b16 %v666, %v664
  %v827 = vpack.c.b16 %v667, %v665
  %v828 = vpack.c.b16 %v670, %v668
  %v829 = vpack.c.b16 %v671, %v669
  %v830 = vpack.c.b16 %v674, %v672
  %v831 = vpack.c.b16 %v675, %v673
  %v832 = vpack.c.b16 %v678, %v676
  %v833 = vpack.c.b16 %v679, %v677
  %v834 = vpack.c.b16 %v682, %v680
  %v835 = vpack.c.b16 %v683, %v681
  %v836 = vpack.c.b16 %v686, %v684
  %v837 = vpack.c.b16 %v687, %v685
  %v838 = vpack.c.b16 %v690, %v688
  %v839 = vpack.c.b16 %v691, %v689
  %v840 = vpack.c.b16 %v694, %v692
  %v841 = vpack.c.b16 %v695, %v693
  %v842 = vpack.c.b16 %v698, %v696
  %v843 = vpack.c.b16 %v699, %v697
  %988 = vmatprep.subr.bf16.mxu0 %v701
  %989 = vmatpush1.bf16.msra.mxu0 %v700
  %990 = vmatprep.subr.bf16.mxu0 %v703
  %991 = vmatpush1.bf16.msra.mxu0 %v702
  %992 = vmatprep.subr.bf16.mxu0 %v705
  %993 = vmatpush1.bf16.msra.mxu0 %v704
  %994 = vmatprep.subr.bf16.mxu0 %v707
  %995 = vmatpush1.bf16.msra.mxu0 %v706
  %996 = vmatprep.subr.bf16.mxu0 %v709
  %997 = vmatpush1.bf16.msra.mxu0 %v708
  %998 = vmatprep.subr.bf16.mxu0 %v711
  %999 = vmatpush1.bf16.msra.mxu0 %v710
  %1000 = vmatprep.subr.bf16.mxu0 %v713
  %1001 = vmatpush1.bf16.msra.mxu0 %v712
  %1002 = vmatprep.subr.bf16.mxu0 %v715
  %1003 = vmatpush1.bf16.msra.mxu0 %v714
  %1004 = vmatprep.subr.bf16.mxu0 %v717
  %1005 = vmatpush1.bf16.msra.mxu0 %v716
  %1006 = vmatprep.subr.bf16.mxu0 %v719
  %1007 = vmatpush1.bf16.msra.mxu0 %v718
  %1008 = vmatprep.subr.bf16.mxu0 %v721
  %1009 = vmatpush1.bf16.msra.mxu0 %v720
  %1010 = vmatprep.subr.bf16.mxu0 %v723
  %1011 = vmatpush1.bf16.msra.mxu0 %v722
  %1012 = vmatprep.subr.bf16.mxu0 %v725
  %1013 = vmatpush1.bf16.msra.mxu0 %v724
  %1014 = vmatprep.subr.bf16.mxu0 %v727
  %1015 = vmatpush1.bf16.msra.mxu0 %v726
  %1016 = vmatprep.subr.bf16.mxu0 %v729
  %1017 = vmatpush1.bf16.msra.mxu0 %v728
  %1018 = vmatprep.subr.bf16.mxu0 %v731
  %1019 = vmatpush1.bf16.msra.mxu0 %v730
  %1020 = vmatprep.mubr.bf16.mxu0 %v233
  %1021 = vmatmul.mubr.bf16.gmra.mrb[0].mxu0 %v232
  %v1022 = vpop.f32.mrb[0].mxu0
  %v1023 = vadd.f32 0.0, %v1022
  %v1024 = vpop.f32.mrb[0].mxu0
  %v1025 = vadd.f32 0.0, %v1024
  %v1026 = vpop.f32.mrb[0].mxu0
  %v1027 = vadd.f32 0.0, %v1026
  %v1028 = vpop.f32.mrb[0].mxu0
  %v1029 = vadd.f32 0.0, %v1028
  %1030 = vmatprep.mubr.bf16.mxu0 %v242
  %1031 = vmatmul.mubr.bf16.gmra.mrb[0].mxu0 %v241
  %v1032 = vpop.f32.mrb[0].mxu0
  %v1033 = vadd.f32 0.0, %v1032
  %v1034 = vpop.f32.mrb[0].mxu0
  %v1035 = vadd.f32 0.0, %v1034
  %v1036 = vpop.f32.mrb[0].mxu0
  %v1037 = vpop.f32.mrb[0].mxu0
  %1038 = vdwg.mxu0
  %1039 = vmatprep.subr.bf16.mxu0 %v733
  %1040 = vmatpush1.bf16.msra.mxu0 %v732
  %1041 = vmatprep.subr.bf16.mxu0 %v735
  %1042 = vmatpush1.bf16.msra.mxu0 %v734
  %1043 = vmatprep.subr.bf16.mxu0 %v737
  %1044 = vmatpush1.bf16.msra.mxu0 %v736
  %1045 = vmatprep.subr.bf16.mxu0 %v739
  %1046 = vmatpush1.bf16.msra.mxu0 %v738
  %1047 = vmatprep.subr.bf16.mxu0 %v741
  %1048 = vmatpush1.bf16.msra.mxu0 %v740
  %1049 = vmatprep.subr.bf16.mxu0 %v743
  %1050 = vmatpush1.bf16.msra.mxu0 %v742
  %1051 = vmatprep.subr.bf16.mxu0 %v745
  %1052 = vmatpush1.bf16.msra.mxu0 %v744
  %1053 = vmatprep.subr.bf16.mxu0 %v747
  %1054 = vmatpush1.bf16.msra.mxu0 %v746
  %1055 = vmatprep.subr.bf16.mxu0 %v749
  %1056 = vmatpush1.bf16.msra.mxu0 %v748
  %1057 = vmatprep.subr.bf16.mxu0 %v751
  %1058 = vmatpush1.bf16.msra.mxu0 %v750
  %1059 = vmatprep.subr.bf16.mxu0 %v753
  %1060 = vmatpush1.bf16.msra.mxu0 %v752
  %1061 = vmatprep.subr.bf16.mxu0 %v755
  %1062 = vmatpush1.bf16.msra.mxu0 %v754
  %1063 = vmatprep.subr.bf16.mxu0 %v757
  %1064 = vmatpush1.bf16.msra.mxu0 %v756
  %1065 = vmatprep.subr.bf16.mxu0 %v759
  %1066 = vmatpush1.bf16.msra.mxu0 %v758
  %1067 = vmatprep.subr.bf16.mxu0 %v761
  %1068 = vmatpush1.bf16.msra.mxu0 %v760
  %1069 = vmatprep.subr.bf16.mxu0 %v763
  %1070 = vmatpush1.bf16.msra.mxu0 %v762
  %1071 = vmatprep.mubr.bf16.mxu0 %v235
  %1072 = vmatmul.mubr.bf16.gmra.mrb[0].mxu0 %v234
  %v1073 = vpop.f32.mrb[0].mxu0
  %v1074 = vadd.f32 %v1023, %v1073
  %v1075 = vpop.f32.mrb[0].mxu0
  %v1076 = vadd.f32 %v1025, %v1075
  %v1077 = vpop.f32.mrb[0].mxu0
  %v1078 = vadd.f32 %v1027, %v1077
  %v1079 = vpop.f32.mrb[0].mxu0
  %v1080 = vadd.f32 %v1029, %v1079
  %1081 = vmatprep.mubr.bf16.mxu0 %v244
  %1082 = vmatmul.mubr.bf16.gmra.mrb[0].mxu0 %v243
  %v1083 = vpop.f32.mrb[0].mxu0
  %v1084 = vadd.f32 %v1033, %v1083
  %v1085 = vpop.f32.mrb[0].mxu0
  %v1086 = vadd.f32 %v1035, %v1085
  %v1087 = vpop.f32.mrb[0].mxu0
  %v1088 = vpop.f32.mrb[0].mxu0
  %1089 = vdwg.mxu0
  %1090 = vmatprep.subr.bf16.mxu0 %v765
  %1091 = vmatpush1.bf16.msra.mxu0 %v764
  %1092 = vmatprep.subr.bf16.mxu0 %v767
  %1093 = vmatpush1.bf16.msra.mxu0 %v766
  %1094 = vmatprep.subr.bf16.mxu0 %v769
  %1095 = vmatpush1.bf16.msra.mxu0 %v768
  %1096 = vmatprep.subr.bf16.mxu0 %v771
  %1097 = vmatpush1.bf16.msra.mxu0 %v770
  %1098 = vmatprep.subr.bf16.mxu0 %v773
  %1099 = vmatpush1.bf16.msra.mxu0 %v772
  %1100 = vmatprep.subr.bf16.mxu0 %v775
  %1101 = vmatpush1.bf16.msra.mxu0 %v774
  %1102 = vmatprep.subr.bf16.mxu0 %v777
  %1103 = vmatpush1.bf16.msra.mxu0 %v776
  %1104 = vmatprep.subr.bf16.mxu0 %v779
  %1105 = vmatpush1.bf16.msra.mxu0 %v778
  %1106 = vmatprep.subr.bf16.mxu0 %v781
  %1107 = vmatpush1.bf16.msra.mxu0 %v780
  %1108 = vmatprep.subr.bf16.mxu0 %v783
  %1109 = vmatpush1.bf16.msra.mxu0 %v782
  %1110 = vmatprep.subr.bf16.mxu0 %v785
  %1111 = vmatpush1.bf16.msra.mxu0 %v784
  %1112 = vmatprep.subr.bf16.mxu0 %v787
  %1113 = vmatpush1.bf16.msra.mxu0 %v786
  %1114 = vmatprep.subr.bf16.mxu0 %v789
  %1115 = vmatpush1.bf16.msra.mxu0 %v788
  %1116 = vmatprep.subr.bf16.mxu0 %v791
  %1117 = vmatpush1.bf16.msra.mxu0 %v790
  %1118 = vmatprep.subr.bf16.mxu0 %v793
  %1119 = vmatpush1.bf16.msra.mxu0 %v792
  %1120 = vmatprep.subr.bf16.mxu0 %v795
  %1121 = vmatpush1.bf16.msra.mxu0 %v794
  %1122 = vmatprep.mubr.bf16.mxu0 %v237
  %1123 = vmatmul.mubr.bf16.gmra.mrb[0].mxu0 %v236
  %v1124 = vpop.f32.mrb[0].mxu0
  %v1125 = vadd.f32 %v1074, %v1124
  %v1126 = vpop.f32.mrb[0].mxu0
  %v1127 = vadd.f32 %v1076, %v1126
  %v1128 = vpop.f32.mrb[0].mxu0
  %v1129 = vadd.f32 %v1078, %v1128
  %v1130 = vpop.f32.mrb[0].mxu0
  %v1131 = vadd.f32 %v1080, %v1130
  %1132 = vmatprep.mubr.bf16.mxu0 %v246
  %1133 = vmatmul.mubr.bf16.gmra.mrb[0].mxu0 %v245
  %v1134 = vpop.f32.mrb[0].mxu0
  %v1135 = vadd.f32 %v1084, %v1134
  %v1136 = vpop.f32.mrb[0].mxu0
  %v1137 = vadd.f32 %v1086, %v1136
  %v1138 = vpop.f32.mrb[0].mxu0
  %v1139 = vpop.f32.mrb[0].mxu0
  %1140 = vdwg.mxu0
  %1141 = vmatprep.subr.bf16.mxu0 %v797
  %1142 = vmatpush1.bf16.msra.mxu0 %v796
  %1143 = vmatprep.subr.bf16.mxu0 %v799
  %1144 = vmatpush1.bf16.msra.mxu0 %v798
  %1145 = vmatprep.subr.bf16.mxu0 %v801
  %1146 = vmatpush1.bf16.msra.mxu0 %v800
  %1147 = vmatprep.subr.bf16.mxu0 %v803
  %1148 = vmatpush1.bf16.msra.mxu0 %v802
  %1149 = vmatprep.subr.bf16.mxu0 %v805
  %1150 = vmatpush1.bf16.msra.mxu0 %v804
  %1151 = vmatprep.subr.bf16.mxu0 %v807
  %1152 = vmatpush1.bf16.msra.mxu0 %v806
  %1153 = vmatprep.subr.bf16.mxu0 %v809
  %1154 = vmatpush1.bf16.msra.mxu0 %v808
  %1155 = vmatprep.subr.bf16.mxu0 %v811
  %1156 = vmatpush1.bf16.msra.mxu0 %v810
  %1157 = vmatprep.subr.bf16.mxu0 %v813
  %1158 = vmatpush1.bf16.msra.mxu0 %v812
  %1159 = vmatprep.subr.bf16.mxu0 %v815
  %1160 = vmatpush1.bf16.msra.mxu0 %v814
  %1161 = vmatprep.subr.bf16.mxu0 %v817
  %1162 = vmatpush1.bf16.msra.mxu0 %v816
  %1163 = vmatprep.subr.bf16.mxu0 %v819
  %1164 = vmatpush1.bf16.msra.mxu0 %v818
  %1165 = vmatprep.subr.bf16.mxu0 %v821
  %1166 = vmatpush1.bf16.msra.mxu0 %v820
  %1167 = vmatprep.subr.bf16.mxu0 %v823
  %1168 = vmatpush1.bf16.msra.mxu0 %v822
  %1169 = vmatprep.subr.bf16.mxu0 %v825
  %1170 = vmatpush1.bf16.msra.mxu0 %v824
  %1171 = vmatprep.subr.bf16.mxu0 %v827
  %1172 = vmatpush1.bf16.msra.mxu0 %v826
  %1173 = vmatprep.mubr.bf16.mxu0 %v239
  %1174 = vmatmul.mubr.bf16.gmra.mrb[0].mxu0 %v238
  %v1175 = vpop.f32.mrb[0].mxu0
  %v1176 = vadd.f32 %v1125, %v1175
  %v1177 = vpop.f32.mrb[0].mxu0
  %v1178 = vadd.f32 %v1127, %v1177
  %v1179 = vpop.f32.mrb[0].mxu0
  %v1180 = vadd.f32 %v1129, %v1179
  %v1181 = vpop.f32.mrb[0].mxu0
  %v1182 = vadd.f32 %v1131, %v1181
  %1183 = vmatprep.mubr.bf16.mxu0 %v248
  %1184 = vmatmul.mubr.bf16.gmra.mrb[0].mxu0 %v247
  %v1185 = vpop.f32.mrb[0].mxu0
  %v1186 = vadd.f32 %v1135, %v1185
  %v1187 = vpop.f32.mrb[0].mxu0
  %v1188 = vadd.f32 %v1137, %v1187
  %v1189 = vpop.f32.mrb[0].mxu0
  %v1190 = vpop.f32.mrb[0].mxu0
  %1191 = vdwg.mxu0
  %1192 = vmatprep.subr.bf16.mxu0 %v829
  %1193 = vmatpush1.bf16.msra.mxu0 %v828
  %1194 = vmatprep.subr.bf16.mxu0 %v831
  %1195 = vmatpush1.bf16.msra.mxu0 %v830
  %1196 = vmatprep.subr.bf16.mxu0 %v833
  %1197 = vmatpush1.bf16.msra.mxu0 %v832
  %1198 = vmatprep.subr.bf16.mxu0 %v835
  %1199 = vmatpush1.bf16.msra.mxu0 %v834
  %1200 = vmatprep.subr.bf16.mxu0 %v837
  %1201 = vmatpush1.bf16.msra.mxu0 %v836
  %1202 = vmatprep.subr.bf16.mxu0 %v839
  %1203 = vmatpush1.bf16.msra.mxu0 %v838
  %1204 = vmatprep.subr.bf16.mxu0 %v841
  %1205 = vmatpush1.bf16.msra.mxu0 %v840
  %1206 = vmatprep.subr.bf16.mxu0 %v843
  %1207 = vmatpush1.bf16.msra.mxu0 %v842
  %1208 = vmatprep.subr.bf16.mxu0 0
  %1209 = vmatpush1.bf16.msra.mxu0 0
  %1210 = vmatprep.subr.bf16.mxu0 0
  %1211 = vmatpush1.bf16.msra.mxu0 0
  %1212 = vmatprep.subr.bf16.mxu0 0
  %1213 = vmatpush1.bf16.msra.mxu0 0
  %1214 = vmatprep.subr.bf16.mxu0 0
  %1215 = vmatpush1.bf16.msra.mxu0 0
  %1216 = vmatprep.subr.bf16.mxu0 0
  %1217 = vmatpush1.bf16.msra.mxu0 0
  %1218 = vmatprep.subr.bf16.mxu0 0
  %1219 = vmatpush1.bf16.msra.mxu0 0
  %1220 = vmatprep.subr.bf16.mxu0 0
  %1221 = vmatpush1.bf16.msra.mxu0 0
  %1222 = vmatprep.subr.bf16.mxu0 0
  %1223 = vmatpush1.bf16.msra.mxu0 0
  %1224 = vmatprep.mubr.bf16.mxu0 0
  %1225 = vmatmul.mubr.bf16.gmra.mrb[0].mxu0 %v240
  %v1226 = vpop.f32.mrb[0].mxu0
  %v1227 = vadd.f32 %v1176, %v1226
  %v1228 = vpop.f32.mrb[0].mxu0
  %v1229 = vadd.f32 %v1178, %v1228
  %v1230 = vpop.f32.mrb[0].mxu0
  %v1231 = vadd.f32 %v1180, %v1230
  %v1232 = vpop.f32.mrb[0].mxu0
  %v1233 = vadd.f32 %v1182, %v1232
  %1234 = vmatprep.mubr.bf16.mxu0 0
  %1235 = vmatmul.mubr.bf16.gmra.mrb[0].mxu0 %v249
  %v1236 = vpop.f32.mrb[0].mxu0
  %v1237 = vadd.f32 %v1186, %v1236
  %v1238 = vpop.f32.mrb[0].mxu0
  %v1239 = vadd.f32 %v1188, %v1238
  %v1240 = vpop.f32.mrb[0].mxu0
  %v1241 = vpop.f32.mrb[0].mxu0
  %1242 = vdwg.mxu0
  %v1243 = vadd.f32 %v25, %v1227
  %v1244 = vadd.f32 %v26, %v1229
  %v1245 = vadd.f32 %v27, %v1231
  %v1246 = vadd.f32 %v28, %v1233
  %v1247 = vadd.f32 %v29, %v1237
  %v1248 = vadd.f32 %v30, %v1239
  %1249 = vst [vmem:[#allocation2] sm:$0xff] %v1243
  %1250 = vst [vmem:[#allocation2 + $0x8] sm:$0xff] %v1244
  %1251 = vst [vmem:[#allocation2 + $0x10] sm:$0xff] %v1245
  %1252 = vst [vmem:[#allocation2 + $0x18] sm:$0xff] %v1246
  %1253 = vst [vmem:[#allocation2 + $0x20] sm:$0x3] %v1247
  %1254 = vst [vmem:[#allocation2 + $0x28] sm:$0x3] %v1248
  // Predicated region
  $region18: #{discriminator_forward.11} parent=0 // pred_check
    %p1255 = pneg %p15
  $region19: #{discriminator_forward.11} parent=0 // pred_check_branch
    %1257 = sbr.rel (%p1255) target = $region21
  $region20: #{discriminator_forward.11} parent=0 // pred_region
    %v1258 = vld [vmem:[#allocation2] sm:$0xff]
    %v1259 = vld [vmem:[#allocation2 + $0x8] sm:$0xff]
    %v1260 = vld [vmem:[#allocation2 + $0x10] sm:$0xff]
    %v1261 = vld [vmem:[#allocation2 + $0x18] sm:$0xff]
    %v1262 = vld [vmem:[#allocation2 + $0x20] sm:$0x3]
    %v1263 = vld [vmem:[#allocation2 + $0x28] sm:$0x3]
    %v1264 = vld [vmem:[%s2] sm:$0x3]
    %v1266 = vlaneseq
    %v1267 = vshrl.u32 %v1266, 7
    %v1268 = vsub.s32 0, %v1267
    %v1269 = vrot.slane %v1264, %v1268
    %v1270 = vlaneseq
    %v1271 = vshrl.u32 %v1270, 7
    %v1272 = vsub.s32 1, %v1271
    %v1273 = vrot.slane %v1264, %v1272
    %v1276 = vadd.f32 %v1258, %v1269
    %v1277 = vadd.f32 %v1259, %v1273
    %v1278 = vadd.f32 %v1260, %v1269
    %v1279 = vadd.f32 %v1261, %v1273
    %v1280 = vadd.f32 %v1262, %v1269
    %v1281 = vadd.f32 %v1263, %v1273
    %vm1282 = vcmp.ge.f32.partialorder %v1276, 0.0
    %vm1283 = vcmp.ge.f32.partialorder %v1277, 0.0
    %vm1284 = vcmp.ge.f32.partialorder %v1278, 0.0
    %vm1285 = vcmp.ge.f32.partialorder %v1279, 0.0
    %vm1286 = vcmp.ge.f32.partialorder %v1280, 0.0
    %vm1287 = vcmp.ge.f32.partialorder %v1281, 0.0
    %v1288 = vmul.f32 %v1276, 0.01
    %v1289 = vmul.f32 %v1277, 0.01
    %v1290 = vmul.f32 %v1278, 0.01
    %v1291 = vmul.f32 %v1279, 0.01
    %v1292 = vmul.f32 %v1280, 0.01
    %v1293 = vmul.f32 %v1281, 0.01
    %v1294 = vsel %vm1282, %v1276, %v1288
    %v1295 = vsel %vm1283, %v1277, %v1289
    %v1296 = vsel %vm1284, %v1278, %v1290
    %v1297 = vsel %vm1285, %v1279, %v1291
    %v1298 = vsel %vm1286, %v1280, %v1292
    %v1299 = vsel %vm1287, %v1281, %v1293
    %v1300 = vpack.c.bf16 %v1296, %v1294
    %v1301 = vpack.c.bf16 %v1297, %v1295
    %v1302 = vpack.c.bf16 %v1298, %v1298
    %v1303 = vpack.c.bf16 %v1299, %v1299
    %v1308 = vunpack.c.l.b16 %v1300
    %v1309 = vunpack.c.l.b16 %v1301
    %v1310 = vunpack.c.h.b16 %v1300
    %v1311 = vunpack.c.h.b16 %v1301
    %v1312 = vunpack.c.l.b16 %v1302
    %v1313 = vunpack.c.l.b16 %v1303
    %v1314 = vpack.c.b16 %v1309, %v1308
    %v1315 = vpack.c.b16 %v1311, %v1310
    %v1316 = vpack.c.b16 %v1313, %v1312
    %1320 = vst [vmem:[%s3] sm:$0xff] %v1314
    %1321 = vst [vmem:[%s3 + $0x8] sm:$0xff] %v1315
    %1322 = vst [vmem:[%s3 + $0x10] sm:$0x11] %v1316
  $region21: #{discriminator_forward.11} parent=0 // pred_fallthru
    _
  // Predicated region
  $region22: #{discriminator_forward.11} parent=0 // pred_check
    _
  $region23: #{discriminator_forward.11} parent=0 // pred_check_branch
    %1324 = sbr.rel (0) target = $region25
  $region24: #{discriminator_forward.11} parent=0 // pred_region
    _
  $region25: #{discriminator_forward.11} parent=0 // pred_fallthru
    _
  // Predicated region
  $region26: #{discriminator_forward.11} parent=0 // pred_check
    _
  $region27: #{discriminator_forward.11} parent=0 // pred_check_branch
    %1326 = sbr.rel (0) target = $region29
  $region28: #{discriminator_forward.11} parent=0 // pred_region
    _
  $region29: #{discriminator_forward.11} parent=0 // pred_fallthru
    _

// kernel: discriminator_forward.12
$region0: #{discriminator_forward.12}
  #allocation0 [shape = 'u32[]', space=smem, size = 0x4, offset = 0x4, fixed_abs, tag = 'smem constant byte address 0x4 - core index']
  #allocation1 [shape = 'u32[144,128]{1,0:T(1,128)}', space=vmem, size = 0x12000, scoped, tag = 'internal scratch']
  #allocation2 [shape = 'f32[2,4]{1,0:T(2,128)}', space=vmem, size = 0x400, scoped, tag = 'scratch operand']
  %s0 = inlined_call_operand.vmem [shape: bf16[2,2304], index: 0, kind: input, shape index: {}]
  %s1 = inlined_call_operand.vmem [shape: bf16[2304,4], index: 1, kind: input, shape index: {}]
  %s2 = inlined_call_operand.vmem [shape: f32[1,4], index: 2, kind: input, shape index: {}]
  %s3 = inlined_call_operand.vmem [shape: bf16[2,4], index: 3, kind: output, shape index: {}]
  %s4 = sld [smem:[#allocation0]]
  $region53: #{discriminator_forward.12} parent=0
    _
  %s6 = ssub.s32 1, %s4
  %s7 = scalar_select 0, %s6, %s4
  loop: start=0, step=1, limit=4
  $region2: #{discriminator_forward.12} parent=0 // loop_pre_header
    _
  $region3: #{discriminator_forward.12} parent=0 // loop_header
    %s9 = sphi 0, %s13
    %p10 = scmp.ge.s32.totalorder %s9, 4
    %s16 = sphi 0, %s28
    %s17 = sphi 0, %s24
    %s18 = sphi 0, %s16
    %s19 = sphi 0, %s17
    %s20 = sphi 0, %s18
    %s21 = sphi 0, %s19
    %s33 = sphi 0, %s35
    %s36 = sphi 0, %s33
    %s37 = sphi 0, %s36
    %s53 = sphi 0, %s37
    %s59 = sphi 0, %s61
    %s62 = sphi 0, %s59
    %s63 = sphi 0, %s62
    %s79 = sphi 0, %s63
    %s83 = sphi 0, %s83
    %s85 = sphi 0, %s83
    %s86 = sphi 0, %s85
    %s100 = sphi 0, %s86
    %s106 = sphi 0, %s108
    %s109 = sphi 0, %s106
    %s110 = sphi 0, %s109
    %s126 = sphi 0, %s110
  $region4: #{discriminator_forward.12} parent=0 // loop_header_branch
    %12 = sbr.rel (%p10) target = $region8
  $region5: #{discriminator_forward.12} parent=0 // loop_body
    %s14 = ssub.s32 %s9, 1
    %s15 = ssub.s32 %s9, 2
    %s22 = sadd.s32 1, %s17
    %p23 = scmp.ge.s32.totalorder %s22, 2
    %s24 = scalar_select %p23, 0, %s22
    %s25 = sadd.s32 1, %s16
    %s26 = scalar_select %p23, %s25, %s16
    %p27 = scmp.ge.s32.totalorder %s26, 1
    %s28 = scalar_select %p27, 0, %s26
    %s29 = ssub.s32 %s16, %s28
    %s30 = ssub.s32 %s17, %s24
    %s31 = sor.u32 %s29, %s30
    %p32 = scmp.eq.s32.totalorder %s31, 0
    %s34 = sadd.s32 %s33, 1
    %s35 = scalar_select %p32, %s33, %s34
    %p38 = pneg %p32
    %p39 = scmp.eq.s32.totalorder %s9, 1
    %p40 = por %p38, %p39
    %p41 = scmp.ne.s32.totalorder %s33, %s36
    %p42 = scmp.eq.s32.totalorder %s9, 0
    %p43 = por %p41, %p42
    %p44 = scmp.ne.s32.totalorder %s33, %s36
    %p45 = scmp.eq.s32.totalorder %s14, 1
    %p46 = por %p44, %p45
    %p47 = scmp.ne.s32.totalorder %s36, %s37
    %p48 = scmp.eq.s32.totalorder %s14, 0
    %p49 = por %p47, %p48
    %p50 = scmp.ne.s32.totalorder %s36, %s37
    %p51 = scmp.eq.s32.totalorder %s15, 1
    %p52 = por %p50, %p51
    %p54 = scmp.ne.s32.totalorder %s37, %s53
    %p55 = scmp.eq.s32.totalorder %s15, 0
    %p56 = por %p54, %p55
    %s57 = ssub.s32 %s17, %s24
    %p58 = scmp.eq.s32.totalorder %s57, 0
    %s60 = sadd.s32 %s59, 1
    %s61 = scalar_select %p58, %s59, %s60
    %p64 = pneg %p58
    %p65 = scmp.eq.s32.totalorder %s9, 1
    %p66 = por %p64, %p65
    %p67 = scmp.ne.s32.totalorder %s59, %s62
    %p68 = scmp.eq.s32.totalorder %s9, 0
    %p69 = por %p67, %p68
    %p70 = scmp.ne.s32.totalorder %s59, %s62
    %p71 = scmp.eq.s32.totalorder %s14, 1
    %p72 = por %p70, %p71
    %p73 = scmp.ne.s32.totalorder %s62, %s63
    %p74 = scmp.eq.s32.totalorder %s14, 0
    %p75 = por %p73, %p74
    %p76 = scmp.ne.s32.totalorder %s62, %s63
    %p77 = scmp.eq.s32.totalorder %s15, 1
    %p78 = por %p76, %p77
    %p80 = scmp.ne.s32.totalorder %s63, %s79
    %p81 = scmp.eq.s32.totalorder %s15, 0
    %p82 = por %p80, %p81
    %s84 = sadd.s32 %s83, 1
    %p87 = scmp.eq.s32.totalorder %s9, 1
    %p88 = scmp.ne.s32.totalorder %s83, %s85
    %p89 = scmp.eq.s32.totalorder %s9, 0
    %p90 = por %p88, %p89
    %p91 = scmp.ne.s32.totalorder %s83, %s85
    %p92 = scmp.eq.s32.totalorder %s14, 1
    %p93 = por %p91, %p92
    %p94 = scmp.ne.s32.totalorder %s85, %s86
    %p95 = scmp.eq.s32.totalorder %s14, 0
    %p96 = por %p94, %p95
    %p97 = scmp.ne.s32.totalorder %s85, %s86
    %p98 = scmp.eq.s32.totalorder %s15, 1
    %p99 = por %p97, %p98
    %p101 = scmp.ne.s32.totalorder %s86, %s100
    %p102 = scmp.eq.s32.totalorder %s15, 0
    %p103 = por %p101, %p102
    %s104 = ssub.s32 %s16, %s28
    %p105 = scmp.eq.s32.totalorder %s104, 0
    %s107 = sadd.s32 %s106, 1
    %s108 = scalar_select %p105, %s106, %s107
    %p111 = pneg %p105
    %p112 = scmp.eq.s32.totalorder %s9, 1
    %p113 = por %p111, %p112
    %p114 = scmp.ne.s32.totalorder %s106, %s109
    %p115 = scmp.eq.s32.totalorder %s9, 0
    %p116 = por %p114, %p115
    %p117 = scmp.ne.s32.totalorder %s106, %s109
    %p118 = scmp.eq.s32.totalorder %s14, 1
    %p119 = por %p117, %p118
    %p120 = scmp.ne.s32.totalorder %s109, %s110
    %p121 = scmp.eq.s32.totalorder %s14, 0
    %p122 = por %p120, %p121
    %p123 = scmp.ne.s32.totalorder %s109, %s110
    %p124 = scmp.eq.s32.totalorder %s15, 1
    %p125 = por %p123, %p124
    %p127 = scmp.ne.s32.totalorder %s110, %s126
    %p128 = scmp.eq.s32.totalorder %s15, 0
    %p129 = por %p127, %p128
    %p130 = scmp.le.s32.totalorder 1, %s9
    %p131 = scmp.lt.s32.totalorder %s9, 3
    %p132 = pnand %p130, %p131
    %p133 = pneg %p132
    // Predicated region
    $region9: #{discriminator_forward.12} parent=5 // pred_check
      _
    $region10: #{discriminator_forward.12} parent=5 // pred_check_branch
      %135 = sbr.rel (%p132) target = $region12
    $region11: #{discriminator_forward.12} parent=5 // pred_region
      %s136 = ssub.s32 %s9, 1
      // Predicated region
      $region13: #{discriminator_forward.12} parent=11 // pred_check
        %p137 = pneg %p96
      $region14: #{discriminator_forward.12} parent=11 // pred_check_branch
        %139 = sbr.rel (%p137) target = $region16
      $region15: #{discriminator_forward.12} parent=11 // pred_region
        _
      $region16: #{discriminator_forward.12} parent=11 // pred_fallthru
        _
    $region12: #{discriminator_forward.12} parent=5 // pred_fallthru
      _
    %p140 = scmp.lt.s32.totalorder %s9, 2
    // Predicated region
    $region17: #{discriminator_forward.12} parent=5 // pred_check
      %p141 = pneg %p140
    $region18: #{discriminator_forward.12} parent=5 // pred_check_branch
      %143 = sbr.rel (%p141) target = $region20
    $region19: #{discriminator_forward.12} parent=5 // pred_region
      // Predicated region
      $region21: #{discriminator_forward.12} parent=19 // pred_check
        %p144 = pneg %p43
      $region22: #{discriminator_forward.12} parent=19 // pred_check_branch
        %146 = sbr.rel (%p144) target = $region24
      $region23: #{discriminator_forward.12} parent=19 // pred_region
        %s147 = smul.u32 9, %s17
        %p148 = scmp.lt.s32.totalorder %s16, 0
        %s149 = scalar_select %p148, %s16, 0
        %p150 = scmp.lt.s32.totalorder %s147, 17
        %s151 = scalar_select %p150, %s147, 17
        %s152 = smul.addr %s149, 18
        %s153 = sadd.s32 %s151, %s152
        %s154 = scalar_lea.vmem %s0, %s153
        %s155 = smul.u32 9, %s17
      $region24: #{discriminator_forward.12} parent=19 // pred_fallthru
        _
      // Predicated region
      $region25: #{discriminator_forward.12} parent=19 // pred_check
        %p156 = pneg %p69
      $region26: #{discriminator_forward.12} parent=19 // pred_check_branch
        %158 = sbr.rel (%p156) target = $region28
      $region27: #{discriminator_forward.12} parent=19 // pred_region
        %s159 = smul.u32 144, %s17
        %p160 = scmp.lt.s32.totalorder %s159, 287
        %s161 = scalar_select %p160, %s159, 287
        %s162 = smul.addr %s161, 4
        %s163 = scalar_lea.vmem %s1, %s162
        %s164 = smul.u32 144, %s17
      $region28: #{discriminator_forward.12} parent=19 // pred_fallthru
        _
    $region20: #{discriminator_forward.12} parent=5 // pred_fallthru
      _
    %p165 = scmp.le.s32.totalorder 1, %s9
    %p166 = scmp.lt.s32.totalorder %s9, 3
    %p167 = pnand %p165, %p166
    %p168 = pneg %p167
    // Predicated region
    $region29: #{discriminator_forward.12} parent=5 // pred_check
      _
    $region30: #{discriminator_forward.12} parent=5 // pred_check_branch
      %170 = sbr.rel (%p167) target = $region32
    $region31: #{discriminator_forward.12} parent=5 // pred_region
      %s171 = ssub.s32 %s9, 1
      %s172 = smul.u32 9, %s19
      %p173 = scmp.lt.s32.totalorder %s18, 0
      %s174 = scalar_select %p173, %s18, 0
      %p175 = scmp.lt.s32.totalorder %s172, 17
      %s176 = scalar_select %p175, %s172, 17
      %s177 = smul.addr %s174, 18
      %s178 = sadd.s32 %s176, %s177
      %s179 = scalar_lea.vmem %s0, %s178
      %p180 = pneg %p49
      %p181 = pneg %p46
      %s182 = smul.u32 144, %s19
      %p183 = scmp.lt.s32.totalorder %s182, 287
      %s184 = scalar_select %p183, %s182, 287
      %s185 = smul.addr %s184, 4
      %s186 = scalar_lea.vmem %s1, %s185
      %p187 = pneg %p75
      %p188 = pneg %p72
      %p189 = pneg %p96
      %p190 = pneg %p93
      %p191 = pneg %p122
      %p192 = pneg %p119
      %p193 = scmp.lt.s32.totalorder %s18, 0
      %s194 = scalar_select %p193, %s18, 0
      %s195 = scalar_lea.vmem %s3, %s194
      %s196 = smul.u32 9, %s19
      %p197 = scmp.lt.s32.totalorder %s18, 0
      %s198 = scalar_select %p197, %s18, 0
      %p199 = scmp.lt.s32.totalorder %s196, 17
      %s200 = scalar_select %p199, %s196, 17
      %s201 = smul.addr %s198, 18
      %s202 = sadd.s32 %s200, %s201
      %s203 = scalar_lea.vmem %s0, %s202
      %s204 = smul.u32 9, %s19
      %s205 = smul.u32 144, %s19
      %p206 = scmp.lt.s32.totalorder %s205, 287
      %s207 = scalar_select %p206, %s205, 287
      %s208 = smul.addr %s207, 4
      %s209 = scalar_lea.vmem %s1, %s208
      %s210 = smul.u32 144, %s19
      %p211 = scmp.lt.s32.totalorder %s18, 0
      %s212 = scalar_select %p211, %s18, 0
      %s213 = scalar_lea.vmem %s3, %s212
      %p215 = scmp.eq.s32.totalorder %s19, 0
      // Predicated region
      $region33: #{discriminator_forward.12} parent=31 // pred_check
        %p216 = pneg %p215
      $region34: #{discriminator_forward.12} parent=31 // pred_check_branch
        %218 = sbr.rel (%p216) target = $region36
      $region35: #{discriminator_forward.12} parent=31 // pred_region
        %vm219 = vcmask 25600
        %220 = vst.msk [vmem:[#allocation2] sm:$0x3] %vm219, 0.0
      $region36: #{discriminator_forward.12} parent=31 // pred_fallthru
        _
      %v221 = vld [vmem:[#allocation2] sm:$0x3]
      %v222 = vld [vmem:[%s203] sm:$0xff]
      %v223 = vld [vmem:[%s203 + $0x8] sm:$0x1]
      %v224 = vld [vmem:[%s209] sm:$0xf]
      %v225 = vld [vmem:[%s209 + $0x4] sm:$0xf]
      %v226 = vld [vmem:[%s209 + $0x8] sm:$0xf]
      %v227 = vld [vmem:[%s209 + $0xc] sm:$0xf]
      %v228 = vld [vmem:[%s209 + $0x10] sm:$0xf]
      %v229 = vld [vmem:[%s209 + $0x14] sm:$0xf]
      %v230 = vld [vmem:[%s209 + $0x18] sm:$0xf]
      %v231 = vld [vmem:[%s209 + $0x1c] sm:$0xf]
      %v232 = vld [vmem:[%s209 + $0x20] sm:$0xf]
      %v233 = vld [vmem:[%s209 + $0x24] sm:$0xf]
      %v234 = vld [vmem:[%s209 + $0x28] sm:$0xf]
      %v235 = vld [vmem:[%s209 + $0x2c] sm:$0xf]
      %v236 = vld [vmem:[%s209 + $0x30] sm:$0xf]
      %v237 = vld [vmem:[%s209 + $0x34] sm:$0xf]
      %v238 = vld [vmem:[%s209 + $0x38] sm:$0xf]
      %v239 = vld [vmem:[%s209 + $0x3c] sm:$0xf]
      %v240 = vld [vmem:[%s209 + $0x40] sm:$0xf]
      %v241 = vld [vmem:[%s209 + $0x44] sm:$0xf]
      %v242 = vld [vmem:[%s209 + $0x48] sm:$0xf]
      %v243 = vld [vmem:[%s209 + $0x4c] sm:$0xf]
      %v244 = vld [vmem:[%s209 + $0x50] sm:$0xf]
      %v245 = vld [vmem:[%s209 + $0x54] sm:$0xf]
      %v246 = vld [vmem:[%s209 + $0x58] sm:$0xf]
      %v247 = vld [vmem:[%s209 + $0x5c] sm:$0xf]
      %v248 = vld [vmem:[%s209 + $0x60] sm:$0xf]
      %v249 = vld [vmem:[%s209 + $0x64] sm:$0xf]
      %v250 = vld [vmem:[%s209 + $0x68] sm:$0xf]
      %v251 = vld [vmem:[%s209 + $0x6c] sm:$0xf]
      %v252 = vld [vmem:[%s209 + $0x70] sm:$0xf]
      %v253 = vld [vmem:[%s209 + $0x74] sm:$0xf]
      %v254 = vld [vmem:[%s209 + $0x78] sm:$0xf]
      %v255 = vld [vmem:[%s209 + $0x7c] sm:$0xf]
      %v256 = vld [vmem:[%s209 + $0x80] sm:$0xf]
      %v257 = vld [vmem:[%s209 + $0x84] sm:$0xf]
      %v258 = vld [vmem:[%s209 + $0x88] sm:$0xf]
      %v259 = vld [vmem:[%s209 + $0x8c] sm:$0xf]
      %v260 = vld [vmem:[%s209 + $0x90] sm:$0xf]
      %v261 = vld [vmem:[%s209 + $0x94] sm:$0xf]
      %v262 = vld [vmem:[%s209 + $0x98] sm:$0xf]
      %v263 = vld [vmem:[%s209 + $0x9c] sm:$0xf]
      %v264 = vld [vmem:[%s209 + $0xa0] sm:$0xf]
      %v265 = vld [vmem:[%s209 + $0xa4] sm:$0xf]
      %v266 = vld [vmem:[%s209 + $0xa8] sm:$0xf]
      %v267 = vld [vmem:[%s209 + $0xac] sm:$0xf]
      %v268 = vld [vmem:[%s209 + $0xb0] sm:$0xf]
      %v269 = vld [vmem:[%s209 + $0xb4] sm:$0xf]
      %v270 = vld [vmem:[%s209 + $0xb8] sm:$0xf]
      %v271 = vld [vmem:[%s209 + $0xbc] sm:$0xf]
      %v272 = vld [vmem:[%s209 + $0xc0] sm:$0xf]
      %v273 = vld [vmem:[%s209 + $0xc4] sm:$0xf]
      %v274 = vld [vmem:[%s209 + $0xc8] sm:$0xf]
      %v275 = vld [vmem:[%s209 + $0xcc] sm:$0xf]
      %v276 = vld [vmem:[%s209 + $0xd0] sm:$0xf]
      %v277 = vld [vmem:[%s209 + $0xd4] sm:$0xf]
      %v278 = vld [vmem:[%s209 + $0xd8] sm:$0xf]
      %v279 = vld [vmem:[%s209 + $0xdc] sm:$0xf]
      %v280 = vld [vmem:[%s209 + $0xe0] sm:$0xf]
      %v281 = vld [vmem:[%s209 + $0xe4] sm:$0xf]
      %v282 = vld [vmem:[%s209 + $0xe8] sm:$0xf]
      %v283 = vld [vmem:[%s209 + $0xec] sm:$0xf]
      %v284 = vld [vmem:[%s209 + $0xf0] sm:$0xf]
      %v285 = vld [vmem:[%s209 + $0xf4] sm:$0xf]
      %v286 = vld [vmem:[%s209 + $0xf8] sm:$0xf]
      %v287 = vld [vmem:[%s209 + $0xfc] sm:$0xf]
      %v288 = vld [vmem:[%s209 + $0x100] sm:$0xf]
      %v289 = vld [vmem:[%s209 + $0x104] sm:$0xf]
      %v290 = vld [vmem:[%s209 + $0x108] sm:$0xf]
      %v291 = vld [vmem:[%s209 + $0x10c] sm:$0xf]
      %v292 = vld [vmem:[%s209 + $0x110] sm:$0xf]
      %v293 = vld [vmem:[%s209 + $0x114] sm:$0xf]
      %v294 = vld [vmem:[%s209 + $0x118] sm:$0xf]
      %v295 = vld [vmem:[%s209 + $0x11c] sm:$0xf]
      %v296 = vld [vmem:[%s209 + $0x120] sm:$0xf]
      %v297 = vld [vmem:[%s209 + $0x124] sm:$0xf]
      %v298 = vld [vmem:[%s209 + $0x128] sm:$0xf]
      %v299 = vld [vmem:[%s209 + $0x12c] sm:$0xf]
      %v300 = vld [vmem:[%s209 + $0x130] sm:$0xf]
      %v301 = vld [vmem:[%s209 + $0x134] sm:$0xf]
      %v302 = vld [vmem:[%s209 + $0x138] sm:$0xf]
      %v303 = vld [vmem:[%s209 + $0x13c] sm:$0xf]
      %v304 = vld [vmem:[%s209 + $0x140] sm:$0xf]
      %v305 = vld [vmem:[%s209 + $0x144] sm:$0xf]
      %v306 = vld [vmem:[%s209 + $0x148] sm:$0xf]
      %v307 = vld [vmem:[%s209 + $0x14c] sm:$0xf]
      %v308 = vld [vmem:[%s209 + $0x150] sm:$0xf]
      %v309 = vld [vmem:[%s209 + $0x154] sm:$0xf]
      %v310 = vld [vmem:[%s209 + $0x158] sm:$0xf]
      %v311 = vld [vmem:[%s209 + $0x15c] sm:$0xf]
      %v312 = vld [vmem:[%s209 + $0x160] sm:$0xf]
      %v313 = vld [vmem:[%s209 + $0x164] sm:$0xf]
      %v314 = vld [vmem:[%s209 + $0x168] sm:$0xf]
      %v315 = vld [vmem:[%s209 + $0x16c] sm:$0xf]
      %v316 = vld [vmem:[%s209 + $0x170] sm:$0xf]
      %v317 = vld [vmem:[%s209 + $0x174] sm:$0xf]
      %v318 = vld [vmem:[%s209 + $0x178] sm:$0xf]
      %v319 = vld [vmem:[%s209 + $0x17c] sm:$0xf]
      %v320 = vld [vmem:[%s209 + $0x180] sm:$0xf]
      %v321 = vld [vmem:[%s209 + $0x184] sm:$0xf]
      %v322 = vld [vmem:[%s209 + $0x188] sm:$0xf]
      %v323 = vld [vmem:[%s209 + $0x18c] sm:$0xf]
      %v324 = vld [vmem:[%s209 + $0x190] sm:$0xf]
      %v325 = vld [vmem:[%s209 + $0x194] sm:$0xf]
      %v326 = vld [vmem:[%s209 + $0x198] sm:$0xf]
      %v327 = vld [vmem:[%s209 + $0x19c] sm:$0xf]
      %v328 = vld [vmem:[%s209 + $0x1a0] sm:$0xf]
      %v329 = vld [vmem:[%s209 + $0x1a4] sm:$0xf]
      %v330 = vld [vmem:[%s209 + $0x1a8] sm:$0xf]
      %v331 = vld [vmem:[%s209 + $0x1ac] sm:$0xf]
      %v332 = vld [vmem:[%s209 + $0x1b0] sm:$0xf]
      %v333 = vld [vmem:[%s209 + $0x1b4] sm:$0xf]
      %v334 = vld [vmem:[%s209 + $0x1b8] sm:$0xf]
      %v335 = vld [vmem:[%s209 + $0x1bc] sm:$0xf]
      %v336 = vld [vmem:[%s209 + $0x1c0] sm:$0xf]
      %v337 = vld [vmem:[%s209 + $0x1c4] sm:$0xf]
      %v338 = vld [vmem:[%s209 + $0x1c8] sm:$0xf]
      %v339 = vld [vmem:[%s209 + $0x1cc] sm:$0xf]
      %v340 = vld [vmem:[%s209 + $0x1d0] sm:$0xf]
      %v341 = vld [vmem:[%s209 + $0x1d4] sm:$0xf]
      %v342 = vld [vmem:[%s209 + $0x1d8] sm:$0xf]
      %v343 = vld [vmem:[%s209 + $0x1dc] sm:$0xf]
      %v344 = vld [vmem:[%s209 + $0x1e0] sm:$0xf]
      %v345 = vld [vmem:[%s209 + $0x1e4] sm:$0xf]
      %v346 = vld [vmem:[%s209 + $0x1e8] sm:$0xf]
      %v347 = vld [vmem:[%s209 + $0x1ec] sm:$0xf]
      %v348 = vld [vmem:[%s209 + $0x1f0] sm:$0xf]
      %v349 = vld [vmem:[%s209 + $0x1f4] sm:$0xf]
      %v350 = vld [vmem:[%s209 + $0x1f8] sm:$0xf]
      %v351 = vld [vmem:[%s209 + $0x1fc] sm:$0xf]
      %v352 = vld [vmem:[%s209 + $0x200] sm:$0xf]
      %v353 = vld [vmem:[%s209 + $0x204] sm:$0xf]
      %v354 = vld [vmem:[%s209 + $0x208] sm:$0xf]
      %v355 = vld [vmem:[%s209 + $0x20c] sm:$0xf]
      %v356 = vld [vmem:[%s209 + $0x210] sm:$0xf]
      %v357 = vld [vmem:[%s209 + $0x214] sm:$0xf]
      %v358 = vld [vmem:[%s209 + $0x218] sm:$0xf]
      %v359 = vld [vmem:[%s209 + $0x21c] sm:$0xf]
      %v360 = vld [vmem:[%s209 + $0x220] sm:$0xf]
      %v361 = vld [vmem:[%s209 + $0x224] sm:$0xf]
      %v362 = vld [vmem:[%s209 + $0x228] sm:$0xf]
      %v363 = vld [vmem:[%s209 + $0x22c] sm:$0xf]
      %v364 = vld [vmem:[%s209 + $0x230] sm:$0xf]
      %v365 = vld [vmem:[%s209 + $0x234] sm:$0xf]
      %v366 = vld [vmem:[%s209 + $0x238] sm:$0xf]
      %v367 = vld [vmem:[%s209 + $0x23c] sm:$0xf]
      %v370 = vcombine.high %v222, %v222
      %v372 = vunpack.c.l.s4 1966171168
      %v373 = vunpack.c.0.s8 %v372
      %v374 = vlaneseq
      %v375 = vshrl.u32 %v374, 7
      %v376 = vsub.s32 %v373, %v375
      %v377 = vrot.slane %v222, %v376
      %v379 = vunpack.c.l.s4 1966171168
      %v380 = vunpack.c.0.s8 %v379
      %v381 = vlaneseq
      %v382 = vshrl.u32 %v381, 7
      %v383 = vsub.s32 %v380, %v382
      %v384 = vrot.slane %v370, %v383
      %v385 = vcombine.high %v377, %v377
      %v386 = vcombine.high %v384, %v384
      %v388 = vunpack.c.l.s4 1966171168
      %v389 = vunpack.c.0.s8 %v388
      %v390 = vlaneseq
      %v391 = vshrl.u32 %v390, 7
      %v392 = vsub.s32 %v389, %v391
      %v393 = vrot.slane %v377, %v392
      %v395 = vunpack.c.l.s4 1966171168
      %v396 = vunpack.c.0.s8 %v395
      %v397 = vlaneseq
      %v398 = vshrl.u32 %v397, 7
      %v399 = vsub.s32 %v396, %v398
      %v400 = vrot.slane %v384, %v399
      %v402 = vunpack.c.l.s4 1966171168
      %v403 = vunpack.c.0.s8 %v402
      %v404 = vlaneseq
      %v405 = vshrl.u32 %v404, 7
      %v406 = vsub.s32 %v403, %v405
      %v407 = vrot.slane %v385, %v406
      %v409 = vunpack.c.l.s4 1966171168
      %v410 = vunpack.c.0.s8 %v409
      %v411 = vlaneseq
      %v412 = vshrl.u32 %v411, 7
      %v413 = vsub.s32 %v410, %v412
      %v414 = vrot.slane %v386, %v413
      %v415 = vcombine.high %v393, %v393
      %v416 = vcombine.high %v400, %v400
      %v417 = vcombine.high %v407, %v407
      %v418 = vcombine.high %v414, %v414
      %v420 = vunpack.c.l.s4 1966171168
      %v421 = vunpack.c.0.s8 %v420
      %v422 = vlaneseq
      %v423 = vshrl.u32 %v422, 7
      %v424 = vsub.s32 %v421, %v423
      %v425 = vrot.slane %v223, %v424
      %v427 = vunpack.c.l.s4 1966171168
      %v428 = vunpack.c.0.s8 %v427
      %v429 = vlaneseq
      %v430 = vshrl.u32 %v429, 7
      %v431 = vsub.s32 %v428, %v430
      %v432 = vrot.slane %v425, %v431
      %v586 = vunpack.c.l.b16 %v224
      %v587 = vunpack.c.l.b16 %v225
      %v588 = vunpack.c.l.b16 %v226
      %v589 = vunpack.c.l.b16 %v227
      %v590 = vunpack.c.l.b16 %v228
      %v591 = vunpack.c.l.b16 %v229
      %v592 = vunpack.c.l.b16 %v230
      %v593 = vunpack.c.l.b16 %v231
      %v594 = vunpack.c.l.b16 %v232
      %v595 = vunpack.c.l.b16 %v233
      %v596 = vunpack.c.l.b16 %v234
      %v597 = vunpack.c.l.b16 %v235
      %v598 = vunpack.c.l.b16 %v236
      %v599 = vunpack.c.l.b16 %v237
      %v600 = vunpack.c.l.b16 %v238
      %v601 = vunpack.c.l.b16 %v239
      %v602 = vunpack.c.l.b16 %v240
      %v603 = vunpack.c.l.b16 %v241
      %v604 = vunpack.c.l.b16 %v242
      %v605 = vunpack.c.l.b16 %v243
      %v606 = vunpack.c.l.b16 %v244
      %v607 = vunpack.c.l.b16 %v245
      %v608 = vunpack.c.l.b16 %v246
      %v609 = vunpack.c.l.b16 %v247
      %v610 = vunpack.c.l.b16 %v248
      %v611 = vunpack.c.l.b16 %v249
      %v612 = vunpack.c.l.b16 %v250
      %v613 = vunpack.c.l.b16 %v251
      %v614 = vunpack.c.l.b16 %v252
      %v615 = vunpack.c.l.b16 %v253
      %v616 = vunpack.c.l.b16 %v254
      %v617 = vunpack.c.l.b16 %v255
      %v618 = vunpack.c.l.b16 %v256
      %v619 = vunpack.c.l.b16 %v257
      %v620 = vunpack.c.l.b16 %v258
      %v621 = vunpack.c.l.b16 %v259
      %v622 = vunpack.c.l.b16 %v260
      %v623 = vunpack.c.l.b16 %v261
      %v624 = vunpack.c.l.b16 %v262
      %v625 = vunpack.c.l.b16 %v263
      %v626 = vunpack.c.l.b16 %v264
      %v627 = vunpack.c.l.b16 %v265
      %v628 = vunpack.c.l.b16 %v266
      %v629 = vunpack.c.l.b16 %v267
      %v630 = vunpack.c.l.b16 %v268
      %v631 = vunpack.c.l.b16 %v269
      %v632 = vunpack.c.l.b16 %v270
      %v633 = vunpack.c.l.b16 %v271
      %v634 = vunpack.c.l.b16 %v272
      %v635 = vunpack.c.l.b16 %v273
      %v636 = vunpack.c.l.b16 %v274
      %v637 = vunpack.c.l.b16 %v275
      %v638 = vunpack.c.l.b16 %v276
      %v639 = vunpack.c.l.b16 %v277
      %v640 = vunpack.c.l.b16 %v278
      %v641 = vunpack.c.l.b16 %v279
      %v642 = vunpack.c.l.b16 %v280
      %v643 = vunpack.c.l.b16 %v281
      %v644 = vunpack.c.l.b16 %v282
      %v645 = vunpack.c.l.b16 %v283
      %v646 = vunpack.c.l.b16 %v284
      %v647 = vunpack.c.l.b16 %v285
      %v648 = vunpack.c.l.b16 %v286
      %v649 = vunpack.c.l.b16 %v287
      %v650 = vunpack.c.l.b16 %v288
      %v651 = vunpack.c.l.b16 %v289
      %v652 = vunpack.c.l.b16 %v290
      %v653 = vunpack.c.l.b16 %v291
      %v654 = vunpack.c.l.b16 %v292
      %v655 = vunpack.c.l.b16 %v293
      %v656 = vunpack.c.l.b16 %v294
      %v657 = vunpack.c.l.b16 %v295
      %v658 = vunpack.c.l.b16 %v296
      %v659 = vunpack.c.l.b16 %v297
      %v660 = vunpack.c.l.b16 %v298
      %v661 = vunpack.c.l.b16 %v299
      %v662 = vunpack.c.l.b16 %v300
      %v663 = vunpack.c.l.b16 %v301
      %v664 = vunpack.c.l.b16 %v302
      %v665 = vunpack.c.l.b16 %v303
      %v666 = vunpack.c.l.b16 %v304
      %v667 = vunpack.c.l.b16 %v305
      %v668 = vunpack.c.l.b16 %v306
      %v669 = vunpack.c.l.b16 %v307
      %v670 = vunpack.c.l.b16 %v308
      %v671 = vunpack.c.l.b16 %v309
      %v672 = vunpack.c.l.b16 %v310
      %v673 = vunpack.c.l.b16 %v311
      %v674 = vunpack.c.l.b16 %v312
      %v675 = vunpack.c.l.b16 %v313
      %v676 = vunpack.c.l.b16 %v314
      %v677 = vunpack.c.l.b16 %v315
      %v678 = vunpack.c.l.b16 %v316
      %v679 = vunpack.c.l.b16 %v317
      %v680 = vunpack.c.l.b16 %v318
      %v681 = vunpack.c.l.b16 %v319
      %v682 = vunpack.c.l.b16 %v320
      %v683 = vunpack.c.l.b16 %v321
      %v684 = vunpack.c.l.b16 %v322
      %v685 = vunpack.c.l.b16 %v323
      %v686 = vunpack.c.l.b16 %v324
      %v687 = vunpack.c.l.b16 %v325
      %v688 = vunpack.c.l.b16 %v326
      %v689 = vunpack.c.l.b16 %v327
      %v690 = vunpack.c.l.b16 %v328
      %v691 = vunpack.c.l.b16 %v329
      %v692 = vunpack.c.l.b16 %v330
      %v693 = vunpack.c.l.b16 %v331
      %v694 = vunpack.c.l.b16 %v332
      %v695 = vunpack.c.l.b16 %v333
      %v696 = vunpack.c.l.b16 %v334
      %v697 = vunpack.c.l.b16 %v335
      %v698 = vunpack.c.l.b16 %v336
      %v699 = vunpack.c.l.b16 %v337
      %v700 = vunpack.c.l.b16 %v338
      %v701 = vunpack.c.l.b16 %v339
      %v702 = vunpack.c.l.b16 %v340
      %v703 = vunpack.c.l.b16 %v341
      %v704 = vunpack.c.l.b16 %v342
      %v705 = vunpack.c.l.b16 %v343
      %v706 = vunpack.c.l.b16 %v344
      %v707 = vunpack.c.l.b16 %v345
      %v708 = vunpack.c.l.b16 %v346
      %v709 = vunpack.c.l.b16 %v347
      %v710 = vunpack.c.l.b16 %v348
      %v711 = vunpack.c.l.b16 %v349
      %v712 = vunpack.c.l.b16 %v350
      %v713 = vunpack.c.l.b16 %v351
      %v714 = vunpack.c.l.b16 %v352
      %v715 = vunpack.c.l.b16 %v353
      %v716 = vunpack.c.l.b16 %v354
      %v717 = vunpack.c.l.b16 %v355
      %v718 = vunpack.c.l.b16 %v356
      %v719 = vunpack.c.l.b16 %v357
      %v720 = vunpack.c.l.b16 %v358
      %v721 = vunpack.c.l.b16 %v359
      %v722 = vunpack.c.l.b16 %v360
      %v723 = vunpack.c.l.b16 %v361
      %v724 = vunpack.c.l.b16 %v362
      %v725 = vunpack.c.l.b16 %v363
      %v726 = vunpack.c.l.b16 %v364
      %v727 = vunpack.c.l.b16 %v365
      %v728 = vunpack.c.l.b16 %v366
      %v729 = vunpack.c.l.b16 %v367
      %v730 = vpack.c.b16 %v587, %v586
      %v731 = vpack.c.b16 %v589, %v588
      %v732 = vpack.c.b16 %v591, %v590
      %v733 = vpack.c.b16 %v593, %v592
      %v734 = vpack.c.b16 %v595, %v594
      %v735 = vpack.c.b16 %v597, %v596
      %v736 = vpack.c.b16 %v599, %v598
      %v737 = vpack.c.b16 %v601, %v600
      %v738 = vpack.c.b16 %v603, %v602
      %v739 = vpack.c.b16 %v605, %v604
      %v740 = vpack.c.b16 %v607, %v606
      %v741 = vpack.c.b16 %v609, %v608
      %v742 = vpack.c.b16 %v611, %v610
      %v743 = vpack.c.b16 %v613, %v612
      %v744 = vpack.c.b16 %v615, %v614
      %v745 = vpack.c.b16 %v617, %v616
      %v746 = vpack.c.b16 %v619, %v618
      %v747 = vpack.c.b16 %v621, %v620
      %v748 = vpack.c.b16 %v623, %v622
      %v749 = vpack.c.b16 %v625, %v624
      %v750 = vpack.c.b16 %v627, %v626
      %v751 = vpack.c.b16 %v629, %v628
      %v752 = vpack.c.b16 %v631, %v630
      %v753 = vpack.c.b16 %v633, %v632
      %v754 = vpack.c.b16 %v635, %v634
      %v755 = vpack.c.b16 %v637, %v636
      %v756 = vpack.c.b16 %v639, %v638
      %v757 = vpack.c.b16 %v641, %v640
      %v758 = vpack.c.b16 %v643, %v642
      %v759 = vpack.c.b16 %v645, %v644
      %v760 = vpack.c.b16 %v647, %v646
      %v761 = vpack.c.b16 %v649, %v648
      %v762 = vpack.c.b16 %v651, %v650
      %v763 = vpack.c.b16 %v653, %v652
      %v764 = vpack.c.b16 %v655, %v654
      %v765 = vpack.c.b16 %v657, %v656
      %v766 = vpack.c.b16 %v659, %v658
      %v767 = vpack.c.b16 %v661, %v660
      %v768 = vpack.c.b16 %v663, %v662
      %v769 = vpack.c.b16 %v665, %v664
      %v770 = vpack.c.b16 %v667, %v666
      %v771 = vpack.c.b16 %v669, %v668
      %v772 = vpack.c.b16 %v671, %v670
      %v773 = vpack.c.b16 %v673, %v672
      %v774 = vpack.c.b16 %v675, %v674
      %v775 = vpack.c.b16 %v677, %v676
      %v776 = vpack.c.b16 %v679, %v678
      %v777 = vpack.c.b16 %v681, %v680
      %v778 = vpack.c.b16 %v683, %v682
      %v779 = vpack.c.b16 %v685, %v684
      %v780 = vpack.c.b16 %v687, %v686
      %v781 = vpack.c.b16 %v689, %v688
      %v782 = vpack.c.b16 %v691, %v690
      %v783 = vpack.c.b16 %v693, %v692
      %v784 = vpack.c.b16 %v695, %v694
      %v785 = vpack.c.b16 %v697, %v696
      %v786 = vpack.c.b16 %v699, %v698
      %v787 = vpack.c.b16 %v701, %v700
      %v788 = vpack.c.b16 %v703, %v702
      %v789 = vpack.c.b16 %v705, %v704
      %v790 = vpack.c.b16 %v707, %v706
      %v791 = vpack.c.b16 %v709, %v708
      %v792 = vpack.c.b16 %v711, %v710
      %v793 = vpack.c.b16 %v713, %v712
      %v794 = vpack.c.b16 %v715, %v714
      %v795 = vpack.c.b16 %v717, %v716
      %v796 = vpack.c.b16 %v719, %v718
      %v797 = vpack.c.b16 %v721, %v720
      %v798 = vpack.c.b16 %v723, %v722
      %v799 = vpack.c.b16 %v725, %v724
      %v800 = vpack.c.b16 %v727, %v726
      %v801 = vpack.c.b16 %v729, %v728
      %874 = vmatprep.subr.bf16.mxu0 0
      %875 = vmatpush1.bf16.msra.mxu0 %v730
      %876 = vmatprep.subr.bf16.mxu0 0
      %877 = vmatpush1.bf16.msra.mxu0 %v731
      %878 = vmatprep.subr.bf16.mxu0 0
      %879 = vmatpush1.bf16.msra.mxu0 %v732
      %880 = vmatprep.subr.bf16.mxu0 0
      %881 = vmatpush1.bf16.msra.mxu0 %v733
      %882 = vmatprep.subr.bf16.mxu0 0
      %883 = vmatpush1.bf16.msra.mxu0 %v734
      %884 = vmatprep.subr.bf16.mxu0 0
      %885 = vmatpush1.bf16.msra.mxu0 %v735
      %886 = vmatprep.subr.bf16.mxu0 0
      %887 = vmatpush1.bf16.msra.mxu0 %v736
      %888 = vmatprep.subr.bf16.mxu0 0
      %889 = vmatpush1.bf16.msra.mxu0 %v737
      %890 = vmatprep.subr.bf16.mxu0 0
      %891 = vmatpush1.bf16.msra.mxu0 %v738
      %892 = vmatprep.subr.bf16.mxu0 0
      %893 = vmatpush1.bf16.msra.mxu0 %v739
      %894 = vmatprep.subr.bf16.mxu0 0
      %895 = vmatpush1.bf16.msra.mxu0 %v740
      %896 = vmatprep.subr.bf16.mxu0 0
      %897 = vmatpush1.bf16.msra.mxu0 %v741
      %898 = vmatprep.subr.bf16.mxu0 0
      %899 = vmatpush1.bf16.msra.mxu0 %v742
      %900 = vmatprep.subr.bf16.mxu0 0
      %901 = vmatpush1.bf16.msra.mxu0 %v743
      %902 = vmatprep.subr.bf16.mxu0 0
      %903 = vmatpush1.bf16.msra.mxu0 %v744
      %904 = vmatprep.subr.bf16.mxu0 0
      %905 = vmatpush1.bf16.msra.mxu0 %v745
      %906 = vmatprep.mubr.bf16.mxu0 %v407
      %907 = vmatmul.mubr.bf16.gmra.mrb[0].mxu0 %v393
      %v908 = vpop.f32.mrb[0].mxu0
      %v909 = vadd.f32 0.0, %v908
      %v910 = vpop.f32.mrb[0].mxu0
      %v911 = vpop.f32.mrb[0].mxu0
      %v912 = vpop.f32.mrb[0].mxu0
      %913 = vdwg.mxu0
      %914 = vmatprep.subr.bf16.mxu0 0
      %915 = vmatpush1.bf16.msra.mxu0 %v746
      %916 = vmatprep.subr.bf16.mxu0 0
      %917 = vmatpush1.bf16.msra.mxu0 %v747
      %918 = vmatprep.subr.bf16.mxu0 0
      %919 = vmatpush1.bf16.msra.mxu0 %v748
      %920 = vmatprep.subr.bf16.mxu0 0
      %921 = vmatpush1.bf16.msra.mxu0 %v749
      %922 = vmatprep.subr.bf16.mxu0 0
      %923 = vmatpush1.bf16.msra.mxu0 %v750
      %924 = vmatprep.subr.bf16.mxu0 0
      %925 = vmatpush1.bf16.msra.mxu0 %v751
      %926 = vmatprep.subr.bf16.mxu0 0
      %927 = vmatpush1.bf16.msra.mxu0 %v752
      %928 = vmatprep.subr.bf16.mxu0 0
      %929 = vmatpush1.bf16.msra.mxu0 %v753
      %930 = vmatprep.subr.bf16.mxu0 0
      %931 = vmatpush1.bf16.msra.mxu0 %v754
      %932 = vmatprep.subr.bf16.mxu0 0
      %933 = vmatpush1.bf16.msra.mxu0 %v755
      %934 = vmatprep.subr.bf16.mxu0 0
      %935 = vmatpush1.bf16.msra.mxu0 %v756
      %936 = vmatprep.subr.bf16.mxu0 0
      %937 = vmatpush1.bf16.msra.mxu0 %v757
      %938 = vmatprep.subr.bf16.mxu0 0
      %939 = vmatpush1.bf16.msra.mxu0 %v758
      %940 = vmatprep.subr.bf16.mxu0 0
      %941 = vmatpush1.bf16.msra.mxu0 %v759
      %942 = vmatprep.subr.bf16.mxu0 0
      %943 = vmatpush1.bf16.msra.mxu0 %v760
      %944 = vmatprep.subr.bf16.mxu0 0
      %945 = vmatpush1.bf16.msra.mxu0 %v761
      %946 = vmatprep.mubr.bf16.mxu0 %v417
      %947 = vmatmul.mubr.bf16.gmra.mrb[0].mxu0 %v415
      %v948 = vpop.f32.mrb[0].mxu0
      %v949 = vadd.f32 %v909, %v948
      %v950 = vpop.f32.mrb[0].mxu0
      %v951 = vpop.f32.mrb[0].mxu0
      %v952 = vpop.f32.mrb[0].mxu0
      %953 = vdwg.mxu0
      %954 = vmatprep.subr.bf16.mxu0 0
      %955 = vmatpush1.bf16.msra.mxu0 %v762
      %956 = vmatprep.subr.bf16.mxu0 0
      %957 = vmatpush1.bf16.msra.mxu0 %v763
      %958 = vmatprep.subr.bf16.mxu0 0
      %959 = vmatpush1.bf16.msra.mxu0 %v764
      %960 = vmatprep.subr.bf16.mxu0 0
      %961 = vmatpush1.bf16.msra.mxu0 %v765
      %962 = vmatprep.subr.bf16.mxu0 0
      %963 = vmatpush1.bf16.msra.mxu0 %v766
      %964 = vmatprep.subr.bf16.mxu0 0
      %965 = vmatpush1.bf16.msra.mxu0 %v767
      %966 = vmatprep.subr.bf16.mxu0 0
      %967 = vmatpush1.bf16.msra.mxu0 %v768
      %968 = vmatprep.subr.bf16.mxu0 0
      %969 = vmatpush1.bf16.msra.mxu0 %v769
      %970 = vmatprep.subr.bf16.mxu0 0
      %971 = vmatpush1.bf16.msra.mxu0 %v770
      %972 = vmatprep.subr.bf16.mxu0 0
      %973 = vmatpush1.bf16.msra.mxu0 %v771
      %974 = vmatprep.subr.bf16.mxu0 0
      %975 = vmatpush1.bf16.msra.mxu0 %v772
      %976 = vmatprep.subr.bf16.mxu0 0
      %977 = vmatpush1.bf16.msra.mxu0 %v773
      %978 = vmatprep.subr.bf16.mxu0 0
      %979 = vmatpush1.bf16.msra.mxu0 %v774
      %980 = vmatprep.subr.bf16.mxu0 0
      %981 = vmatpush1.bf16.msra.mxu0 %v775
      %982 = vmatprep.subr.bf16.mxu0 0
      %983 = vmatpush1.bf16.msra.mxu0 %v776
      %984 = vmatprep.subr.bf16.mxu0 0
      %985 = vmatpush1.bf16.msra.mxu0 %v777
      %986 = vmatprep.mubr.bf16.mxu0 %v414
      %987 = vmatmul.mubr.bf16.gmra.mrb[0].mxu0 %v400
      %v988 = vpop.f32.mrb[0].mxu0
      %v989 = vadd.f32 %v949, %v988
      %v990 = vpop.f32.mrb[0].mxu0
      %v991 = vpop.f32.mrb[0].mxu0
      %v992 = vpop.f32.mrb[0].mxu0
      %993 = vdwg.mxu0
      %994 = vmatprep.subr.bf16.mxu0 0
      %995 = vmatpush1.bf16.msra.mxu0 %v778
      %996 = vmatprep.subr.bf16.mxu0 0
      %997 = vmatpush1.bf16.msra.mxu0 %v779
      %998 = vmatprep.subr.bf16.mxu0 0
      %999 = vmatpush1.bf16.msra.mxu0 %v780
      %1000 = vmatprep.subr.bf16.mxu0 0
      %1001 = vmatpush1.bf16.msra.mxu0 %v781
      %1002 = vmatprep.subr.bf16.mxu0 0
      %1003 = vmatpush1.bf16.msra.mxu0 %v782
      %1004 = vmatprep.subr.bf16.mxu0 0
      %1005 = vmatpush1.bf16.msra.mxu0 %v783
      %1006 = vmatprep.subr.bf16.mxu0 0
      %1007 = vmatpush1.bf16.msra.mxu0 %v784
      %1008 = vmatprep.subr.bf16.mxu0 0
      %1009 = vmatpush1.bf16.msra.mxu0 %v785
      %1010 = vmatprep.subr.bf16.mxu0 0
      %1011 = vmatpush1.bf16.msra.mxu0 %v786
      %1012 = vmatprep.subr.bf16.mxu0 0
      %1013 = vmatpush1.bf16.msra.mxu0 %v787
      %1014 = vmatprep.subr.bf16.mxu0 0
      %1015 = vmatpush1.bf16.msra.mxu0 %v788
      %1016 = vmatprep.subr.bf16.mxu0 0
      %1017 = vmatpush1.bf16.msra.mxu0 %v789
      %1018 = vmatprep.subr.bf16.mxu0 0
      %1019 = vmatpush1.bf16.msra.mxu0 %v790
      %1020 = vmatprep.subr.bf16.mxu0 0
      %1021 = vmatpush1.bf16.msra.mxu0 %v791
      %1022 = vmatprep.subr.bf16.mxu0 0
      %1023 = vmatpush1.bf16.msra.mxu0 %v792
      %1024 = vmatprep.subr.bf16.mxu0 0
      %1025 = vmatpush1.bf16.msra.mxu0 %v793
      %1026 = vmatprep.mubr.bf16.mxu0 %v418
      %1027 = vmatmul.mubr.bf16.gmra.mrb[0].mxu0 %v416
      %v1028 = vpop.f32.mrb[0].mxu0
      %v1029 = vadd.f32 %v989, %v1028
      %v1030 = vpop.f32.mrb[0].mxu0
      %v1031 = vpop.f32.mrb[0].mxu0
      %v1032 = vpop.f32.mrb[0].mxu0
      %1033 = vdwg.mxu0
      %1034 = vmatprep.subr.bf16.mxu0 0
      %1035 = vmatpush1.bf16.msra.mxu0 %v794
      %1036 = vmatprep.subr.bf16.mxu0 0
      %1037 = vmatpush1.bf16.msra.mxu0 %v795
      %1038 = vmatprep.subr.bf16.mxu0 0
      %1039 = vmatpush1.bf16.msra.mxu0 %v796
      %1040 = vmatprep.subr.bf16.mxu0 0
      %1041 = vmatpush1.bf16.msra.mxu0 %v797
      %1042 = vmatprep.subr.bf16.mxu0 0
      %1043 = vmatpush1.bf16.msra.mxu0 %v798
      %1044 = vmatprep.subr.bf16.mxu0 0
      %1045 = vmatpush1.bf16.msra.mxu0 %v799
      %1046 = vmatprep.subr.bf16.mxu0 0
      %1047 = vmatpush1.bf16.msra.mxu0 %v800
      %1048 = vmatprep.subr.bf16.mxu0 0
      %1049 = vmatpush1.bf16.msra.mxu0 %v801
      %1050 = vmatprep.subr.bf16.mxu0 0
      %1051 = vmatpush1.bf16.msra.mxu0 0
      %1052 = vmatprep.subr.bf16.mxu0 0
      %1053 = vmatpush1.bf16.msra.mxu0 0
      %1054 = vmatprep.subr.bf16.mxu0 0
      %1055 = vmatpush1.bf16.msra.mxu0 0
      %1056 = vmatprep.subr.bf16.mxu0 0
      %1057 = vmatpush1.bf16.msra.mxu0 0
      %1058 = vmatprep.subr.bf16.mxu0 0
      %1059 = vmatpush1.bf16.msra.mxu0 0
      %1060 = vmatprep.subr.bf16.mxu0 0
      %1061 = vmatpush1.bf16.msra.mxu0 0
      %1062 = vmatprep.subr.bf16.mxu0 0
      %1063 = vmatpush1.bf16.msra.mxu0 0
      %1064 = vmatprep.subr.bf16.mxu0 0
      %1065 = vmatpush1.bf16.msra.mxu0 0
      %1066 = vmatprep.mubr.bf16.mxu0 0
      %1067 = vmatmul.mubr.bf16.gmra.mrb[0].mxu0 %v432
      %v1068 = vpop.f32.mrb[0].mxu0
      %v1069 = vadd.f32 %v1029, %v1068
      %v1070 = vpop.f32.mrb[0].mxu0
      %v1071 = vpop.f32.mrb[0].mxu0
      %v1072 = vpop.f32.mrb[0].mxu0
      %1073 = vdwg.mxu0
      %v1074 = vadd.f32 %v221, %v1069
      %vm1075 = vcmask 25600
      %1076 = vst.msk [vmem:[#allocation2] sm:$0x3] %vm1075, %v1074
      %p1077 = scmp.eq.s32.totalorder %s19, 1
      // Predicated region
      $region37: #{discriminator_forward.12} parent=31 // pred_check
        %p1078 = pneg %p1077
      $region38: #{discriminator_forward.12} parent=31 // pred_check_branch
        %1080 = sbr.rel (%p1078) target = $region40
      $region39: #{discriminator_forward.12} parent=31 // pred_region
        %v1081 = vld [vmem:[#allocation2] sm:$0x3]
        %v1082 = vld [vmem:[%s2] sm:$0x1]
        %v1084 = vlaneseq
        %v1085 = vshrl.u32 %v1084, 7
        %v1086 = vsub.s32 0, %v1085
        %v1087 = vrot.slane %v1082, %v1086
        %v1089 = vadd.f32 %v1081, %v1087
        %vm1090 = vcmp.ge.f32.partialorder %v1089, 0.0
        %v1091 = vmul.f32 %v1089, 0.01
        %v1092 = vsel %vm1090, %v1089, %v1091
        %v1093 = vpack.c.bf16 %v1092, %v1092
        %vm1094 = vcmask 24576
        %1095 = vst.msk [vmem:[%s213] sm:$0x1] %vm1094, %v1093
      $region40: #{discriminator_forward.12} parent=31 // pred_fallthru
        _
      %p1096 = scmp.lt.s32.totalorder %s18, 0
      %s1097 = scalar_select %p1096, %s18, 0
      %s1098 = scalar_lea.vmem %s3, %s1097
      // Predicated region
      $region41: #{discriminator_forward.12} parent=31 // pred_check
        %p1099 = pneg %p119
      $region42: #{discriminator_forward.12} parent=31 // pred_check_branch
        %1101 = sbr.rel (%p1099) target = $region44
      $region43: #{discriminator_forward.12} parent=31 // pred_region
        _
      $region44: #{discriminator_forward.12} parent=31 // pred_fallthru
        _
      // Predicated region
      $region45: #{discriminator_forward.12} parent=31 // pred_check
        %p1102 = pneg %p119
      $region46: #{discriminator_forward.12} parent=31 // pred_check_branch
        %1104 = sbr.rel (%p1102) target = $region48
      $region47: #{discriminator_forward.12} parent=31 // pred_region
        %p1105 = scmp.lt.s32.totalorder %s18, 0
        %s1106 = scalar_select %p1105, %s18, 0
        %s1107 = scalar_lea.vmem %s3, %s1106
      $region48: #{discriminator_forward.12} parent=31 // pred_fallthru
        _
    $region32: #{discriminator_forward.12} parent=5 // pred_fallthru
      _
    %p1108 = scmp.le.s32.totalorder 2, %s9
    // Predicated region
    $region49: #{discriminator_forward.12} parent=5 // pred_check
      %p1109 = pneg %p1108
    $region50: #{discriminator_forward.12} parent=5 // pred_check_branch
      %1111 = sbr.rel (%p1109) target = $region52
    $region51: #{discriminator_forward.12} parent=5 // pred_region
      %s1112 = ssub.s32 %s9, 2
    $region52: #{discriminator_forward.12} parent=5 // pred_fallthru
      _
  $region6: #{discriminator_forward.12} parent=0 // loop_footer
    %s13 = sadd.s32 1, %s9
  $region7: #{discriminator_forward.12} parent=0 // loop_footer_branch
    %8 = sbr.rel target = $region3
  $region8: #{discriminator_forward.12} parent=0 // loop_exit
    _

</llo_original>
